<compile_context>
chip_gen: v7x
topology: tpu7x:2x2x1
jax: 0.10.0
libtpu: 0.0.40
codegen_flags: <defaults>
</compile_context>

<pallas_src>
import math
import functools

import jax
import jax.numpy as jnp
from jax import lax
from jax.experimental import pallas as pl
from jax.experimental.pallas import tpu as pltpu

LANE = 128
SUBLANE = 8


# ----------------------------------------------------------------------------
# helpers
# ----------------------------------------------------------------------------
def _round_up(x, m):
    return (x + m - 1) // m * m


def _pick_time_tile(T):
    for c in (16, 8, 4, 2):
        if T % c == 0:
            return c
    return 1


def _pick_batch_tile(Bp):
    # Prefer >=2 batch tiles (lets the "parallel" axis shard across TensorCores).
    for c in (256, 128, 64, 32, 16, 8):
        if Bp % c == 0 and Bp // c >= 2:
            return c
    return Bp


def _lstm_cell_step(gi_t, h_prev, c_prev, w_hh, Hp):
    """One LSTM cell update; gi_t already contains x_t @ W_ih + b_ih + b_hh."""
    gates = gi_t + jnp.dot(h_prev, w_hh, preferred_element_type=jnp.float32)
    i = jax.nn.sigmoid(gates[:, 0 * Hp:1 * Hp])
    f = jax.nn.sigmoid(gates[:, 1 * Hp:2 * Hp])
    g = jnp.tanh(gates[:, 2 * Hp:3 * Hp])
    o = jax.nn.sigmoid(gates[:, 3 * Hp:4 * Hp])
    c_new = f * c_prev + i * g
    h_new = o * jnp.tanh(c_new)
    return h_new, c_new


# ----------------------------------------------------------------------------
# Pallas kernels
# ----------------------------------------------------------------------------
def _lstm_seq_kernel(x_ref, w_ih_ref, w_hh_ref, b_ref, out_ref,
                     gi_ref, h_ref, c_ref):
    """One LSTM layer, one (batch_tile, time_tile) grid step; writes hidden seq.

    x_ref   : (tT, bB, F)    time-major input tile
    w_ih_ref: (F, 4Hp)       pre-transposed, gate-padded input weights
    w_hh_ref: (Hp, 4Hp)      pre-transposed, gate-padded hidden weights
    b_ref   : (1, 4Hp)       b_ih + b_hh (folded once)
    out_ref : (tT, bB, Hp)   hidden states for this tile
    gi_ref  : (tT*bB, 4Hp)   scratch: hoisted input projection
    h_ref/c_ref: (bB, Hp)    running state, persists across time-grid steps
    """
    tt = pl.program_id(1)
    tT, bB, F = x_ref.shape
    Hp = h_ref.shape[1]

    @pl.when(tt == 0)
    def _():
        h_ref[...] = jnp.zeros_like(h_ref)
        c_ref[...] = jnp.zeros_like(c_ref)

    # Hoisted input projection: one big MXU matmul off the serial critical path.
    x_flat = x_ref[...].reshape(tT * bB, F)
    gi_ref[...] = (jnp.dot(x_flat, w_ih_ref[...],
                           preferred_element_type=jnp.float32) + b_ref[...])

    def step(t, carry):
        row = pl.multiple_of(t * bB, bB)           # sublane-aligned dynamic slice
        gi_t = gi_ref[pl.ds(row, bB), :]
        h_new, c_new = _lstm_cell_step(gi_t, h_ref[...], c_ref[...],
                                       w_hh_ref[...], Hp)
        h_ref[...] = h_new
        c_ref[...] = c_new
        out_ref[t] = h_new.astype(out_ref.dtype)
        return carry

    lax.fori_loop(0, tT, step, 0, unroll=True)


def _lstm_head_kernel(x_ref, w_ih_ref, w_hh_ref, b_ref, w_out_ref, b_out_ref,
                      out_ref, gi_ref, h_ref, c_ref):
    """Last LSTM layer with the Linear head fused into the epilogue.

    Outputs only (bB, Cp) — no (T, B, H) sequence writeback.
    """
    tt = pl.program_id(1)
    tT, bB, F = x_ref.shape
    Hp = h_ref.shape[1]

    @pl.when(tt == 0)
    def _():
        h_ref[...] = jnp.zeros_like(h_ref)
        c_ref[...] = jnp.zeros_like(c_ref)

    x_flat = x_ref[...].reshape(tT * bB, F)
    gi_ref[...] = (jnp.dot(x_flat, w_ih_ref[...],
                           preferred_element_type=jnp.float32) + b_ref[...])

    def step(t, carry):
        row = pl.multiple_of(t * bB, bB)
        gi_t = gi_ref[pl.ds(row, bB), :]
        h_new, c_new = _lstm_cell_step(gi_t, h_ref[...], c_ref[...],
                                       w_hh_ref[...], Hp)
        h_ref[...] = h_new
        c_ref[...] = c_new
        return carry

    lax.fori_loop(0, tT, step, 0, unroll=True)

    @pl.when(tt == pl.num_programs(1) - 1)
    def _():
        out_ref[...] = (jnp.dot(h_ref[...], w_out_ref[...],
                                preferred_element_type=jnp.float32)
                        + b_out_ref[...]).astype(out_ref.dtype)


# ----------------------------------------------------------------------------
# pallas_call wrappers
# ----------------------------------------------------------------------------
def _lstm_seq_layer(x_tbf, w_ih, w_hh, b):
    T, Bp, F = x_tbf.shape
    Hp = w_hh.shape[0]
    tT = _pick_time_tile(T)
    bB = _pick_batch_tile(Bp)
    grid = (Bp // bB, T // tT)
    return pl.pallas_call(
        _lstm_seq_kernel,
        out_shape=jax.ShapeDtypeStruct((T, Bp, Hp), jnp.float32),
        grid_spec=pltpu.PrefetchScalarGridSpec(
            num_scalar_prefetch=0,
            grid=grid,
            in_specs=[
                pl.BlockSpec((tT, bB, F), lambda bt, tt: (tt, bt, 0)),
                pl.BlockSpec((F, 4 * Hp), lambda bt, tt: (0, 0)),
                pl.BlockSpec((Hp, 4 * Hp), lambda bt, tt: (0, 0)),
                pl.BlockSpec((1, 4 * Hp), lambda bt, tt: (0, 0)),
            ],
            out_specs=pl.BlockSpec((tT, bB, Hp), lambda bt, tt: (tt, bt, 0)),
            scratch_shapes=[
                pltpu.VMEM((tT * bB, 4 * Hp), jnp.float32),   # gi
                pltpu.VMEM((bB, Hp), jnp.float32),            # h
                pltpu.VMEM((bB, Hp), jnp.float32),            # c
            ]),
        compiler_params=pltpu.CompilerParams(
            dimension_semantics=("parallel", "arbitrary")),
    )(x_tbf, w_ih, w_hh, b)


def _lstm_head_layer(x_tbf, w_ih, w_hh, b, w_out, b_out):
    T, Bp, F = x_tbf.shape
    Hp = w_hh.shape[0]
    Cp = w_out.shape[1]
    tT = _pick_time_tile(T)
    bB = _pick_batch_tile(Bp)
    grid = (Bp // bB, T // tT)
    return pl.pallas_call(
        _lstm_head_kernel,
        out_shape=jax.ShapeDtypeStruct((Bp, Cp), jnp.float32),
        grid_spec=pltpu.PrefetchScalarGridSpec(
            num_scalar_prefetch=0,
            grid=grid,
            in_specs=[
                pl.BlockSpec((tT, bB, F), lambda bt, tt: (tt, bt, 0)),
                pl.BlockSpec((F, 4 * Hp), lambda bt, tt: (0, 0)),
                pl.BlockSpec((Hp, 4 * Hp), lambda bt, tt: (0, 0)),
                pl.BlockSpec((1, 4 * Hp), lambda bt, tt: (0, 0)),
                pl.BlockSpec((Hp, Cp), lambda bt, tt: (0, 0)),
                pl.BlockSpec((1, Cp), lambda bt, tt: (0, 0)),
            ],
            out_specs=pl.BlockSpec((bB, Cp), lambda bt, tt: (bt, 0)),
            scratch_shapes=[
                pltpu.VMEM((tT * bB, 4 * Hp), jnp.float32),   # gi
                pltpu.VMEM((bB, Hp), jnp.float32),            # h
                pltpu.VMEM((bB, Hp), jnp.float32),            # c
            ]),
        compiler_params=pltpu.CompilerParams(
            dimension_semantics=("parallel", "arbitrary")),
    )(x_tbf, w_ih, w_hh, b, w_out, b_out)


# ----------------------------------------------------------------------------
# One-time parameter preparation (transpose / gate padding / bias folding)
# ----------------------------------------------------------------------------
def _pad_gate_cols(w, H, Hp):
    """w: (rows, 4H), gate order i,f,g,o -> (rows, 4Hp), each gate lane-padded."""
    rows = w.shape[0]
    out = jnp.zeros((rows, 4 * Hp), jnp.float32)
    for k in range(4):
        out = out.at[:, k * Hp:k * Hp + H].set(w[:, k * H:(k + 1) * H])
    return out


def prepare_params(params, input_dim):
    H = params["lstm_layers"][0]["w_hh"].shape[1]
    Hp = _round_up(H, LANE)
    C = params["linear"]["w"].shape[0]
    Cp = _round_up(C, LANE)
    layers = []
    for idx, lp in enumerate(params["lstm_layers"]):
        fin = input_dim if idx == 0 else H
        fin_p = input_dim if idx == 0 else Hp
        w_ih_t = jnp.transpose(lp["w_ih"]).astype(jnp.float32)   # (fin, 4H)
        w_hh_t = jnp.transpose(lp["w_hh"]).astype(jnp.float32)   # (H, 4H)
        w_ih_p = jnp.zeros((fin_p, 4 * Hp), jnp.float32).at[:fin].set(
            _pad_gate_cols(w_ih_t, H, Hp))
        w_hh_p = jnp.zeros((Hp, 4 * Hp), jnp.float32).at[:H].set(
            _pad_gate_cols(w_hh_t, H, Hp))
        b_p = _pad_gate_cols((lp["b_ih"] + lp["b_hh"]).reshape(1, -1), H, Hp)
        layers.append({"w_ih": w_ih_p, "w_hh": w_hh_p, "b": b_p})
    w_out = jnp.zeros((Hp, Cp), jnp.float32).at[:H, :C].set(
        jnp.transpose(params["linear"]["w"]))
    b_out = jnp.zeros((1, Cp), jnp.float32).at[0, :C].set(params["linear"]["b"])
    return {"layers": layers, "w_out": w_out, "b_out": b_out,
            "H": H, "Hp": Hp, "C": C, "Cp": Cp}


# ----------------------------------------------------------------------------
# Forward pass (equivalent of StaticLSTM.forward)
# ----------------------------------------------------------------------------
def static_lstm_forward(prepared, batch_tensor):
    """batch_tensor: (B, T, input).  Returns sales: (B, categories or 1)."""
    B, T, _ = batch_tensor.shape
    Bp = _round_up(max(B, SUBLANE), SUBLANE)
    x = jnp.transpose(batch_tensor, (1, 0, 2)).astype(jnp.float32)   # (T, B, F)
    x = jnp.pad(x, ((0, 0), (0, Bp - B), (0, 0)))
    layers = prepared["layers"]
    for lp in layers[:-1]:
        x = _lstm_seq_layer(x, lp["w_ih"], lp["w_hh"], lp["b"])
    lp = layers[-1]
    out = _lstm_head_layer(x, lp["w_ih"], lp["w_hh"], lp["b"],
                           prepared["w_out"], prepared["b_out"])
    return out[:B, :prepared["C"]]


# ----------------------------------------------------------------------------
# Deterministic parameter init (PyTorch-style uniform(-1/sqrt(H), 1/sqrt(H)))
# ----------------------------------------------------------------------------
def init_params(key, hidden_dim, layers, input_dim, categories=0):
    out_dim = categories if categories > 0 else 1
    k = 1.0 / math.sqrt(hidden_dim)
    params = {"lstm_layers": [], "linear": {}}
    for layer in range(layers):
        in_dim = input_dim if layer == 0 else hidden_dim
        key, k1, k2, k3, k4 = jax.random.split(key, 5)
        params["lstm_layers"].append({
            "w_ih": jax.random.uniform(k1, (4 * hidden_dim, in_dim),
                                       jnp.float32, -k, k),
            "w_hh": jax.random.uniform(k2, (4 * hidden_dim, hidden_dim),
                                       jnp.float32, -k, k),
            "b_ih": jax.random.uniform(k3, (4 * hidden_dim,), jnp.float32, -k, k),
            "b_hh": jax.random.uniform(k4, (4 * hidden_dim,), jnp.float32, -k, k),
        })
    key, k1, k2 = jax.random.split(key, 3)
    params["linear"]["w"] = jax.random.uniform(k1, (out_dim, hidden_dim),
                                               jnp.float32, -k, k)
    params["linear"]["b"] = jax.random.uniform(k2, (out_dim,), jnp.float32, -k, k)
    return params


# ----------------------------------------------------------------------------
# Pure-JAX reference (PyTorch nn.LSTM semantics) for correctness check
# ----------------------------------------------------------------------------
def reference_forward(params, x_bti):
    B, T, _ = x_bti.shape
    H = params["lstm_layers"][0]["w_hh"].shape[1]
    out = x_bti.astype(jnp.float32)
    for lp in params["lstm_layers"]:
        h = jnp.zeros((B, H), jnp.float32)
        c = jnp.zeros((B, H), jnp.float32)
        ys = []
        for t in range(T):
            x_t = out[:, t, :]
            gates = x_t @ lp["w_ih"].T + lp["b_ih"] + h @ lp["w_hh"].T + lp["b_hh"]
            i = jax.nn.sigmoid(gates[:, 0:H])
            f = jax.nn.sigmoid(gates[:, H:2 * H])
            g = jnp.tanh(gates[:, 2 * H:3 * H])
            o = jax.nn.sigmoid(gates[:, 3 * H:4 * H])
            c = f * c + i * g
            h = o * jnp.tanh(c)
            ys.append(h)
        out = jnp.stack(ys, axis=1)
    last = out[:, -1, :]
    return last @ params["linear"]["w"].T + params["linear"]["b"]


# ----------------------------------------------------------------------------
if __name__ == "__main__":
    # Small shapes consistent with the module: hidden_dim=32, layers=2,
    # input=4, batch=2, seq=8, categories=0 -> output (B, 1).
    hidden_dim, layers, input_dim, batch, seq = 32, 2, 4, 2, 8

    key = jax.random.PRNGKey(0)
    key, pkey, xkey = jax.random.split(key, 3)
    params = init_params(pkey, hidden_dim, layers, input_dim, categories=0)
    prepared = prepare_params(params, input_dim)
    batch_tensor = jax.random.normal(xkey, (batch, seq, input_dim), jnp.float32)

    fwd = jax.jit(functools.partial(static_lstm_forward, prepared))
    sales = jax.block_until_ready(fwd(batch_tensor))

    ref = reference_forward(params, batch_tensor)
    assert sales.shape == (batch, 1), sales.shape
    assert jnp.allclose(sales, ref, atol=1e-4, rtol=1e-3), (sales, ref)

    print("KERNEL_OK")
</pallas_src>

<mosaic_0001>
module attributes {stable_mosaic.version = 11 : i64} {
  func.func @_lstm_head_kernel(%arg0: i32, %arg1: i32, %arg2: memref<8x8x128xf32, #tpu.memory_space<vmem>>, %arg3: memref<128x512xf32, #tpu.memory_space<vmem>>, %arg4: memref<128x512xf32, #tpu.memory_space<vmem>>, %arg5: memref<1x512xf32, #tpu.memory_space<vmem>>, %arg6: memref<128x128xf32, #tpu.memory_space<vmem>>, %arg7: memref<1x128xf32, #tpu.memory_space<vmem>>, %arg8: memref<8x128xf32, #tpu.memory_space<vmem>>, %arg9: memref<64x512xf32, #tpu.memory_space<vmem>>, %arg10: memref<8x128xf32, #tpu.memory_space<vmem>>, %arg11: memref<8x128xf32, #tpu.memory_space<vmem>>) attributes {dimension_semantics = [#tpu.dimension_semantics<parallel>, #tpu.dimension_semantics<arbitrary>], iteration_bounds = array<i64: 1, 1>, scalar_prefetch = 0 : i64, scratch_operands = 3 : i64, tpu.core_type = #tpu.core_type<tc>, window_params = [{transform_indices = @transform_0, window_bounds = array<i64: 8, 8, 128>}, {pipeline_mode = #tpu.pipeline_mode<synchronous>, transform_indices = @transform_1, window_bounds = array<i64: 128, 512>}, {pipeline_mode = #tpu.pipeline_mode<synchronous>, transform_indices = @transform_2, window_bounds = array<i64: 128, 512>}, {pipeline_mode = #tpu.pipeline_mode<synchronous>, transform_indices = @transform_3, window_bounds = array<i64: 1, 512>}, {pipeline_mode = #tpu.pipeline_mode<synchronous>, transform_indices = @transform_4, window_bounds = array<i64: 128, 128>}, {pipeline_mode = #tpu.pipeline_mode<synchronous>, transform_indices = @transform_5, window_bounds = array<i64: 1, 128>}, {transform_indices = @transform_6, window_bounds = array<i64: 8, 128>}]} {
    %c0_i32 = arith.constant 0 : i32
    %0 = arith.cmpi eq, %arg1, %c0_i32 : i32
    %1 = arith.extui %0 : i1 to i32
    %c0_i32_0 = arith.constant 0 : i32
    %2 = arith.cmpi ne, %1, %c0_i32_0 : i32
    scf.if %2 {
      %cst_140 = arith.constant 0.000000e+00 : f32
      %302 = vector.broadcast %cst_140 : f32 to vector<8x128xf32>
      %c0_141 = arith.constant 0 : index
      %c0_142 = arith.constant 0 : index
      %303 = vector.load %arg10[%c0_141, %c0_142] : memref<8x128xf32, #tpu.memory_space<vmem>>, vector<8x128xf32>
      tpu.vector_store %arg10[%c0_141, %c0_142], %302 {strides = array<i32>} : memref<8x128xf32, #tpu.memory_space<vmem>>, vector<8x128xf32>,
      %cst_143 = arith.constant 0.000000e+00 : f32
      %304 = vector.broadcast %cst_143 : f32 to vector<8x128xf32>
      %c0_144 = arith.constant 0 : index
      %c0_145 = arith.constant 0 : index
      %305 = vector.load %arg11[%c0_144, %c0_145] : memref<8x128xf32, #tpu.memory_space<vmem>>, vector<8x128xf32>
      tpu.vector_store %arg11[%c0_144, %c0_145], %304 {strides = array<i32>} : memref<8x128xf32, #tpu.memory_space<vmem>>, vector<8x128xf32>,
    } else {
    }
    %c0 = arith.constant 0 : index
    %c0_1 = arith.constant 0 : index
    %c0_2 = arith.constant 0 : index
    %3 = vector.load %arg2[%c0, %c0_1, %c0_2] : memref<8x8x128xf32, #tpu.memory_space<vmem>>, vector<8x8x128xf32>
    %4 = vector.shape_cast %3 : vector<8x8x128xf32> to vector<64x128xf32>
    %c0_3 = arith.constant 0 : index
    %c0_4 = arith.constant 0 : index
    %5 = vector.load %arg3[%c0_3, %c0_4] : memref<128x512xf32, #tpu.memory_space<vmem>>, vector<128x512xf32>
    %cst = arith.constant dense<0.000000e+00> : vector<64x512xf32>
    %6 = tpu.matmul %4, %5, %cst {dimension_numbers = #tpu.dot_dimension_numbers<[1], [0], [0], [1], [0, 0, 1, 1], [], []>} : vector<64x128xf32>, vector<128x512xf32>, vector<64x512xf32> -> vector<64x512xf32>
    %c0_5 = arith.constant 0 : index
    %c0_6 = arith.constant 0 : index
    %7 = vector.load %arg5[%c0_5, %c0_6] : memref<1x512xf32, #tpu.memory_space<vmem>>, vector<1x512xf32>
    %8 = vector.broadcast %7 : vector<1x512xf32> to vector<64x512xf32>
    %9 = arith.addf %6, %8 : vector<64x512xf32>
    %c0_7 = arith.constant 0 : index
    %c0_8 = arith.constant 0 : index
    %10 = vector.load %arg9[%c0_7, %c0_8] : memref<64x512xf32, #tpu.memory_space<vmem>>, vector<64x512xf32>
    tpu.vector_store %arg9[%c0_7, %c0_8], %9 {strides = array<i32>} : memref<64x512xf32, #tpu.memory_space<vmem>>, vector<64x512xf32>,
    %c0_i32_9 = arith.constant 0 : i32
    %c8_i32 = arith.constant 8 : i32
    %11 = arith.muli %c0_i32_9, %c8_i32 : i32
    %12 = tpu.assume_multiple %11, 8 : i32
    %13 = arith.index_cast %12 : i32 to index
    %c0_10 = arith.constant 0 : index
    %14 = vector.load %arg9[%13, %c0_10] : memref<64x512xf32, #tpu.memory_space<vmem>>, vector<8x512xf32>
    %c0_11 = arith.constant 0 : index
    %c0_12 = arith.constant 0 : index
    %15 = vector.load %arg10[%c0_11, %c0_12] : memref<8x128xf32, #tpu.memory_space<vmem>>, vector<8x128xf32>
    %c0_13 = arith.constant 0 : index
    %c0_14 = arith.constant 0 : index
    %16 = vector.load %arg11[%c0_13, %c0_14] : memref<8x128xf32, #tpu.memory_space<vmem>>, vector<8x128xf32>
    %c0_15 = arith.constant 0 : index
    %c0_16 = arith.constant 0 : index
    %17 = vector.load %arg4[%c0_15, %c0_16] : memref<128x512xf32, #tpu.memory_space<vmem>>, vector<128x512xf32>
    %cst_17 = arith.constant dense<0.000000e+00> : vector<8x512xf32>
    %18 = tpu.matmul %15, %17, %cst_17 {dimension_numbers = #tpu.dot_dimension_numbers<[1], [0], [0], [1], [0, 0, 1, 1], [], []>} : vector<8x128xf32>, vector<128x512xf32>, vector<8x512xf32> -> vector<8x512xf32>
    %19 = arith.addf %14, %18 : vector<8x512xf32>
    %20 = vector.extract_strided_slice %19 {offsets = [0, 0], sizes = [8, 128], strides = [1, 1]} : vector<8x512xf32> to vector<8x128xf32>
    %21 = arith.negf %20 : vector<8x128xf32>
    %22 = math.exp %21 : vector<8x128xf32>
    %cst_18 = arith.constant 1.000000e+00 : f32
    %23 = vector.broadcast %cst_18 : f32 to vector<8x128xf32>
    %24 = arith.addf %23, %22 : vector<8x128xf32>
    %25 = arith.divf %23, %24 : vector<8x128xf32>
    %26 = vector.extract_strided_slice %19 {offsets = [0, 128], sizes = [8, 128], strides = [1, 1]} : vector<8x512xf32> to vector<8x128xf32>
    %27 = arith.negf %26 : vector<8x128xf32>
    %28 = math.exp %27 : vector<8x128xf32>
    %cst_19 = arith.constant 1.000000e+00 : f32
    %29 = vector.broadcast %cst_19 : f32 to vector<8x128xf32>
    %30 = arith.addf %29, %28 : vector<8x128xf32>
    %31 = arith.divf %29, %30 : vector<8x128xf32>
    %32 = vector.extract_strided_slice %19 {offsets = [0, 256], sizes = [8, 128], strides = [1, 1]} : vector<8x512xf32> to vector<8x128xf32>
    %33 = math.tanh %32 : vector<8x128xf32>
    %34 = vector.extract_strided_slice %19 {offsets = [0, 384], sizes = [8, 128], strides = [1, 1]} : vector<8x512xf32> to vector<8x128xf32>
    %35 = arith.negf %34 : vector<8x128xf32>
    %36 = math.exp %35 : vector<8x128xf32>
    %cst_20 = arith.constant 1.000000e+00 : f32
    %37 = vector.broadcast %cst_20 : f32 to vector<8x128xf32>
    %38 = arith.addf %37, %36 : vector<8x128xf32>
    %39 = arith.divf %37, %38 : vector<8x128xf32>
    %40 = arith.mulf %31, %16 : vector<8x128xf32>
    %41 = arith.mulf %25, %33 : vector<8x128xf32>
    %42 = arith.addf %40, %41 : vector<8x128xf32>
    %43 = math.tanh %42 : vector<8x128xf32>
    %44 = arith.mulf %39, %43 : vector<8x128xf32>
    %c0_21 = arith.constant 0 : index
    %c0_22 = arith.constant 0 : index
    %45 = vector.load %arg10[%c0_21, %c0_22] : memref<8x128xf32, #tpu.memory_space<vmem>>, vector<8x128xf32>
    tpu.vector_store %arg10[%c0_21, %c0_22], %44 {strides = array<i32>} : memref<8x128xf32, #tpu.memory_space<vmem>>, vector<8x128xf32>,
    %c0_23 = arith.constant 0 : index
    %c0_24 = arith.constant 0 : index
    %46 = vector.load %arg11[%c0_23, %c0_24] : memref<8x128xf32, #tpu.memory_space<vmem>>, vector<8x128xf32>
    tpu.vector_store %arg11[%c0_23, %c0_24], %42 {strides = array<i32>} : memref<8x128xf32, #tpu.memory_space<vmem>>, vector<8x128xf32>,
    %c1_i32 = arith.constant 1 : i32
    %c8_i32_25 = arith.constant 8 : i32
    %47 = arith.muli %c1_i32, %c8_i32_25 : i32
    %48 = tpu.assume_multiple %47, 8 : i32
    %49 = arith.index_cast %48 : i32 to index
    %c0_26 = arith.constant 0 : index
    %50 = vector.load %arg9[%49, %c0_26] : memref<64x512xf32, #tpu.memory_space<vmem>>, vector<8x512xf32>
    %c0_27 = arith.constant 0 : index
    %c0_28 = arith.constant 0 : index
    %51 = vector.load %arg10[%c0_27, %c0_28] : memref<8x128xf32, #tpu.memory_space<vmem>>, vector<8x128xf32>
    %c0_29 = arith.constant 0 : index
    %c0_30 = arith.constant 0 : index
    %52 = vector.load %arg11[%c0_29, %c0_30] : memref<8x128xf32, #tpu.memory_space<vmem>>, vector<8x128xf32>
    %c0_31 = arith.constant 0 : index
    %c0_32 = arith.constant 0 : index
    %53 = vector.load %arg4[%c0_31, %c0_32] : memref<128x512xf32, #tpu.memory_space<vmem>>, vector<128x512xf32>
    %cst_33 = arith.constant dense<0.000000e+00> : vector<8x512xf32>
    %54 = tpu.matmul %51, %53, %cst_33 {dimension_numbers = #tpu.dot_dimension_numbers<[1], [0], [0], [1], [0, 0, 1, 1], [], []>} : vector<8x128xf32>, vector<128x512xf32>, vector<8x512xf32> -> vector<8x512xf32>
    %55 = arith.addf %50, %54 : vector<8x512xf32>
    %56 = vector.extract_strided_slice %55 {offsets = [0, 0], sizes = [8, 128], strides = [1, 1]} : vector<8x512xf32> to vector<8x128xf32>
    %57 = arith.negf %56 : vector<8x128xf32>
    %58 = math.exp %57 : vector<8x128xf32>
    %cst_34 = arith.constant 1.000000e+00 : f32
    %59 = vector.broadcast %cst_34 : f32 to vector<8x128xf32>
    %60 = arith.addf %59, %58 : vector<8x128xf32>
    %61 = arith.divf %59, %60 : vector<8x128xf32>
    %62 = vector.extract_strided_slice %55 {offsets = [0, 128], sizes = [8, 128], strides = [1, 1]} : vector<8x512xf32> to vector<8x128xf32>
    %63 = arith.negf %62 : vector<8x128xf32>
    %64 = math.exp %63 : vector<8x128xf32>
    %cst_35 = arith.constant 1.000000e+00 : f32
    %65 = vector.broadcast %cst_35 : f32 to vector<8x128xf32>
    %66 = arith.addf %65, %64 : vector<8x128xf32>
    %67 = arith.divf %65, %66 : vector<8x128xf32>
    %68 = vector.extract_strided_slice %55 {offsets = [0, 256], sizes = [8, 128], strides = [1, 1]} : vector<8x512xf32> to vector<8x128xf32>
    %69 = math.tanh %68 : vector<8x128xf32>
    %70 = vector.extract_strided_slice %55 {offsets = [0, 384], sizes = [8, 128], strides = [1, 1]} : vector<8x512xf32> to vector<8x128xf32>
    %71 = arith.negf %70 : vector<8x128xf32>
    %72 = math.exp %71 : vector<8x128xf32>
    %cst_36 = arith.constant 1.000000e+00 : f32
    %73 = vector.broadcast %cst_36 : f32 to vector<8x128xf32>
    %74 = arith.addf %73, %72 : vector<8x128xf32>
    %75 = arith.divf %73, %74 : vector<8x128xf32>
    %76 = arith.mulf %67, %52 : vector<8x128xf32>
    %77 = arith.mulf %61, %69 : vector<8x128xf32>
    %78 = arith.addf %76, %77 : vector<8x128xf32>
    %79 = math.tanh %78 : vector<8x128xf32>
    %80 = arith.mulf %75, %79 : vector<8x128xf32>
    %c0_37 = arith.constant 0 : index
    %c0_38 = arith.constant 0 : index
    %81 = vector.load %arg10[%c0_37, %c0_38] : memref<8x128xf32, #tpu.memory_space<vmem>>, vector<8x128xf32>
    tpu.vector_store %arg10[%c0_37, %c0_38], %80 {strides = array<i32>} : memref<8x128xf32, #tpu.memory_space<vmem>>, vector<8x128xf32>,
    %c0_39 = arith.constant 0 : index
    %c0_40 = arith.constant 0 : index
    %82 = vector.load %arg11[%c0_39, %c0_40] : memref<8x128xf32, #tpu.memory_space<vmem>>, vector<8x128xf32>
    tpu.vector_store %arg11[%c0_39, %c0_40], %78 {strides = array<i32>} : memref<8x128xf32, #tpu.memory_space<vmem>>, vector<8x128xf32>,
    %c2_i32 = arith.constant 2 : i32
    %c8_i32_41 = arith.constant 8 : i32
    %83 = arith.muli %c2_i32, %c8_i32_41 : i32
    %84 = tpu.assume_multiple %83, 8 : i32
    %85 = arith.index_cast %84 : i32 to index
    %c0_42 = arith.constant 0 : index
    %86 = vector.load %arg9[%85, %c0_42] : memref<64x512xf32, #tpu.memory_space<vmem>>, vector<8x512xf32>
    %c0_43 = arith.constant 0 : index
    %c0_44 = arith.constant 0 : index
    %87 = vector.load %arg10[%c0_43, %c0_44] : memref<8x128xf32, #tpu.memory_space<vmem>>, vector<8x128xf32>
    %c0_45 = arith.constant 0 : index
    %c0_46 = arith.constant 0 : index
    %88 = vector.load %arg11[%c0_45, %c0_46] : memref<8x128xf32, #tpu.memory_space<vmem>>, vector<8x128xf32>
    %c0_47 = arith.constant 0 : index
    %c0_48 = arith.constant 0 : index
    %89 = vector.load %arg4[%c0_47, %c0_48] : memref<128x512xf32, #tpu.memory_space<vmem>>, vector<128x512xf32>
    %cst_49 = arith.constant dense<0.000000e+00> : vector<8x512xf32>
    %90 = tpu.matmul %87, %89, %cst_49 {dimension_numbers = #tpu.dot_dimension_numbers<[1], [0], [0], [1], [0, 0, 1, 1], [], []>} : vector<8x128xf32>, vector<128x512xf32>, vector<8x512xf32> -> vector<8x512xf32>
    %91 = arith.addf %86, %90 : vector<8x512xf32>
    %92 = vector.extract_strided_slice %91 {offsets = [0, 0], sizes = [8, 128], strides = [1, 1]} : vector<8x512xf32> to vector<8x128xf32>
    %93 = arith.negf %92 : vector<8x128xf32>
    %94 = math.exp %93 : vector<8x128xf32>
    %cst_50 = arith.constant 1.000000e+00 : f32
    %95 = vector.broadcast %cst_50 : f32 to vector<8x128xf32>
    %96 = arith.addf %95, %94 : vector<8x128xf32>
    %97 = arith.divf %95, %96 : vector<8x128xf32>
    %98 = vector.extract_strided_slice %91 {offsets = [0, 128], sizes = [8, 128], strides = [1, 1]} : vector<8x512xf32> to vector<8x128xf32>
    %99 = arith.negf %98 : vector<8x128xf32>
    %100 = math.exp %99 : vector<8x128xf32>
    %cst_51 = arith.constant 1.000000e+00 : f32
    %101 = vector.broadcast %cst_51 : f32 to vector<8x128xf32>
    %102 = arith.addf %101, %100 : vector<8x128xf32>
    %103 = arith.divf %101, %102 : vector<8x128xf32>
    %104 = vector.extract_strided_slice %91 {offsets = [0, 256], sizes = [8, 128], strides = [1, 1]} : vector<8x512xf32> to vector<8x128xf32>
    %105 = math.tanh %104 : vector<8x128xf32>
    %106 = vector.extract_strided_slice %91 {offsets = [0, 384], sizes = [8, 128], strides = [1, 1]} : vector<8x512xf32> to vector<8x128xf32>
    %107 = arith.negf %106 : vector<8x128xf32>
    %108 = math.exp %107 : vector<8x128xf32>
    %cst_52 = arith.constant 1.000000e+00 : f32
    %109 = vector.broadcast %cst_52 : f32 to vector<8x128xf32>
    %110 = arith.addf %109, %108 : vector<8x128xf32>
    %111 = arith.divf %109, %110 : vector<8x128xf32>
    %112 = arith.mulf %103, %88 : vector<8x128xf32>
    %113 = arith.mulf %97, %105 : vector<8x128xf32>
    %114 = arith.addf %112, %113 : vector<8x128xf32>
    %115 = math.tanh %114 : vector<8x128xf32>
    %116 = arith.mulf %111, %115 : vector<8x128xf32>
    %c0_53 = arith.constant 0 : index
    %c0_54 = arith.constant 0 : index
    %117 = vector.load %arg10[%c0_53, %c0_54] : memref<8x128xf32, #tpu.memory_space<vmem>>, vector<8x128xf32>
    tpu.vector_store %arg10[%c0_53, %c0_54], %116 {strides = array<i32>} : memref<8x128xf32, #tpu.memory_space<vmem>>, vector<8x128xf32>,
    %c0_55 = arith.constant 0 : index
    %c0_56 = arith.constant 0 : index
    %118 = vector.load %arg11[%c0_55, %c0_56] : memref<8x128xf32, #tpu.memory_space<vmem>>, vector<8x128xf32>
    tpu.vector_store %arg11[%c0_55, %c0_56], %114 {strides = array<i32>} : memref<8x128xf32, #tpu.memory_space<vmem>>, vector<8x128xf32>,
    %c3_i32 = arith.constant 3 : i32
    %c8_i32_57 = arith.constant 8 : i32
    %119 = arith.muli %c3_i32, %c8_i32_57 : i32
    %120 = tpu.assume_multiple %119, 8 : i32
    %121 = arith.index_cast %120 : i32 to index
    %c0_58 = arith.constant 0 : index
    %122 = vector.load %arg9[%121, %c0_58] : memref<64x512xf32, #tpu.memory_space<vmem>>, vector<8x512xf32>
    %c0_59 = arith.constant 0 : index
    %c0_60 = arith.constant 0 : index
    %123 = vector.load %arg10[%c0_59, %c0_60] : memref<8x128xf32, #tpu.memory_space<vmem>>, vector<8x128xf32>
    %c0_61 = arith.constant 0 : index
    %c0_62 = arith.constant 0 : index
    %124 = vector.load %arg11[%c0_61, %c0_62] : memref<8x128xf32, #tpu.memory_space<vmem>>, vector<8x128xf32>
    %c0_63 = arith.constant 0 : index
    %c0_64 = arith.constant 0 : index
    %125 = vector.load %arg4[%c0_63, %c0_64] : memref<128x512xf32, #tpu.memory_space<vmem>>, vector<128x512xf32>
    %cst_65 = arith.constant dense<0.000000e+00> : vector<8x512xf32>
    %126 = tpu.matmul %123, %125, %cst_65 {dimension_numbers = #tpu.dot_dimension_numbers<[1], [0], [0], [1], [0, 0, 1, 1], [], []>} : vector<8x128xf32>, vector<128x512xf32>, vector<8x512xf32> -> vector<8x512xf32>
    %127 = arith.addf %122, %126 : vector<8x512xf32>
    %128 = vector.extract_strided_slice %127 {offsets = [0, 0], sizes = [8, 128], strides = [1, 1]} : vector<8x512xf32> to vector<8x128xf32>
    %129 = arith.negf %128 : vector<8x128xf32>
    %130 = math.exp %129 : vector<8x128xf32>
    %cst_66 = arith.constant 1.000000e+00 : f32
    %131 = vector.broadcast %cst_66 : f32 to vector<8x128xf32>
    %132 = arith.addf %131, %130 : vector<8x128xf32>
    %133 = arith.divf %131, %132 : vector<8x128xf32>
    %134 = vector.extract_strided_slice %127 {offsets = [0, 128], sizes = [8, 128], strides = [1, 1]} : vector<8x512xf32> to vector<8x128xf32>
    %135 = arith.negf %134 : vector<8x128xf32>
    %136 = math.exp %135 : vector<8x128xf32>
    %cst_67 = arith.constant 1.000000e+00 : f32
    %137 = vector.broadcast %cst_67 : f32 to vector<8x128xf32>
    %138 = arith.addf %137, %136 : vector<8x128xf32>
    %139 = arith.divf %137, %138 : vector<8x128xf32>
    %140 = vector.extract_strided_slice %127 {offsets = [0, 256], sizes = [8, 128], strides = [1, 1]} : vector<8x512xf32> to vector<8x128xf32>
    %141 = math.tanh %140 : vector<8x128xf32>
    %142 = vector.extract_strided_slice %127 {offsets = [0, 384], sizes = [8, 128], strides = [1, 1]} : vector<8x512xf32> to vector<8x128xf32>
    %143 = arith.negf %142 : vector<8x128xf32>
    %144 = math.exp %143 : vector<8x128xf32>
    %cst_68 = arith.constant 1.000000e+00 : f32
    %145 = vector.broadcast %cst_68 : f32 to vector<8x128xf32>
    %146 = arith.addf %145, %144 : vector<8x128xf32>
    %147 = arith.divf %145, %146 : vector<8x128xf32>
    %148 = arith.mulf %139, %124 : vector<8x128xf32>
    %149 = arith.mulf %133, %141 : vector<8x128xf32>
    %150 = arith.addf %148, %149 : vector<8x128xf32>
    %151 = math.tanh %150 : vector<8x128xf32>
    %152 = arith.mulf %147, %151 : vector<8x128xf32>
    %c0_69 = arith.constant 0 : index
    %c0_70 = arith.constant 0 : index
    %153 = vector.load %arg10[%c0_69, %c0_70] : memref<8x128xf32, #tpu.memory_space<vmem>>, vector<8x128xf32>
    tpu.vector_store %arg10[%c0_69, %c0_70], %152 {strides = array<i32>} : memref<8x128xf32, #tpu.memory_space<vmem>>, vector<8x128xf32>,
    %c0_71 = arith.constant 0 : index
    %c0_72 = arith.constant 0 : index
    %154 = vector.load %arg11[%c0_71, %c0_72] : memref<8x128xf32, #tpu.memory_space<vmem>>, vector<8x128xf32>
    tpu.vector_store %arg11[%c0_71, %c0_72], %150 {strides = array<i32>} : memref<8x128xf32, #tpu.memory_space<vmem>>, vector<8x128xf32>,
    %c4_i32 = arith.constant 4 : i32
    %c8_i32_73 = arith.constant 8 : i32
    %155 = arith.muli %c4_i32, %c8_i32_73 : i32
    %156 = tpu.assume_multiple %155, 8 : i32
    %157 = arith.index_cast %156 : i32 to index
    %c0_74 = arith.constant 0 : index
    %158 = vector.load %arg9[%157, %c0_74] : memref<64x512xf32, #tpu.memory_space<vmem>>, vector<8x512xf32>
    %c0_75 = arith.constant 0 : index
    %c0_76 = arith.constant 0 : index
    %159 = vector.load %arg10[%c0_75, %c0_76] : memref<8x128xf32, #tpu.memory_space<vmem>>, vector<8x128xf32>
    %c0_77 = arith.constant 0 : index
    %c0_78 = arith.constant 0 : index
    %160 = vector.load %arg11[%c0_77, %c0_78] : memref<8x128xf32, #tpu.memory_space<vmem>>, vector<8x128xf32>
    %c0_79 = arith.constant 0 : index
    %c0_80 = arith.constant 0 : index
    %161 = vector.load %arg4[%c0_79, %c0_80] : memref<128x512xf32, #tpu.memory_space<vmem>>, vector<128x512xf32>
    %cst_81 = arith.constant dense<0.000000e+00> : vector<8x512xf32>
    %162 = tpu.matmul %159, %161, %cst_81 {dimension_numbers = #tpu.dot_dimension_numbers<[1], [0], [0], [1], [0, 0, 1, 1], [], []>} : vector<8x128xf32>, vector<128x512xf32>, vector<8x512xf32> -> vector<8x512xf32>
    %163 = arith.addf %158, %162 : vector<8x512xf32>
    %164 = vector.extract_strided_slice %163 {offsets = [0, 0], sizes = [8, 128], strides = [1, 1]} : vector<8x512xf32> to vector<8x128xf32>
    %165 = arith.negf %164 : vector<8x128xf32>
    %166 = math.exp %165 : vector<8x128xf32>
    %cst_82 = arith.constant 1.000000e+00 : f32
    %167 = vector.broadcast %cst_82 : f32 to vector<8x128xf32>
    %168 = arith.addf %167, %166 : vector<8x128xf32>
    %169 = arith.divf %167, %168 : vector<8x128xf32>
    %170 = vector.extract_strided_slice %163 {offsets = [0, 128], sizes = [8, 128], strides = [1, 1]} : vector<8x512xf32> to vector<8x128xf32>
    %171 = arith.negf %170 : vector<8x128xf32>
    %172 = math.exp %171 : vector<8x128xf32>
    %cst_83 = arith.constant 1.000000e+00 : f32
    %173 = vector.broadcast %cst_83 : f32 to vector<8x128xf32>
    %174 = arith.addf %173, %172 : vector<8x128xf32>
    %175 = arith.divf %173, %174 : vector<8x128xf32>
    %176 = vector.extract_strided_slice %163 {offsets = [0, 256], sizes = [8, 128], strides = [1, 1]} : vector<8x512xf32> to vector<8x128xf32>
    %177 = math.tanh %176 : vector<8x128xf32>
    %178 = vector.extract_strided_slice %163 {offsets = [0, 384], sizes = [8, 128], strides = [1, 1]} : vector<8x512xf32> to vector<8x128xf32>
    %179 = arith.negf %178 : vector<8x128xf32>
    %180 = math.exp %179 : vector<8x128xf32>
    %cst_84 = arith.constant 1.000000e+00 : f32
    %181 = vector.broadcast %cst_84 : f32 to vector<8x128xf32>
    %182 = arith.addf %181, %180 : vector<8x128xf32>
    %183 = arith.divf %181, %182 : vector<8x128xf32>
    %184 = arith.mulf %175, %160 : vector<8x128xf32>
    %185 = arith.mulf %169, %177 : vector<8x128xf32>
    %186 = arith.addf %184, %185 : vector<8x128xf32>
    %187 = math.tanh %186 : vector<8x128xf32>
    %188 = arith.mulf %183, %187 : vector<8x128xf32>
    %c0_85 = arith.constant 0 : index
    %c0_86 = arith.constant 0 : index
    %189 = vector.load %arg10[%c0_85, %c0_86] : memref<8x128xf32, #tpu.memory_space<vmem>>, vector<8x128xf32>
    tpu.vector_store %arg10[%c0_85, %c0_86], %188 {strides = array<i32>} : memref<8x128xf32, #tpu.memory_space<vmem>>, vector<8x128xf32>,
    %c0_87 = arith.constant 0 : index
    %c0_88 = arith.constant 0 : index
    %190 = vector.load %arg11[%c0_87, %c0_88] : memref<8x128xf32, #tpu.memory_space<vmem>>, vector<8x128xf32>
    tpu.vector_store %arg11[%c0_87, %c0_88], %186 {strides = array<i32>} : memref<8x128xf32, #tpu.memory_space<vmem>>, vector<8x128xf32>,
    %c5_i32 = arith.constant 5 : i32
    %c8_i32_89 = arith.constant 8 : i32
    %191 = arith.muli %c5_i32, %c8_i32_89 : i32
    %192 = tpu.assume_multiple %191, 8 : i32
    %193 = arith.index_cast %192 : i32 to index
    %c0_90 = arith.constant 0 : index
    %194 = vector.load %arg9[%193, %c0_90] : memref<64x512xf32, #tpu.memory_space<vmem>>, vector<8x512xf32>
    %c0_91 = arith.constant 0 : index
    %c0_92 = arith.constant 0 : index
    %195 = vector.load %arg10[%c0_91, %c0_92] : memref<8x128xf32, #tpu.memory_space<vmem>>, vector<8x128xf32>
    %c0_93 = arith.constant 0 : index
    %c0_94 = arith.constant 0 : index
    %196 = vector.load %arg11[%c0_93, %c0_94] : memref<8x128xf32, #tpu.memory_space<vmem>>, vector<8x128xf32>
    %c0_95 = arith.constant 0 : index
    %c0_96 = arith.constant 0 : index
    %197 = vector.load %arg4[%c0_95, %c0_96] : memref<128x512xf32, #tpu.memory_space<vmem>>, vector<128x512xf32>
    %cst_97 = arith.constant dense<0.000000e+00> : vector<8x512xf32>
    %198 = tpu.matmul %195, %197, %cst_97 {dimension_numbers = #tpu.dot_dimension_numbers<[1], [0], [0], [1], [0, 0, 1, 1], [], []>} : vector<8x128xf32>, vector<128x512xf32>, vector<8x512xf32> -> vector<8x512xf32>
    %199 = arith.addf %194, %198 : vector<8x512xf32>
    %200 = vector.extract_strided_slice %199 {offsets = [0, 0], sizes = [8, 128], strides = [1, 1]} : vector<8x512xf32> to vector<8x128xf32>
    %201 = arith.negf %200 : vector<8x128xf32>
    %202 = math.exp %201 : vector<8x128xf32>
    %cst_98 = arith.constant 1.000000e+00 : f32
    %203 = vector.broadcast %cst_98 : f32 to vector<8x128xf32>
    %204 = arith.addf %203, %202 : vector<8x128xf32>
    %205 = arith.divf %203, %204 : vector<8x128xf32>
    %206 = vector.extract_strided_slice %199 {offsets = [0, 128], sizes = [8, 128], strides = [1, 1]} : vector<8x512xf32> to vector<8x128xf32>
    %207 = arith.negf %206 : vector<8x128xf32>
    %208 = math.exp %207 : vector<8x128xf32>
    %cst_99 = arith.constant 1.000000e+00 : f32
    %209 = vector.broadcast %cst_99 : f32 to vector<8x128xf32>
    %210 = arith.addf %209, %208 : vector<8x128xf32>
    %211 = arith.divf %209, %210 : vector<8x128xf32>
    %212 = vector.extract_strided_slice %199 {offsets = [0, 256], sizes = [8, 128], strides = [1, 1]} : vector<8x512xf32> to vector<8x128xf32>
    %213 = math.tanh %212 : vector<8x128xf32>
    %214 = vector.extract_strided_slice %199 {offsets = [0, 384], sizes = [8, 128], strides = [1, 1]} : vector<8x512xf32> to vector<8x128xf32>
    %215 = arith.negf %214 : vector<8x128xf32>
    %216 = math.exp %215 : vector<8x128xf32>
    %cst_100 = arith.constant 1.000000e+00 : f32
    %217 = vector.broadcast %cst_100 : f32 to vector<8x128xf32>
    %218 = arith.addf %217, %216 : vector<8x128xf32>
    %219 = arith.divf %217, %218 : vector<8x128xf32>
    %220 = arith.mulf %211, %196 : vector<8x128xf32>
    %221 = arith.mulf %205, %213 : vector<8x128xf32>
    %222 = arith.addf %220, %221 : vector<8x128xf32>
    %223 = math.tanh %222 : vector<8x128xf32>
    %224 = arith.mulf %219, %223 : vector<8x128xf32>
    %c0_101 = arith.constant 0 : index
    %c0_102 = arith.constant 0 : index
    %225 = vector.load %arg10[%c0_101, %c0_102] : memref<8x128xf32, #tpu.memory_space<vmem>>, vector<8x128xf32>
    tpu.vector_store %arg10[%c0_101, %c0_102], %224 {strides = array<i32>} : memref<8x128xf32, #tpu.memory_space<vmem>>, vector<8x128xf32>,
    %c0_103 = arith.constant 0 : index
    %c0_104 = arith.constant 0 : index
    %226 = vector.load %arg11[%c0_103, %c0_104] : memref<8x128xf32, #tpu.memory_space<vmem>>, vector<8x128xf32>
    tpu.vector_store %arg11[%c0_103, %c0_104], %222 {strides = array<i32>} : memref<8x128xf32, #tpu.memory_space<vmem>>, vector<8x128xf32>,
    %c6_i32 = arith.constant 6 : i32
    %c8_i32_105 = arith.constant 8 : i32
    %227 = arith.muli %c6_i32, %c8_i32_105 : i32
    %228 = tpu.assume_multiple %227, 8 : i32
    %229 = arith.index_cast %228 : i32 to index
    %c0_106 = arith.constant 0 : index
    %230 = vector.load %arg9[%229, %c0_106] : memref<64x512xf32, #tpu.memory_space<vmem>>, vector<8x512xf32>
    %c0_107 = arith.constant 0 : index
    %c0_108 = arith.constant 0 : index
    %231 = vector.load %arg10[%c0_107, %c0_108] : memref<8x128xf32, #tpu.memory_space<vmem>>, vector<8x128xf32>
    %c0_109 = arith.constant 0 : index
    %c0_110 = arith.constant 0 : index
    %232 = vector.load %arg11[%c0_109, %c0_110] : memref<8x128xf32, #tpu.memory_space<vmem>>, vector<8x128xf32>
    %c0_111 = arith.constant 0 : index
    %c0_112 = arith.constant 0 : index
    %233 = vector.load %arg4[%c0_111, %c0_112] : memref<128x512xf32, #tpu.memory_space<vmem>>, vector<128x512xf32>
    %cst_113 = arith.constant dense<0.000000e+00> : vector<8x512xf32>
    %234 = tpu.matmul %231, %233, %cst_113 {dimension_numbers = #tpu.dot_dimension_numbers<[1], [0], [0], [1], [0, 0, 1, 1], [], []>} : vector<8x128xf32>, vector<128x512xf32>, vector<8x512xf32> -> vector<8x512xf32>
    %235 = arith.addf %230, %234 : vector<8x512xf32>
    %236 = vector.extract_strided_slice %235 {offsets = [0, 0], sizes = [8, 128], strides = [1, 1]} : vector<8x512xf32> to vector<8x128xf32>
    %237 = arith.negf %236 : vector<8x128xf32>
    %238 = math.exp %237 : vector<8x128xf32>
    %cst_114 = arith.constant 1.000000e+00 : f32
    %239 = vector.broadcast %cst_114 : f32 to vector<8x128xf32>
    %240 = arith.addf %239, %238 : vector<8x128xf32>
    %241 = arith.divf %239, %240 : vector<8x128xf32>
    %242 = vector.extract_strided_slice %235 {offsets = [0, 128], sizes = [8, 128], strides = [1, 1]} : vector<8x512xf32> to vector<8x128xf32>
    %243 = arith.negf %242 : vector<8x128xf32>
    %244 = math.exp %243 : vector<8x128xf32>
    %cst_115 = arith.constant 1.000000e+00 : f32
    %245 = vector.broadcast %cst_115 : f32 to vector<8x128xf32>
    %246 = arith.addf %245, %244 : vector<8x128xf32>
    %247 = arith.divf %245, %246 : vector<8x128xf32>
    %248 = vector.extract_strided_slice %235 {offsets = [0, 256], sizes = [8, 128], strides = [1, 1]} : vector<8x512xf32> to vector<8x128xf32>
    %249 = math.tanh %248 : vector<8x128xf32>
    %250 = vector.extract_strided_slice %235 {offsets = [0, 384], sizes = [8, 128], strides = [1, 1]} : vector<8x512xf32> to vector<8x128xf32>
    %251 = arith.negf %250 : vector<8x128xf32>
    %252 = math.exp %251 : vector<8x128xf32>
    %cst_116 = arith.constant 1.000000e+00 : f32
    %253 = vector.broadcast %cst_116 : f32 to vector<8x128xf32>
    %254 = arith.addf %253, %252 : vector<8x128xf32>
    %255 = arith.divf %253, %254 : vector<8x128xf32>
    %256 = arith.mulf %247, %232 : vector<8x128xf32>
    %257 = arith.mulf %241, %249 : vector<8x128xf32>
    %258 = arith.addf %256, %257 : vector<8x128xf32>
    %259 = math.tanh %258 : vector<8x128xf32>
    %260 = arith.mulf %255, %259 : vector<8x128xf32>
    %c0_117 = arith.constant 0 : index
    %c0_118 = arith.constant 0 : index
    %261 = vector.load %arg10[%c0_117, %c0_118] : memref<8x128xf32, #tpu.memory_space<vmem>>, vector<8x128xf32>
    tpu.vector_store %arg10[%c0_117, %c0_118], %260 {strides = array<i32>} : memref<8x128xf32, #tpu.memory_space<vmem>>, vector<8x128xf32>,
    %c0_119 = arith.constant 0 : index
    %c0_120 = arith.constant 0 : index
    %262 = vector.load %arg11[%c0_119, %c0_120] : memref<8x128xf32, #tpu.memory_space<vmem>>, vector<8x128xf32>
    tpu.vector_store %arg11[%c0_119, %c0_120], %258 {strides = array<i32>} : memref<8x128xf32, #tpu.memory_space<vmem>>, vector<8x128xf32>,
    %c7_i32 = arith.constant 7 : i32
    %c8_i32_121 = arith.constant 8 : i32
    %263 = arith.muli %c7_i32, %c8_i32_121 : i32
    %264 = tpu.assume_multiple %263, 8 : i32
    %265 = arith.index_cast %264 : i32 to index
    %c0_122 = arith.constant 0 : index
    %266 = vector.load %arg9[%265, %c0_122] : memref<64x512xf32, #tpu.memory_space<vmem>>, vector<8x512xf32>
    %c0_123 = arith.constant 0 : index
    %c0_124 = arith.constant 0 : index
    %267 = vector.load %arg10[%c0_123, %c0_124] : memref<8x128xf32, #tpu.memory_space<vmem>>, vector<8x128xf32>
    %c0_125 = arith.constant 0 : index
    %c0_126 = arith.constant 0 : index
    %268 = vector.load %arg11[%c0_125, %c0_126] : memref<8x128xf32, #tpu.memory_space<vmem>>, vector<8x128xf32>
    %c0_127 = arith.constant 0 : index
    %c0_128 = arith.constant 0 : index
    %269 = vector.load %arg4[%c0_127, %c0_128] : memref<128x512xf32, #tpu.memory_space<vmem>>, vector<128x512xf32>
    %cst_129 = arith.constant dense<0.000000e+00> : vector<8x512xf32>
    %270 = tpu.matmul %267, %269, %cst_129 {dimension_numbers = #tpu.dot_dimension_numbers<[1], [0], [0], [1], [0, 0, 1, 1], [], []>} : vector<8x128xf32>, vector<128x512xf32>, vector<8x512xf32> -> vector<8x512xf32>
    %271 = arith.addf %266, %270 : vector<8x512xf32>
    %272 = vector.extract_strided_slice %271 {offsets = [0, 0], sizes = [8, 128], strides = [1, 1]} : vector<8x512xf32> to vector<8x128xf32>
    %273 = arith.negf %272 : vector<8x128xf32>
    %274 = math.exp %273 : vector<8x128xf32>
    %cst_130 = arith.constant 1.000000e+00 : f32
    %275 = vector.broadcast %cst_130 : f32 to vector<8x128xf32>
    %276 = arith.addf %275, %274 : vector<8x128xf32>
    %277 = arith.divf %275, %276 : vector<8x128xf32>
    %278 = vector.extract_strided_slice %271 {offsets = [0, 128], sizes = [8, 128], strides = [1, 1]} : vector<8x512xf32> to vector<8x128xf32>
    %279 = arith.negf %278 : vector<8x128xf32>
    %280 = math.exp %279 : vector<8x128xf32>
    %cst_131 = arith.constant 1.000000e+00 : f32
    %281 = vector.broadcast %cst_131 : f32 to vector<8x128xf32>
    %282 = arith.addf %281, %280 : vector<8x128xf32>
    %283 = arith.divf %281, %282 : vector<8x128xf32>
    %284 = vector.extract_strided_slice %271 {offsets = [0, 256], sizes = [8, 128], strides = [1, 1]} : vector<8x512xf32> to vector<8x128xf32>
    %285 = math.tanh %284 : vector<8x128xf32>
    %286 = vector.extract_strided_slice %271 {offsets = [0, 384], sizes = [8, 128], strides = [1, 1]} : vector<8x512xf32> to vector<8x128xf32>
    %287 = arith.negf %286 : vector<8x128xf32>
    %288 = math.exp %287 : vector<8x128xf32>
    %cst_132 = arith.constant 1.000000e+00 : f32
    %289 = vector.broadcast %cst_132 : f32 to vector<8x128xf32>
    %290 = arith.addf %289, %288 : vector<8x128xf32>
    %291 = arith.divf %289, %290 : vector<8x128xf32>
    %292 = arith.mulf %283, %268 : vector<8x128xf32>
    %293 = arith.mulf %277, %285 : vector<8x128xf32>
    %294 = arith.addf %292, %293 : vector<8x128xf32>
    %295 = math.tanh %294 : vector<8x128xf32>
    %296 = arith.mulf %291, %295 : vector<8x128xf32>
    %c0_133 = arith.constant 0 : index
    %c0_134 = arith.constant 0 : index
    %297 = vector.load %arg10[%c0_133, %c0_134] : memref<8x128xf32, #tpu.memory_space<vmem>>, vector<8x128xf32>
    tpu.vector_store %arg10[%c0_133, %c0_134], %296 {strides = array<i32>} : memref<8x128xf32, #tpu.memory_space<vmem>>, vector<8x128xf32>,
    %c0_135 = arith.constant 0 : index
    %c0_136 = arith.constant 0 : index
    %298 = vector.load %arg11[%c0_135, %c0_136] : memref<8x128xf32, #tpu.memory_space<vmem>>, vector<8x128xf32>
    tpu.vector_store %arg11[%c0_135, %c0_136], %294 {strides = array<i32>} : memref<8x128xf32, #tpu.memory_space<vmem>>, vector<8x128xf32>,
    %c8_i32_137 = arith.constant 8 : i32
    %c0_i32_138 = arith.constant 0 : i32
    %299 = arith.cmpi eq, %arg1, %c0_i32_138 : i32
    %300 = arith.extui %299 : i1 to i32
    %c0_i32_139 = arith.constant 0 : i32
    %301 = arith.cmpi ne, %300, %c0_i32_139 : i32
    scf.if %301 {
      %c0_140 = arith.constant 0 : index
      %c0_141 = arith.constant 0 : index
      %302 = vector.load %arg10[%c0_140, %c0_141] : memref<8x128xf32, #tpu.memory_space<vmem>>, vector<8x128xf32>
      %c0_142 = arith.constant 0 : index
      %c0_143 = arith.constant 0 : index
      %303 = vector.load %arg6[%c0_142, %c0_143] : memref<128x128xf32, #tpu.memory_space<vmem>>, vector<128x128xf32>
      %cst_144 = arith.constant dense<0.000000e+00> : vector<8x128xf32>
      %304 = tpu.matmul %302, %303, %cst_144 {dimension_numbers = #tpu.dot_dimension_numbers<[1], [0], [0], [1], [0, 0, 1, 1], [], []>} : vector<8x128xf32>, vector<128x128xf32>, vector<8x128xf32> -> vector<8x128xf32>
      %c0_145 = arith.constant 0 : index
      %c0_146 = arith.constant 0 : index
      %305 = vector.load %arg7[%c0_145, %c0_146] : memref<1x128xf32, #tpu.memory_space<vmem>>, vector<1x128xf32>
      %306 = vector.broadcast %305 : vector<1x128xf32> to vector<8x128xf32>
      %307 = arith.addf %304, %306 : vector<8x128xf32>
      %c0_147 = arith.constant 0 : index
      %c0_148 = arith.constant 0 : index
      %308 = vector.load %arg8[%c0_147, %c0_148] : memref<8x128xf32, #tpu.memory_space<vmem>>, vector<8x128xf32>
      tpu.vector_store %arg8[%c0_147, %c0_148], %307 {strides = array<i32>} : memref<8x128xf32, #tpu.memory_space<vmem>>, vector<8x128xf32>,
    } else {
    }
    return
  }
  func.func @transform_0(%arg0: i32, %arg1: i32) -> (i32, i32, i32) {
    %c0_i32 = arith.constant 0 : i32
    %c0_i32_0 = arith.constant 0 : i32
    return %arg1, %arg0, %c0_i32 : i32, i32, i32
  }
  func.func @transform_1(%arg0: i32, %arg1: i32) -> (i32, i32) {
    %c0_i32 = arith.constant 0 : i32
    %c0_i32_0 = arith.constant 0 : i32
    %c0_i32_1 = arith.constant 0 : i32
    return %c0_i32, %c0_i32_0 : i32, i32
  }
  func.func @transform_2(%arg0: i32, %arg1: i32) -> (i32, i32) {
    %c0_i32 = arith.constant 0 : i32
    %c0_i32_0 = arith.constant 0 : i32
    %c0_i32_1 = arith.constant 0 : i32
    return %c0_i32, %c0_i32_0 : i32, i32
  }
  func.func @transform_3(%arg0: i32, %arg1: i32) -> (i32, i32) {
    %c0_i32 = arith.constant 0 : i32
    %c0_i32_0 = arith.constant 0 : i32
    %c0_i32_1 = arith.constant 0 : i32
    return %c0_i32, %c0_i32_0 : i32, i32
  }
  func.func @transform_4(%arg0: i32, %arg1: i32) -> (i32, i32) {
    %c0_i32 = arith.constant 0 : i32
    %c0_i32_0 = arith.constant 0 : i32
    %c0_i32_1 = arith.constant 0 : i32
    return %c0_i32, %c0_i32_0 : i32, i32
  }
  func.func @transform_5(%arg0: i32, %arg1: i32) -> (i32, i32) {
    %c0_i32 = arith.constant 0 : i32
    %c0_i32_0 = arith.constant 0 : i32
    %c0_i32_1 = arith.constant 0 : i32
    return %c0_i32, %c0_i32_0 : i32, i32
  }
  func.func @transform_6(%arg0: i32, %arg1: i32) -> (i32, i32) {
    %c0_i32 = arith.constant 0 : i32
    %c0_i32_0 = arith.constant 0 : i32
    return %arg0, %c0_i32 : i32, i32
  }
}

module attributes {stable_mosaic.version = 11 : i64} {
  func.func @_lstm_seq_kernel(%arg0: i32, %arg1: i32, %arg2: memref<8x8x4xf32, #tpu.memory_space<vmem>>, %arg3: memref<4x512xf32, #tpu.memory_space<vmem>>, %arg4: memref<128x512xf32, #tpu.memory_space<vmem>>, %arg5: memref<1x512xf32, #tpu.memory_space<vmem>>, %arg6: memref<8x8x128xf32, #tpu.memory_space<vmem>>, %arg7: memref<64x512xf32, #tpu.memory_space<vmem>>, %arg8: memref<8x128xf32, #tpu.memory_space<vmem>>, %arg9: memref<8x128xf32, #tpu.memory_space<vmem>>) attributes {dimension_semantics = [#tpu.dimension_semantics<parallel>, #tpu.dimension_semantics<arbitrary>], iteration_bounds = array<i64: 1, 1>, scalar_prefetch = 0 : i64, scratch_operands = 3 : i64, tpu.core_type = #tpu.core_type<tc>, window_params = [{transform_indices = @transform_0, window_bounds = array<i64: 8, 8, 4>}, {pipeline_mode = #tpu.pipeline_mode<synchronous>, transform_indices = @transform_1, window_bounds = array<i64: 4, 512>}, {pipeline_mode = #tpu.pipeline_mode<synchronous>, transform_indices = @transform_2, window_bounds = array<i64: 128, 512>}, {pipeline_mode = #tpu.pipeline_mode<synchronous>, transform_indices = @transform_3, window_bounds = array<i64: 1, 512>}, {transform_indices = @transform_4, window_bounds = array<i64: 8, 8, 128>}]} {
    %c0_i32 = arith.constant 0 : i32
    %0 = arith.cmpi eq, %arg1, %c0_i32 : i32
    %1 = arith.extui %0 : i1 to i32
    %c0_i32_0 = arith.constant 0 : i32
    %2 = arith.cmpi ne, %1, %c0_i32_0 : i32
    scf.if %2 {
      %cst_154 = arith.constant 0.000000e+00 : f32
      %331 = vector.broadcast %cst_154 : f32 to vector<8x128xf32>
      %c0_155 = arith.constant 0 : index
      %c0_156 = arith.constant 0 : index
      %332 = vector.load %arg8[%c0_155, %c0_156] : memref<8x128xf32, #tpu.memory_space<vmem>>, vector<8x128xf32>
      tpu.vector_store %arg8[%c0_155, %c0_156], %331 {strides = array<i32>} : memref<8x128xf32, #tpu.memory_space<vmem>>, vector<8x128xf32>,
      %cst_157 = arith.constant 0.000000e+00 : f32
      %333 = vector.broadcast %cst_157 : f32 to vector<8x128xf32>
      %c0_158 = arith.constant 0 : index
      %c0_159 = arith.constant 0 : index
      %334 = vector.load %arg9[%c0_158, %c0_159] : memref<8x128xf32, #tpu.memory_space<vmem>>, vector<8x128xf32>
      tpu.vector_store %arg9[%c0_158, %c0_159], %333 {strides = array<i32>} : memref<8x128xf32, #tpu.memory_space<vmem>>, vector<8x128xf32>,
    } else {
    }
    %c0 = arith.constant 0 : index
    %c0_1 = arith.constant 0 : index
    %c0_2 = arith.constant 0 : index
    %3 = vector.load %arg2[%c0, %c0_1, %c0_2] : memref<8x8x4xf32, #tpu.memory_space<vmem>>, vector<8x8x4xf32>
    %4 = vector.shape_cast %3 : vector<8x8x4xf32> to vector<64x4xf32>
    %c0_3 = arith.constant 0 : index
    %c0_4 = arith.constant 0 : index
    %5 = vector.load %arg3[%c0_3, %c0_4] : memref<4x512xf32, #tpu.memory_space<vmem>>, vector<4x512xf32>
    %cst = arith.constant dense<0.000000e+00> : vector<64x512xf32>
    %6 = tpu.matmul %4, %5, %cst {dimension_numbers = #tpu.dot_dimension_numbers<[1], [0], [0], [1], [0, 0, 1, 1], [], []>} : vector<64x4xf32>, vector<4x512xf32>, vector<64x512xf32> -> vector<64x512xf32>
    %c0_5 = arith.constant 0 : index
    %c0_6 = arith.constant 0 : index
    %7 = vector.load %arg5[%c0_5, %c0_6] : memref<1x512xf32, #tpu.memory_space<vmem>>, vector<1x512xf32>
    %8 = vector.broadcast %7 : vector<1x512xf32> to vector<64x512xf32>
    %9 = arith.addf %6, %8 : vector<64x512xf32>
    %c0_7 = arith.constant 0 : index
    %c0_8 = arith.constant 0 : index
    %10 = vector.load %arg7[%c0_7, %c0_8] : memref<64x512xf32, #tpu.memory_space<vmem>>, vector<64x512xf32>
    tpu.vector_store %arg7[%c0_7, %c0_8], %9 {strides = array<i32>} : memref<64x512xf32, #tpu.memory_space<vmem>>, vector<64x512xf32>,
    %c0_i32_9 = arith.constant 0 : i32
    %c8_i32 = arith.constant 8 : i32
    %11 = arith.muli %c0_i32_9, %c8_i32 : i32
    %12 = tpu.assume_multiple %11, 8 : i32
    %13 = arith.index_cast %12 : i32 to index
    %c0_10 = arith.constant 0 : index
    %14 = vector.load %arg7[%13, %c0_10] : memref<64x512xf32, #tpu.memory_space<vmem>>, vector<8x512xf32>
    %c0_11 = arith.constant 0 : index
    %c0_12 = arith.constant 0 : index
    %15 = vector.load %arg8[%c0_11, %c0_12] : memref<8x128xf32, #tpu.memory_space<vmem>>, vector<8x128xf32>
    %c0_13 = arith.constant 0 : index
    %c0_14 = arith.constant 0 : index
    %16 = vector.load %arg9[%c0_13, %c0_14] : memref<8x128xf32, #tpu.memory_space<vmem>>, vector<8x128xf32>
    %c0_15 = arith.constant 0 : index
    %c0_16 = arith.constant 0 : index
    %17 = vector.load %arg4[%c0_15, %c0_16] : memref<128x512xf32, #tpu.memory_space<vmem>>, vector<128x512xf32>
    %cst_17 = arith.constant dense<0.000000e+00> : vector<8x512xf32>
    %18 = tpu.matmul %15, %17, %cst_17 {dimension_numbers = #tpu.dot_dimension_numbers<[1], [0], [0], [1], [0, 0, 1, 1], [], []>} : vector<8x128xf32>, vector<128x512xf32>, vector<8x512xf32> -> vector<8x512xf32>
    %19 = arith.addf %14, %18 : vector<8x512xf32>
    %20 = vector.extract_strided_slice %19 {offsets = [0, 0], sizes = [8, 128], strides = [1, 1]} : vector<8x512xf32> to vector<8x128xf32>
    %21 = arith.negf %20 : vector<8x128xf32>
    %22 = math.exp %21 : vector<8x128xf32>
    %cst_18 = arith.constant 1.000000e+00 : f32
    %23 = vector.broadcast %cst_18 : f32 to vector<8x128xf32>
    %24 = arith.addf %23, %22 : vector<8x128xf32>
    %25 = arith.divf %23, %24 : vector<8x128xf32>
    %26 = vector.extract_strided_slice %19 {offsets = [0, 128], sizes = [8, 128], strides = [1, 1]} : vector<8x512xf32> to vector<8x128xf32>
    %27 = arith.negf %26 : vector<8x128xf32>
    %28 = math.exp %27 : vector<8x128xf32>
    %cst_19 = arith.constant 1.000000e+00 : f32
    %29 = vector.broadcast %cst_19 : f32 to vector<8x128xf32>
    %30 = arith.addf %29, %28 : vector<8x128xf32>
    %31 = arith.divf %29, %30 : vector<8x128xf32>
    %32 = vector.extract_strided_slice %19 {offsets = [0, 256], sizes = [8, 128], strides = [1, 1]} : vector<8x512xf32> to vector<8x128xf32>
    %33 = math.tanh %32 : vector<8x128xf32>
    %34 = vector.extract_strided_slice %19 {offsets = [0, 384], sizes = [8, 128], strides = [1, 1]} : vector<8x512xf32> to vector<8x128xf32>
    %35 = arith.negf %34 : vector<8x128xf32>
    %36 = math.exp %35 : vector<8x128xf32>
    %cst_20 = arith.constant 1.000000e+00 : f32
    %37 = vector.broadcast %cst_20 : f32 to vector<8x128xf32>
    %38 = arith.addf %37, %36 : vector<8x128xf32>
    %39 = arith.divf %37, %38 : vector<8x128xf32>
    %40 = arith.mulf %31, %16 : vector<8x128xf32>
    %41 = arith.mulf %25, %33 : vector<8x128xf32>
    %42 = arith.addf %40, %41 : vector<8x128xf32>
    %43 = math.tanh %42 : vector<8x128xf32>
    %44 = arith.mulf %39, %43 : vector<8x128xf32>
    %c0_21 = arith.constant 0 : index
    %c0_22 = arith.constant 0 : index
    %45 = vector.load %arg8[%c0_21, %c0_22] : memref<8x128xf32, #tpu.memory_space<vmem>>, vector<8x128xf32>
    tpu.vector_store %arg8[%c0_21, %c0_22], %44 {strides = array<i32>} : memref<8x128xf32, #tpu.memory_space<vmem>>, vector<8x128xf32>,
    %c0_23 = arith.constant 0 : index
    %c0_24 = arith.constant 0 : index
    %46 = vector.load %arg9[%c0_23, %c0_24] : memref<8x128xf32, #tpu.memory_space<vmem>>, vector<8x128xf32>
    tpu.vector_store %arg9[%c0_23, %c0_24], %42 {strides = array<i32>} : memref<8x128xf32, #tpu.memory_space<vmem>>, vector<8x128xf32>,
    %47 = arith.index_cast %c0_i32_9 : i32 to index
    %c0_25 = arith.constant 0 : index
    %c0_26 = arith.constant 0 : index
    %48 = vector.load %arg6[%47, %c0_25, %c0_26] : memref<8x8x128xf32, #tpu.memory_space<vmem>>, vector<1x8x128xf32>
    %49 = vector.shape_cast %48 : vector<1x8x128xf32> to vector<8x128xf32>
    %50 = vector.shape_cast %44 : vector<8x128xf32> to vector<1x8x128xf32>
    tpu.vector_store %arg6[%47, %c0_25, %c0_26], %50 {strides = array<i32>} : memref<8x8x128xf32, #tpu.memory_space<vmem>>, vector<1x8x128xf32>,
    %c1_i32 = arith.constant 1 : i32
    %c8_i32_27 = arith.constant 8 : i32
    %51 = arith.muli %c1_i32, %c8_i32_27 : i32
    %52 = tpu.assume_multiple %51, 8 : i32
    %53 = arith.index_cast %52 : i32 to index
    %c0_28 = arith.constant 0 : index
    %54 = vector.load %arg7[%53, %c0_28] : memref<64x512xf32, #tpu.memory_space<vmem>>, vector<8x512xf32>
    %c0_29 = arith.constant 0 : index
    %c0_30 = arith.constant 0 : index
    %55 = vector.load %arg8[%c0_29, %c0_30] : memref<8x128xf32, #tpu.memory_space<vmem>>, vector<8x128xf32>
    %c0_31 = arith.constant 0 : index
    %c0_32 = arith.constant 0 : index
    %56 = vector.load %arg9[%c0_31, %c0_32] : memref<8x128xf32, #tpu.memory_space<vmem>>, vector<8x128xf32>
    %c0_33 = arith.constant 0 : index
    %c0_34 = arith.constant 0 : index
    %57 = vector.load %arg4[%c0_33, %c0_34] : memref<128x512xf32, #tpu.memory_space<vmem>>, vector<128x512xf32>
    %cst_35 = arith.constant dense<0.000000e+00> : vector<8x512xf32>
    %58 = tpu.matmul %55, %57, %cst_35 {dimension_numbers = #tpu.dot_dimension_numbers<[1], [0], [0], [1], [0, 0, 1, 1], [], []>} : vector<8x128xf32>, vector<128x512xf32>, vector<8x512xf32> -> vector<8x512xf32>
    %59 = arith.addf %54, %58 : vector<8x512xf32>
    %60 = vector.extract_strided_slice %59 {offsets = [0, 0], sizes = [8, 128], strides = [1, 1]} : vector<8x512xf32> to vector<8x128xf32>
    %61 = arith.negf %60 : vector<8x128xf32>
    %62 = math.exp %61 : vector<8x128xf32>
    %cst_36 = arith.constant 1.000000e+00 : f32
    %63 = vector.broadcast %cst_36 : f32 to vector<8x128xf32>
    %64 = arith.addf %63, %62 : vector<8x128xf32>
    %65 = arith.divf %63, %64 : vector<8x128xf32>
    %66 = vector.extract_strided_slice %59 {offsets = [0, 128], sizes = [8, 128], strides = [1, 1]} : vector<8x512xf32> to vector<8x128xf32>
    %67 = arith.negf %66 : vector<8x128xf32>
    %68 = math.exp %67 : vector<8x128xf32>
    %cst_37 = arith.constant 1.000000e+00 : f32
    %69 = vector.broadcast %cst_37 : f32 to vector<8x128xf32>
    %70 = arith.addf %69, %68 : vector<8x128xf32>
    %71 = arith.divf %69, %70 : vector<8x128xf32>
    %72 = vector.extract_strided_slice %59 {offsets = [0, 256], sizes = [8, 128], strides = [1, 1]} : vector<8x512xf32> to vector<8x128xf32>
    %73 = math.tanh %72 : vector<8x128xf32>
    %74 = vector.extract_strided_slice %59 {offsets = [0, 384], sizes = [8, 128], strides = [1, 1]} : vector<8x512xf32> to vector<8x128xf32>
    %75 = arith.negf %74 : vector<8x128xf32>
    %76 = math.exp %75 : vector<8x128xf32>
    %cst_38 = arith.constant 1.000000e+00 : f32
    %77 = vector.broadcast %cst_38 : f32 to vector<8x128xf32>
    %78 = arith.addf %77, %76 : vector<8x128xf32>
    %79 = arith.divf %77, %78 : vector<8x128xf32>
    %80 = arith.mulf %71, %56 : vector<8x128xf32>
    %81 = arith.mulf %65, %73 : vector<8x128xf32>
    %82 = arith.addf %80, %81 : vector<8x128xf32>
    %83 = math.tanh %82 : vector<8x128xf32>
    %84 = arith.mulf %79, %83 : vector<8x128xf32>
    %c0_39 = arith.constant 0 : index
    %c0_40 = arith.constant 0 : index
    %85 = vector.load %arg8[%c0_39, %c0_40] : memref<8x128xf32, #tpu.memory_space<vmem>>, vector<8x128xf32>
    tpu.vector_store %arg8[%c0_39, %c0_40], %84 {strides = array<i32>} : memref<8x128xf32, #tpu.memory_space<vmem>>, vector<8x128xf32>,
    %c0_41 = arith.constant 0 : index
    %c0_42 = arith.constant 0 : index
    %86 = vector.load %arg9[%c0_41, %c0_42] : memref<8x128xf32, #tpu.memory_space<vmem>>, vector<8x128xf32>
    tpu.vector_store %arg9[%c0_41, %c0_42], %82 {strides = array<i32>} : memref<8x128xf32, #tpu.memory_space<vmem>>, vector<8x128xf32>,
    %87 = arith.index_cast %c1_i32 : i32 to index
    %c0_43 = arith.constant 0 : index
    %c0_44 = arith.constant 0 : index
    %88 = vector.load %arg6[%87, %c0_43, %c0_44] : memref<8x8x128xf32, #tpu.memory_space<vmem>>, vector<1x8x128xf32>
    %89 = vector.shape_cast %88 : vector<1x8x128xf32> to vector<8x128xf32>
    %90 = vector.shape_cast %84 : vector<8x128xf32> to vector<1x8x128xf32>
    tpu.vector_store %arg6[%87, %c0_43, %c0_44], %90 {strides = array<i32>} : memref<8x8x128xf32, #tpu.memory_space<vmem>>, vector<1x8x128xf32>,
    %c2_i32 = arith.constant 2 : i32
    %c8_i32_45 = arith.constant 8 : i32
    %91 = arith.muli %c2_i32, %c8_i32_45 : i32
    %92 = tpu.assume_multiple %91, 8 : i32
    %93 = arith.index_cast %92 : i32 to index
    %c0_46 = arith.constant 0 : index
    %94 = vector.load %arg7[%93, %c0_46] : memref<64x512xf32, #tpu.memory_space<vmem>>, vector<8x512xf32>
    %c0_47 = arith.constant 0 : index
    %c0_48 = arith.constant 0 : index
    %95 = vector.load %arg8[%c0_47, %c0_48] : memref<8x128xf32, #tpu.memory_space<vmem>>, vector<8x128xf32>
    %c0_49 = arith.constant 0 : index
    %c0_50 = arith.constant 0 : index
    %96 = vector.load %arg9[%c0_49, %c0_50] : memref<8x128xf32, #tpu.memory_space<vmem>>, vector<8x128xf32>
    %c0_51 = arith.constant 0 : index
    %c0_52 = arith.constant 0 : index
    %97 = vector.load %arg4[%c0_51, %c0_52] : memref<128x512xf32, #tpu.memory_space<vmem>>, vector<128x512xf32>
    %cst_53 = arith.constant dense<0.000000e+00> : vector<8x512xf32>
    %98 = tpu.matmul %95, %97, %cst_53 {dimension_numbers = #tpu.dot_dimension_numbers<[1], [0], [0], [1], [0, 0, 1, 1], [], []>} : vector<8x128xf32>, vector<128x512xf32>, vector<8x512xf32> -> vector<8x512xf32>
    %99 = arith.addf %94, %98 : vector<8x512xf32>
    %100 = vector.extract_strided_slice %99 {offsets = [0, 0], sizes = [8, 128], strides = [1, 1]} : vector<8x512xf32> to vector<8x128xf32>
    %101 = arith.negf %100 : vector<8x128xf32>
    %102 = math.exp %101 : vector<8x128xf32>
    %cst_54 = arith.constant 1.000000e+00 : f32
    %103 = vector.broadcast %cst_54 : f32 to vector<8x128xf32>
    %104 = arith.addf %103, %102 : vector<8x128xf32>
    %105 = arith.divf %103, %104 : vector<8x128xf32>
    %106 = vector.extract_strided_slice %99 {offsets = [0, 128], sizes = [8, 128], strides = [1, 1]} : vector<8x512xf32> to vector<8x128xf32>
    %107 = arith.negf %106 : vector<8x128xf32>
    %108 = math.exp %107 : vector<8x128xf32>
    %cst_55 = arith.constant 1.000000e+00 : f32
    %109 = vector.broadcast %cst_55 : f32 to vector<8x128xf32>
    %110 = arith.addf %109, %108 : vector<8x128xf32>
    %111 = arith.divf %109, %110 : vector<8x128xf32>
    %112 = vector.extract_strided_slice %99 {offsets = [0, 256], sizes = [8, 128], strides = [1, 1]} : vector<8x512xf32> to vector<8x128xf32>
    %113 = math.tanh %112 : vector<8x128xf32>
    %114 = vector.extract_strided_slice %99 {offsets = [0, 384], sizes = [8, 128], strides = [1, 1]} : vector<8x512xf32> to vector<8x128xf32>
    %115 = arith.negf %114 : vector<8x128xf32>
    %116 = math.exp %115 : vector<8x128xf32>
    %cst_56 = arith.constant 1.000000e+00 : f32
    %117 = vector.broadcast %cst_56 : f32 to vector<8x128xf32>
    %118 = arith.addf %117, %116 : vector<8x128xf32>
    %119 = arith.divf %117, %118 : vector<8x128xf32>
    %120 = arith.mulf %111, %96 : vector<8x128xf32>
    %121 = arith.mulf %105, %113 : vector<8x128xf32>
    %122 = arith.addf %120, %121 : vector<8x128xf32>
    %123 = math.tanh %122 : vector<8x128xf32>
    %124 = arith.mulf %119, %123 : vector<8x128xf32>
    %c0_57 = arith.constant 0 : index
    %c0_58 = arith.constant 0 : index
    %125 = vector.load %arg8[%c0_57, %c0_58] : memref<8x128xf32, #tpu.memory_space<vmem>>, vector<8x128xf32>
    tpu.vector_store %arg8[%c0_57, %c0_58], %124 {strides = array<i32>} : memref<8x128xf32, #tpu.memory_space<vmem>>, vector<8x128xf32>,
    %c0_59 = arith.constant 0 : index
    %c0_60 = arith.constant 0 : index
    %126 = vector.load %arg9[%c0_59, %c0_60] : memref<8x128xf32, #tpu.memory_space<vmem>>, vector<8x128xf32>
    tpu.vector_store %arg9[%c0_59, %c0_60], %122 {strides = array<i32>} : memref<8x128xf32, #tpu.memory_space<vmem>>, vector<8x128xf32>,
    %127 = arith.index_cast %c2_i32 : i32 to index
    %c0_61 = arith.constant 0 : index
    %c0_62 = arith.constant 0 : index
    %128 = vector.load %arg6[%127, %c0_61, %c0_62] : memref<8x8x128xf32, #tpu.memory_space<vmem>>, vector<1x8x128xf32>
    %129 = vector.shape_cast %128 : vector<1x8x128xf32> to vector<8x128xf32>
    %130 = vector.shape_cast %124 : vector<8x128xf32> to vector<1x8x128xf32>
    tpu.vector_store %arg6[%127, %c0_61, %c0_62], %130 {strides = array<i32>} : memref<8x8x128xf32, #tpu.memory_space<vmem>>, vector<1x8x128xf32>,
    %c3_i32 = arith.constant 3 : i32
    %c8_i32_63 = arith.constant 8 : i32
    %131 = arith.muli %c3_i32, %c8_i32_63 : i32
    %132 = tpu.assume_multiple %131, 8 : i32
    %133 = arith.index_cast %132 : i32 to index
    %c0_64 = arith.constant 0 : index
    %134 = vector.load %arg7[%133, %c0_64] : memref<64x512xf32, #tpu.memory_space<vmem>>, vector<8x512xf32>
    %c0_65 = arith.constant 0 : index
    %c0_66 = arith.constant 0 : index
    %135 = vector.load %arg8[%c0_65, %c0_66] : memref<8x128xf32, #tpu.memory_space<vmem>>, vector<8x128xf32>
    %c0_67 = arith.constant 0 : index
    %c0_68 = arith.constant 0 : index
    %136 = vector.load %arg9[%c0_67, %c0_68] : memref<8x128xf32, #tpu.memory_space<vmem>>, vector<8x128xf32>
    %c0_69 = arith.constant 0 : index
    %c0_70 = arith.constant 0 : index
    %137 = vector.load %arg4[%c0_69, %c0_70] : memref<128x512xf32, #tpu.memory_space<vmem>>, vector<128x512xf32>
    %cst_71 = arith.constant dense<0.000000e+00> : vector<8x512xf32>
    %138 = tpu.matmul %135, %137, %cst_71 {dimension_numbers = #tpu.dot_dimension_numbers<[1], [0], [0], [1], [0, 0, 1, 1], [], []>} : vector<8x128xf32>, vector<128x512xf32>, vector<8x512xf32> -> vector<8x512xf32>
    %139 = arith.addf %134, %138 : vector<8x512xf32>
    %140 = vector.extract_strided_slice %139 {offsets = [0, 0], sizes = [8, 128], strides = [1, 1]} : vector<8x512xf32> to vector<8x128xf32>
    %141 = arith.negf %140 : vector<8x128xf32>
    %142 = math.exp %141 : vector<8x128xf32>
    %cst_72 = arith.constant 1.000000e+00 : f32
    %143 = vector.broadcast %cst_72 : f32 to vector<8x128xf32>
    %144 = arith.addf %143, %142 : vector<8x128xf32>
    %145 = arith.divf %143, %144 : vector<8x128xf32>
    %146 = vector.extract_strided_slice %139 {offsets = [0, 128], sizes = [8, 128], strides = [1, 1]} : vector<8x512xf32> to vector<8x128xf32>
    %147 = arith.negf %146 : vector<8x128xf32>
    %148 = math.exp %147 : vector<8x128xf32>
    %cst_73 = arith.constant 1.000000e+00 : f32
    %149 = vector.broadcast %cst_73 : f32 to vector<8x128xf32>
    %150 = arith.addf %149, %148 : vector<8x128xf32>
    %151 = arith.divf %149, %150 : vector<8x128xf32>
    %152 = vector.extract_strided_slice %139 {offsets = [0, 256], sizes = [8, 128], strides = [1, 1]} : vector<8x512xf32> to vector<8x128xf32>
    %153 = math.tanh %152 : vector<8x128xf32>
    %154 = vector.extract_strided_slice %139 {offsets = [0, 384], sizes = [8, 128], strides = [1, 1]} : vector<8x512xf32> to vector<8x128xf32>
    %155 = arith.negf %154 : vector<8x128xf32>
    %156 = math.exp %155 : vector<8x128xf32>
    %cst_74 = arith.constant 1.000000e+00 : f32
    %157 = vector.broadcast %cst_74 : f32 to vector<8x128xf32>
    %158 = arith.addf %157, %156 : vector<8x128xf32>
    %159 = arith.divf %157, %158 : vector<8x128xf32>
    %160 = arith.mulf %151, %136 : vector<8x128xf32>
    %161 = arith.mulf %145, %153 : vector<8x128xf32>
    %162 = arith.addf %160, %161 : vector<8x128xf32>
    %163 = math.tanh %162 : vector<8x128xf32>
    %164 = arith.mulf %159, %163 : vector<8x128xf32>
    %c0_75 = arith.constant 0 : index
    %c0_76 = arith.constant 0 : index
    %165 = vector.load %arg8[%c0_75, %c0_76] : memref<8x128xf32, #tpu.memory_space<vmem>>, vector<8x128xf32>
    tpu.vector_store %arg8[%c0_75, %c0_76], %164 {strides = array<i32>} : memref<8x128xf32, #tpu.memory_space<vmem>>, vector<8x128xf32>,
    %c0_77 = arith.constant 0 : index
    %c0_78 = arith.constant 0 : index
    %166 = vector.load %arg9[%c0_77, %c0_78] : memref<8x128xf32, #tpu.memory_space<vmem>>, vector<8x128xf32>
    tpu.vector_store %arg9[%c0_77, %c0_78], %162 {strides = array<i32>} : memref<8x128xf32, #tpu.memory_space<vmem>>, vector<8x128xf32>,
    %167 = arith.index_cast %c3_i32 : i32 to index
    %c0_79 = arith.constant 0 : index
    %c0_80 = arith.constant 0 : index
    %168 = vector.load %arg6[%167, %c0_79, %c0_80] : memref<8x8x128xf32, #tpu.memory_space<vmem>>, vector<1x8x128xf32>
    %169 = vector.shape_cast %168 : vector<1x8x128xf32> to vector<8x128xf32>
    %170 = vector.shape_cast %164 : vector<8x128xf32> to vector<1x8x128xf32>
    tpu.vector_store %arg6[%167, %c0_79, %c0_80], %170 {strides = array<i32>} : memref<8x8x128xf32, #tpu.memory_space<vmem>>, vector<1x8x128xf32>,
    %c4_i32 = arith.constant 4 : i32
    %c8_i32_81 = arith.constant 8 : i32
    %171 = arith.muli %c4_i32, %c8_i32_81 : i32
    %172 = tpu.assume_multiple %171, 8 : i32
    %173 = arith.index_cast %172 : i32 to index
    %c0_82 = arith.constant 0 : index
    %174 = vector.load %arg7[%173, %c0_82] : memref<64x512xf32, #tpu.memory_space<vmem>>, vector<8x512xf32>
    %c0_83 = arith.constant 0 : index
    %c0_84 = arith.constant 0 : index
    %175 = vector.load %arg8[%c0_83, %c0_84] : memref<8x128xf32, #tpu.memory_space<vmem>>, vector<8x128xf32>
    %c0_85 = arith.constant 0 : index
    %c0_86 = arith.constant 0 : index
    %176 = vector.load %arg9[%c0_85, %c0_86] : memref<8x128xf32, #tpu.memory_space<vmem>>, vector<8x128xf32>
    %c0_87 = arith.constant 0 : index
    %c0_88 = arith.constant 0 : index
    %177 = vector.load %arg4[%c0_87, %c0_88] : memref<128x512xf32, #tpu.memory_space<vmem>>, vector<128x512xf32>
    %cst_89 = arith.constant dense<0.000000e+00> : vector<8x512xf32>
    %178 = tpu.matmul %175, %177, %cst_89 {dimension_numbers = #tpu.dot_dimension_numbers<[1], [0], [0], [1], [0, 0, 1, 1], [], []>} : vector<8x128xf32>, vector<128x512xf32>, vector<8x512xf32> -> vector<8x512xf32>
    %179 = arith.addf %174, %178 : vector<8x512xf32>
    %180 = vector.extract_strided_slice %179 {offsets = [0, 0], sizes = [8, 128], strides = [1, 1]} : vector<8x512xf32> to vector<8x128xf32>
    %181 = arith.negf %180 : vector<8x128xf32>
    %182 = math.exp %181 : vector<8x128xf32>
    %cst_90 = arith.constant 1.000000e+00 : f32
    %183 = vector.broadcast %cst_90 : f32 to vector<8x128xf32>
    %184 = arith.addf %183, %182 : vector<8x128xf32>
    %185 = arith.divf %183, %184 : vector<8x128xf32>
    %186 = vector.extract_strided_slice %179 {offsets = [0, 128], sizes = [8, 128], strides = [1, 1]} : vector<8x512xf32> to vector<8x128xf32>
    %187 = arith.negf %186 : vector<8x128xf32>
    %188 = math.exp %187 : vector<8x128xf32>
    %cst_91 = arith.constant 1.000000e+00 : f32
    %189 = vector.broadcast %cst_91 : f32 to vector<8x128xf32>
    %190 = arith.addf %189, %188 : vector<8x128xf32>
    %191 = arith.divf %189, %190 : vector<8x128xf32>
    %192 = vector.extract_strided_slice %179 {offsets = [0, 256], sizes = [8, 128], strides = [1, 1]} : vector<8x512xf32> to vector<8x128xf32>
    %193 = math.tanh %192 : vector<8x128xf32>
    %194 = vector.extract_strided_slice %179 {offsets = [0, 384], sizes = [8, 128], strides = [1, 1]} : vector<8x512xf32> to vector<8x128xf32>
    %195 = arith.negf %194 : vector<8x128xf32>
    %196 = math.exp %195 : vector<8x128xf32>
    %cst_92 = arith.constant 1.000000e+00 : f32
    %197 = vector.broadcast %cst_92 : f32 to vector<8x128xf32>
    %198 = arith.addf %197, %196 : vector<8x128xf32>
    %199 = arith.divf %197, %198 : vector<8x128xf32>
    %200 = arith.mulf %191, %176 : vector<8x128xf32>
    %201 = arith.mulf %185, %193 : vector<8x128xf32>
    %202 = arith.addf %200, %201 : vector<8x128xf32>
    %203 = math.tanh %202 : vector<8x128xf32>
    %204 = arith.mulf %199, %203 : vector<8x128xf32>
    %c0_93 = arith.constant 0 : index
    %c0_94 = arith.constant 0 : index
    %205 = vector.load %arg8[%c0_93, %c0_94] : memref<8x128xf32, #tpu.memory_space<vmem>>, vector<8x128xf32>
    tpu.vector_store %arg8[%c0_93, %c0_94], %204 {strides = array<i32>} : memref<8x128xf32, #tpu.memory_space<vmem>>, vector<8x128xf32>,
    %c0_95 = arith.constant 0 : index
    %c0_96 = arith.constant 0 : index
    %206 = vector.load %arg9[%c0_95, %c0_96] : memref<8x128xf32, #tpu.memory_space<vmem>>, vector<8x128xf32>
    tpu.vector_store %arg9[%c0_95, %c0_96], %202 {strides = array<i32>} : memref<8x128xf32, #tpu.memory_space<vmem>>, vector<8x128xf32>,
    %207 = arith.index_cast %c4_i32 : i32 to index
    %c0_97 = arith.constant 0 : index
    %c0_98 = arith.constant 0 : index
    %208 = vector.load %arg6[%207, %c0_97, %c0_98] : memref<8x8x128xf32, #tpu.memory_space<vmem>>, vector<1x8x128xf32>
    %209 = vector.shape_cast %208 : vector<1x8x128xf32> to vector<8x128xf32>
    %210 = vector.shape_cast %204 : vector<8x128xf32> to vector<1x8x128xf32>
    tpu.vector_store %arg6[%207, %c0_97, %c0_98], %210 {strides = array<i32>} : memref<8x8x128xf32, #tpu.memory_space<vmem>>, vector<1x8x128xf32>,
    %c5_i32 = arith.constant 5 : i32
    %c8_i32_99 = arith.constant 8 : i32
    %211 = arith.muli %c5_i32, %c8_i32_99 : i32
    %212 = tpu.assume_multiple %211, 8 : i32
    %213 = arith.index_cast %212 : i32 to index
    %c0_100 = arith.constant 0 : index
    %214 = vector.load %arg7[%213, %c0_100] : memref<64x512xf32, #tpu.memory_space<vmem>>, vector<8x512xf32>
    %c0_101 = arith.constant 0 : index
    %c0_102 = arith.constant 0 : index
    %215 = vector.load %arg8[%c0_101, %c0_102] : memref<8x128xf32, #tpu.memory_space<vmem>>, vector<8x128xf32>
    %c0_103 = arith.constant 0 : index
    %c0_104 = arith.constant 0 : index
    %216 = vector.load %arg9[%c0_103, %c0_104] : memref<8x128xf32, #tpu.memory_space<vmem>>, vector<8x128xf32>
    %c0_105 = arith.constant 0 : index
    %c0_106 = arith.constant 0 : index
    %217 = vector.load %arg4[%c0_105, %c0_106] : memref<128x512xf32, #tpu.memory_space<vmem>>, vector<128x512xf32>
    %cst_107 = arith.constant dense<0.000000e+00> : vector<8x512xf32>
    %218 = tpu.matmul %215, %217, %cst_107 {dimension_numbers = #tpu.dot_dimension_numbers<[1], [0], [0], [1], [0, 0, 1, 1], [], []>} : vector<8x128xf32>, vector<128x512xf32>, vector<8x512xf32> -> vector<8x512xf32>
    %219 = arith.addf %214, %218 : vector<8x512xf32>
    %220 = vector.extract_strided_slice %219 {offsets = [0, 0], sizes = [8, 128], strides = [1, 1]} : vector<8x512xf32> to vector<8x128xf32>
    %221 = arith.negf %220 : vector<8x128xf32>
    %222 = math.exp %221 : vector<8x128xf32>
    %cst_108 = arith.constant 1.000000e+00 : f32
    %223 = vector.broadcast %cst_108 : f32 to vector<8x128xf32>
    %224 = arith.addf %223, %222 : vector<8x128xf32>
    %225 = arith.divf %223, %224 : vector<8x128xf32>
    %226 = vector.extract_strided_slice %219 {offsets = [0, 128], sizes = [8, 128], strides = [1, 1]} : vector<8x512xf32> to vector<8x128xf32>
    %227 = arith.negf %226 : vector<8x128xf32>
    %228 = math.exp %227 : vector<8x128xf32>
    %cst_109 = arith.constant 1.000000e+00 : f32
    %229 = vector.broadcast %cst_109 : f32 to vector<8x128xf32>
    %230 = arith.addf %229, %228 : vector<8x128xf32>
    %231 = arith.divf %229, %230 : vector<8x128xf32>
    %232 = vector.extract_strided_slice %219 {offsets = [0, 256], sizes = [8, 128], strides = [1, 1]} : vector<8x512xf32> to vector<8x128xf32>
    %233 = math.tanh %232 : vector<8x128xf32>
    %234 = vector.extract_strided_slice %219 {offsets = [0, 384], sizes = [8, 128], strides = [1, 1]} : vector<8x512xf32> to vector<8x128xf32>
    %235 = arith.negf %234 : vector<8x128xf32>
    %236 = math.exp %235 : vector<8x128xf32>
    %cst_110 = arith.constant 1.000000e+00 : f32
    %237 = vector.broadcast %cst_110 : f32 to vector<8x128xf32>
    %238 = arith.addf %237, %236 : vector<8x128xf32>
    %239 = arith.divf %237, %238 : vector<8x128xf32>
    %240 = arith.mulf %231, %216 : vector<8x128xf32>
    %241 = arith.mulf %225, %233 : vector<8x128xf32>
    %242 = arith.addf %240, %241 : vector<8x128xf32>
    %243 = math.tanh %242 : vector<8x128xf32>
    %244 = arith.mulf %239, %243 : vector<8x128xf32>
    %c0_111 = arith.constant 0 : index
    %c0_112 = arith.constant 0 : index
    %245 = vector.load %arg8[%c0_111, %c0_112] : memref<8x128xf32, #tpu.memory_space<vmem>>, vector<8x128xf32>
    tpu.vector_store %arg8[%c0_111, %c0_112], %244 {strides = array<i32>} : memref<8x128xf32, #tpu.memory_space<vmem>>, vector<8x128xf32>,
    %c0_113 = arith.constant 0 : index
    %c0_114 = arith.constant 0 : index
    %246 = vector.load %arg9[%c0_113, %c0_114] : memref<8x128xf32, #tpu.memory_space<vmem>>, vector<8x128xf32>
    tpu.vector_store %arg9[%c0_113, %c0_114], %242 {strides = array<i32>} : memref<8x128xf32, #tpu.memory_space<vmem>>, vector<8x128xf32>,
    %247 = arith.index_cast %c5_i32 : i32 to index
    %c0_115 = arith.constant 0 : index
    %c0_116 = arith.constant 0 : index
    %248 = vector.load %arg6[%247, %c0_115, %c0_116] : memref<8x8x128xf32, #tpu.memory_space<vmem>>, vector<1x8x128xf32>
    %249 = vector.shape_cast %248 : vector<1x8x128xf32> to vector<8x128xf32>
    %250 = vector.shape_cast %244 : vector<8x128xf32> to vector<1x8x128xf32>
    tpu.vector_store %arg6[%247, %c0_115, %c0_116], %250 {strides = array<i32>} : memref<8x8x128xf32, #tpu.memory_space<vmem>>, vector<1x8x128xf32>,
    %c6_i32 = arith.constant 6 : i32
    %c8_i32_117 = arith.constant 8 : i32
    %251 = arith.muli %c6_i32, %c8_i32_117 : i32
    %252 = tpu.assume_multiple %251, 8 : i32
    %253 = arith.index_cast %252 : i32 to index
    %c0_118 = arith.constant 0 : index
    %254 = vector.load %arg7[%253, %c0_118] : memref<64x512xf32, #tpu.memory_space<vmem>>, vector<8x512xf32>
    %c0_119 = arith.constant 0 : index
    %c0_120 = arith.constant 0 : index
    %255 = vector.load %arg8[%c0_119, %c0_120] : memref<8x128xf32, #tpu.memory_space<vmem>>, vector<8x128xf32>
    %c0_121 = arith.constant 0 : index
    %c0_122 = arith.constant 0 : index
    %256 = vector.load %arg9[%c0_121, %c0_122] : memref<8x128xf32, #tpu.memory_space<vmem>>, vector<8x128xf32>
    %c0_123 = arith.constant 0 : index
    %c0_124 = arith.constant 0 : index
    %257 = vector.load %arg4[%c0_123, %c0_124] : memref<128x512xf32, #tpu.memory_space<vmem>>, vector<128x512xf32>
    %cst_125 = arith.constant dense<0.000000e+00> : vector<8x512xf32>
    %258 = tpu.matmul %255, %257, %cst_125 {dimension_numbers = #tpu.dot_dimension_numbers<[1], [0], [0], [1], [0, 0, 1, 1], [], []>} : vector<8x128xf32>, vector<128x512xf32>, vector<8x512xf32> -> vector<8x512xf32>
    %259 = arith.addf %254, %258 : vector<8x512xf32>
    %260 = vector.extract_strided_slice %259 {offsets = [0, 0], sizes = [8, 128], strides = [1, 1]} : vector<8x512xf32> to vector<8x128xf32>
    %261 = arith.negf %260 : vector<8x128xf32>
    %262 = math.exp %261 : vector<8x128xf32>
    %cst_126 = arith.constant 1.000000e+00 : f32
    %263 = vector.broadcast %cst_126 : f32 to vector<8x128xf32>
    %264 = arith.addf %263, %262 : vector<8x128xf32>
    %265 = arith.divf %263, %264 : vector<8x128xf32>
    %266 = vector.extract_strided_slice %259 {offsets = [0, 128], sizes = [8, 128], strides = [1, 1]} : vector<8x512xf32> to vector<8x128xf32>
    %267 = arith.negf %266 : vector<8x128xf32>
    %268 = math.exp %267 : vector<8x128xf32>
    %cst_127 = arith.constant 1.000000e+00 : f32
    %269 = vector.broadcast %cst_127 : f32 to vector<8x128xf32>
    %270 = arith.addf %269, %268 : vector<8x128xf32>
    %271 = arith.divf %269, %270 : vector<8x128xf32>
    %272 = vector.extract_strided_slice %259 {offsets = [0, 256], sizes = [8, 128], strides = [1, 1]} : vector<8x512xf32> to vector<8x128xf32>
    %273 = math.tanh %272 : vector<8x128xf32>
    %274 = vector.extract_strided_slice %259 {offsets = [0, 384], sizes = [8, 128], strides = [1, 1]} : vector<8x512xf32> to vector<8x128xf32>
    %275 = arith.negf %274 : vector<8x128xf32>
    %276 = math.exp %275 : vector<8x128xf32>
    %cst_128 = arith.constant 1.000000e+00 : f32
    %277 = vector.broadcast %cst_128 : f32 to vector<8x128xf32>
    %278 = arith.addf %277, %276 : vector<8x128xf32>
    %279 = arith.divf %277, %278 : vector<8x128xf32>
    %280 = arith.mulf %271, %256 : vector<8x128xf32>
    %281 = arith.mulf %265, %273 : vector<8x128xf32>
    %282 = arith.addf %280, %281 : vector<8x128xf32>
    %283 = math.tanh %282 : vector<8x128xf32>
    %284 = arith.mulf %279, %283 : vector<8x128xf32>
    %c0_129 = arith.constant 0 : index
    %c0_130 = arith.constant 0 : index
    %285 = vector.load %arg8[%c0_129, %c0_130] : memref<8x128xf32, #tpu.memory_space<vmem>>, vector<8x128xf32>
    tpu.vector_store %arg8[%c0_129, %c0_130], %284 {strides = array<i32>} : memref<8x128xf32, #tpu.memory_space<vmem>>, vector<8x128xf32>,
    %c0_131 = arith.constant 0 : index
    %c0_132 = arith.constant 0 : index
    %286 = vector.load %arg9[%c0_131, %c0_132] : memref<8x128xf32, #tpu.memory_space<vmem>>, vector<8x128xf32>
    tpu.vector_store %arg9[%c0_131, %c0_132], %282 {strides = array<i32>} : memref<8x128xf32, #tpu.memory_space<vmem>>, vector<8x128xf32>,
    %287 = arith.index_cast %c6_i32 : i32 to index
    %c0_133 = arith.constant 0 : index
    %c0_134 = arith.constant 0 : index
    %288 = vector.load %arg6[%287, %c0_133, %c0_134] : memref<8x8x128xf32, #tpu.memory_space<vmem>>, vector<1x8x128xf32>
    %289 = vector.shape_cast %288 : vector<1x8x128xf32> to vector<8x128xf32>
    %290 = vector.shape_cast %284 : vector<8x128xf32> to vector<1x8x128xf32>
    tpu.vector_store %arg6[%287, %c0_133, %c0_134], %290 {strides = array<i32>} : memref<8x8x128xf32, #tpu.memory_space<vmem>>, vector<1x8x128xf32>,
    %c7_i32 = arith.constant 7 : i32
    %c8_i32_135 = arith.constant 8 : i32
    %291 = arith.muli %c7_i32, %c8_i32_135 : i32
    %292 = tpu.assume_multiple %291, 8 : i32
    %293 = arith.index_cast %292 : i32 to index
    %c0_136 = arith.constant 0 : index
    %294 = vector.load %arg7[%293, %c0_136] : memref<64x512xf32, #tpu.memory_space<vmem>>, vector<8x512xf32>
    %c0_137 = arith.constant 0 : index
    %c0_138 = arith.constant 0 : index
    %295 = vector.load %arg8[%c0_137, %c0_138] : memref<8x128xf32, #tpu.memory_space<vmem>>, vector<8x128xf32>
    %c0_139 = arith.constant 0 : index
    %c0_140 = arith.constant 0 : index
    %296 = vector.load %arg9[%c0_139, %c0_140] : memref<8x128xf32, #tpu.memory_space<vmem>>, vector<8x128xf32>
    %c0_141 = arith.constant 0 : index
    %c0_142 = arith.constant 0 : index
    %297 = vector.load %arg4[%c0_141, %c0_142] : memref<128x512xf32, #tpu.memory_space<vmem>>, vector<128x512xf32>
    %cst_143 = arith.constant dense<0.000000e+00> : vector<8x512xf32>
    %298 = tpu.matmul %295, %297, %cst_143 {dimension_numbers = #tpu.dot_dimension_numbers<[1], [0], [0], [1], [0, 0, 1, 1], [], []>} : vector<8x128xf32>, vector<128x512xf32>, vector<8x512xf32> -> vector<8x512xf32>
    %299 = arith.addf %294, %298 : vector<8x512xf32>
    %300 = vector.extract_strided_slice %299 {offsets = [0, 0], sizes = [8, 128], strides = [1, 1]} : vector<8x512xf32> to vector<8x128xf32>
    %301 = arith.negf %300 : vector<8x128xf32>
    %302 = math.exp %301 : vector<8x128xf32>
    %cst_144 = arith.constant 1.000000e+00 : f32
    %303 = vector.broadcast %cst_144 : f32 to vector<8x128xf32>
    %304 = arith.addf %303, %302 : vector<8x128xf32>
    %305 = arith.divf %303, %304 : vector<8x128xf32>
    %306 = vector.extract_strided_slice %299 {offsets = [0, 128], sizes = [8, 128], strides = [1, 1]} : vector<8x512xf32> to vector<8x128xf32>
    %307 = arith.negf %306 : vector<8x128xf32>
    %308 = math.exp %307 : vector<8x128xf32>
    %cst_145 = arith.constant 1.000000e+00 : f32
    %309 = vector.broadcast %cst_145 : f32 to vector<8x128xf32>
    %310 = arith.addf %309, %308 : vector<8x128xf32>
    %311 = arith.divf %309, %310 : vector<8x128xf32>
    %312 = vector.extract_strided_slice %299 {offsets = [0, 256], sizes = [8, 128], strides = [1, 1]} : vector<8x512xf32> to vector<8x128xf32>
    %313 = math.tanh %312 : vector<8x128xf32>
    %314 = vector.extract_strided_slice %299 {offsets = [0, 384], sizes = [8, 128], strides = [1, 1]} : vector<8x512xf32> to vector<8x128xf32>
    %315 = arith.negf %314 : vector<8x128xf32>
    %316 = math.exp %315 : vector<8x128xf32>
    %cst_146 = arith.constant 1.000000e+00 : f32
    %317 = vector.broadcast %cst_146 : f32 to vector<8x128xf32>
    %318 = arith.addf %317, %316 : vector<8x128xf32>
    %319 = arith.divf %317, %318 : vector<8x128xf32>
    %320 = arith.mulf %311, %296 : vector<8x128xf32>
    %321 = arith.mulf %305, %313 : vector<8x128xf32>
    %322 = arith.addf %320, %321 : vector<8x128xf32>
    %323 = math.tanh %322 : vector<8x128xf32>
    %324 = arith.mulf %319, %323 : vector<8x128xf32>
    %c0_147 = arith.constant 0 : index
    %c0_148 = arith.constant 0 : index
    %325 = vector.load %arg8[%c0_147, %c0_148] : memref<8x128xf32, #tpu.memory_space<vmem>>, vector<8x128xf32>
    tpu.vector_store %arg8[%c0_147, %c0_148], %324 {strides = array<i32>} : memref<8x128xf32, #tpu.memory_space<vmem>>, vector<8x128xf32>,
    %c0_149 = arith.constant 0 : index
    %c0_150 = arith.constant 0 : index
    %326 = vector.load %arg9[%c0_149, %c0_150] : memref<8x128xf32, #tpu.memory_space<vmem>>, vector<8x128xf32>
    tpu.vector_store %arg9[%c0_149, %c0_150], %322 {strides = array<i32>} : memref<8x128xf32, #tpu.memory_space<vmem>>, vector<8x128xf32>,
    %327 = arith.index_cast %c7_i32 : i32 to index
    %c0_151 = arith.constant 0 : index
    %c0_152 = arith.constant 0 : index
    %328 = vector.load %arg6[%327, %c0_151, %c0_152] : memref<8x8x128xf32, #tpu.memory_space<vmem>>, vector<1x8x128xf32>
    %329 = vector.shape_cast %328 : vector<1x8x128xf32> to vector<8x128xf32>
    %330 = vector.shape_cast %324 : vector<8x128xf32> to vector<1x8x128xf32>
    tpu.vector_store %arg6[%327, %c0_151, %c0_152], %330 {strides = array<i32>} : memref<8x8x128xf32, #tpu.memory_space<vmem>>, vector<1x8x128xf32>,
    %c8_i32_153 = arith.constant 8 : i32
    return
  }
  func.func @transform_0(%arg0: i32, %arg1: i32) -> (i32, i32, i32) {
    %c0_i32 = arith.constant 0 : i32
    %c0_i32_0 = arith.constant 0 : i32
    return %arg1, %arg0, %c0_i32 : i32, i32, i32
  }
  func.func @transform_1(%arg0: i32, %arg1: i32) -> (i32, i32) {
    %c0_i32 = arith.constant 0 : i32
    %c0_i32_0 = arith.constant 0 : i32
    %c0_i32_1 = arith.constant 0 : i32
    return %c0_i32, %c0_i32_0 : i32, i32
  }
  func.func @transform_2(%arg0: i32, %arg1: i32) -> (i32, i32) {
    %c0_i32 = arith.constant 0 : i32
    %c0_i32_0 = arith.constant 0 : i32
    %c0_i32_1 = arith.constant 0 : i32
    return %c0_i32, %c0_i32_0 : i32, i32
  }
  func.func @transform_3(%arg0: i32, %arg1: i32) -> (i32, i32) {
    %c0_i32 = arith.constant 0 : i32
    %c0_i32_0 = arith.constant 0 : i32
    %c0_i32_1 = arith.constant 0 : i32
    return %c0_i32, %c0_i32_0 : i32, i32
  }
  func.func @transform_4(%arg0: i32, %arg1: i32) -> (i32, i32, i32) {
    %c0_i32 = arith.constant 0 : i32
    %c0_i32_0 = arith.constant 0 : i32
    return %arg1, %arg0, %c0_i32 : i32, i32, i32
  }
}

</mosaic_0001>

<llo_original>
// kernel: static_lstm_forward.2
$region0: #{static_lstm_forward.2}
  #allocation0 [shape = 'u32[]', space=smem, size = 0x4, offset = 0x4, fixed_abs, tag = 'smem constant byte address 0x4 - core index']
  #allocation1 [shape = 'u32[144,128]{1,0:T(1,128)}', space=vmem, size = 0x12000, scoped, tag = 'internal scratch']
  #allocation2 [shape = 'f32[64,512]{1,0:T(8,128)}', space=vmem, size = 0x20000, scoped, tag = 'scratch operand']
  #allocation3 [shape = 'f32[8,128]{1,0:T(8,128)}', space=vmem, size = 0x1000, scoped, tag = 'scratch operand']
  #allocation4 [shape = 'f32[8,128]{1,0:T(8,128)}', space=vmem, size = 0x1000, scoped, tag = 'scratch operand']
  %s0 = inlined_call_operand.vmem [shape: f32[8,8,4], index: 0, kind: input, shape index: {}]
  %s1 = inlined_call_operand.vmem [shape: f32[4,512], index: 1, kind: input, shape index: {}]
  %s2 = inlined_call_operand.hbm [shape: f32[128,512], index: 2, kind: input, shape index: {}]
  %s3 = inlined_call_operand.vmem [shape: f32[1,512], index: 3, kind: input, shape index: {}]
  %s4 = inlined_call_operand.vmem [shape: f32[8,8,128], index: 4, kind: output, shape index: {}]
  %s5 = sld [smem:[#allocation0]]
  $region34: #{static_lstm_forward.2} parent=0
    _
  %s7 = ssub.s32 1, %s5
  %s8 = scalar_select 0, %s7, %s5
  $region1: #{static_lstm_forward.2} parent=0
    #allocation5 [shape = 'u8[262144]{0}', space=vmem, size = 0x40000, scoped, tag = 'input window, operand 2, single buffered']
    #allocation6 [shape = 's32[1]{0}', space=sflag, size = 0x4, scoped, tag = 'scoped memory for static_lstm_forward.2']
    %9 = vsyncpa [#allocation6], 0
    // Predicated region
    $region2: #{static_lstm_forward.2} parent=1 // pred_check
      _
    $region3: #{static_lstm_forward.2} parent=1 // pred_check_branch
      %11 = sbr.rel (0) target = $region5
    $region4: #{static_lstm_forward.2} parent=1 // pred_region
      _
    $region5: #{static_lstm_forward.2} parent=1 // pred_fallthru
      _
    // Predicated region
    $region6: #{static_lstm_forward.2} parent=1 // pred_check
      _
    $region7: #{static_lstm_forward.2} parent=1 // pred_check_branch
      %13 = sbr.rel (0) target = $region9
    $region8: #{static_lstm_forward.2} parent=1 // pred_region
      _
    $region9: #{static_lstm_forward.2} parent=1 // pred_fallthru
      _
    // Predicated region
    $region10: #{static_lstm_forward.2} parent=1 // pred_check
      _
    $region11: #{static_lstm_forward.2} parent=1 // pred_check_branch
      %15 = sbr.rel (0) target = $region13
    $region12: #{static_lstm_forward.2} parent=1 // pred_region
      %s17 = ssub.s32 8192, 8192
      %18 = vsyncadd [#allocation6], %s17
      %s19 = sshll.u32 [#allocation5], 4
      %s20 = int_to_ptr.vmem [resolvable:$true] %s19
      %25 = dma.hbm_to_vmem [thread:$0]  %s2, 8192, %s20, [#allocation6], 512, 512, 32
    $region13: #{static_lstm_forward.2} parent=1 // pred_fallthru
      _
    // Predicated region
    $region14: #{static_lstm_forward.2} parent=1 // pred_check
      _
    $region15: #{static_lstm_forward.2} parent=1 // pred_check_branch
      %27 = sbr.rel (0) target = $region17
    $region16: #{static_lstm_forward.2} parent=1 // pred_region
      _
    $region17: #{static_lstm_forward.2} parent=1 // pred_fallthru
      _
    // Predicated region
    $region18: #{static_lstm_forward.2} parent=1 // pred_check
      _
    $region19: #{static_lstm_forward.2} parent=1 // pred_check_branch
      %29 = sbr.rel (0) target = $region21
    $region20: #{static_lstm_forward.2} parent=1 // pred_region
      %30 = dma.done [#allocation6], 8192
    $region21: #{static_lstm_forward.2} parent=1 // pred_fallthru
      _
    %p31 = scmp.eq.s32.totalorder 0, 0
    // Predicated region
    $region22: #{static_lstm_forward.2} parent=1 // pred_check
      %p32 = pneg %p31
    $region23: #{static_lstm_forward.2} parent=1 // pred_check_branch
      %34 = sbr.rel (%p32) target = $region25
    $region24: #{static_lstm_forward.2} parent=1 // pred_region
      %35 = vst [vmem:[#allocation3] sm:$0xff] 0.0
      %36 = vst [vmem:[#allocation4] sm:$0xff] 0.0
    $region25: #{static_lstm_forward.2} parent=1 // pred_fallthru
      _
    %v37 = vld [vmem:[%s0] sm:$0xff]
    %v38 = vld [vmem:[%s0 + $0x8] sm:$0xff]
    %v39 = vld [vmem:[%s0 + $0x10] sm:$0xff]
    %v40 = vld [vmem:[%s0 + $0x18] sm:$0xff]
    %v41 = vld [vmem:[%s0 + $0x20] sm:$0xff]
    %v42 = vld [vmem:[%s0 + $0x28] sm:$0xff]
    %v43 = vld [vmem:[%s0 + $0x30] sm:$0xff]
    %v44 = vld [vmem:[%s0 + $0x38] sm:$0xff]
    %v45 = vld [vmem:[%s1] sm:$0xff]
    %v46 = vld [vmem:[%s1 + $0x8] sm:$0xff]
    %v47 = vld [vmem:[%s3] sm:$0xf]
    %v49 = vlaneseq
    %v50 = vshrl.u32 %v49, 7
    %v51 = vsub.s32 0, %v50
    %v52 = vrot.slane %v47, %v51
    %v53 = vlaneseq
    %v54 = vshrl.u32 %v53, 7
    %v55 = vsub.s32 1, %v54
    %v56 = vrot.slane %v47, %v55
    %v57 = vlaneseq
    %v58 = vshrl.u32 %v57, 7
    %v59 = vsub.s32 2, %v58
    %v60 = vrot.slane %v47, %v59
    %v61 = vlaneseq
    %v62 = vshrl.u32 %v61, 7
    %v63 = vsub.s32 3, %v62
    %v64 = vrot.slane %v47, %v63
    %v71 = vcombine.high %v45, %v45
    %v72 = vcombine.high %v46, %v46
    %vm73 = vcmask 31744
    %v75 = vsel %vm73, %v37, 0
    %v78 = vsel %vm73, %v38, 0
    %v81 = vsel %vm73, %v39, 0
    %v84 = vsel %vm73, %v40, 0
    %v87 = vsel %vm73, %v41, 0
    %v90 = vsel %vm73, %v42, 0
    %v93 = vsel %vm73, %v43, 0
    %v96 = vsel %vm73, %v44, 0
    %vm98 = vcmask 1043456
    %v99 = vsel %vm98, %v45, 0
    %v101 = vsel %vm98, %v71, 0
    %v103 = vsel %vm98, %v46, 0
    %v105 = vsel %vm98, %v72, 0
    %107 = vmatprep.subr.mxu0 %v101
    %108 = vmatpush1.msra.mxu0 %v99
    %109 = vmatprep.subr.mxu0 0.0
    %110 = vmatpush1.msra.mxu0 0.0
    %111 = vmatprep.subr.mxu0 0.0
    %112 = vmatpush1.msra.mxu0 0.0
    %113 = vmatprep.subr.mxu0 0.0
    %114 = vmatpush1.msra.mxu0 0.0
    %115 = vmatprep.subr.mxu0 0.0
    %116 = vmatpush1.msra.mxu0 0.0
    %117 = vmatprep.subr.mxu0 0.0
    %118 = vmatpush1.msra.mxu0 0.0
    %119 = vmatprep.subr.mxu0 0.0
    %120 = vmatpush1.msra.mxu0 0.0
    %121 = vmatprep.subr.mxu0 0.0
    %122 = vmatpush1.msra.mxu0 0.0
    %123 = vmatprep.subr.mxu0 0.0
    %124 = vmatpush1.msra.mxu0 0.0
    %125 = vmatprep.subr.mxu0 0.0
    %126 = vmatpush1.msra.mxu0 0.0
    %127 = vmatprep.subr.mxu0 0.0
    %128 = vmatpush1.msra.mxu0 0.0
    %129 = vmatprep.subr.mxu0 0.0
    %130 = vmatpush1.msra.mxu0 0.0
    %131 = vmatprep.subr.mxu0 0.0
    %132 = vmatpush1.msra.mxu0 0.0
    %133 = vmatprep.subr.mxu0 0.0
    %134 = vmatpush1.msra.mxu0 0.0
    %135 = vmatprep.subr.mxu0 0.0
    %136 = vmatpush1.msra.mxu0 0.0
    %137 = vmatprep.subr.mxu0 0.0
    %138 = vmatpush1.msra.mxu0 0.0
    %139 = vmatprep.subr.mxu0 0.0
    %140 = vmatpush1.msra.mxu0 0.0
    %141 = vmatprep.subr.mxu0 0.0
    %142 = vmatpush1.msra.mxu0 0.0
    %143 = vmatprep.subr.mxu0 0.0
    %144 = vmatpush1.msra.mxu0 0.0
    %145 = vmatprep.subr.mxu0 0.0
    %146 = vmatpush1.msra.mxu0 0.0
    %147 = vmatprep.subr.mxu0 0.0
    %148 = vmatpush1.msra.mxu0 0.0
    %149 = vmatprep.subr.mxu0 0.0
    %150 = vmatpush1.msra.mxu0 0.0
    %151 = vmatprep.subr.mxu0 0.0
    %152 = vmatpush1.msra.mxu0 0.0
    %153 = vmatprep.subr.mxu0 0.0
    %154 = vmatpush1.msra.mxu0 0.0
    %155 = vmatprep.subr.mxu0 0.0
    %156 = vmatpush1.msra.mxu0 0.0
    %157 = vmatprep.subr.mxu0 0.0
    %158 = vmatpush1.msra.mxu0 0.0
    %159 = vmatprep.subr.mxu0 0.0
    %160 = vmatpush1.msra.mxu0 0.0
    %161 = vmatprep.subr.mxu0 0.0
    %162 = vmatpush1.msra.mxu0 0.0
    %163 = vmatprep.subr.mxu0 0.0
    %164 = vmatpush1.msra.mxu0 0.0
    %165 = vmatprep.subr.mxu0 0.0
    %166 = vmatpush1.msra.mxu0 0.0
    %167 = vmatprep.subr.mxu0 0.0
    %168 = vmatpush1.msra.mxu0 0.0
    %169 = vmatprep.subr.mxu0 0.0
    %170 = vmatpush1.msra.mxu0 0.0
    %171 = vmatprep.mubr.f32.mxu0 0.0
    %172 = vmatmul.mubr.f32.gmra.mrb[0].mxu0 %v75
    %v173 = vpop.f32.mrb[0].mxu0
    %v174 = vadd.f32 %v52, %v173
    %v175 = vpop.f32.mrb[0].mxu0
    %v176 = vadd.f32 %v56, %v175
    %177 = vmatprep.mubr.f32.mxu0 0.0
    %178 = vmatmul.mubr.f32.gmra.mrb[0].mxu0 %v78
    %v179 = vpop.f32.mrb[0].mxu0
    %v180 = vadd.f32 %v52, %v179
    %v181 = vpop.f32.mrb[0].mxu0
    %v182 = vadd.f32 %v56, %v181
    %183 = vmatprep.mubr.f32.mxu0 0.0
    %184 = vmatmul.mubr.f32.gmra.mrb[0].mxu0 %v81
    %v185 = vpop.f32.mrb[0].mxu0
    %v186 = vadd.f32 %v52, %v185
    %v187 = vpop.f32.mrb[0].mxu0
    %v188 = vadd.f32 %v56, %v187
    %189 = vmatprep.mubr.f32.mxu0 0.0
    %190 = vmatmul.mubr.f32.gmra.mrb[0].mxu0 %v84
    %v191 = vpop.f32.mrb[0].mxu0
    %v192 = vadd.f32 %v52, %v191
    %v193 = vpop.f32.mrb[0].mxu0
    %v194 = vadd.f32 %v56, %v193
    %195 = vmatprep.mubr.f32.mxu0 0.0
    %196 = vmatmul.mubr.f32.gmra.mrb[0].mxu0 %v87
    %v197 = vpop.f32.mrb[0].mxu0
    %v198 = vadd.f32 %v52, %v197
    %v199 = vpop.f32.mrb[0].mxu0
    %v200 = vadd.f32 %v56, %v199
    %201 = vmatprep.mubr.f32.mxu0 0.0
    %202 = vmatmul.mubr.f32.gmra.mrb[0].mxu0 %v90
    %v203 = vpop.f32.mrb[0].mxu0
    %v204 = vadd.f32 %v52, %v203
    %v205 = vpop.f32.mrb[0].mxu0
    %v206 = vadd.f32 %v56, %v205
    %207 = vmatprep.mubr.f32.mxu0 0.0
    %208 = vmatmul.mubr.f32.gmra.mrb[0].mxu0 %v93
    %v209 = vpop.f32.mrb[0].mxu0
    %v210 = vadd.f32 %v52, %v209
    %v211 = vpop.f32.mrb[0].mxu0
    %v212 = vadd.f32 %v56, %v211
    %213 = vmatprep.mubr.f32.mxu0 0.0
    %214 = vmatmul.mubr.f32.gmra.mrb[0].mxu0 %v96
    %v215 = vpop.f32.mrb[0].mxu0
    %v216 = vadd.f32 %v52, %v215
    %v217 = vpop.f32.mrb[0].mxu0
    %v218 = vadd.f32 %v56, %v217
    %219 = vdwg.mxu0
    %220 = vmatprep.subr.mxu0 %v105
    %221 = vmatpush1.msra.mxu0 %v103
    %222 = vmatprep.subr.mxu0 0.0
    %223 = vmatpush1.msra.mxu0 0.0
    %224 = vmatprep.subr.mxu0 0.0
    %225 = vmatpush1.msra.mxu0 0.0
    %226 = vmatprep.subr.mxu0 0.0
    %227 = vmatpush1.msra.mxu0 0.0
    %228 = vmatprep.subr.mxu0 0.0
    %229 = vmatpush1.msra.mxu0 0.0
    %230 = vmatprep.subr.mxu0 0.0
    %231 = vmatpush1.msra.mxu0 0.0
    %232 = vmatprep.subr.mxu0 0.0
    %233 = vmatpush1.msra.mxu0 0.0
    %234 = vmatprep.subr.mxu0 0.0
    %235 = vmatpush1.msra.mxu0 0.0
    %236 = vmatprep.subr.mxu0 0.0
    %237 = vmatpush1.msra.mxu0 0.0
    %238 = vmatprep.subr.mxu0 0.0
    %239 = vmatpush1.msra.mxu0 0.0
    %240 = vmatprep.subr.mxu0 0.0
    %241 = vmatpush1.msra.mxu0 0.0
    %242 = vmatprep.subr.mxu0 0.0
    %243 = vmatpush1.msra.mxu0 0.0
    %244 = vmatprep.subr.mxu0 0.0
    %245 = vmatpush1.msra.mxu0 0.0
    %246 = vmatprep.subr.mxu0 0.0
    %247 = vmatpush1.msra.mxu0 0.0
    %248 = vmatprep.subr.mxu0 0.0
    %249 = vmatpush1.msra.mxu0 0.0
    %250 = vmatprep.subr.mxu0 0.0
    %251 = vmatpush1.msra.mxu0 0.0
    %252 = vmatprep.subr.mxu0 0.0
    %253 = vmatpush1.msra.mxu0 0.0
    %254 = vmatprep.subr.mxu0 0.0
    %255 = vmatpush1.msra.mxu0 0.0
    %256 = vmatprep.subr.mxu0 0.0
    %257 = vmatpush1.msra.mxu0 0.0
    %258 = vmatprep.subr.mxu0 0.0
    %259 = vmatpush1.msra.mxu0 0.0
    %260 = vmatprep.subr.mxu0 0.0
    %261 = vmatpush1.msra.mxu0 0.0
    %262 = vmatprep.subr.mxu0 0.0
    %263 = vmatpush1.msra.mxu0 0.0
    %264 = vmatprep.subr.mxu0 0.0
    %265 = vmatpush1.msra.mxu0 0.0
    %266 = vmatprep.subr.mxu0 0.0
    %267 = vmatpush1.msra.mxu0 0.0
    %268 = vmatprep.subr.mxu0 0.0
    %269 = vmatpush1.msra.mxu0 0.0
    %270 = vmatprep.subr.mxu0 0.0
    %271 = vmatpush1.msra.mxu0 0.0
    %272 = vmatprep.subr.mxu0 0.0
    %273 = vmatpush1.msra.mxu0 0.0
    %274 = vmatprep.subr.mxu0 0.0
    %275 = vmatpush1.msra.mxu0 0.0
    %276 = vmatprep.subr.mxu0 0.0
    %277 = vmatpush1.msra.mxu0 0.0
    %278 = vmatprep.subr.mxu0 0.0
    %279 = vmatpush1.msra.mxu0 0.0
    %280 = vmatprep.subr.mxu0 0.0
    %281 = vmatpush1.msra.mxu0 0.0
    %282 = vmatprep.subr.mxu0 0.0
    %283 = vmatpush1.msra.mxu0 0.0
    %284 = vmatprep.mubr.f32.mxu0 0.0
    %285 = vmatmul.mubr.f32.gmra.mrb[0].mxu0 %v75
    %v286 = vpop.f32.mrb[0].mxu0
    %v287 = vadd.f32 %v60, %v286
    %v288 = vpop.f32.mrb[0].mxu0
    %v289 = vadd.f32 %v64, %v288
    %290 = vmatprep.mubr.f32.mxu0 0.0
    %291 = vmatmul.mubr.f32.gmra.mrb[0].mxu0 %v78
    %v292 = vpop.f32.mrb[0].mxu0
    %v293 = vadd.f32 %v60, %v292
    %v294 = vpop.f32.mrb[0].mxu0
    %v295 = vadd.f32 %v64, %v294
    %296 = vmatprep.mubr.f32.mxu0 0.0
    %297 = vmatmul.mubr.f32.gmra.mrb[0].mxu0 %v81
    %v298 = vpop.f32.mrb[0].mxu0
    %v299 = vadd.f32 %v60, %v298
    %v300 = vpop.f32.mrb[0].mxu0
    %v301 = vadd.f32 %v64, %v300
    %302 = vmatprep.mubr.f32.mxu0 0.0
    %303 = vmatmul.mubr.f32.gmra.mrb[0].mxu0 %v84
    %v304 = vpop.f32.mrb[0].mxu0
    %v305 = vadd.f32 %v60, %v304
    %v306 = vpop.f32.mrb[0].mxu0
    %v307 = vadd.f32 %v64, %v306
    %308 = vmatprep.mubr.f32.mxu0 0.0
    %309 = vmatmul.mubr.f32.gmra.mrb[0].mxu0 %v87
    %v310 = vpop.f32.mrb[0].mxu0
    %v311 = vadd.f32 %v60, %v310
    %v312 = vpop.f32.mrb[0].mxu0
    %v313 = vadd.f32 %v64, %v312
    %314 = vmatprep.mubr.f32.mxu0 0.0
    %315 = vmatmul.mubr.f32.gmra.mrb[0].mxu0 %v90
    %v316 = vpop.f32.mrb[0].mxu0
    %v317 = vadd.f32 %v60, %v316
    %v318 = vpop.f32.mrb[0].mxu0
    %v319 = vadd.f32 %v64, %v318
    %320 = vmatprep.mubr.f32.mxu0 0.0
    %321 = vmatmul.mubr.f32.gmra.mrb[0].mxu0 %v93
    %v322 = vpop.f32.mrb[0].mxu0
    %v323 = vadd.f32 %v60, %v322
    %v324 = vpop.f32.mrb[0].mxu0
    %v325 = vadd.f32 %v64, %v324
    %326 = vmatprep.mubr.f32.mxu0 0.0
    %327 = vmatmul.mubr.f32.gmra.mrb[0].mxu0 %v96
    %v328 = vpop.f32.mrb[0].mxu0
    %v329 = vadd.f32 %v60, %v328
    %v330 = vpop.f32.mrb[0].mxu0
    %v331 = vadd.f32 %v64, %v330
    %332 = vdwg.mxu0
    %333 = vst [vmem:[#allocation2] sm:$0xff] %v174
    %334 = vst [vmem:[#allocation2 + $0x8] sm:$0xff] %v176
    %335 = vst [vmem:[#allocation2 + $0x10] sm:$0xff] %v287
    %336 = vst [vmem:[#allocation2 + $0x18] sm:$0xff] %v289
    %337 = vst [vmem:[#allocation2 + $0x20] sm:$0xff] %v180
    %338 = vst [vmem:[#allocation2 + $0x28] sm:$0xff] %v182
    %339 = vst [vmem:[#allocation2 + $0x30] sm:$0xff] %v293
    %340 = vst [vmem:[#allocation2 + $0x38] sm:$0xff] %v295
    %341 = vst [vmem:[#allocation2 + $0x40] sm:$0xff] %v186
    %342 = vst [vmem:[#allocation2 + $0x48] sm:$0xff] %v188
    %343 = vst [vmem:[#allocation2 + $0x50] sm:$0xff] %v299
    %344 = vst [vmem:[#allocation2 + $0x58] sm:$0xff] %v301
    %345 = vst [vmem:[#allocation2 + $0x60] sm:$0xff] %v192
    %346 = vst [vmem:[#allocation2 + $0x68] sm:$0xff] %v194
    %347 = vst [vmem:[#allocation2 + $0x70] sm:$0xff] %v305
    %348 = vst [vmem:[#allocation2 + $0x78] sm:$0xff] %v307
    %349 = vst [vmem:[#allocation2 + $0x80] sm:$0xff] %v198
    %350 = vst [vmem:[#allocation2 + $0x88] sm:$0xff] %v200
    %351 = vst [vmem:[#allocation2 + $0x90] sm:$0xff] %v311
    %352 = vst [vmem:[#allocation2 + $0x98] sm:$0xff] %v313
    %353 = vst [vmem:[#allocation2 + $0xa0] sm:$0xff] %v204
    %354 = vst [vmem:[#allocation2 + $0xa8] sm:$0xff] %v206
    %355 = vst [vmem:[#allocation2 + $0xb0] sm:$0xff] %v317
    %356 = vst [vmem:[#allocation2 + $0xb8] sm:$0xff] %v319
    %357 = vst [vmem:[#allocation2 + $0xc0] sm:$0xff] %v210
    %358 = vst [vmem:[#allocation2 + $0xc8] sm:$0xff] %v212
    %359 = vst [vmem:[#allocation2 + $0xd0] sm:$0xff] %v323
    %360 = vst [vmem:[#allocation2 + $0xd8] sm:$0xff] %v325
    %361 = vst [vmem:[#allocation2 + $0xe0] sm:$0xff] %v216
    %362 = vst [vmem:[#allocation2 + $0xe8] sm:$0xff] %v218
    %363 = vst [vmem:[#allocation2 + $0xf0] sm:$0xff] %v329
    %364 = vst [vmem:[#allocation2 + $0xf8] sm:$0xff] %v331
    %s365 = smul.u32 0, 4
    %s366 = smul.addr %s365, 8
    %s367 = scalar_lea.vmem [#allocation2], %s366
    %v368 = vld [vmem:[%s367] sm:$0xff]
    %v369 = vld [vmem:[%s367 + $0x8] sm:$0xff]
    %v370 = vld [vmem:[%s367 + $0x10] sm:$0xff]
    %v371 = vld [vmem:[%s367 + $0x18] sm:$0xff]
    %v372 = vld [vmem:[#allocation3] sm:$0xff]
    %v373 = vld [vmem:[#allocation4] sm:$0xff]
    %v374 = vld [vmem:[#allocation5] sm:$0xff]
    %v375 = vld [vmem:[#allocation5 + $0x8] sm:$0xff]
    %v376 = vld [vmem:[#allocation5 + $0x10] sm:$0xff]
    %v377 = vld [vmem:[#allocation5 + $0x18] sm:$0xff]
    %v378 = vld [vmem:[#allocation5 + $0x20] sm:$0xff]
    %v379 = vld [vmem:[#allocation5 + $0x28] sm:$0xff]
    %v380 = vld [vmem:[#allocation5 + $0x30] sm:$0xff]
    %v381 = vld [vmem:[#allocation5 + $0x38] sm:$0xff]
    %v382 = vld [vmem:[#allocation5 + $0x40] sm:$0xff]
    %v383 = vld [vmem:[#allocation5 + $0x48] sm:$0xff]
    %v384 = vld [vmem:[#allocation5 + $0x50] sm:$0xff]
    %v385 = vld [vmem:[#allocation5 + $0x58] sm:$0xff]
    %v386 = vld [vmem:[#allocation5 + $0x60] sm:$0xff]
    %v387 = vld [vmem:[#allocation5 + $0x68] sm:$0xff]
    %v388 = vld [vmem:[#allocation5 + $0x70] sm:$0xff]
    %v389 = vld [vmem:[#allocation5 + $0x78] sm:$0xff]
    %v390 = vld [vmem:[#allocation5 + $0x80] sm:$0xff]
    %v391 = vld [vmem:[#allocation5 + $0x88] sm:$0xff]
    %v392 = vld [vmem:[#allocation5 + $0x90] sm:$0xff]
    %v393 = vld [vmem:[#allocation5 + $0x98] sm:$0xff]
    %v394 = vld [vmem:[#allocation5 + $0xa0] sm:$0xff]
    %v395 = vld [vmem:[#allocation5 + $0xa8] sm:$0xff]
    %v396 = vld [vmem:[#allocation5 + $0xb0] sm:$0xff]
    %v397 = vld [vmem:[#allocation5 + $0xb8] sm:$0xff]
    %v398 = vld [vmem:[#allocation5 + $0xc0] sm:$0xff]
    %v399 = vld [vmem:[#allocation5 + $0xc8] sm:$0xff]
    %v400 = vld [vmem:[#allocation5 + $0xd0] sm:$0xff]
    %v401 = vld [vmem:[#allocation5 + $0xd8] sm:$0xff]
    %v402 = vld [vmem:[#allocation5 + $0xe0] sm:$0xff]
    %v403 = vld [vmem:[#allocation5 + $0xe8] sm:$0xff]
    %v404 = vld [vmem:[#allocation5 + $0xf0] sm:$0xff]
    %v405 = vld [vmem:[#allocation5 + $0xf8] sm:$0xff]
    %v406 = vld [vmem:[#allocation5 + $0x100] sm:$0xff]
    %v407 = vld [vmem:[#allocation5 + $0x108] sm:$0xff]
    %v408 = vld [vmem:[#allocation5 + $0x110] sm:$0xff]
    %v409 = vld [vmem:[#allocation5 + $0x118] sm:$0xff]
    %v410 = vld [vmem:[#allocation5 + $0x120] sm:$0xff]
    %v411 = vld [vmem:[#allocation5 + $0x128] sm:$0xff]
    %v412 = vld [vmem:[#allocation5 + $0x130] sm:$0xff]
    %v413 = vld [vmem:[#allocation5 + $0x138] sm:$0xff]
    %v414 = vld [vmem:[#allocation5 + $0x140] sm:$0xff]
    %v415 = vld [vmem:[#allocation5 + $0x148] sm:$0xff]
    %v416 = vld [vmem:[#allocation5 + $0x150] sm:$0xff]
    %v417 = vld [vmem:[#allocation5 + $0x158] sm:$0xff]
    %v418 = vld [vmem:[#allocation5 + $0x160] sm:$0xff]
    %v419 = vld [vmem:[#allocation5 + $0x168] sm:$0xff]
    %v420 = vld [vmem:[#allocation5 + $0x170] sm:$0xff]
    %v421 = vld [vmem:[#allocation5 + $0x178] sm:$0xff]
    %v422 = vld [vmem:[#allocation5 + $0x180] sm:$0xff]
    %v423 = vld [vmem:[#allocation5 + $0x188] sm:$0xff]
    %v424 = vld [vmem:[#allocation5 + $0x190] sm:$0xff]
    %v425 = vld [vmem:[#allocation5 + $0x198] sm:$0xff]
    %v426 = vld [vmem:[#allocation5 + $0x1a0] sm:$0xff]
    %v427 = vld [vmem:[#allocation5 + $0x1a8] sm:$0xff]
    %v428 = vld [vmem:[#allocation5 + $0x1b0] sm:$0xff]
    %v429 = vld [vmem:[#allocation5 + $0x1b8] sm:$0xff]
    %v430 = vld [vmem:[#allocation5 + $0x1c0] sm:$0xff]
    %v431 = vld [vmem:[#allocation5 + $0x1c8] sm:$0xff]
    %v432 = vld [vmem:[#allocation5 + $0x1d0] sm:$0xff]
    %v433 = vld [vmem:[#allocation5 + $0x1d8] sm:$0xff]
    %v434 = vld [vmem:[#allocation5 + $0x1e0] sm:$0xff]
    %v435 = vld [vmem:[#allocation5 + $0x1e8] sm:$0xff]
    %v436 = vld [vmem:[#allocation5 + $0x1f0] sm:$0xff]
    %v437 = vld [vmem:[#allocation5 + $0x1f8] sm:$0xff]
    %438 = vmatprep.subr.mxu0 %v375
    %439 = vmatpush1.msra.mxu0 %v374
    %440 = vmatprep.subr.mxu0 %v379
    %441 = vmatpush1.msra.mxu0 %v378
    %442 = vmatprep.subr.mxu0 %v383
    %443 = vmatpush1.msra.mxu0 %v382
    %444 = vmatprep.subr.mxu0 %v387
    %445 = vmatpush1.msra.mxu0 %v386
    %446 = vmatprep.subr.mxu0 %v391
    %447 = vmatpush1.msra.mxu0 %v390
    %448 = vmatprep.subr.mxu0 %v395
    %449 = vmatpush1.msra.mxu0 %v394
    %450 = vmatprep.subr.mxu0 %v399
    %451 = vmatpush1.msra.mxu0 %v398
    %452 = vmatprep.subr.mxu0 %v403
    %453 = vmatpush1.msra.mxu0 %v402
    %454 = vmatprep.subr.mxu0 %v407
    %455 = vmatpush1.msra.mxu0 %v406
    %456 = vmatprep.subr.mxu0 %v411
    %457 = vmatpush1.msra.mxu0 %v410
    %458 = vmatprep.subr.mxu0 %v415
    %459 = vmatpush1.msra.mxu0 %v414
    %460 = vmatprep.subr.mxu0 %v419
    %461 = vmatpush1.msra.mxu0 %v418
    %462 = vmatprep.subr.mxu0 %v423
    %463 = vmatpush1.msra.mxu0 %v422
    %464 = vmatprep.subr.mxu0 %v427
    %465 = vmatpush1.msra.mxu0 %v426
    %466 = vmatprep.subr.mxu0 %v431
    %467 = vmatpush1.msra.mxu0 %v430
    %468 = vmatprep.subr.mxu0 %v435
    %469 = vmatpush1.msra.mxu0 %v434
    %470 = vmatprep.subr.mxu0 0.0
    %471 = vmatpush1.msra.mxu0 0.0
    %472 = vmatprep.subr.mxu0 0.0
    %473 = vmatpush1.msra.mxu0 0.0
    %474 = vmatprep.subr.mxu0 0.0
    %475 = vmatpush1.msra.mxu0 0.0
    %476 = vmatprep.subr.mxu0 0.0
    %477 = vmatpush1.msra.mxu0 0.0
    %478 = vmatprep.subr.mxu0 0.0
    %479 = vmatpush1.msra.mxu0 0.0
    %480 = vmatprep.subr.mxu0 0.0
    %481 = vmatpush1.msra.mxu0 0.0
    %482 = vmatprep.subr.mxu0 0.0
    %483 = vmatpush1.msra.mxu0 0.0
    %484 = vmatprep.subr.mxu0 0.0
    %485 = vmatpush1.msra.mxu0 0.0
    %486 = vmatprep.subr.mxu0 0.0
    %487 = vmatpush1.msra.mxu0 0.0
    %488 = vmatprep.subr.mxu0 0.0
    %489 = vmatpush1.msra.mxu0 0.0
    %490 = vmatprep.subr.mxu0 0.0
    %491 = vmatpush1.msra.mxu0 0.0
    %492 = vmatprep.subr.mxu0 0.0
    %493 = vmatpush1.msra.mxu0 0.0
    %494 = vmatprep.subr.mxu0 0.0
    %495 = vmatpush1.msra.mxu0 0.0
    %496 = vmatprep.subr.mxu0 0.0
    %497 = vmatpush1.msra.mxu0 0.0
    %498 = vmatprep.subr.mxu0 0.0
    %499 = vmatpush1.msra.mxu0 0.0
    %500 = vmatprep.subr.mxu0 0.0
    %501 = vmatpush1.msra.mxu0 0.0
    %502 = vmatprep.mubr.f32.mxu0 0.0
    %503 = vmatmul.mubr.f32.gmra.mrb[0].mxu0 %v372
    %v504 = vpop.f32.mrb[0].mxu0
    %v505 = vadd.f32 0.0, %v504
    %v506 = vpop.f32.mrb[0].mxu0
    %v507 = vadd.f32 0.0, %v506
    %508 = vdwg.mxu0
    %509 = vmatprep.subr.mxu0 %v377
    %510 = vmatpush1.msra.mxu0 %v376
    %511 = vmatprep.subr.mxu0 %v381
    %512 = vmatpush1.msra.mxu0 %v380
    %513 = vmatprep.subr.mxu0 %v385
    %514 = vmatpush1.msra.mxu0 %v384
    %515 = vmatprep.subr.mxu0 %v389
    %516 = vmatpush1.msra.mxu0 %v388
    %517 = vmatprep.subr.mxu0 %v393
    %518 = vmatpush1.msra.mxu0 %v392
    %519 = vmatprep.subr.mxu0 %v397
    %520 = vmatpush1.msra.mxu0 %v396
    %521 = vmatprep.subr.mxu0 %v401
    %522 = vmatpush1.msra.mxu0 %v400
    %523 = vmatprep.subr.mxu0 %v405
    %524 = vmatpush1.msra.mxu0 %v404
    %525 = vmatprep.subr.mxu0 %v409
    %526 = vmatpush1.msra.mxu0 %v408
    %527 = vmatprep.subr.mxu0 %v413
    %528 = vmatpush1.msra.mxu0 %v412
    %529 = vmatprep.subr.mxu0 %v417
    %530 = vmatpush1.msra.mxu0 %v416
    %531 = vmatprep.subr.mxu0 %v421
    %532 = vmatpush1.msra.mxu0 %v420
    %533 = vmatprep.subr.mxu0 %v425
    %534 = vmatpush1.msra.mxu0 %v424
    %535 = vmatprep.subr.mxu0 %v429
    %536 = vmatpush1.msra.mxu0 %v428
    %537 = vmatprep.subr.mxu0 %v433
    %538 = vmatpush1.msra.mxu0 %v432
    %539 = vmatprep.subr.mxu0 %v437
    %540 = vmatpush1.msra.mxu0 %v436
    %541 = vmatprep.subr.mxu0 0.0
    %542 = vmatpush1.msra.mxu0 0.0
    %543 = vmatprep.subr.mxu0 0.0
    %544 = vmatpush1.msra.mxu0 0.0
    %545 = vmatprep.subr.mxu0 0.0
    %546 = vmatpush1.msra.mxu0 0.0
    %547 = vmatprep.subr.mxu0 0.0
    %548 = vmatpush1.msra.mxu0 0.0
    %549 = vmatprep.subr.mxu0 0.0
    %550 = vmatpush1.msra.mxu0 0.0
    %551 = vmatprep.subr.mxu0 0.0
    %552 = vmatpush1.msra.mxu0 0.0
    %553 = vmatprep.subr.mxu0 0.0
    %554 = vmatpush1.msra.mxu0 0.0
    %555 = vmatprep.subr.mxu0 0.0
    %556 = vmatpush1.msra.mxu0 0.0
    %557 = vmatprep.subr.mxu0 0.0
    %558 = vmatpush1.msra.mxu0 0.0
    %559 = vmatprep.subr.mxu0 0.0
    %560 = vmatpush1.msra.mxu0 0.0
    %561 = vmatprep.subr.mxu0 0.0
    %562 = vmatpush1.msra.mxu0 0.0
    %563 = vmatprep.subr.mxu0 0.0
    %564 = vmatpush1.msra.mxu0 0.0
    %565 = vmatprep.subr.mxu0 0.0
    %566 = vmatpush1.msra.mxu0 0.0
    %567 = vmatprep.subr.mxu0 0.0
    %568 = vmatpush1.msra.mxu0 0.0
    %569 = vmatprep.subr.mxu0 0.0
    %570 = vmatpush1.msra.mxu0 0.0
    %571 = vmatprep.subr.mxu0 0.0
    %572 = vmatpush1.msra.mxu0 0.0
    %573 = vmatprep.mubr.f32.mxu0 0.0
    %574 = vmatmul.mubr.f32.gmra.mrb[0].mxu0 %v372
    %v575 = vpop.f32.mrb[0].mxu0
    %v576 = vadd.f32 0.0, %v575
    %v577 = vpop.f32.mrb[0].mxu0
    %v578 = vadd.f32 0.0, %v577
    %579 = vdwg.mxu0
    %v580 = vadd.f32 %v368, %v505
    %v581 = vadd.f32 %v369, %v507
    %v582 = vadd.f32 %v370, %v576
    %v583 = vadd.f32 %v371, %v578
    %v584 = vxor.u32 %v580, 2147483648
    %v585 = vmul.f32 %v584, 1.442695
    %v586 = vpow.pop %v585
    %v587 = vadd.f32 %v586, 1.0
    %v588 = vrcp.pop %v587
    %v589 = vmul.f32 1.0, %v588
    %v590 = vxor.u32 %v581, 2147483648
    %v591 = vmul.f32 %v590, 1.442695
    %v592 = vpow.pop %v591
    %v593 = vadd.f32 %v592, 1.0
    %v594 = vrcp.pop %v593
    %v595 = vmul.f32 1.0, %v594
    %v596 = vtanh.pop %v582
    %v597 = vxor.u32 %v583, 2147483648
    %v598 = vmul.f32 %v597, 1.442695
    %v599 = vpow.pop %v598
    %v600 = vadd.f32 %v599, 1.0
    %v601 = vrcp.pop %v600
    %v602 = vmul.f32 1.0, %v601
    %v603 = vmul.f32 %v595, %v373
    %v604 = vmul.f32 %v589, %v596
    %v605 = vadd.f32 %v603, %v604
    %v606 = vtanh.pop %v605
    %v607 = vmul.f32 %v602, %v606
    %608 = vst [vmem:[#allocation3] sm:$0xff] %v607
    %609 = vst [vmem:[#allocation4] sm:$0xff] %v605
    %610 = vst [vmem:[%s4] sm:$0xff] %v607
    %s611 = smul.u32 1, 4
    %s612 = smul.addr %s611, 8
    %s613 = scalar_lea.vmem [#allocation2], %s612
    %v614 = vld [vmem:[%s613] sm:$0xff]
    %v615 = vld [vmem:[%s613 + $0x8] sm:$0xff]
    %v616 = vld [vmem:[%s613 + $0x10] sm:$0xff]
    %v617 = vld [vmem:[%s613 + $0x18] sm:$0xff]
    %v618 = vld [vmem:[#allocation3] sm:$0xff]
    %v619 = vld [vmem:[#allocation4] sm:$0xff]
    %v620 = vld [vmem:[#allocation5] sm:$0xff]
    %v621 = vld [vmem:[#allocation5 + $0x8] sm:$0xff]
    %v622 = vld [vmem:[#allocation5 + $0x10] sm:$0xff]
    %v623 = vld [vmem:[#allocation5 + $0x18] sm:$0xff]
    %v624 = vld [vmem:[#allocation5 + $0x20] sm:$0xff]
    %v625 = vld [vmem:[#allocation5 + $0x28] sm:$0xff]
    %v626 = vld [vmem:[#allocation5 + $0x30] sm:$0xff]
    %v627 = vld [vmem:[#allocation5 + $0x38] sm:$0xff]
    %v628 = vld [vmem:[#allocation5 + $0x40] sm:$0xff]
    %v629 = vld [vmem:[#allocation5 + $0x48] sm:$0xff]
    %v630 = vld [vmem:[#allocation5 + $0x50] sm:$0xff]
    %v631 = vld [vmem:[#allocation5 + $0x58] sm:$0xff]
    %v632 = vld [vmem:[#allocation5 + $0x60] sm:$0xff]
    %v633 = vld [vmem:[#allocation5 + $0x68] sm:$0xff]
    %v634 = vld [vmem:[#allocation5 + $0x70] sm:$0xff]
    %v635 = vld [vmem:[#allocation5 + $0x78] sm:$0xff]
    %v636 = vld [vmem:[#allocation5 + $0x80] sm:$0xff]
    %v637 = vld [vmem:[#allocation5 + $0x88] sm:$0xff]
    %v638 = vld [vmem:[#allocation5 + $0x90] sm:$0xff]
    %v639 = vld [vmem:[#allocation5 + $0x98] sm:$0xff]
    %v640 = vld [vmem:[#allocation5 + $0xa0] sm:$0xff]
    %v641 = vld [vmem:[#allocation5 + $0xa8] sm:$0xff]
    %v642 = vld [vmem:[#allocation5 + $0xb0] sm:$0xff]
    %v643 = vld [vmem:[#allocation5 + $0xb8] sm:$0xff]
    %v644 = vld [vmem:[#allocation5 + $0xc0] sm:$0xff]
    %v645 = vld [vmem:[#allocation5 + $0xc8] sm:$0xff]
    %v646 = vld [vmem:[#allocation5 + $0xd0] sm:$0xff]
    %v647 = vld [vmem:[#allocation5 + $0xd8] sm:$0xff]
    %v648 = vld [vmem:[#allocation5 + $0xe0] sm:$0xff]
    %v649 = vld [vmem:[#allocation5 + $0xe8] sm:$0xff]
    %v650 = vld [vmem:[#allocation5 + $0xf0] sm:$0xff]
    %v651 = vld [vmem:[#allocation5 + $0xf8] sm:$0xff]
    %v652 = vld [vmem:[#allocation5 + $0x100] sm:$0xff]
    %v653 = vld [vmem:[#allocation5 + $0x108] sm:$0xff]
    %v654 = vld [vmem:[#allocation5 + $0x110] sm:$0xff]
    %v655 = vld [vmem:[#allocation5 + $0x118] sm:$0xff]
    %v656 = vld [vmem:[#allocation5 + $0x120] sm:$0xff]
    %v657 = vld [vmem:[#allocation5 + $0x128] sm:$0xff]
    %v658 = vld [vmem:[#allocation5 + $0x130] sm:$0xff]
    %v659 = vld [vmem:[#allocation5 + $0x138] sm:$0xff]
    %v660 = vld [vmem:[#allocation5 + $0x140] sm:$0xff]
    %v661 = vld [vmem:[#allocation5 + $0x148] sm:$0xff]
    %v662 = vld [vmem:[#allocation5 + $0x150] sm:$0xff]
    %v663 = vld [vmem:[#allocation5 + $0x158] sm:$0xff]
    %v664 = vld [vmem:[#allocation5 + $0x160] sm:$0xff]
    %v665 = vld [vmem:[#allocation5 + $0x168] sm:$0xff]
    %v666 = vld [vmem:[#allocation5 + $0x170] sm:$0xff]
    %v667 = vld [vmem:[#allocation5 + $0x178] sm:$0xff]
    %v668 = vld [vmem:[#allocation5 + $0x180] sm:$0xff]
    %v669 = vld [vmem:[#allocation5 + $0x188] sm:$0xff]
    %v670 = vld [vmem:[#allocation5 + $0x190] sm:$0xff]
    %v671 = vld [vmem:[#allocation5 + $0x198] sm:$0xff]
    %v672 = vld [vmem:[#allocation5 + $0x1a0] sm:$0xff]
    %v673 = vld [vmem:[#allocation5 + $0x1a8] sm:$0xff]
    %v674 = vld [vmem:[#allocation5 + $0x1b0] sm:$0xff]
    %v675 = vld [vmem:[#allocation5 + $0x1b8] sm:$0xff]
    %v676 = vld [vmem:[#allocation5 + $0x1c0] sm:$0xff]
    %v677 = vld [vmem:[#allocation5 + $0x1c8] sm:$0xff]
    %v678 = vld [vmem:[#allocation5 + $0x1d0] sm:$0xff]
    %v679 = vld [vmem:[#allocation5 + $0x1d8] sm:$0xff]
    %v680 = vld [vmem:[#allocation5 + $0x1e0] sm:$0xff]
    %v681 = vld [vmem:[#allocation5 + $0x1e8] sm:$0xff]
    %v682 = vld [vmem:[#allocation5 + $0x1f0] sm:$0xff]
    %v683 = vld [vmem:[#allocation5 + $0x1f8] sm:$0xff]
    %684 = vmatprep.subr.mxu0 %v621
    %685 = vmatpush1.msra.mxu0 %v620
    %686 = vmatprep.subr.mxu0 %v625
    %687 = vmatpush1.msra.mxu0 %v624
    %688 = vmatprep.subr.mxu0 %v629
    %689 = vmatpush1.msra.mxu0 %v628
    %690 = vmatprep.subr.mxu0 %v633
    %691 = vmatpush1.msra.mxu0 %v632
    %692 = vmatprep.subr.mxu0 %v637
    %693 = vmatpush1.msra.mxu0 %v636
    %694 = vmatprep.subr.mxu0 %v641
    %695 = vmatpush1.msra.mxu0 %v640
    %696 = vmatprep.subr.mxu0 %v645
    %697 = vmatpush1.msra.mxu0 %v644
    %698 = vmatprep.subr.mxu0 %v649
    %699 = vmatpush1.msra.mxu0 %v648
    %700 = vmatprep.subr.mxu0 %v653
    %701 = vmatpush1.msra.mxu0 %v652
    %702 = vmatprep.subr.mxu0 %v657
    %703 = vmatpush1.msra.mxu0 %v656
    %704 = vmatprep.subr.mxu0 %v661
    %705 = vmatpush1.msra.mxu0 %v660
    %706 = vmatprep.subr.mxu0 %v665
    %707 = vmatpush1.msra.mxu0 %v664
    %708 = vmatprep.subr.mxu0 %v669
    %709 = vmatpush1.msra.mxu0 %v668
    %710 = vmatprep.subr.mxu0 %v673
    %711 = vmatpush1.msra.mxu0 %v672
    %712 = vmatprep.subr.mxu0 %v677
    %713 = vmatpush1.msra.mxu0 %v676
    %714 = vmatprep.subr.mxu0 %v681
    %715 = vmatpush1.msra.mxu0 %v680
    %716 = vmatprep.subr.mxu0 0.0
    %717 = vmatpush1.msra.mxu0 0.0
    %718 = vmatprep.subr.mxu0 0.0
    %719 = vmatpush1.msra.mxu0 0.0
    %720 = vmatprep.subr.mxu0 0.0
    %721 = vmatpush1.msra.mxu0 0.0
    %722 = vmatprep.subr.mxu0 0.0
    %723 = vmatpush1.msra.mxu0 0.0
    %724 = vmatprep.subr.mxu0 0.0
    %725 = vmatpush1.msra.mxu0 0.0
    %726 = vmatprep.subr.mxu0 0.0
    %727 = vmatpush1.msra.mxu0 0.0
    %728 = vmatprep.subr.mxu0 0.0
    %729 = vmatpush1.msra.mxu0 0.0
    %730 = vmatprep.subr.mxu0 0.0
    %731 = vmatpush1.msra.mxu0 0.0
    %732 = vmatprep.subr.mxu0 0.0
    %733 = vmatpush1.msra.mxu0 0.0
    %734 = vmatprep.subr.mxu0 0.0
    %735 = vmatpush1.msra.mxu0 0.0
    %736 = vmatprep.subr.mxu0 0.0
    %737 = vmatpush1.msra.mxu0 0.0
    %738 = vmatprep.subr.mxu0 0.0
    %739 = vmatpush1.msra.mxu0 0.0
    %740 = vmatprep.subr.mxu0 0.0
    %741 = vmatpush1.msra.mxu0 0.0
    %742 = vmatprep.subr.mxu0 0.0
    %743 = vmatpush1.msra.mxu0 0.0
    %744 = vmatprep.subr.mxu0 0.0
    %745 = vmatpush1.msra.mxu0 0.0
    %746 = vmatprep.subr.mxu0 0.0
    %747 = vmatpush1.msra.mxu0 0.0
    %748 = vmatprep.mubr.f32.mxu0 0.0
    %749 = vmatmul.mubr.f32.gmra.mrb[0].mxu0 %v618
    %v750 = vpop.f32.mrb[0].mxu0
    %v751 = vadd.f32 0.0, %v750
    %v752 = vpop.f32.mrb[0].mxu0
    %v753 = vadd.f32 0.0, %v752
    %754 = vdwg.mxu0
    %755 = vmatprep.subr.mxu0 %v623
    %756 = vmatpush1.msra.mxu0 %v622
    %757 = vmatprep.subr.mxu0 %v627
    %758 = vmatpush1.msra.mxu0 %v626
    %759 = vmatprep.subr.mxu0 %v631
    %760 = vmatpush1.msra.mxu0 %v630
    %761 = vmatprep.subr.mxu0 %v635
    %762 = vmatpush1.msra.mxu0 %v634
    %763 = vmatprep.subr.mxu0 %v639
    %764 = vmatpush1.msra.mxu0 %v638
    %765 = vmatprep.subr.mxu0 %v643
    %766 = vmatpush1.msra.mxu0 %v642
    %767 = vmatprep.subr.mxu0 %v647
    %768 = vmatpush1.msra.mxu0 %v646
    %769 = vmatprep.subr.mxu0 %v651
    %770 = vmatpush1.msra.mxu0 %v650
    %771 = vmatprep.subr.mxu0 %v655
    %772 = vmatpush1.msra.mxu0 %v654
    %773 = vmatprep.subr.mxu0 %v659
    %774 = vmatpush1.msra.mxu0 %v658
    %775 = vmatprep.subr.mxu0 %v663
    %776 = vmatpush1.msra.mxu0 %v662
    %777 = vmatprep.subr.mxu0 %v667
    %778 = vmatpush1.msra.mxu0 %v666
    %779 = vmatprep.subr.mxu0 %v671
    %780 = vmatpush1.msra.mxu0 %v670
    %781 = vmatprep.subr.mxu0 %v675
    %782 = vmatpush1.msra.mxu0 %v674
    %783 = vmatprep.subr.mxu0 %v679
    %784 = vmatpush1.msra.mxu0 %v678
    %785 = vmatprep.subr.mxu0 %v683
    %786 = vmatpush1.msra.mxu0 %v682
    %787 = vmatprep.subr.mxu0 0.0
    %788 = vmatpush1.msra.mxu0 0.0
    %789 = vmatprep.subr.mxu0 0.0
    %790 = vmatpush1.msra.mxu0 0.0
    %791 = vmatprep.subr.mxu0 0.0
    %792 = vmatpush1.msra.mxu0 0.0
    %793 = vmatprep.subr.mxu0 0.0
    %794 = vmatpush1.msra.mxu0 0.0
    %795 = vmatprep.subr.mxu0 0.0
    %796 = vmatpush1.msra.mxu0 0.0
    %797 = vmatprep.subr.mxu0 0.0
    %798 = vmatpush1.msra.mxu0 0.0
    %799 = vmatprep.subr.mxu0 0.0
    %800 = vmatpush1.msra.mxu0 0.0
    %801 = vmatprep.subr.mxu0 0.0
    %802 = vmatpush1.msra.mxu0 0.0
    %803 = vmatprep.subr.mxu0 0.0
    %804 = vmatpush1.msra.mxu0 0.0
    %805 = vmatprep.subr.mxu0 0.0
    %806 = vmatpush1.msra.mxu0 0.0
    %807 = vmatprep.subr.mxu0 0.0
    %808 = vmatpush1.msra.mxu0 0.0
    %809 = vmatprep.subr.mxu0 0.0
    %810 = vmatpush1.msra.mxu0 0.0
    %811 = vmatprep.subr.mxu0 0.0
    %812 = vmatpush1.msra.mxu0 0.0
    %813 = vmatprep.subr.mxu0 0.0
    %814 = vmatpush1.msra.mxu0 0.0
    %815 = vmatprep.subr.mxu0 0.0
    %816 = vmatpush1.msra.mxu0 0.0
    %817 = vmatprep.subr.mxu0 0.0
    %818 = vmatpush1.msra.mxu0 0.0
    %819 = vmatprep.mubr.f32.mxu0 0.0
    %820 = vmatmul.mubr.f32.gmra.mrb[0].mxu0 %v618
    %v821 = vpop.f32.mrb[0].mxu0
    %v822 = vadd.f32 0.0, %v821
    %v823 = vpop.f32.mrb[0].mxu0
    %v824 = vadd.f32 0.0, %v823
    %825 = vdwg.mxu0
    %v826 = vadd.f32 %v614, %v751
    %v827 = vadd.f32 %v615, %v753
    %v828 = vadd.f32 %v616, %v822
    %v829 = vadd.f32 %v617, %v824
    %v830 = vxor.u32 %v826, 2147483648
    %v831 = vmul.f32 %v830, 1.442695
    %v832 = vpow.pop %v831
    %v833 = vadd.f32 %v832, 1.0
    %v834 = vrcp.pop %v833
    %v835 = vmul.f32 1.0, %v834
    %v836 = vxor.u32 %v827, 2147483648
    %v837 = vmul.f32 %v836, 1.442695
    %v838 = vpow.pop %v837
    %v839 = vadd.f32 %v838, 1.0
    %v840 = vrcp.pop %v839
    %v841 = vmul.f32 1.0, %v840
    %v842 = vtanh.pop %v828
    %v843 = vxor.u32 %v829, 2147483648
    %v844 = vmul.f32 %v843, 1.442695
    %v845 = vpow.pop %v844
    %v846 = vadd.f32 %v845, 1.0
    %v847 = vrcp.pop %v846
    %v848 = vmul.f32 1.0, %v847
    %v849 = vmul.f32 %v841, %v619
    %v850 = vmul.f32 %v835, %v842
    %v851 = vadd.f32 %v849, %v850
    %v852 = vtanh.pop %v851
    %v853 = vmul.f32 %v848, %v852
    %854 = vst [vmem:[#allocation3] sm:$0xff] %v853
    %855 = vst [vmem:[#allocation4] sm:$0xff] %v851
    %s856 = scalar_lea.vmem %s4, 8
    %857 = vst [vmem:[%s856] sm:$0xff] %v853
    %s858 = smul.u32 2, 4
    %s859 = smul.addr %s858, 8
    %s860 = scalar_lea.vmem [#allocation2], %s859
    %v861 = vld [vmem:[%s860] sm:$0xff]
    %v862 = vld [vmem:[%s860 + $0x8] sm:$0xff]
    %v863 = vld [vmem:[%s860 + $0x10] sm:$0xff]
    %v864 = vld [vmem:[%s860 + $0x18] sm:$0xff]
    %v865 = vld [vmem:[#allocation3] sm:$0xff]
    %v866 = vld [vmem:[#allocation4] sm:$0xff]
    %v867 = vld [vmem:[#allocation5] sm:$0xff]
    %v868 = vld [vmem:[#allocation5 + $0x8] sm:$0xff]
    %v869 = vld [vmem:[#allocation5 + $0x10] sm:$0xff]
    %v870 = vld [vmem:[#allocation5 + $0x18] sm:$0xff]
    %v871 = vld [vmem:[#allocation5 + $0x20] sm:$0xff]
    %v872 = vld [vmem:[#allocation5 + $0x28] sm:$0xff]
    %v873 = vld [vmem:[#allocation5 + $0x30] sm:$0xff]
    %v874 = vld [vmem:[#allocation5 + $0x38] sm:$0xff]
    %v875 = vld [vmem:[#allocation5 + $0x40] sm:$0xff]
    %v876 = vld [vmem:[#allocation5 + $0x48] sm:$0xff]
    %v877 = vld [vmem:[#allocation5 + $0x50] sm:$0xff]
    %v878 = vld [vmem:[#allocation5 + $0x58] sm:$0xff]
    %v879 = vld [vmem:[#allocation5 + $0x60] sm:$0xff]
    %v880 = vld [vmem:[#allocation5 + $0x68] sm:$0xff]
    %v881 = vld [vmem:[#allocation5 + $0x70] sm:$0xff]
    %v882 = vld [vmem:[#allocation5 + $0x78] sm:$0xff]
    %v883 = vld [vmem:[#allocation5 + $0x80] sm:$0xff]
    %v884 = vld [vmem:[#allocation5 + $0x88] sm:$0xff]
    %v885 = vld [vmem:[#allocation5 + $0x90] sm:$0xff]
    %v886 = vld [vmem:[#allocation5 + $0x98] sm:$0xff]
    %v887 = vld [vmem:[#allocation5 + $0xa0] sm:$0xff]
    %v888 = vld [vmem:[#allocation5 + $0xa8] sm:$0xff]
    %v889 = vld [vmem:[#allocation5 + $0xb0] sm:$0xff]
    %v890 = vld [vmem:[#allocation5 + $0xb8] sm:$0xff]
    %v891 = vld [vmem:[#allocation5 + $0xc0] sm:$0xff]
    %v892 = vld [vmem:[#allocation5 + $0xc8] sm:$0xff]
    %v893 = vld [vmem:[#allocation5 + $0xd0] sm:$0xff]
    %v894 = vld [vmem:[#allocation5 + $0xd8] sm:$0xff]
    %v895 = vld [vmem:[#allocation5 + $0xe0] sm:$0xff]
    %v896 = vld [vmem:[#allocation5 + $0xe8] sm:$0xff]
    %v897 = vld [vmem:[#allocation5 + $0xf0] sm:$0xff]
    %v898 = vld [vmem:[#allocation5 + $0xf8] sm:$0xff]
    %v899 = vld [vmem:[#allocation5 + $0x100] sm:$0xff]
    %v900 = vld [vmem:[#allocation5 + $0x108] sm:$0xff]
    %v901 = vld [vmem:[#allocation5 + $0x110] sm:$0xff]
    %v902 = vld [vmem:[#allocation5 + $0x118] sm:$0xff]
    %v903 = vld [vmem:[#allocation5 + $0x120] sm:$0xff]
    %v904 = vld [vmem:[#allocation5 + $0x128] sm:$0xff]
    %v905 = vld [vmem:[#allocation5 + $0x130] sm:$0xff]
    %v906 = vld [vmem:[#allocation5 + $0x138] sm:$0xff]
    %v907 = vld [vmem:[#allocation5 + $0x140] sm:$0xff]
    %v908 = vld [vmem:[#allocation5 + $0x148] sm:$0xff]
    %v909 = vld [vmem:[#allocation5 + $0x150] sm:$0xff]
    %v910 = vld [vmem:[#allocation5 + $0x158] sm:$0xff]
    %v911 = vld [vmem:[#allocation5 + $0x160] sm:$0xff]
    %v912 = vld [vmem:[#allocation5 + $0x168] sm:$0xff]
    %v913 = vld [vmem:[#allocation5 + $0x170] sm:$0xff]
    %v914 = vld [vmem:[#allocation5 + $0x178] sm:$0xff]
    %v915 = vld [vmem:[#allocation5 + $0x180] sm:$0xff]
    %v916 = vld [vmem:[#allocation5 + $0x188] sm:$0xff]
    %v917 = vld [vmem:[#allocation5 + $0x190] sm:$0xff]
    %v918 = vld [vmem:[#allocation5 + $0x198] sm:$0xff]
    %v919 = vld [vmem:[#allocation5 + $0x1a0] sm:$0xff]
    %v920 = vld [vmem:[#allocation5 + $0x1a8] sm:$0xff]
    %v921 = vld [vmem:[#allocation5 + $0x1b0] sm:$0xff]
    %v922 = vld [vmem:[#allocation5 + $0x1b8] sm:$0xff]
    %v923 = vld [vmem:[#allocation5 + $0x1c0] sm:$0xff]
    %v924 = vld [vmem:[#allocation5 + $0x1c8] sm:$0xff]
    %v925 = vld [vmem:[#allocation5 + $0x1d0] sm:$0xff]
    %v926 = vld [vmem:[#allocation5 + $0x1d8] sm:$0xff]
    %v927 = vld [vmem:[#allocation5 + $0x1e0] sm:$0xff]
    %v928 = vld [vmem:[#allocation5 + $0x1e8] sm:$0xff]
    %v929 = vld [vmem:[#allocation5 + $0x1f0] sm:$0xff]
    %v930 = vld [vmem:[#allocation5 + $0x1f8] sm:$0xff]
    %931 = vmatprep.subr.mxu0 %v868
    %932 = vmatpush1.msra.mxu0 %v867
    %933 = vmatprep.subr.mxu0 %v872
    %934 = vmatpush1.msra.mxu0 %v871
    %935 = vmatprep.subr.mxu0 %v876
    %936 = vmatpush1.msra.mxu0 %v875
    %937 = vmatprep.subr.mxu0 %v880
    %938 = vmatpush1.msra.mxu0 %v879
    %939 = vmatprep.subr.mxu0 %v884
    %940 = vmatpush1.msra.mxu0 %v883
    %941 = vmatprep.subr.mxu0 %v888
    %942 = vmatpush1.msra.mxu0 %v887
    %943 = vmatprep.subr.mxu0 %v892
    %944 = vmatpush1.msra.mxu0 %v891
    %945 = vmatprep.subr.mxu0 %v896
    %946 = vmatpush1.msra.mxu0 %v895
    %947 = vmatprep.subr.mxu0 %v900
    %948 = vmatpush1.msra.mxu0 %v899
    %949 = vmatprep.subr.mxu0 %v904
    %950 = vmatpush1.msra.mxu0 %v903
    %951 = vmatprep.subr.mxu0 %v908
    %952 = vmatpush1.msra.mxu0 %v907
    %953 = vmatprep.subr.mxu0 %v912
    %954 = vmatpush1.msra.mxu0 %v911
    %955 = vmatprep.subr.mxu0 %v916
    %956 = vmatpush1.msra.mxu0 %v915
    %957 = vmatprep.subr.mxu0 %v920
    %958 = vmatpush1.msra.mxu0 %v919
    %959 = vmatprep.subr.mxu0 %v924
    %960 = vmatpush1.msra.mxu0 %v923
    %961 = vmatprep.subr.mxu0 %v928
    %962 = vmatpush1.msra.mxu0 %v927
    %963 = vmatprep.subr.mxu0 0.0
    %964 = vmatpush1.msra.mxu0 0.0
    %965 = vmatprep.subr.mxu0 0.0
    %966 = vmatpush1.msra.mxu0 0.0
    %967 = vmatprep.subr.mxu0 0.0
    %968 = vmatpush1.msra.mxu0 0.0
    %969 = vmatprep.subr.mxu0 0.0
    %970 = vmatpush1.msra.mxu0 0.0
    %971 = vmatprep.subr.mxu0 0.0
    %972 = vmatpush1.msra.mxu0 0.0
    %973 = vmatprep.subr.mxu0 0.0
    %974 = vmatpush1.msra.mxu0 0.0
    %975 = vmatprep.subr.mxu0 0.0
    %976 = vmatpush1.msra.mxu0 0.0
    %977 = vmatprep.subr.mxu0 0.0
    %978 = vmatpush1.msra.mxu0 0.0
    %979 = vmatprep.subr.mxu0 0.0
    %980 = vmatpush1.msra.mxu0 0.0
    %981 = vmatprep.subr.mxu0 0.0
    %982 = vmatpush1.msra.mxu0 0.0
    %983 = vmatprep.subr.mxu0 0.0
    %984 = vmatpush1.msra.mxu0 0.0
    %985 = vmatprep.subr.mxu0 0.0
    %986 = vmatpush1.msra.mxu0 0.0
    %987 = vmatprep.subr.mxu0 0.0
    %988 = vmatpush1.msra.mxu0 0.0
    %989 = vmatprep.subr.mxu0 0.0
    %990 = vmatpush1.msra.mxu0 0.0
    %991 = vmatprep.subr.mxu0 0.0
    %992 = vmatpush1.msra.mxu0 0.0
    %993 = vmatprep.subr.mxu0 0.0
    %994 = vmatpush1.msra.mxu0 0.0
    %995 = vmatprep.mubr.f32.mxu0 0.0
    %996 = vmatmul.mubr.f32.gmra.mrb[0].mxu0 %v865
    %v997 = vpop.f32.mrb[0].mxu0
    %v998 = vadd.f32 0.0, %v997
    %v999 = vpop.f32.mrb[0].mxu0
    %v1000 = vadd.f32 0.0, %v999
    %1001 = vdwg.mxu0
    %1002 = vmatprep.subr.mxu0 %v870
    %1003 = vmatpush1.msra.mxu0 %v869
    %1004 = vmatprep.subr.mxu0 %v874
    %1005 = vmatpush1.msra.mxu0 %v873
    %1006 = vmatprep.subr.mxu0 %v878
    %1007 = vmatpush1.msra.mxu0 %v877
    %1008 = vmatprep.subr.mxu0 %v882
    %1009 = vmatpush1.msra.mxu0 %v881
    %1010 = vmatprep.subr.mxu0 %v886
    %1011 = vmatpush1.msra.mxu0 %v885
    %1012 = vmatprep.subr.mxu0 %v890
    %1013 = vmatpush1.msra.mxu0 %v889
    %1014 = vmatprep.subr.mxu0 %v894
    %1015 = vmatpush1.msra.mxu0 %v893
    %1016 = vmatprep.subr.mxu0 %v898
    %1017 = vmatpush1.msra.mxu0 %v897
    %1018 = vmatprep.subr.mxu0 %v902
    %1019 = vmatpush1.msra.mxu0 %v901
    %1020 = vmatprep.subr.mxu0 %v906
    %1021 = vmatpush1.msra.mxu0 %v905
    %1022 = vmatprep.subr.mxu0 %v910
    %1023 = vmatpush1.msra.mxu0 %v909
    %1024 = vmatprep.subr.mxu0 %v914
    %1025 = vmatpush1.msra.mxu0 %v913
    %1026 = vmatprep.subr.mxu0 %v918
    %1027 = vmatpush1.msra.mxu0 %v917
    %1028 = vmatprep.subr.mxu0 %v922
    %1029 = vmatpush1.msra.mxu0 %v921
    %1030 = vmatprep.subr.mxu0 %v926
    %1031 = vmatpush1.msra.mxu0 %v925
    %1032 = vmatprep.subr.mxu0 %v930
    %1033 = vmatpush1.msra.mxu0 %v929
    %1034 = vmatprep.subr.mxu0 0.0
    %1035 = vmatpush1.msra.mxu0 0.0
    %1036 = vmatprep.subr.mxu0 0.0
    %1037 = vmatpush1.msra.mxu0 0.0
    %1038 = vmatprep.subr.mxu0 0.0
    %1039 = vmatpush1.msra.mxu0 0.0
    %1040 = vmatprep.subr.mxu0 0.0
    %1041 = vmatpush1.msra.mxu0 0.0
    %1042 = vmatprep.subr.mxu0 0.0
    %1043 = vmatpush1.msra.mxu0 0.0
    %1044 = vmatprep.subr.mxu0 0.0
    %1045 = vmatpush1.msra.mxu0 0.0
    %1046 = vmatprep.subr.mxu0 0.0
    %1047 = vmatpush1.msra.mxu0 0.0
    %1048 = vmatprep.subr.mxu0 0.0
    %1049 = vmatpush1.msra.mxu0 0.0
    %1050 = vmatprep.subr.mxu0 0.0
    %1051 = vmatpush1.msra.mxu0 0.0
    %1052 = vmatprep.subr.mxu0 0.0
    %1053 = vmatpush1.msra.mxu0 0.0
    %1054 = vmatprep.subr.mxu0 0.0
    %1055 = vmatpush1.msra.mxu0 0.0
    %1056 = vmatprep.subr.mxu0 0.0
    %1057 = vmatpush1.msra.mxu0 0.0
    %1058 = vmatprep.subr.mxu0 0.0
    %1059 = vmatpush1.msra.mxu0 0.0
    %1060 = vmatprep.subr.mxu0 0.0
    %1061 = vmatpush1.msra.mxu0 0.0
    %1062 = vmatprep.subr.mxu0 0.0
    %1063 = vmatpush1.msra.mxu0 0.0
    %1064 = vmatprep.subr.mxu0 0.0
    %1065 = vmatpush1.msra.mxu0 0.0
    %1066 = vmatprep.mubr.f32.mxu0 0.0
    %1067 = vmatmul.mubr.f32.gmra.mrb[0].mxu0 %v865
    %v1068 = vpop.f32.mrb[0].mxu0
    %v1069 = vadd.f32 0.0, %v1068
    %v1070 = vpop.f32.mrb[0].mxu0
    %v1071 = vadd.f32 0.0, %v1070
    %1072 = vdwg.mxu0
    %v1073 = vadd.f32 %v861, %v998
    %v1074 = vadd.f32 %v862, %v1000
    %v1075 = vadd.f32 %v863, %v1069
    %v1076 = vadd.f32 %v864, %v1071
    %v1077 = vxor.u32 %v1073, 2147483648
    %v1078 = vmul.f32 %v1077, 1.442695
    %v1079 = vpow.pop %v1078
    %v1080 = vadd.f32 %v1079, 1.0
    %v1081 = vrcp.pop %v1080
    %v1082 = vmul.f32 1.0, %v1081
    %v1083 = vxor.u32 %v1074, 2147483648
    %v1084 = vmul.f32 %v1083, 1.442695
    %v1085 = vpow.pop %v1084
    %v1086 = vadd.f32 %v1085, 1.0
    %v1087 = vrcp.pop %v1086
    %v1088 = vmul.f32 1.0, %v1087
    %v1089 = vtanh.pop %v1075
    %v1090 = vxor.u32 %v1076, 2147483648
    %v1091 = vmul.f32 %v1090, 1.442695
    %v1092 = vpow.pop %v1091
    %v1093 = vadd.f32 %v1092, 1.0
    %v1094 = vrcp.pop %v1093
    %v1095 = vmul.f32 1.0, %v1094
    %v1096 = vmul.f32 %v1088, %v866
    %v1097 = vmul.f32 %v1082, %v1089
    %v1098 = vadd.f32 %v1096, %v1097
    %v1099 = vtanh.pop %v1098
    %v1100 = vmul.f32 %v1095, %v1099
    %1101 = vst [vmem:[#allocation3] sm:$0xff] %v1100
    %1102 = vst [vmem:[#allocation4] sm:$0xff] %v1098
    %s1103 = scalar_lea.vmem %s4, 16
    %1104 = vst [vmem:[%s1103] sm:$0xff] %v1100
    %s1105 = smul.u32 3, 4
    %s1106 = smul.addr %s1105, 8
    %s1107 = scalar_lea.vmem [#allocation2], %s1106
    %v1108 = vld [vmem:[%s1107] sm:$0xff]
    %v1109 = vld [vmem:[%s1107 + $0x8] sm:$0xff]
    %v1110 = vld [vmem:[%s1107 + $0x10] sm:$0xff]
    %v1111 = vld [vmem:[%s1107 + $0x18] sm:$0xff]
    %v1112 = vld [vmem:[#allocation3] sm:$0xff]
    %v1113 = vld [vmem:[#allocation4] sm:$0xff]
    %v1114 = vld [vmem:[#allocation5] sm:$0xff]
    %v1115 = vld [vmem:[#allocation5 + $0x8] sm:$0xff]
    %v1116 = vld [vmem:[#allocation5 + $0x10] sm:$0xff]
    %v1117 = vld [vmem:[#allocation5 + $0x18] sm:$0xff]
    %v1118 = vld [vmem:[#allocation5 + $0x20] sm:$0xff]
    %v1119 = vld [vmem:[#allocation5 + $0x28] sm:$0xff]
    %v1120 = vld [vmem:[#allocation5 + $0x30] sm:$0xff]
    %v1121 = vld [vmem:[#allocation5 + $0x38] sm:$0xff]
    %v1122 = vld [vmem:[#allocation5 + $0x40] sm:$0xff]
    %v1123 = vld [vmem:[#allocation5 + $0x48] sm:$0xff]
    %v1124 = vld [vmem:[#allocation5 + $0x50] sm:$0xff]
    %v1125 = vld [vmem:[#allocation5 + $0x58] sm:$0xff]
    %v1126 = vld [vmem:[#allocation5 + $0x60] sm:$0xff]
    %v1127 = vld [vmem:[#allocation5 + $0x68] sm:$0xff]
    %v1128 = vld [vmem:[#allocation5 + $0x70] sm:$0xff]
    %v1129 = vld [vmem:[#allocation5 + $0x78] sm:$0xff]
    %v1130 = vld [vmem:[#allocation5 + $0x80] sm:$0xff]
    %v1131 = vld [vmem:[#allocation5 + $0x88] sm:$0xff]
    %v1132 = vld [vmem:[#allocation5 + $0x90] sm:$0xff]
    %v1133 = vld [vmem:[#allocation5 + $0x98] sm:$0xff]
    %v1134 = vld [vmem:[#allocation5 + $0xa0] sm:$0xff]
    %v1135 = vld [vmem:[#allocation5 + $0xa8] sm:$0xff]
    %v1136 = vld [vmem:[#allocation5 + $0xb0] sm:$0xff]
    %v1137 = vld [vmem:[#allocation5 + $0xb8] sm:$0xff]
    %v1138 = vld [vmem:[#allocation5 + $0xc0] sm:$0xff]
    %v1139 = vld [vmem:[#allocation5 + $0xc8] sm:$0xff]
    %v1140 = vld [vmem:[#allocation5 + $0xd0] sm:$0xff]
    %v1141 = vld [vmem:[#allocation5 + $0xd8] sm:$0xff]
    %v1142 = vld [vmem:[#allocation5 + $0xe0] sm:$0xff]
    %v1143 = vld [vmem:[#allocation5 + $0xe8] sm:$0xff]
    %v1144 = vld [vmem:[#allocation5 + $0xf0] sm:$0xff]
    %v1145 = vld [vmem:[#allocation5 + $0xf8] sm:$0xff]
    %v1146 = vld [vmem:[#allocation5 + $0x100] sm:$0xff]
    %v1147 = vld [vmem:[#allocation5 + $0x108] sm:$0xff]
    %v1148 = vld [vmem:[#allocation5 + $0x110] sm:$0xff]
    %v1149 = vld [vmem:[#allocation5 + $0x118] sm:$0xff]
    %v1150 = vld [vmem:[#allocation5 + $0x120] sm:$0xff]
    %v1151 = vld [vmem:[#allocation5 + $0x128] sm:$0xff]
    %v1152 = vld [vmem:[#allocation5 + $0x130] sm:$0xff]
    %v1153 = vld [vmem:[#allocation5 + $0x138] sm:$0xff]
    %v1154 = vld [vmem:[#allocation5 + $0x140] sm:$0xff]
    %v1155 = vld [vmem:[#allocation5 + $0x148] sm:$0xff]
    %v1156 = vld [vmem:[#allocation5 + $0x150] sm:$0xff]
    %v1157 = vld [vmem:[#allocation5 + $0x158] sm:$0xff]
    %v1158 = vld [vmem:[#allocation5 + $0x160] sm:$0xff]
    %v1159 = vld [vmem:[#allocation5 + $0x168] sm:$0xff]
    %v1160 = vld [vmem:[#allocation5 + $0x170] sm:$0xff]
    %v1161 = vld [vmem:[#allocation5 + $0x178] sm:$0xff]
    %v1162 = vld [vmem:[#allocation5 + $0x180] sm:$0xff]
    %v1163 = vld [vmem:[#allocation5 + $0x188] sm:$0xff]
    %v1164 = vld [vmem:[#allocation5 + $0x190] sm:$0xff]
    %v1165 = vld [vmem:[#allocation5 + $0x198] sm:$0xff]
    %v1166 = vld [vmem:[#allocation5 + $0x1a0] sm:$0xff]
    %v1167 = vld [vmem:[#allocation5 + $0x1a8] sm:$0xff]
    %v1168 = vld [vmem:[#allocation5 + $0x1b0] sm:$0xff]
    %v1169 = vld [vmem:[#allocation5 + $0x1b8] sm:$0xff]
    %v1170 = vld [vmem:[#allocation5 + $0x1c0] sm:$0xff]
    %v1171 = vld [vmem:[#allocation5 + $0x1c8] sm:$0xff]
    %v1172 = vld [vmem:[#allocation5 + $0x1d0] sm:$0xff]
    %v1173 = vld [vmem:[#allocation5 + $0x1d8] sm:$0xff]
    %v1174 = vld [vmem:[#allocation5 + $0x1e0] sm:$0xff]
    %v1175 = vld [vmem:[#allocation5 + $0x1e8] sm:$0xff]
    %v1176 = vld [vmem:[#allocation5 + $0x1f0] sm:$0xff]
    %v1177 = vld [vmem:[#allocation5 + $0x1f8] sm:$0xff]
    %1178 = vmatprep.subr.mxu0 %v1115
    %1179 = vmatpush1.msra.mxu0 %v1114
    %1180 = vmatprep.subr.mxu0 %v1119
    %1181 = vmatpush1.msra.mxu0 %v1118
    %1182 = vmatprep.subr.mxu0 %v1123
    %1183 = vmatpush1.msra.mxu0 %v1122
    %1184 = vmatprep.subr.mxu0 %v1127
    %1185 = vmatpush1.msra.mxu0 %v1126
    %1186 = vmatprep.subr.mxu0 %v1131
    %1187 = vmatpush1.msra.mxu0 %v1130
    %1188 = vmatprep.subr.mxu0 %v1135
    %1189 = vmatpush1.msra.mxu0 %v1134
    %1190 = vmatprep.subr.mxu0 %v1139
    %1191 = vmatpush1.msra.mxu0 %v1138
    %1192 = vmatprep.subr.mxu0 %v1143
    %1193 = vmatpush1.msra.mxu0 %v1142
    %1194 = vmatprep.subr.mxu0 %v1147
    %1195 = vmatpush1.msra.mxu0 %v1146
    %1196 = vmatprep.subr.mxu0 %v1151
    %1197 = vmatpush1.msra.mxu0 %v1150
    %1198 = vmatprep.subr.mxu0 %v1155
    %1199 = vmatpush1.msra.mxu0 %v1154
    %1200 = vmatprep.subr.mxu0 %v1159
    %1201 = vmatpush1.msra.mxu0 %v1158
    %1202 = vmatprep.subr.mxu0 %v1163
    %1203 = vmatpush1.msra.mxu0 %v1162
    %1204 = vmatprep.subr.mxu0 %v1167
    %1205 = vmatpush1.msra.mxu0 %v1166
    %1206 = vmatprep.subr.mxu0 %v1171
    %1207 = vmatpush1.msra.mxu0 %v1170
    %1208 = vmatprep.subr.mxu0 %v1175
    %1209 = vmatpush1.msra.mxu0 %v1174
    %1210 = vmatprep.subr.mxu0 0.0
    %1211 = vmatpush1.msra.mxu0 0.0
    %1212 = vmatprep.subr.mxu0 0.0
    %1213 = vmatpush1.msra.mxu0 0.0
    %1214 = vmatprep.subr.mxu0 0.0
    %1215 = vmatpush1.msra.mxu0 0.0
    %1216 = vmatprep.subr.mxu0 0.0
    %1217 = vmatpush1.msra.mxu0 0.0
    %1218 = vmatprep.subr.mxu0 0.0
    %1219 = vmatpush1.msra.mxu0 0.0
    %1220 = vmatprep.subr.mxu0 0.0
    %1221 = vmatpush1.msra.mxu0 0.0
    %1222 = vmatprep.subr.mxu0 0.0
    %1223 = vmatpush1.msra.mxu0 0.0
    %1224 = vmatprep.subr.mxu0 0.0
    %1225 = vmatpush1.msra.mxu0 0.0
    %1226 = vmatprep.subr.mxu0 0.0
    %1227 = vmatpush1.msra.mxu0 0.0
    %1228 = vmatprep.subr.mxu0 0.0
    %1229 = vmatpush1.msra.mxu0 0.0
    %1230 = vmatprep.subr.mxu0 0.0
    %1231 = vmatpush1.msra.mxu0 0.0
    %1232 = vmatprep.subr.mxu0 0.0
    %1233 = vmatpush1.msra.mxu0 0.0
    %1234 = vmatprep.subr.mxu0 0.0
    %1235 = vmatpush1.msra.mxu0 0.0
    %1236 = vmatprep.subr.mxu0 0.0
    %1237 = vmatpush1.msra.mxu0 0.0
    %1238 = vmatprep.subr.mxu0 0.0
    %1239 = vmatpush1.msra.mxu0 0.0
    %1240 = vmatprep.subr.mxu0 0.0
    %1241 = vmatpush1.msra.mxu0 0.0
    %1242 = vmatprep.mubr.f32.mxu0 0.0
    %1243 = vmatmul.mubr.f32.gmra.mrb[0].mxu0 %v1112
    %v1244 = vpop.f32.mrb[0].mxu0
    %v1245 = vadd.f32 0.0, %v1244
    %v1246 = vpop.f32.mrb[0].mxu0
    %v1247 = vadd.f32 0.0, %v1246
    %1248 = vdwg.mxu0
    %1249 = vmatprep.subr.mxu0 %v1117
    %1250 = vmatpush1.msra.mxu0 %v1116
    %1251 = vmatprep.subr.mxu0 %v1121
    %1252 = vmatpush1.msra.mxu0 %v1120
    %1253 = vmatprep.subr.mxu0 %v1125
    %1254 = vmatpush1.msra.mxu0 %v1124
    %1255 = vmatprep.subr.mxu0 %v1129
    %1256 = vmatpush1.msra.mxu0 %v1128
    %1257 = vmatprep.subr.mxu0 %v1133
    %1258 = vmatpush1.msra.mxu0 %v1132
    %1259 = vmatprep.subr.mxu0 %v1137
    %1260 = vmatpush1.msra.mxu0 %v1136
    %1261 = vmatprep.subr.mxu0 %v1141
    %1262 = vmatpush1.msra.mxu0 %v1140
    %1263 = vmatprep.subr.mxu0 %v1145
    %1264 = vmatpush1.msra.mxu0 %v1144
    %1265 = vmatprep.subr.mxu0 %v1149
    %1266 = vmatpush1.msra.mxu0 %v1148
    %1267 = vmatprep.subr.mxu0 %v1153
    %1268 = vmatpush1.msra.mxu0 %v1152
    %1269 = vmatprep.subr.mxu0 %v1157
    %1270 = vmatpush1.msra.mxu0 %v1156
    %1271 = vmatprep.subr.mxu0 %v1161
    %1272 = vmatpush1.msra.mxu0 %v1160
    %1273 = vmatprep.subr.mxu0 %v1165
    %1274 = vmatpush1.msra.mxu0 %v1164
    %1275 = vmatprep.subr.mxu0 %v1169
    %1276 = vmatpush1.msra.mxu0 %v1168
    %1277 = vmatprep.subr.mxu0 %v1173
    %1278 = vmatpush1.msra.mxu0 %v1172
    %1279 = vmatprep.subr.mxu0 %v1177
    %1280 = vmatpush1.msra.mxu0 %v1176
    %1281 = vmatprep.subr.mxu0 0.0
    %1282 = vmatpush1.msra.mxu0 0.0
    %1283 = vmatprep.subr.mxu0 0.0
    %1284 = vmatpush1.msra.mxu0 0.0
    %1285 = vmatprep.subr.mxu0 0.0
    %1286 = vmatpush1.msra.mxu0 0.0
    %1287 = vmatprep.subr.mxu0 0.0
    %1288 = vmatpush1.msra.mxu0 0.0
    %1289 = vmatprep.subr.mxu0 0.0
    %1290 = vmatpush1.msra.mxu0 0.0
    %1291 = vmatprep.subr.mxu0 0.0
    %1292 = vmatpush1.msra.mxu0 0.0
    %1293 = vmatprep.subr.mxu0 0.0
    %1294 = vmatpush1.msra.mxu0 0.0
    %1295 = vmatprep.subr.mxu0 0.0
    %1296 = vmatpush1.msra.mxu0 0.0
    %1297 = vmatprep.subr.mxu0 0.0
    %1298 = vmatpush1.msra.mxu0 0.0
    %1299 = vmatprep.subr.mxu0 0.0
    %1300 = vmatpush1.msra.mxu0 0.0
    %1301 = vmatprep.subr.mxu0 0.0
    %1302 = vmatpush1.msra.mxu0 0.0
    %1303 = vmatprep.subr.mxu0 0.0
    %1304 = vmatpush1.msra.mxu0 0.0
    %1305 = vmatprep.subr.mxu0 0.0
    %1306 = vmatpush1.msra.mxu0 0.0
    %1307 = vmatprep.subr.mxu0 0.0
    %1308 = vmatpush1.msra.mxu0 0.0
    %1309 = vmatprep.subr.mxu0 0.0
    %1310 = vmatpush1.msra.mxu0 0.0
    %1311 = vmatprep.subr.mxu0 0.0
    %1312 = vmatpush1.msra.mxu0 0.0
    %1313 = vmatprep.mubr.f32.mxu0 0.0
    %1314 = vmatmul.mubr.f32.gmra.mrb[0].mxu0 %v1112
    %v1315 = vpop.f32.mrb[0].mxu0
    %v1316 = vadd.f32 0.0, %v1315
    %v1317 = vpop.f32.mrb[0].mxu0
    %v1318 = vadd.f32 0.0, %v1317
    %1319 = vdwg.mxu0
    %v1320 = vadd.f32 %v1108, %v1245
    %v1321 = vadd.f32 %v1109, %v1247
    %v1322 = vadd.f32 %v1110, %v1316
    %v1323 = vadd.f32 %v1111, %v1318
    %v1324 = vxor.u32 %v1320, 2147483648
    %v1325 = vmul.f32 %v1324, 1.442695
    %v1326 = vpow.pop %v1325
    %v1327 = vadd.f32 %v1326, 1.0
    %v1328 = vrcp.pop %v1327
    %v1329 = vmul.f32 1.0, %v1328
    %v1330 = vxor.u32 %v1321, 2147483648
    %v1331 = vmul.f32 %v1330, 1.442695
    %v1332 = vpow.pop %v1331
    %v1333 = vadd.f32 %v1332, 1.0
    %v1334 = vrcp.pop %v1333
    %v1335 = vmul.f32 1.0, %v1334
    %v1336 = vtanh.pop %v1322
    %v1337 = vxor.u32 %v1323, 2147483648
    %v1338 = vmul.f32 %v1337, 1.442695
    %v1339 = vpow.pop %v1338
    %v1340 = vadd.f32 %v1339, 1.0
    %v1341 = vrcp.pop %v1340
    %v1342 = vmul.f32 1.0, %v1341
    %v1343 = vmul.f32 %v1335, %v1113
    %v1344 = vmul.f32 %v1329, %v1336
    %v1345 = vadd.f32 %v1343, %v1344
    %v1346 = vtanh.pop %v1345
    %v1347 = vmul.f32 %v1342, %v1346
    %1348 = vst [vmem:[#allocation3] sm:$0xff] %v1347
    %1349 = vst [vmem:[#allocation4] sm:$0xff] %v1345
    %s1350 = scalar_lea.vmem %s4, 24
    %1351 = vst [vmem:[%s1350] sm:$0xff] %v1347
    %s1352 = smul.u32 4, 4
    %s1353 = smul.addr %s1352, 8
    %s1354 = scalar_lea.vmem [#allocation2], %s1353
    %v1355 = vld [vmem:[%s1354] sm:$0xff]
    %v1356 = vld [vmem:[%s1354 + $0x8] sm:$0xff]
    %v1357 = vld [vmem:[%s1354 + $0x10] sm:$0xff]
    %v1358 = vld [vmem:[%s1354 + $0x18] sm:$0xff]
    %v1359 = vld [vmem:[#allocation3] sm:$0xff]
    %v1360 = vld [vmem:[#allocation4] sm:$0xff]
    %v1361 = vld [vmem:[#allocation5] sm:$0xff]
    %v1362 = vld [vmem:[#allocation5 + $0x8] sm:$0xff]
    %v1363 = vld [vmem:[#allocation5 + $0x10] sm:$0xff]
    %v1364 = vld [vmem:[#allocation5 + $0x18] sm:$0xff]
    %v1365 = vld [vmem:[#allocation5 + $0x20] sm:$0xff]
    %v1366 = vld [vmem:[#allocation5 + $0x28] sm:$0xff]
    %v1367 = vld [vmem:[#allocation5 + $0x30] sm:$0xff]
    %v1368 = vld [vmem:[#allocation5 + $0x38] sm:$0xff]
    %v1369 = vld [vmem:[#allocation5 + $0x40] sm:$0xff]
    %v1370 = vld [vmem:[#allocation5 + $0x48] sm:$0xff]
    %v1371 = vld [vmem:[#allocation5 + $0x50] sm:$0xff]
    %v1372 = vld [vmem:[#allocation5 + $0x58] sm:$0xff]
    %v1373 = vld [vmem:[#allocation5 + $0x60] sm:$0xff]
    %v1374 = vld [vmem:[#allocation5 + $0x68] sm:$0xff]
    %v1375 = vld [vmem:[#allocation5 + $0x70] sm:$0xff]
    %v1376 = vld [vmem:[#allocation5 + $0x78] sm:$0xff]
    %v1377 = vld [vmem:[#allocation5 + $0x80] sm:$0xff]
    %v1378 = vld [vmem:[#allocation5 + $0x88] sm:$0xff]
    %v1379 = vld [vmem:[#allocation5 + $0x90] sm:$0xff]
    %v1380 = vld [vmem:[#allocation5 + $0x98] sm:$0xff]
    %v1381 = vld [vmem:[#allocation5 + $0xa0] sm:$0xff]
    %v1382 = vld [vmem:[#allocation5 + $0xa8] sm:$0xff]
    %v1383 = vld [vmem:[#allocation5 + $0xb0] sm:$0xff]
    %v1384 = vld [vmem:[#allocation5 + $0xb8] sm:$0xff]
    %v1385 = vld [vmem:[#allocation5 + $0xc0] sm:$0xff]
    %v1386 = vld [vmem:[#allocation5 + $0xc8] sm:$0xff]
    %v1387 = vld [vmem:[#allocation5 + $0xd0] sm:$0xff]
    %v1388 = vld [vmem:[#allocation5 + $0xd8] sm:$0xff]
    %v1389 = vld [vmem:[#allocation5 + $0xe0] sm:$0xff]
    %v1390 = vld [vmem:[#allocation5 + $0xe8] sm:$0xff]
    %v1391 = vld [vmem:[#allocation5 + $0xf0] sm:$0xff]
    %v1392 = vld [vmem:[#allocation5 + $0xf8] sm:$0xff]
    %v1393 = vld [vmem:[#allocation5 + $0x100] sm:$0xff]
    %v1394 = vld [vmem:[#allocation5 + $0x108] sm:$0xff]
    %v1395 = vld [vmem:[#allocation5 + $0x110] sm:$0xff]
    %v1396 = vld [vmem:[#allocation5 + $0x118] sm:$0xff]
    %v1397 = vld [vmem:[#allocation5 + $0x120] sm:$0xff]
    %v1398 = vld [vmem:[#allocation5 + $0x128] sm:$0xff]
    %v1399 = vld [vmem:[#allocation5 + $0x130] sm:$0xff]
    %v1400 = vld [vmem:[#allocation5 + $0x138] sm:$0xff]
    %v1401 = vld [vmem:[#allocation5 + $0x140] sm:$0xff]
    %v1402 = vld [vmem:[#allocation5 + $0x148] sm:$0xff]
    %v1403 = vld [vmem:[#allocation5 + $0x150] sm:$0xff]
    %v1404 = vld [vmem:[#allocation5 + $0x158] sm:$0xff]
    %v1405 = vld [vmem:[#allocation5 + $0x160] sm:$0xff]
    %v1406 = vld [vmem:[#allocation5 + $0x168] sm:$0xff]
    %v1407 = vld [vmem:[#allocation5 + $0x170] sm:$0xff]
    %v1408 = vld [vmem:[#allocation5 + $0x178] sm:$0xff]
    %v1409 = vld [vmem:[#allocation5 + $0x180] sm:$0xff]
    %v1410 = vld [vmem:[#allocation5 + $0x188] sm:$0xff]
    %v1411 = vld [vmem:[#allocation5 + $0x190] sm:$0xff]
    %v1412 = vld [vmem:[#allocation5 + $0x198] sm:$0xff]
    %v1413 = vld [vmem:[#allocation5 + $0x1a0] sm:$0xff]
    %v1414 = vld [vmem:[#allocation5 + $0x1a8] sm:$0xff]
    %v1415 = vld [vmem:[#allocation5 + $0x1b0] sm:$0xff]
    %v1416 = vld [vmem:[#allocation5 + $0x1b8] sm:$0xff]
    %v1417 = vld [vmem:[#allocation5 + $0x1c0] sm:$0xff]
    %v1418 = vld [vmem:[#allocation5 + $0x1c8] sm:$0xff]
    %v1419 = vld [vmem:[#allocation5 + $0x1d0] sm:$0xff]
    %v1420 = vld [vmem:[#allocation5 + $0x1d8] sm:$0xff]
    %v1421 = vld [vmem:[#allocation5 + $0x1e0] sm:$0xff]
    %v1422 = vld [vmem:[#allocation5 + $0x1e8] sm:$0xff]
    %v1423 = vld [vmem:[#allocation5 + $0x1f0] sm:$0xff]
    %v1424 = vld [vmem:[#allocation5 + $0x1f8] sm:$0xff]
    %1425 = vmatprep.subr.mxu0 %v1362
    %1426 = vmatpush1.msra.mxu0 %v1361
    %1427 = vmatprep.subr.mxu0 %v1366
    %1428 = vmatpush1.msra.mxu0 %v1365
    %1429 = vmatprep.subr.mxu0 %v1370
    %1430 = vmatpush1.msra.mxu0 %v1369
    %1431 = vmatprep.subr.mxu0 %v1374
    %1432 = vmatpush1.msra.mxu0 %v1373
    %1433 = vmatprep.subr.mxu0 %v1378
    %1434 = vmatpush1.msra.mxu0 %v1377
    %1435 = vmatprep.subr.mxu0 %v1382
    %1436 = vmatpush1.msra.mxu0 %v1381
    %1437 = vmatprep.subr.mxu0 %v1386
    %1438 = vmatpush1.msra.mxu0 %v1385
    %1439 = vmatprep.subr.mxu0 %v1390
    %1440 = vmatpush1.msra.mxu0 %v1389
    %1441 = vmatprep.subr.mxu0 %v1394
    %1442 = vmatpush1.msra.mxu0 %v1393
    %1443 = vmatprep.subr.mxu0 %v1398
    %1444 = vmatpush1.msra.mxu0 %v1397
    %1445 = vmatprep.subr.mxu0 %v1402
    %1446 = vmatpush1.msra.mxu0 %v1401
    %1447 = vmatprep.subr.mxu0 %v1406
    %1448 = vmatpush1.msra.mxu0 %v1405
    %1449 = vmatprep.subr.mxu0 %v1410
    %1450 = vmatpush1.msra.mxu0 %v1409
    %1451 = vmatprep.subr.mxu0 %v1414
    %1452 = vmatpush1.msra.mxu0 %v1413
    %1453 = vmatprep.subr.mxu0 %v1418
    %1454 = vmatpush1.msra.mxu0 %v1417
    %1455 = vmatprep.subr.mxu0 %v1422
    %1456 = vmatpush1.msra.mxu0 %v1421
    %1457 = vmatprep.subr.mxu0 0.0
    %1458 = vmatpush1.msra.mxu0 0.0
    %1459 = vmatprep.subr.mxu0 0.0
    %1460 = vmatpush1.msra.mxu0 0.0
    %1461 = vmatprep.subr.mxu0 0.0
    %1462 = vmatpush1.msra.mxu0 0.0
    %1463 = vmatprep.subr.mxu0 0.0
    %1464 = vmatpush1.msra.mxu0 0.0
    %1465 = vmatprep.subr.mxu0 0.0
    %1466 = vmatpush1.msra.mxu0 0.0
    %1467 = vmatprep.subr.mxu0 0.0
    %1468 = vmatpush1.msra.mxu0 0.0
    %1469 = vmatprep.subr.mxu0 0.0
    %1470 = vmatpush1.msra.mxu0 0.0
    %1471 = vmatprep.subr.mxu0 0.0
    %1472 = vmatpush1.msra.mxu0 0.0
    %1473 = vmatprep.subr.mxu0 0.0
    %1474 = vmatpush1.msra.mxu0 0.0
    %1475 = vmatprep.subr.mxu0 0.0
    %1476 = vmatpush1.msra.mxu0 0.0
    %1477 = vmatprep.subr.mxu0 0.0
    %1478 = vmatpush1.msra.mxu0 0.0
    %1479 = vmatprep.subr.mxu0 0.0
    %1480 = vmatpush1.msra.mxu0 0.0
    %1481 = vmatprep.subr.mxu0 0.0
    %1482 = vmatpush1.msra.mxu0 0.0
    %1483 = vmatprep.subr.mxu0 0.0
    %1484 = vmatpush1.msra.mxu0 0.0
    %1485 = vmatprep.subr.mxu0 0.0
    %1486 = vmatpush1.msra.mxu0 0.0
    %1487 = vmatprep.subr.mxu0 0.0
    %1488 = vmatpush1.msra.mxu0 0.0
    %1489 = vmatprep.mubr.f32.mxu0 0.0
    %1490 = vmatmul.mubr.f32.gmra.mrb[0].mxu0 %v1359
    %v1491 = vpop.f32.mrb[0].mxu0
    %v1492 = vadd.f32 0.0, %v1491
    %v1493 = vpop.f32.mrb[0].mxu0
    %v1494 = vadd.f32 0.0, %v1493
    %1495 = vdwg.mxu0
    %1496 = vmatprep.subr.mxu0 %v1364
    %1497 = vmatpush1.msra.mxu0 %v1363
    %1498 = vmatprep.subr.mxu0 %v1368
    %1499 = vmatpush1.msra.mxu0 %v1367
    %1500 = vmatprep.subr.mxu0 %v1372
    %1501 = vmatpush1.msra.mxu0 %v1371
    %1502 = vmatprep.subr.mxu0 %v1376
    %1503 = vmatpush1.msra.mxu0 %v1375
    %1504 = vmatprep.subr.mxu0 %v1380
    %1505 = vmatpush1.msra.mxu0 %v1379
    %1506 = vmatprep.subr.mxu0 %v1384
    %1507 = vmatpush1.msra.mxu0 %v1383
    %1508 = vmatprep.subr.mxu0 %v1388
    %1509 = vmatpush1.msra.mxu0 %v1387
    %1510 = vmatprep.subr.mxu0 %v1392
    %1511 = vmatpush1.msra.mxu0 %v1391
    %1512 = vmatprep.subr.mxu0 %v1396
    %1513 = vmatpush1.msra.mxu0 %v1395
    %1514 = vmatprep.subr.mxu0 %v1400
    %1515 = vmatpush1.msra.mxu0 %v1399
    %1516 = vmatprep.subr.mxu0 %v1404
    %1517 = vmatpush1.msra.mxu0 %v1403
    %1518 = vmatprep.subr.mxu0 %v1408
    %1519 = vmatpush1.msra.mxu0 %v1407
    %1520 = vmatprep.subr.mxu0 %v1412
    %1521 = vmatpush1.msra.mxu0 %v1411
    %1522 = vmatprep.subr.mxu0 %v1416
    %1523 = vmatpush1.msra.mxu0 %v1415
    %1524 = vmatprep.subr.mxu0 %v1420
    %1525 = vmatpush1.msra.mxu0 %v1419
    %1526 = vmatprep.subr.mxu0 %v1424
    %1527 = vmatpush1.msra.mxu0 %v1423
    %1528 = vmatprep.subr.mxu0 0.0
    %1529 = vmatpush1.msra.mxu0 0.0
    %1530 = vmatprep.subr.mxu0 0.0
    %1531 = vmatpush1.msra.mxu0 0.0
    %1532 = vmatprep.subr.mxu0 0.0
    %1533 = vmatpush1.msra.mxu0 0.0
    %1534 = vmatprep.subr.mxu0 0.0
    %1535 = vmatpush1.msra.mxu0 0.0
    %1536 = vmatprep.subr.mxu0 0.0
    %1537 = vmatpush1.msra.mxu0 0.0
    %1538 = vmatprep.subr.mxu0 0.0
    %1539 = vmatpush1.msra.mxu0 0.0
    %1540 = vmatprep.subr.mxu0 0.0
    %1541 = vmatpush1.msra.mxu0 0.0
    %1542 = vmatprep.subr.mxu0 0.0
    %1543 = vmatpush1.msra.mxu0 0.0
    %1544 = vmatprep.subr.mxu0 0.0
    %1545 = vmatpush1.msra.mxu0 0.0
    %1546 = vmatprep.subr.mxu0 0.0
    %1547 = vmatpush1.msra.mxu0 0.0
    %1548 = vmatprep.subr.mxu0 0.0
    %1549 = vmatpush1.msra.mxu0 0.0
    %1550 = vmatprep.subr.mxu0 0.0
    %1551 = vmatpush1.msra.mxu0 0.0
    %1552 = vmatprep.subr.mxu0 0.0
    %1553 = vmatpush1.msra.mxu0 0.0
    %1554 = vmatprep.subr.mxu0 0.0
    %1555 = vmatpush1.msra.mxu0 0.0
    %1556 = vmatprep.subr.mxu0 0.0
    %1557 = vmatpush1.msra.mxu0 0.0
    %1558 = vmatprep.subr.mxu0 0.0
    %1559 = vmatpush1.msra.mxu0 0.0
    %1560 = vmatprep.mubr.f32.mxu0 0.0
    %1561 = vmatmul.mubr.f32.gmra.mrb[0].mxu0 %v1359
    %v1562 = vpop.f32.mrb[0].mxu0
    %v1563 = vadd.f32 0.0, %v1562
    %v1564 = vpop.f32.mrb[0].mxu0
    %v1565 = vadd.f32 0.0, %v1564
    %1566 = vdwg.mxu0
    %v1567 = vadd.f32 %v1355, %v1492
    %v1568 = vadd.f32 %v1356, %v1494
    %v1569 = vadd.f32 %v1357, %v1563
    %v1570 = vadd.f32 %v1358, %v1565
    %v1571 = vxor.u32 %v1567, 2147483648
    %v1572 = vmul.f32 %v1571, 1.442695
    %v1573 = vpow.pop %v1572
    %v1574 = vadd.f32 %v1573, 1.0
    %v1575 = vrcp.pop %v1574
    %v1576 = vmul.f32 1.0, %v1575
    %v1577 = vxor.u32 %v1568, 2147483648
    %v1578 = vmul.f32 %v1577, 1.442695
    %v1579 = vpow.pop %v1578
    %v1580 = vadd.f32 %v1579, 1.0
    %v1581 = vrcp.pop %v1580
    %v1582 = vmul.f32 1.0, %v1581
    %v1583 = vtanh.pop %v1569
    %v1584 = vxor.u32 %v1570, 2147483648
    %v1585 = vmul.f32 %v1584, 1.442695
    %v1586 = vpow.pop %v1585
    %v1587 = vadd.f32 %v1586, 1.0
    %v1588 = vrcp.pop %v1587
    %v1589 = vmul.f32 1.0, %v1588
    %v1590 = vmul.f32 %v1582, %v1360
    %v1591 = vmul.f32 %v1576, %v1583
    %v1592 = vadd.f32 %v1590, %v1591
    %v1593 = vtanh.pop %v1592
    %v1594 = vmul.f32 %v1589, %v1593
    %1595 = vst [vmem:[#allocation3] sm:$0xff] %v1594
    %1596 = vst [vmem:[#allocation4] sm:$0xff] %v1592
    %s1597 = scalar_lea.vmem %s4, 32
    %1598 = vst [vmem:[%s1597] sm:$0xff] %v1594
    %s1599 = smul.u32 5, 4
    %s1600 = smul.addr %s1599, 8
    %s1601 = scalar_lea.vmem [#allocation2], %s1600
    %v1602 = vld [vmem:[%s1601] sm:$0xff]
    %v1603 = vld [vmem:[%s1601 + $0x8] sm:$0xff]
    %v1604 = vld [vmem:[%s1601 + $0x10] sm:$0xff]
    %v1605 = vld [vmem:[%s1601 + $0x18] sm:$0xff]
    %v1606 = vld [vmem:[#allocation3] sm:$0xff]
    %v1607 = vld [vmem:[#allocation4] sm:$0xff]
    %v1608 = vld [vmem:[#allocation5] sm:$0xff]
    %v1609 = vld [vmem:[#allocation5 + $0x8] sm:$0xff]
    %v1610 = vld [vmem:[#allocation5 + $0x10] sm:$0xff]
    %v1611 = vld [vmem:[#allocation5 + $0x18] sm:$0xff]
    %v1612 = vld [vmem:[#allocation5 + $0x20] sm:$0xff]
    %v1613 = vld [vmem:[#allocation5 + $0x28] sm:$0xff]
    %v1614 = vld [vmem:[#allocation5 + $0x30] sm:$0xff]
    %v1615 = vld [vmem:[#allocation5 + $0x38] sm:$0xff]
    %v1616 = vld [vmem:[#allocation5 + $0x40] sm:$0xff]
    %v1617 = vld [vmem:[#allocation5 + $0x48] sm:$0xff]
    %v1618 = vld [vmem:[#allocation5 + $0x50] sm:$0xff]
    %v1619 = vld [vmem:[#allocation5 + $0x58] sm:$0xff]
    %v1620 = vld [vmem:[#allocation5 + $0x60] sm:$0xff]
    %v1621 = vld [vmem:[#allocation5 + $0x68] sm:$0xff]
    %v1622 = vld [vmem:[#allocation5 + $0x70] sm:$0xff]
    %v1623 = vld [vmem:[#allocation5 + $0x78] sm:$0xff]
    %v1624 = vld [vmem:[#allocation5 + $0x80] sm:$0xff]
    %v1625 = vld [vmem:[#allocation5 + $0x88] sm:$0xff]
    %v1626 = vld [vmem:[#allocation5 + $0x90] sm:$0xff]
    %v1627 = vld [vmem:[#allocation5 + $0x98] sm:$0xff]
    %v1628 = vld [vmem:[#allocation5 + $0xa0] sm:$0xff]
    %v1629 = vld [vmem:[#allocation5 + $0xa8] sm:$0xff]
    %v1630 = vld [vmem:[#allocation5 + $0xb0] sm:$0xff]
    %v1631 = vld [vmem:[#allocation5 + $0xb8] sm:$0xff]
    %v1632 = vld [vmem:[#allocation5 + $0xc0] sm:$0xff]
    %v1633 = vld [vmem:[#allocation5 + $0xc8] sm:$0xff]
    %v1634 = vld [vmem:[#allocation5 + $0xd0] sm:$0xff]
    %v1635 = vld [vmem:[#allocation5 + $0xd8] sm:$0xff]
    %v1636 = vld [vmem:[#allocation5 + $0xe0] sm:$0xff]
    %v1637 = vld [vmem:[#allocation5 + $0xe8] sm:$0xff]
    %v1638 = vld [vmem:[#allocation5 + $0xf0] sm:$0xff]
    %v1639 = vld [vmem:[#allocation5 + $0xf8] sm:$0xff]
    %v1640 = vld [vmem:[#allocation5 + $0x100] sm:$0xff]
    %v1641 = vld [vmem:[#allocation5 + $0x108] sm:$0xff]
    %v1642 = vld [vmem:[#allocation5 + $0x110] sm:$0xff]
    %v1643 = vld [vmem:[#allocation5 + $0x118] sm:$0xff]
    %v1644 = vld [vmem:[#allocation5 + $0x120] sm:$0xff]
    %v1645 = vld [vmem:[#allocation5 + $0x128] sm:$0xff]
    %v1646 = vld [vmem:[#allocation5 + $0x130] sm:$0xff]
    %v1647 = vld [vmem:[#allocation5 + $0x138] sm:$0xff]
    %v1648 = vld [vmem:[#allocation5 + $0x140] sm:$0xff]
    %v1649 = vld [vmem:[#allocation5 + $0x148] sm:$0xff]
    %v1650 = vld [vmem:[#allocation5 + $0x150] sm:$0xff]
    %v1651 = vld [vmem:[#allocation5 + $0x158] sm:$0xff]
    %v1652 = vld [vmem:[#allocation5 + $0x160] sm:$0xff]
    %v1653 = vld [vmem:[#allocation5 + $0x168] sm:$0xff]
    %v1654 = vld [vmem:[#allocation5 + $0x170] sm:$0xff]
    %v1655 = vld [vmem:[#allocation5 + $0x178] sm:$0xff]
    %v1656 = vld [vmem:[#allocation5 + $0x180] sm:$0xff]
    %v1657 = vld [vmem:[#allocation5 + $0x188] sm:$0xff]
    %v1658 = vld [vmem:[#allocation5 + $0x190] sm:$0xff]
    %v1659 = vld [vmem:[#allocation5 + $0x198] sm:$0xff]
    %v1660 = vld [vmem:[#allocation5 + $0x1a0] sm:$0xff]
    %v1661 = vld [vmem:[#allocation5 + $0x1a8] sm:$0xff]
    %v1662 = vld [vmem:[#allocation5 + $0x1b0] sm:$0xff]
    %v1663 = vld [vmem:[#allocation5 + $0x1b8] sm:$0xff]
    %v1664 = vld [vmem:[#allocation5 + $0x1c0] sm:$0xff]
    %v1665 = vld [vmem:[#allocation5 + $0x1c8] sm:$0xff]
    %v1666 = vld [vmem:[#allocation5 + $0x1d0] sm:$0xff]
    %v1667 = vld [vmem:[#allocation5 + $0x1d8] sm:$0xff]
    %v1668 = vld [vmem:[#allocation5 + $0x1e0] sm:$0xff]
    %v1669 = vld [vmem:[#allocation5 + $0x1e8] sm:$0xff]
    %v1670 = vld [vmem:[#allocation5 + $0x1f0] sm:$0xff]
    %v1671 = vld [vmem:[#allocation5 + $0x1f8] sm:$0xff]
    %1672 = vmatprep.subr.mxu0 %v1609
    %1673 = vmatpush1.msra.mxu0 %v1608
    %1674 = vmatprep.subr.mxu0 %v1613
    %1675 = vmatpush1.msra.mxu0 %v1612
    %1676 = vmatprep.subr.mxu0 %v1617
    %1677 = vmatpush1.msra.mxu0 %v1616
    %1678 = vmatprep.subr.mxu0 %v1621
    %1679 = vmatpush1.msra.mxu0 %v1620
    %1680 = vmatprep.subr.mxu0 %v1625
    %1681 = vmatpush1.msra.mxu0 %v1624
    %1682 = vmatprep.subr.mxu0 %v1629
    %1683 = vmatpush1.msra.mxu0 %v1628
    %1684 = vmatprep.subr.mxu0 %v1633
    %1685 = vmatpush1.msra.mxu0 %v1632
    %1686 = vmatprep.subr.mxu0 %v1637
    %1687 = vmatpush1.msra.mxu0 %v1636
    %1688 = vmatprep.subr.mxu0 %v1641
    %1689 = vmatpush1.msra.mxu0 %v1640
    %1690 = vmatprep.subr.mxu0 %v1645
    %1691 = vmatpush1.msra.mxu0 %v1644
    %1692 = vmatprep.subr.mxu0 %v1649
    %1693 = vmatpush1.msra.mxu0 %v1648
    %1694 = vmatprep.subr.mxu0 %v1653
    %1695 = vmatpush1.msra.mxu0 %v1652
    %1696 = vmatprep.subr.mxu0 %v1657
    %1697 = vmatpush1.msra.mxu0 %v1656
    %1698 = vmatprep.subr.mxu0 %v1661
    %1699 = vmatpush1.msra.mxu0 %v1660
    %1700 = vmatprep.subr.mxu0 %v1665
    %1701 = vmatpush1.msra.mxu0 %v1664
    %1702 = vmatprep.subr.mxu0 %v1669
    %1703 = vmatpush1.msra.mxu0 %v1668
    %1704 = vmatprep.subr.mxu0 0.0
    %1705 = vmatpush1.msra.mxu0 0.0
    %1706 = vmatprep.subr.mxu0 0.0
    %1707 = vmatpush1.msra.mxu0 0.0
    %1708 = vmatprep.subr.mxu0 0.0
    %1709 = vmatpush1.msra.mxu0 0.0
    %1710 = vmatprep.subr.mxu0 0.0
    %1711 = vmatpush1.msra.mxu0 0.0
    %1712 = vmatprep.subr.mxu0 0.0
    %1713 = vmatpush1.msra.mxu0 0.0
    %1714 = vmatprep.subr.mxu0 0.0
    %1715 = vmatpush1.msra.mxu0 0.0
    %1716 = vmatprep.subr.mxu0 0.0
    %1717 = vmatpush1.msra.mxu0 0.0
    %1718 = vmatprep.subr.mxu0 0.0
    %1719 = vmatpush1.msra.mxu0 0.0
    %1720 = vmatprep.subr.mxu0 0.0
    %1721 = vmatpush1.msra.mxu0 0.0
    %1722 = vmatprep.subr.mxu0 0.0
    %1723 = vmatpush1.msra.mxu0 0.0
    %1724 = vmatprep.subr.mxu0 0.0
    %1725 = vmatpush1.msra.mxu0 0.0
    %1726 = vmatprep.subr.mxu0 0.0
    %1727 = vmatpush1.msra.mxu0 0.0
    %1728 = vmatprep.subr.mxu0 0.0
    %1729 = vmatpush1.msra.mxu0 0.0
    %1730 = vmatprep.subr.mxu0 0.0
    %1731 = vmatpush1.msra.mxu0 0.0
    %1732 = vmatprep.subr.mxu0 0.0
    %1733 = vmatpush1.msra.mxu0 0.0
    %1734 = vmatprep.subr.mxu0 0.0
    %1735 = vmatpush1.msra.mxu0 0.0
    %1736 = vmatprep.mubr.f32.mxu0 0.0
    %1737 = vmatmul.mubr.f32.gmra.mrb[0].mxu0 %v1606
    %v1738 = vpop.f32.mrb[0].mxu0
    %v1739 = vadd.f32 0.0, %v1738
    %v1740 = vpop.f32.mrb[0].mxu0
    %v1741 = vadd.f32 0.0, %v1740
    %1742 = vdwg.mxu0
    %1743 = vmatprep.subr.mxu0 %v1611
    %1744 = vmatpush1.msra.mxu0 %v1610
    %1745 = vmatprep.subr.mxu0 %v1615
    %1746 = vmatpush1.msra.mxu0 %v1614
    %1747 = vmatprep.subr.mxu0 %v1619
    %1748 = vmatpush1.msra.mxu0 %v1618
    %1749 = vmatprep.subr.mxu0 %v1623
    %1750 = vmatpush1.msra.mxu0 %v1622
    %1751 = vmatprep.subr.mxu0 %v1627
    %1752 = vmatpush1.msra.mxu0 %v1626
    %1753 = vmatprep.subr.mxu0 %v1631
    %1754 = vmatpush1.msra.mxu0 %v1630
    %1755 = vmatprep.subr.mxu0 %v1635
    %1756 = vmatpush1.msra.mxu0 %v1634
    %1757 = vmatprep.subr.mxu0 %v1639
    %1758 = vmatpush1.msra.mxu0 %v1638
    %1759 = vmatprep.subr.mxu0 %v1643
    %1760 = vmatpush1.msra.mxu0 %v1642
    %1761 = vmatprep.subr.mxu0 %v1647
    %1762 = vmatpush1.msra.mxu0 %v1646
    %1763 = vmatprep.subr.mxu0 %v1651
    %1764 = vmatpush1.msra.mxu0 %v1650
    %1765 = vmatprep.subr.mxu0 %v1655
    %1766 = vmatpush1.msra.mxu0 %v1654
    %1767 = vmatprep.subr.mxu0 %v1659
    %1768 = vmatpush1.msra.mxu0 %v1658
    %1769 = vmatprep.subr.mxu0 %v1663
    %1770 = vmatpush1.msra.mxu0 %v1662
    %1771 = vmatprep.subr.mxu0 %v1667
    %1772 = vmatpush1.msra.mxu0 %v1666
    %1773 = vmatprep.subr.mxu0 %v1671
    %1774 = vmatpush1.msra.mxu0 %v1670
    %1775 = vmatprep.subr.mxu0 0.0
    %1776 = vmatpush1.msra.mxu0 0.0
    %1777 = vmatprep.subr.mxu0 0.0
    %1778 = vmatpush1.msra.mxu0 0.0
    %1779 = vmatprep.subr.mxu0 0.0
    %1780 = vmatpush1.msra.mxu0 0.0
    %1781 = vmatprep.subr.mxu0 0.0
    %1782 = vmatpush1.msra.mxu0 0.0
    %1783 = vmatprep.subr.mxu0 0.0
    %1784 = vmatpush1.msra.mxu0 0.0
    %1785 = vmatprep.subr.mxu0 0.0
    %1786 = vmatpush1.msra.mxu0 0.0
    %1787 = vmatprep.subr.mxu0 0.0
    %1788 = vmatpush1.msra.mxu0 0.0
    %1789 = vmatprep.subr.mxu0 0.0
    %1790 = vmatpush1.msra.mxu0 0.0
    %1791 = vmatprep.subr.mxu0 0.0
    %1792 = vmatpush1.msra.mxu0 0.0
    %1793 = vmatprep.subr.mxu0 0.0
    %1794 = vmatpush1.msra.mxu0 0.0
    %1795 = vmatprep.subr.mxu0 0.0
    %1796 = vmatpush1.msra.mxu0 0.0
    %1797 = vmatprep.subr.mxu0 0.0
    %1798 = vmatpush1.msra.mxu0 0.0
    %1799 = vmatprep.subr.mxu0 0.0
    %1800 = vmatpush1.msra.mxu0 0.0
    %1801 = vmatprep.subr.mxu0 0.0
    %1802 = vmatpush1.msra.mxu0 0.0
    %1803 = vmatprep.subr.mxu0 0.0
    %1804 = vmatpush1.msra.mxu0 0.0
    %1805 = vmatprep.subr.mxu0 0.0
    %1806 = vmatpush1.msra.mxu0 0.0
    %1807 = vmatprep.mubr.f32.mxu0 0.0
    %1808 = vmatmul.mubr.f32.gmra.mrb[0].mxu0 %v1606
    %v1809 = vpop.f32.mrb[0].mxu0
    %v1810 = vadd.f32 0.0, %v1809
    %v1811 = vpop.f32.mrb[0].mxu0
    %v1812 = vadd.f32 0.0, %v1811
    %1813 = vdwg.mxu0
    %v1814 = vadd.f32 %v1602, %v1739
    %v1815 = vadd.f32 %v1603, %v1741
    %v1816 = vadd.f32 %v1604, %v1810
    %v1817 = vadd.f32 %v1605, %v1812
    %v1818 = vxor.u32 %v1814, 2147483648
    %v1819 = vmul.f32 %v1818, 1.442695
    %v1820 = vpow.pop %v1819
    %v1821 = vadd.f32 %v1820, 1.0
    %v1822 = vrcp.pop %v1821
    %v1823 = vmul.f32 1.0, %v1822
    %v1824 = vxor.u32 %v1815, 2147483648
    %v1825 = vmul.f32 %v1824, 1.442695
    %v1826 = vpow.pop %v1825
    %v1827 = vadd.f32 %v1826, 1.0
    %v1828 = vrcp.pop %v1827
    %v1829 = vmul.f32 1.0, %v1828
    %v1830 = vtanh.pop %v1816
    %v1831 = vxor.u32 %v1817, 2147483648
    %v1832 = vmul.f32 %v1831, 1.442695
    %v1833 = vpow.pop %v1832
    %v1834 = vadd.f32 %v1833, 1.0
    %v1835 = vrcp.pop %v1834
    %v1836 = vmul.f32 1.0, %v1835
    %v1837 = vmul.f32 %v1829, %v1607
    %v1838 = vmul.f32 %v1823, %v1830
    %v1839 = vadd.f32 %v1837, %v1838
    %v1840 = vtanh.pop %v1839
    %v1841 = vmul.f32 %v1836, %v1840
    %1842 = vst [vmem:[#allocation3] sm:$0xff] %v1841
    %1843 = vst [vmem:[#allocation4] sm:$0xff] %v1839
    %s1844 = scalar_lea.vmem %s4, 40
    %1845 = vst [vmem:[%s1844] sm:$0xff] %v1841
    %s1846 = smul.u32 6, 4
    %s1847 = smul.addr %s1846, 8
    %s1848 = scalar_lea.vmem [#allocation2], %s1847
    %v1849 = vld [vmem:[%s1848] sm:$0xff]
    %v1850 = vld [vmem:[%s1848 + $0x8] sm:$0xff]
    %v1851 = vld [vmem:[%s1848 + $0x10] sm:$0xff]
    %v1852 = vld [vmem:[%s1848 + $0x18] sm:$0xff]
    %v1853 = vld [vmem:[#allocation3] sm:$0xff]
    %v1854 = vld [vmem:[#allocation4] sm:$0xff]
    %v1855 = vld [vmem:[#allocation5] sm:$0xff]
    %v1856 = vld [vmem:[#allocation5 + $0x8] sm:$0xff]
    %v1857 = vld [vmem:[#allocation5 + $0x10] sm:$0xff]
    %v1858 = vld [vmem:[#allocation5 + $0x18] sm:$0xff]
    %v1859 = vld [vmem:[#allocation5 + $0x20] sm:$0xff]
    %v1860 = vld [vmem:[#allocation5 + $0x28] sm:$0xff]
    %v1861 = vld [vmem:[#allocation5 + $0x30] sm:$0xff]
    %v1862 = vld [vmem:[#allocation5 + $0x38] sm:$0xff]
    %v1863 = vld [vmem:[#allocation5 + $0x40] sm:$0xff]
    %v1864 = vld [vmem:[#allocation5 + $0x48] sm:$0xff]
    %v1865 = vld [vmem:[#allocation5 + $0x50] sm:$0xff]
    %v1866 = vld [vmem:[#allocation5 + $0x58] sm:$0xff]
    %v1867 = vld [vmem:[#allocation5 + $0x60] sm:$0xff]
    %v1868 = vld [vmem:[#allocation5 + $0x68] sm:$0xff]
    %v1869 = vld [vmem:[#allocation5 + $0x70] sm:$0xff]
    %v1870 = vld [vmem:[#allocation5 + $0x78] sm:$0xff]
    %v1871 = vld [vmem:[#allocation5 + $0x80] sm:$0xff]
    %v1872 = vld [vmem:[#allocation5 + $0x88] sm:$0xff]
    %v1873 = vld [vmem:[#allocation5 + $0x90] sm:$0xff]
    %v1874 = vld [vmem:[#allocation5 + $0x98] sm:$0xff]
    %v1875 = vld [vmem:[#allocation5 + $0xa0] sm:$0xff]
    %v1876 = vld [vmem:[#allocation5 + $0xa8] sm:$0xff]
    %v1877 = vld [vmem:[#allocation5 + $0xb0] sm:$0xff]
    %v1878 = vld [vmem:[#allocation5 + $0xb8] sm:$0xff]
    %v1879 = vld [vmem:[#allocation5 + $0xc0] sm:$0xff]
    %v1880 = vld [vmem:[#allocation5 + $0xc8] sm:$0xff]
    %v1881 = vld [vmem:[#allocation5 + $0xd0] sm:$0xff]
    %v1882 = vld [vmem:[#allocation5 + $0xd8] sm:$0xff]
    %v1883 = vld [vmem:[#allocation5 + $0xe0] sm:$0xff]
    %v1884 = vld [vmem:[#allocation5 + $0xe8] sm:$0xff]
    %v1885 = vld [vmem:[#allocation5 + $0xf0] sm:$0xff]
    %v1886 = vld [vmem:[#allocation5 + $0xf8] sm:$0xff]
    %v1887 = vld [vmem:[#allocation5 + $0x100] sm:$0xff]
    %v1888 = vld [vmem:[#allocation5 + $0x108] sm:$0xff]
    %v1889 = vld [vmem:[#allocation5 + $0x110] sm:$0xff]
    %v1890 = vld [vmem:[#allocation5 + $0x118] sm:$0xff]
    %v1891 = vld [vmem:[#allocation5 + $0x120] sm:$0xff]
    %v1892 = vld [vmem:[#allocation5 + $0x128] sm:$0xff]
    %v1893 = vld [vmem:[#allocation5 + $0x130] sm:$0xff]
    %v1894 = vld [vmem:[#allocation5 + $0x138] sm:$0xff]
    %v1895 = vld [vmem:[#allocation5 + $0x140] sm:$0xff]
    %v1896 = vld [vmem:[#allocation5 + $0x148] sm:$0xff]
    %v1897 = vld [vmem:[#allocation5 + $0x150] sm:$0xff]
    %v1898 = vld [vmem:[#allocation5 + $0x158] sm:$0xff]
    %v1899 = vld [vmem:[#allocation5 + $0x160] sm:$0xff]
    %v1900 = vld [vmem:[#allocation5 + $0x168] sm:$0xff]
    %v1901 = vld [vmem:[#allocation5 + $0x170] sm:$0xff]
    %v1902 = vld [vmem:[#allocation5 + $0x178] sm:$0xff]
    %v1903 = vld [vmem:[#allocation5 + $0x180] sm:$0xff]
    %v1904 = vld [vmem:[#allocation5 + $0x188] sm:$0xff]
    %v1905 = vld [vmem:[#allocation5 + $0x190] sm:$0xff]
    %v1906 = vld [vmem:[#allocation5 + $0x198] sm:$0xff]
    %v1907 = vld [vmem:[#allocation5 + $0x1a0] sm:$0xff]
    %v1908 = vld [vmem:[#allocation5 + $0x1a8] sm:$0xff]
    %v1909 = vld [vmem:[#allocation5 + $0x1b0] sm:$0xff]
    %v1910 = vld [vmem:[#allocation5 + $0x1b8] sm:$0xff]
    %v1911 = vld [vmem:[#allocation5 + $0x1c0] sm:$0xff]
    %v1912 = vld [vmem:[#allocation5 + $0x1c8] sm:$0xff]
    %v1913 = vld [vmem:[#allocation5 + $0x1d0] sm:$0xff]
    %v1914 = vld [vmem:[#allocation5 + $0x1d8] sm:$0xff]
    %v1915 = vld [vmem:[#allocation5 + $0x1e0] sm:$0xff]
    %v1916 = vld [vmem:[#allocation5 + $0x1e8] sm:$0xff]
    %v1917 = vld [vmem:[#allocation5 + $0x1f0] sm:$0xff]
    %v1918 = vld [vmem:[#allocation5 + $0x1f8] sm:$0xff]
    %1919 = vmatprep.subr.mxu0 %v1856
    %1920 = vmatpush1.msra.mxu0 %v1855
    %1921 = vmatprep.subr.mxu0 %v1860
    %1922 = vmatpush1.msra.mxu0 %v1859
    %1923 = vmatprep.subr.mxu0 %v1864
    %1924 = vmatpush1.msra.mxu0 %v1863
    %1925 = vmatprep.subr.mxu0 %v1868
    %1926 = vmatpush1.msra.mxu0 %v1867
    %1927 = vmatprep.subr.mxu0 %v1872
    %1928 = vmatpush1.msra.mxu0 %v1871
    %1929 = vmatprep.subr.mxu0 %v1876
    %1930 = vmatpush1.msra.mxu0 %v1875
    %1931 = vmatprep.subr.mxu0 %v1880
    %1932 = vmatpush1.msra.mxu0 %v1879
    %1933 = vmatprep.subr.mxu0 %v1884
    %1934 = vmatpush1.msra.mxu0 %v1883
    %1935 = vmatprep.subr.mxu0 %v1888
    %1936 = vmatpush1.msra.mxu0 %v1887
    %1937 = vmatprep.subr.mxu0 %v1892
    %1938 = vmatpush1.msra.mxu0 %v1891
    %1939 = vmatprep.subr.mxu0 %v1896
    %1940 = vmatpush1.msra.mxu0 %v1895
    %1941 = vmatprep.subr.mxu0 %v1900
    %1942 = vmatpush1.msra.mxu0 %v1899
    %1943 = vmatprep.subr.mxu0 %v1904
    %1944 = vmatpush1.msra.mxu0 %v1903
    %1945 = vmatprep.subr.mxu0 %v1908
    %1946 = vmatpush1.msra.mxu0 %v1907
    %1947 = vmatprep.subr.mxu0 %v1912
    %1948 = vmatpush1.msra.mxu0 %v1911
    %1949 = vmatprep.subr.mxu0 %v1916
    %1950 = vmatpush1.msra.mxu0 %v1915
    %1951 = vmatprep.subr.mxu0 0.0
    %1952 = vmatpush1.msra.mxu0 0.0
    %1953 = vmatprep.subr.mxu0 0.0
    %1954 = vmatpush1.msra.mxu0 0.0
    %1955 = vmatprep.subr.mxu0 0.0
    %1956 = vmatpush1.msra.mxu0 0.0
    %1957 = vmatprep.subr.mxu0 0.0
    %1958 = vmatpush1.msra.mxu0 0.0
    %1959 = vmatprep.subr.mxu0 0.0
    %1960 = vmatpush1.msra.mxu0 0.0
    %1961 = vmatprep.subr.mxu0 0.0
    %1962 = vmatpush1.msra.mxu0 0.0
    %1963 = vmatprep.subr.mxu0 0.0
    %1964 = vmatpush1.msra.mxu0 0.0
    %1965 = vmatprep.subr.mxu0 0.0
    %1966 = vmatpush1.msra.mxu0 0.0
    %1967 = vmatprep.subr.mxu0 0.0
    %1968 = vmatpush1.msra.mxu0 0.0
    %1969 = vmatprep.subr.mxu0 0.0
    %1970 = vmatpush1.msra.mxu0 0.0
    %1971 = vmatprep.subr.mxu0 0.0
    %1972 = vmatpush1.msra.mxu0 0.0
    %1973 = vmatprep.subr.mxu0 0.0
    %1974 = vmatpush1.msra.mxu0 0.0
    %1975 = vmatprep.subr.mxu0 0.0
    %1976 = vmatpush1.msra.mxu0 0.0
    %1977 = vmatprep.subr.mxu0 0.0
    %1978 = vmatpush1.msra.mxu0 0.0
    %1979 = vmatprep.subr.mxu0 0.0
    %1980 = vmatpush1.msra.mxu0 0.0
    %1981 = vmatprep.subr.mxu0 0.0
    %1982 = vmatpush1.msra.mxu0 0.0
    %1983 = vmatprep.mubr.f32.mxu0 0.0
    %1984 = vmatmul.mubr.f32.gmra.mrb[0].mxu0 %v1853
    %v1985 = vpop.f32.mrb[0].mxu0
    %v1986 = vadd.f32 0.0, %v1985
    %v1987 = vpop.f32.mrb[0].mxu0
    %v1988 = vadd.f32 0.0, %v1987
    %1989 = vdwg.mxu0
    %1990 = vmatprep.subr.mxu0 %v1858
    %1991 = vmatpush1.msra.mxu0 %v1857
    %1992 = vmatprep.subr.mxu0 %v1862
    %1993 = vmatpush1.msra.mxu0 %v1861
    %1994 = vmatprep.subr.mxu0 %v1866
    %1995 = vmatpush1.msra.mxu0 %v1865
    %1996 = vmatprep.subr.mxu0 %v1870
    %1997 = vmatpush1.msra.mxu0 %v1869
    %1998 = vmatprep.subr.mxu0 %v1874
    %1999 = vmatpush1.msra.mxu0 %v1873
    %2000 = vmatprep.subr.mxu0 %v1878
    %2001 = vmatpush1.msra.mxu0 %v1877
    %2002 = vmatprep.subr.mxu0 %v1882
    %2003 = vmatpush1.msra.mxu0 %v1881
    %2004 = vmatprep.subr.mxu0 %v1886
    %2005 = vmatpush1.msra.mxu0 %v1885
    %2006 = vmatprep.subr.mxu0 %v1890
    %2007 = vmatpush1.msra.mxu0 %v1889
    %2008 = vmatprep.subr.mxu0 %v1894
    %2009 = vmatpush1.msra.mxu0 %v1893
    %2010 = vmatprep.subr.mxu0 %v1898
    %2011 = vmatpush1.msra.mxu0 %v1897
    %2012 = vmatprep.subr.mxu0 %v1902
    %2013 = vmatpush1.msra.mxu0 %v1901
    %2014 = vmatprep.subr.mxu0 %v1906
    %2015 = vmatpush1.msra.mxu0 %v1905
    %2016 = vmatprep.subr.mxu0 %v1910
    %2017 = vmatpush1.msra.mxu0 %v1909
    %2018 = vmatprep.subr.mxu0 %v1914
    %2019 = vmatpush1.msra.mxu0 %v1913
    %2020 = vmatprep.subr.mxu0 %v1918
    %2021 = vmatpush1.msra.mxu0 %v1917
    %2022 = vmatprep.subr.mxu0 0.0
    %2023 = vmatpush1.msra.mxu0 0.0
    %2024 = vmatprep.subr.mxu0 0.0
    %2025 = vmatpush1.msra.mxu0 0.0
    %2026 = vmatprep.subr.mxu0 0.0
    %2027 = vmatpush1.msra.mxu0 0.0
    %2028 = vmatprep.subr.mxu0 0.0
    %2029 = vmatpush1.msra.mxu0 0.0
    %2030 = vmatprep.subr.mxu0 0.0
    %2031 = vmatpush1.msra.mxu0 0.0
    %2032 = vmatprep.subr.mxu0 0.0
    %2033 = vmatpush1.msra.mxu0 0.0
    %2034 = vmatprep.subr.mxu0 0.0
    %2035 = vmatpush1.msra.mxu0 0.0
    %2036 = vmatprep.subr.mxu0 0.0
    %2037 = vmatpush1.msra.mxu0 0.0
    %2038 = vmatprep.subr.mxu0 0.0
    %2039 = vmatpush1.msra.mxu0 0.0
    %2040 = vmatprep.subr.mxu0 0.0
    %2041 = vmatpush1.msra.mxu0 0.0
    %2042 = vmatprep.subr.mxu0 0.0
    %2043 = vmatpush1.msra.mxu0 0.0
    %2044 = vmatprep.subr.mxu0 0.0
    %2045 = vmatpush1.msra.mxu0 0.0
    %2046 = vmatprep.subr.mxu0 0.0
    %2047 = vmatpush1.msra.mxu0 0.0
    %2048 = vmatprep.subr.mxu0 0.0
    %2049 = vmatpush1.msra.mxu0 0.0
    %2050 = vmatprep.subr.mxu0 0.0
    %2051 = vmatpush1.msra.mxu0 0.0
    %2052 = vmatprep.subr.mxu0 0.0
    %2053 = vmatpush1.msra.mxu0 0.0
    %2054 = vmatprep.mubr.f32.mxu0 0.0
    %2055 = vmatmul.mubr.f32.gmra.mrb[0].mxu0 %v1853
    %v2056 = vpop.f32.mrb[0].mxu0
    %v2057 = vadd.f32 0.0, %v2056
    %v2058 = vpop.f32.mrb[0].mxu0
    %v2059 = vadd.f32 0.0, %v2058
    %2060 = vdwg.mxu0
    %v2061 = vadd.f32 %v1849, %v1986
    %v2062 = vadd.f32 %v1850, %v1988
    %v2063 = vadd.f32 %v1851, %v2057
    %v2064 = vadd.f32 %v1852, %v2059
    %v2065 = vxor.u32 %v2061, 2147483648
    %v2066 = vmul.f32 %v2065, 1.442695
    %v2067 = vpow.pop %v2066
    %v2068 = vadd.f32 %v2067, 1.0
    %v2069 = vrcp.pop %v2068
    %v2070 = vmul.f32 1.0, %v2069
    %v2071 = vxor.u32 %v2062, 2147483648
    %v2072 = vmul.f32 %v2071, 1.442695
    %v2073 = vpow.pop %v2072
    %v2074 = vadd.f32 %v2073, 1.0
    %v2075 = vrcp.pop %v2074
    %v2076 = vmul.f32 1.0, %v2075
    %v2077 = vtanh.pop %v2063
    %v2078 = vxor.u32 %v2064, 2147483648
    %v2079 = vmul.f32 %v2078, 1.442695
    %v2080 = vpow.pop %v2079
    %v2081 = vadd.f32 %v2080, 1.0
    %v2082 = vrcp.pop %v2081
    %v2083 = vmul.f32 1.0, %v2082
    %v2084 = vmul.f32 %v2076, %v1854
    %v2085 = vmul.f32 %v2070, %v2077
    %v2086 = vadd.f32 %v2084, %v2085
    %v2087 = vtanh.pop %v2086
    %v2088 = vmul.f32 %v2083, %v2087
    %2089 = vst [vmem:[#allocation3] sm:$0xff] %v2088
    %2090 = vst [vmem:[#allocation4] sm:$0xff] %v2086
    %s2091 = scalar_lea.vmem %s4, 48
    %2092 = vst [vmem:[%s2091] sm:$0xff] %v2088
    %s2093 = smul.u32 7, 4
    %s2094 = smul.addr %s2093, 8
    %s2095 = scalar_lea.vmem [#allocation2], %s2094
    %v2096 = vld [vmem:[%s2095] sm:$0xff]
    %v2097 = vld [vmem:[%s2095 + $0x8] sm:$0xff]
    %v2098 = vld [vmem:[%s2095 + $0x10] sm:$0xff]
    %v2099 = vld [vmem:[%s2095 + $0x18] sm:$0xff]
    %v2100 = vld [vmem:[#allocation3] sm:$0xff]
    %v2101 = vld [vmem:[#allocation4] sm:$0xff]
    %v2102 = vld [vmem:[#allocation5] sm:$0xff]
    %v2103 = vld [vmem:[#allocation5 + $0x8] sm:$0xff]
    %v2104 = vld [vmem:[#allocation5 + $0x10] sm:$0xff]
    %v2105 = vld [vmem:[#allocation5 + $0x18] sm:$0xff]
    %v2106 = vld [vmem:[#allocation5 + $0x20] sm:$0xff]
    %v2107 = vld [vmem:[#allocation5 + $0x28] sm:$0xff]
    %v2108 = vld [vmem:[#allocation5 + $0x30] sm:$0xff]
    %v2109 = vld [vmem:[#allocation5 + $0x38] sm:$0xff]
    %v2110 = vld [vmem:[#allocation5 + $0x40] sm:$0xff]
    %v2111 = vld [vmem:[#allocation5 + $0x48] sm:$0xff]
    %v2112 = vld [vmem:[#allocation5 + $0x50] sm:$0xff]
    %v2113 = vld [vmem:[#allocation5 + $0x58] sm:$0xff]
    %v2114 = vld [vmem:[#allocation5 + $0x60] sm:$0xff]
    %v2115 = vld [vmem:[#allocation5 + $0x68] sm:$0xff]
    %v2116 = vld [vmem:[#allocation5 + $0x70] sm:$0xff]
    %v2117 = vld [vmem:[#allocation5 + $0x78] sm:$0xff]
    %v2118 = vld [vmem:[#allocation5 + $0x80] sm:$0xff]
    %v2119 = vld [vmem:[#allocation5 + $0x88] sm:$0xff]
    %v2120 = vld [vmem:[#allocation5 + $0x90] sm:$0xff]
    %v2121 = vld [vmem:[#allocation5 + $0x98] sm:$0xff]
    %v2122 = vld [vmem:[#allocation5 + $0xa0] sm:$0xff]
    %v2123 = vld [vmem:[#allocation5 + $0xa8] sm:$0xff]
    %v2124 = vld [vmem:[#allocation5 + $0xb0] sm:$0xff]
    %v2125 = vld [vmem:[#allocation5 + $0xb8] sm:$0xff]
    %v2126 = vld [vmem:[#allocation5 + $0xc0] sm:$0xff]
    %v2127 = vld [vmem:[#allocation5 + $0xc8] sm:$0xff]
    %v2128 = vld [vmem:[#allocation5 + $0xd0] sm:$0xff]
    %v2129 = vld [vmem:[#allocation5 + $0xd8] sm:$0xff]
    %v2130 = vld [vmem:[#allocation5 + $0xe0] sm:$0xff]
    %v2131 = vld [vmem:[#allocation5 + $0xe8] sm:$0xff]
    %v2132 = vld [vmem:[#allocation5 + $0xf0] sm:$0xff]
    %v2133 = vld [vmem:[#allocation5 + $0xf8] sm:$0xff]
    %v2134 = vld [vmem:[#allocation5 + $0x100] sm:$0xff]
    %v2135 = vld [vmem:[#allocation5 + $0x108] sm:$0xff]
    %v2136 = vld [vmem:[#allocation5 + $0x110] sm:$0xff]
    %v2137 = vld [vmem:[#allocation5 + $0x118] sm:$0xff]
    %v2138 = vld [vmem:[#allocation5 + $0x120] sm:$0xff]
    %v2139 = vld [vmem:[#allocation5 + $0x128] sm:$0xff]
    %v2140 = vld [vmem:[#allocation5 + $0x130] sm:$0xff]
    %v2141 = vld [vmem:[#allocation5 + $0x138] sm:$0xff]
    %v2142 = vld [vmem:[#allocation5 + $0x140] sm:$0xff]
    %v2143 = vld [vmem:[#allocation5 + $0x148] sm:$0xff]
    %v2144 = vld [vmem:[#allocation5 + $0x150] sm:$0xff]
    %v2145 = vld [vmem:[#allocation5 + $0x158] sm:$0xff]
    %v2146 = vld [vmem:[#allocation5 + $0x160] sm:$0xff]
    %v2147 = vld [vmem:[#allocation5 + $0x168] sm:$0xff]
    %v2148 = vld [vmem:[#allocation5 + $0x170] sm:$0xff]
    %v2149 = vld [vmem:[#allocation5 + $0x178] sm:$0xff]
    %v2150 = vld [vmem:[#allocation5 + $0x180] sm:$0xff]
    %v2151 = vld [vmem:[#allocation5 + $0x188] sm:$0xff]
    %v2152 = vld [vmem:[#allocation5 + $0x190] sm:$0xff]
    %v2153 = vld [vmem:[#allocation5 + $0x198] sm:$0xff]
    %v2154 = vld [vmem:[#allocation5 + $0x1a0] sm:$0xff]
    %v2155 = vld [vmem:[#allocation5 + $0x1a8] sm:$0xff]
    %v2156 = vld [vmem:[#allocation5 + $0x1b0] sm:$0xff]
    %v2157 = vld [vmem:[#allocation5 + $0x1b8] sm:$0xff]
    %v2158 = vld [vmem:[#allocation5 + $0x1c0] sm:$0xff]
    %v2159 = vld [vmem:[#allocation5 + $0x1c8] sm:$0xff]
    %v2160 = vld [vmem:[#allocation5 + $0x1d0] sm:$0xff]
    %v2161 = vld [vmem:[#allocation5 + $0x1d8] sm:$0xff]
    %v2162 = vld [vmem:[#allocation5 + $0x1e0] sm:$0xff]
    %v2163 = vld [vmem:[#allocation5 + $0x1e8] sm:$0xff]
    %v2164 = vld [vmem:[#allocation5 + $0x1f0] sm:$0xff]
    %v2165 = vld [vmem:[#allocation5 + $0x1f8] sm:$0xff]
    %2166 = vmatprep.subr.mxu0 %v2103
    %2167 = vmatpush1.msra.mxu0 %v2102
    %2168 = vmatprep.subr.mxu0 %v2107
    %2169 = vmatpush1.msra.mxu0 %v2106
    %2170 = vmatprep.subr.mxu0 %v2111
    %2171 = vmatpush1.msra.mxu0 %v2110
    %2172 = vmatprep.subr.mxu0 %v2115
    %2173 = vmatpush1.msra.mxu0 %v2114
    %2174 = vmatprep.subr.mxu0 %v2119
    %2175 = vmatpush1.msra.mxu0 %v2118
    %2176 = vmatprep.subr.mxu0 %v2123
    %2177 = vmatpush1.msra.mxu0 %v2122
    %2178 = vmatprep.subr.mxu0 %v2127
    %2179 = vmatpush1.msra.mxu0 %v2126
    %2180 = vmatprep.subr.mxu0 %v2131
    %2181 = vmatpush1.msra.mxu0 %v2130
    %2182 = vmatprep.subr.mxu0 %v2135
    %2183 = vmatpush1.msra.mxu0 %v2134
    %2184 = vmatprep.subr.mxu0 %v2139
    %2185 = vmatpush1.msra.mxu0 %v2138
    %2186 = vmatprep.subr.mxu0 %v2143
    %2187 = vmatpush1.msra.mxu0 %v2142
    %2188 = vmatprep.subr.mxu0 %v2147
    %2189 = vmatpush1.msra.mxu0 %v2146
    %2190 = vmatprep.subr.mxu0 %v2151
    %2191 = vmatpush1.msra.mxu0 %v2150
    %2192 = vmatprep.subr.mxu0 %v2155
    %2193 = vmatpush1.msra.mxu0 %v2154
    %2194 = vmatprep.subr.mxu0 %v2159
    %2195 = vmatpush1.msra.mxu0 %v2158
    %2196 = vmatprep.subr.mxu0 %v2163
    %2197 = vmatpush1.msra.mxu0 %v2162
    %2198 = vmatprep.subr.mxu0 0.0
    %2199 = vmatpush1.msra.mxu0 0.0
    %2200 = vmatprep.subr.mxu0 0.0
    %2201 = vmatpush1.msra.mxu0 0.0
    %2202 = vmatprep.subr.mxu0 0.0
    %2203 = vmatpush1.msra.mxu0 0.0
    %2204 = vmatprep.subr.mxu0 0.0
    %2205 = vmatpush1.msra.mxu0 0.0
    %2206 = vmatprep.subr.mxu0 0.0
    %2207 = vmatpush1.msra.mxu0 0.0
    %2208 = vmatprep.subr.mxu0 0.0
    %2209 = vmatpush1.msra.mxu0 0.0
    %2210 = vmatprep.subr.mxu0 0.0
    %2211 = vmatpush1.msra.mxu0 0.0
    %2212 = vmatprep.subr.mxu0 0.0
    %2213 = vmatpush1.msra.mxu0 0.0
    %2214 = vmatprep.subr.mxu0 0.0
    %2215 = vmatpush1.msra.mxu0 0.0
    %2216 = vmatprep.subr.mxu0 0.0
    %2217 = vmatpush1.msra.mxu0 0.0
    %2218 = vmatprep.subr.mxu0 0.0
    %2219 = vmatpush1.msra.mxu0 0.0
    %2220 = vmatprep.subr.mxu0 0.0
    %2221 = vmatpush1.msra.mxu0 0.0
    %2222 = vmatprep.subr.mxu0 0.0
    %2223 = vmatpush1.msra.mxu0 0.0
    %2224 = vmatprep.subr.mxu0 0.0
    %2225 = vmatpush1.msra.mxu0 0.0
    %2226 = vmatprep.subr.mxu0 0.0
    %2227 = vmatpush1.msra.mxu0 0.0
    %2228 = vmatprep.subr.mxu0 0.0
    %2229 = vmatpush1.msra.mxu0 0.0
    %2230 = vmatprep.mubr.f32.mxu0 0.0
    %2231 = vmatmul.mubr.f32.gmra.mrb[0].mxu0 %v2100
    %v2232 = vpop.f32.mrb[0].mxu0
    %v2233 = vadd.f32 0.0, %v2232
    %v2234 = vpop.f32.mrb[0].mxu0
    %v2235 = vadd.f32 0.0, %v2234
    %2236 = vdwg.mxu0
    %2237 = vmatprep.subr.mxu0 %v2105
    %2238 = vmatpush1.msra.mxu0 %v2104
    %2239 = vmatprep.subr.mxu0 %v2109
    %2240 = vmatpush1.msra.mxu0 %v2108
    %2241 = vmatprep.subr.mxu0 %v2113
    %2242 = vmatpush1.msra.mxu0 %v2112
    %2243 = vmatprep.subr.mxu0 %v2117
    %2244 = vmatpush1.msra.mxu0 %v2116
    %2245 = vmatprep.subr.mxu0 %v2121
    %2246 = vmatpush1.msra.mxu0 %v2120
    %2247 = vmatprep.subr.mxu0 %v2125
    %2248 = vmatpush1.msra.mxu0 %v2124
    %2249 = vmatprep.subr.mxu0 %v2129
    %2250 = vmatpush1.msra.mxu0 %v2128
    %2251 = vmatprep.subr.mxu0 %v2133
    %2252 = vmatpush1.msra.mxu0 %v2132
    %2253 = vmatprep.subr.mxu0 %v2137
    %2254 = vmatpush1.msra.mxu0 %v2136
    %2255 = vmatprep.subr.mxu0 %v2141
    %2256 = vmatpush1.msra.mxu0 %v2140
    %2257 = vmatprep.subr.mxu0 %v2145
    %2258 = vmatpush1.msra.mxu0 %v2144
    %2259 = vmatprep.subr.mxu0 %v2149
    %2260 = vmatpush1.msra.mxu0 %v2148
    %2261 = vmatprep.subr.mxu0 %v2153
    %2262 = vmatpush1.msra.mxu0 %v2152
    %2263 = vmatprep.subr.mxu0 %v2157
    %2264 = vmatpush1.msra.mxu0 %v2156
    %2265 = vmatprep.subr.mxu0 %v2161
    %2266 = vmatpush1.msra.mxu0 %v2160
    %2267 = vmatprep.subr.mxu0 %v2165
    %2268 = vmatpush1.msra.mxu0 %v2164
    %2269 = vmatprep.subr.mxu0 0.0
    %2270 = vmatpush1.msra.mxu0 0.0
    %2271 = vmatprep.subr.mxu0 0.0
    %2272 = vmatpush1.msra.mxu0 0.0
    %2273 = vmatprep.subr.mxu0 0.0
    %2274 = vmatpush1.msra.mxu0 0.0
    %2275 = vmatprep.subr.mxu0 0.0
    %2276 = vmatpush1.msra.mxu0 0.0
    %2277 = vmatprep.subr.mxu0 0.0
    %2278 = vmatpush1.msra.mxu0 0.0
    %2279 = vmatprep.subr.mxu0 0.0
    %2280 = vmatpush1.msra.mxu0 0.0
    %2281 = vmatprep.subr.mxu0 0.0
    %2282 = vmatpush1.msra.mxu0 0.0
    %2283 = vmatprep.subr.mxu0 0.0
    %2284 = vmatpush1.msra.mxu0 0.0
    %2285 = vmatprep.subr.mxu0 0.0
    %2286 = vmatpush1.msra.mxu0 0.0
    %2287 = vmatprep.subr.mxu0 0.0
    %2288 = vmatpush1.msra.mxu0 0.0
    %2289 = vmatprep.subr.mxu0 0.0
    %2290 = vmatpush1.msra.mxu0 0.0
    %2291 = vmatprep.subr.mxu0 0.0
    %2292 = vmatpush1.msra.mxu0 0.0
    %2293 = vmatprep.subr.mxu0 0.0
    %2294 = vmatpush1.msra.mxu0 0.0
    %2295 = vmatprep.subr.mxu0 0.0
    %2296 = vmatpush1.msra.mxu0 0.0
    %2297 = vmatprep.subr.mxu0 0.0
    %2298 = vmatpush1.msra.mxu0 0.0
    %2299 = vmatprep.subr.mxu0 0.0
    %2300 = vmatpush1.msra.mxu0 0.0
    %2301 = vmatprep.mubr.f32.mxu0 0.0
    %2302 = vmatmul.mubr.f32.gmra.mrb[0].mxu0 %v2100
    %v2303 = vpop.f32.mrb[0].mxu0
    %v2304 = vadd.f32 0.0, %v2303
    %v2305 = vpop.f32.mrb[0].mxu0
    %v2306 = vadd.f32 0.0, %v2305
    %2307 = vdwg.mxu0
    %v2308 = vadd.f32 %v2096, %v2233
    %v2309 = vadd.f32 %v2097, %v2235
    %v2310 = vadd.f32 %v2098, %v2304
    %v2311 = vadd.f32 %v2099, %v2306
    %v2312 = vxor.u32 %v2308, 2147483648
    %v2313 = vmul.f32 %v2312, 1.442695
    %v2314 = vpow.pop %v2313
    %v2315 = vadd.f32 %v2314, 1.0
    %v2316 = vrcp.pop %v2315
    %v2317 = vmul.f32 1.0, %v2316
    %v2318 = vxor.u32 %v2309, 2147483648
    %v2319 = vmul.f32 %v2318, 1.442695
    %v2320 = vpow.pop %v2319
    %v2321 = vadd.f32 %v2320, 1.0
    %v2322 = vrcp.pop %v2321
    %v2323 = vmul.f32 1.0, %v2322
    %v2324 = vtanh.pop %v2310
    %v2325 = vxor.u32 %v2311, 2147483648
    %v2326 = vmul.f32 %v2325, 1.442695
    %v2327 = vpow.pop %v2326
    %v2328 = vadd.f32 %v2327, 1.0
    %v2329 = vrcp.pop %v2328
    %v2330 = vmul.f32 1.0, %v2329
    %v2331 = vmul.f32 %v2323, %v2101
    %v2332 = vmul.f32 %v2317, %v2324
    %v2333 = vadd.f32 %v2331, %v2332
    %v2334 = vtanh.pop %v2333
    %v2335 = vmul.f32 %v2330, %v2334
    %2336 = vst [vmem:[#allocation3] sm:$0xff] %v2335
    %2337 = vst [vmem:[#allocation4] sm:$0xff] %v2333
    %s2338 = scalar_lea.vmem %s4, 56
    %2339 = vst [vmem:[%s2338] sm:$0xff] %v2335
    // Predicated region
    $region26: #{static_lstm_forward.2} parent=1 // pred_check
      _
    $region27: #{static_lstm_forward.2} parent=1 // pred_check_branch
      %2341 = sbr.rel (0) target = $region29
    $region28: #{static_lstm_forward.2} parent=1 // pred_region
      _
    $region29: #{static_lstm_forward.2} parent=1 // pred_fallthru
      _
    // Predicated region
    $region30: #{static_lstm_forward.2} parent=1 // pred_check
      _
    $region31: #{static_lstm_forward.2} parent=1 // pred_check_branch
      %2343 = sbr.rel (0) target = $region33
    $region32: #{static_lstm_forward.2} parent=1 // pred_region
      _
    $region33: #{static_lstm_forward.2} parent=1 // pred_fallthru
      _
    %2344 = vsyncpa [#allocation6], 1

// kernel: static_lstm_forward.3
$region0: #{static_lstm_forward.3}
  #allocation0 [shape = 'u32[]', space=smem, size = 0x4, offset = 0x4, fixed_abs, tag = 'smem constant byte address 0x4 - core index']
  #allocation1 [shape = 'u32[144,128]{1,0:T(1,128)}', space=vmem, size = 0x12000, scoped, tag = 'internal scratch']
  #allocation2 [shape = 'f32[64,512]{1,0:T(8,128)}', space=vmem, size = 0x20000, scoped, tag = 'scratch operand']
  #allocation3 [shape = 'f32[8,128]{1,0:T(8,128)}', space=vmem, size = 0x1000, scoped, tag = 'scratch operand']
  #allocation4 [shape = 'f32[8,128]{1,0:T(8,128)}', space=vmem, size = 0x1000, scoped, tag = 'scratch operand']
  %s0 = inlined_call_operand.vmem [shape: f32[8,8,128], index: 0, kind: input, shape index: {}]
  %s1 = inlined_call_operand.hbm [shape: f32[128,512], index: 1, kind: input, shape index: {}]
  %s2 = inlined_call_operand.vmem [shape: f32[128,512], index: 2, kind: input, shape index: {}]
  %s3 = inlined_call_operand.vmem [shape: f32[1,512], index: 3, kind: input, shape index: {}]
  %s4 = inlined_call_operand.vmem [shape: f32[128,128], index: 4, kind: input, shape index: {}]
  %s5 = inlined_call_operand.vmem [shape: f32[1,128], index: 5, kind: input, shape index: {}]
  %s6 = inlined_call_operand.vmem [shape: f32[8,128], index: 6, kind: output, shape index: {}]
  %s7 = sld [smem:[#allocation0]]
  $region46: #{static_lstm_forward.3} parent=0
    _
  %s9 = ssub.s32 1, %s7
  %s10 = scalar_select 0, %s9, %s7
  $region1: #{static_lstm_forward.3} parent=0
    #allocation5 [shape = 'u8[262144]{0}', space=vmem, size = 0x40000, scoped, tag = 'input window, operand 1, single buffered']
    #allocation6 [shape = 's32[1]{0}', space=sflag, size = 0x4, scoped, tag = 'scoped memory for static_lstm_forward.3']
    %11 = vsyncpa [#allocation6], 0
    // Predicated region
    $region2: #{static_lstm_forward.3} parent=1 // pred_check
      _
    $region3: #{static_lstm_forward.3} parent=1 // pred_check_branch
      %13 = sbr.rel (0) target = $region5
    $region4: #{static_lstm_forward.3} parent=1 // pred_region
      _
    $region5: #{static_lstm_forward.3} parent=1 // pred_fallthru
      _
    // Predicated region
    $region6: #{static_lstm_forward.3} parent=1 // pred_check
      _
    $region7: #{static_lstm_forward.3} parent=1 // pred_check_branch
      %15 = sbr.rel (0) target = $region9
    $region8: #{static_lstm_forward.3} parent=1 // pred_region
      %s17 = ssub.s32 8192, 8192
      %18 = vsyncadd [#allocation6], %s17
      %s19 = sshll.u32 [#allocation5], 4
      %s20 = int_to_ptr.vmem [resolvable:$true] %s19
      %25 = dma.hbm_to_vmem [thread:$0]  %s1, 8192, %s20, [#allocation6], 512, 512, 32
    $region9: #{static_lstm_forward.3} parent=1 // pred_fallthru
      _
    // Predicated region
    $region10: #{static_lstm_forward.3} parent=1 // pred_check
      _
    $region11: #{static_lstm_forward.3} parent=1 // pred_check_branch
      %27 = sbr.rel (0) target = $region13
    $region12: #{static_lstm_forward.3} parent=1 // pred_region
      _
    $region13: #{static_lstm_forward.3} parent=1 // pred_fallthru
      _
    // Predicated region
    $region14: #{static_lstm_forward.3} parent=1 // pred_check
      _
    $region15: #{static_lstm_forward.3} parent=1 // pred_check_branch
      %29 = sbr.rel (0) target = $region17
    $region16: #{static_lstm_forward.3} parent=1 // pred_region
      _
    $region17: #{static_lstm_forward.3} parent=1 // pred_fallthru
      _
    // Predicated region
    $region18: #{static_lstm_forward.3} parent=1 // pred_check
      _
    $region19: #{static_lstm_forward.3} parent=1 // pred_check_branch
      %31 = sbr.rel (0) target = $region21
    $region20: #{static_lstm_forward.3} parent=1 // pred_region
      _
    $region21: #{static_lstm_forward.3} parent=1 // pred_fallthru
      _
    // Predicated region
    $region22: #{static_lstm_forward.3} parent=1 // pred_check
      _
    $region23: #{static_lstm_forward.3} parent=1 // pred_check_branch
      %33 = sbr.rel (0) target = $region25
    $region24: #{static_lstm_forward.3} parent=1 // pred_region
      _
    $region25: #{static_lstm_forward.3} parent=1 // pred_fallthru
      _
    // Predicated region
    $region26: #{static_lstm_forward.3} parent=1 // pred_check
      _
    $region27: #{static_lstm_forward.3} parent=1 // pred_check_branch
      %35 = sbr.rel (0) target = $region29
    $region28: #{static_lstm_forward.3} parent=1 // pred_region
      %36 = dma.done [#allocation6], 8192
    $region29: #{static_lstm_forward.3} parent=1 // pred_fallthru
      _
    %p37 = scmp.eq.s32.totalorder 0, 0
    // Predicated region
    $region30: #{static_lstm_forward.3} parent=1 // pred_check
      %p38 = pneg %p37
    $region31: #{static_lstm_forward.3} parent=1 // pred_check_branch
      %40 = sbr.rel (%p38) target = $region33
    $region32: #{static_lstm_forward.3} parent=1 // pred_region
      %41 = vst [vmem:[#allocation3] sm:$0xff] 0.0
      %42 = vst [vmem:[#allocation4] sm:$0xff] 0.0
    $region33: #{static_lstm_forward.3} parent=1 // pred_fallthru
      _
    %v43 = vld [vmem:[%s0] sm:$0xff]
    %v44 = vld [vmem:[%s0 + $0x8] sm:$0xff]
    %v45 = vld [vmem:[%s0 + $0x10] sm:$0xff]
    %v46 = vld [vmem:[%s0 + $0x18] sm:$0xff]
    %v47 = vld [vmem:[%s0 + $0x20] sm:$0xff]
    %v48 = vld [vmem:[%s0 + $0x28] sm:$0xff]
    %v49 = vld [vmem:[%s0 + $0x30] sm:$0xff]
    %v50 = vld [vmem:[%s0 + $0x38] sm:$0xff]
    %v51 = vld [vmem:[#allocation5] sm:$0xff]
    %v52 = vld [vmem:[#allocation5 + $0x8] sm:$0xff]
    %v53 = vld [vmem:[#allocation5 + $0x10] sm:$0xff]
    %v54 = vld [vmem:[#allocation5 + $0x18] sm:$0xff]
    %v55 = vld [vmem:[#allocation5 + $0x20] sm:$0xff]
    %v56 = vld [vmem:[#allocation5 + $0x28] sm:$0xff]
    %v57 = vld [vmem:[#allocation5 + $0x30] sm:$0xff]
    %v58 = vld [vmem:[#allocation5 + $0x38] sm:$0xff]
    %v59 = vld [vmem:[#allocation5 + $0x40] sm:$0xff]
    %v60 = vld [vmem:[#allocation5 + $0x48] sm:$0xff]
    %v61 = vld [vmem:[#allocation5 + $0x50] sm:$0xff]
    %v62 = vld [vmem:[#allocation5 + $0x58] sm:$0xff]
    %v63 = vld [vmem:[#allocation5 + $0x60] sm:$0xff]
    %v64 = vld [vmem:[#allocation5 + $0x68] sm:$0xff]
    %v65 = vld [vmem:[#allocation5 + $0x70] sm:$0xff]
    %v66 = vld [vmem:[#allocation5 + $0x78] sm:$0xff]
    %v67 = vld [vmem:[#allocation5 + $0x80] sm:$0xff]
    %v68 = vld [vmem:[#allocation5 + $0x88] sm:$0xff]
    %v69 = vld [vmem:[#allocation5 + $0x90] sm:$0xff]
    %v70 = vld [vmem:[#allocation5 + $0x98] sm:$0xff]
    %v71 = vld [vmem:[#allocation5 + $0xa0] sm:$0xff]
    %v72 = vld [vmem:[#allocation5 + $0xa8] sm:$0xff]
    %v73 = vld [vmem:[#allocation5 + $0xb0] sm:$0xff]
    %v74 = vld [vmem:[#allocation5 + $0xb8] sm:$0xff]
    %v75 = vld [vmem:[#allocation5 + $0xc0] sm:$0xff]
    %v76 = vld [vmem:[#allocation5 + $0xc8] sm:$0xff]
    %v77 = vld [vmem:[#allocation5 + $0xd0] sm:$0xff]
    %v78 = vld [vmem:[#allocation5 + $0xd8] sm:$0xff]
    %v79 = vld [vmem:[#allocation5 + $0xe0] sm:$0xff]
    %v80 = vld [vmem:[#allocation5 + $0xe8] sm:$0xff]
    %v81 = vld [vmem:[#allocation5 + $0xf0] sm:$0xff]
    %v82 = vld [vmem:[#allocation5 + $0xf8] sm:$0xff]
    %v83 = vld [vmem:[#allocation5 + $0x100] sm:$0xff]
    %v84 = vld [vmem:[#allocation5 + $0x108] sm:$0xff]
    %v85 = vld [vmem:[#allocation5 + $0x110] sm:$0xff]
    %v86 = vld [vmem:[#allocation5 + $0x118] sm:$0xff]
    %v87 = vld [vmem:[#allocation5 + $0x120] sm:$0xff]
    %v88 = vld [vmem:[#allocation5 + $0x128] sm:$0xff]
    %v89 = vld [vmem:[#allocation5 + $0x130] sm:$0xff]
    %v90 = vld [vmem:[#allocation5 + $0x138] sm:$0xff]
    %v91 = vld [vmem:[#allocation5 + $0x140] sm:$0xff]
    %v92 = vld [vmem:[#allocation5 + $0x148] sm:$0xff]
    %v93 = vld [vmem:[#allocation5 + $0x150] sm:$0xff]
    %v94 = vld [vmem:[#allocation5 + $0x158] sm:$0xff]
    %v95 = vld [vmem:[#allocation5 + $0x160] sm:$0xff]
    %v96 = vld [vmem:[#allocation5 + $0x168] sm:$0xff]
    %v97 = vld [vmem:[#allocation5 + $0x170] sm:$0xff]
    %v98 = vld [vmem:[#allocation5 + $0x178] sm:$0xff]
    %v99 = vld [vmem:[#allocation5 + $0x180] sm:$0xff]
    %v100 = vld [vmem:[#allocation5 + $0x188] sm:$0xff]
    %v101 = vld [vmem:[#allocation5 + $0x190] sm:$0xff]
    %v102 = vld [vmem:[#allocation5 + $0x198] sm:$0xff]
    %v103 = vld [vmem:[#allocation5 + $0x1a0] sm:$0xff]
    %v104 = vld [vmem:[#allocation5 + $0x1a8] sm:$0xff]
    %v105 = vld [vmem:[#allocation5 + $0x1b0] sm:$0xff]
    %v106 = vld [vmem:[#allocation5 + $0x1b8] sm:$0xff]
    %v107 = vld [vmem:[#allocation5 + $0x1c0] sm:$0xff]
    %v108 = vld [vmem:[#allocation5 + $0x1c8] sm:$0xff]
    %v109 = vld [vmem:[#allocation5 + $0x1d0] sm:$0xff]
    %v110 = vld [vmem:[#allocation5 + $0x1d8] sm:$0xff]
    %v111 = vld [vmem:[#allocation5 + $0x1e0] sm:$0xff]
    %v112 = vld [vmem:[#allocation5 + $0x1e8] sm:$0xff]
    %v113 = vld [vmem:[#allocation5 + $0x1f0] sm:$0xff]
    %v114 = vld [vmem:[#allocation5 + $0x1f8] sm:$0xff]
    %v115 = vld [vmem:[%s3] sm:$0xf]
    %v117 = vlaneseq
    %v118 = vshrl.u32 %v117, 7
    %v119 = vsub.s32 0, %v118
    %v120 = vrot.slane %v115, %v119
    %v121 = vlaneseq
    %v122 = vshrl.u32 %v121, 7
    %v123 = vsub.s32 1, %v122
    %v124 = vrot.slane %v115, %v123
    %v125 = vlaneseq
    %v126 = vshrl.u32 %v125, 7
    %v127 = vsub.s32 2, %v126
    %v128 = vrot.slane %v115, %v127
    %v129 = vlaneseq
    %v130 = vshrl.u32 %v129, 7
    %v131 = vsub.s32 3, %v130
    %v132 = vrot.slane %v115, %v131
    %137 = vmatprep.subr.mxu0 %v52
    %138 = vmatpush1.msra.mxu0 %v51
    %139 = vmatprep.subr.mxu0 %v56
    %140 = vmatpush1.msra.mxu0 %v55
    %141 = vmatprep.subr.mxu0 %v60
    %142 = vmatpush1.msra.mxu0 %v59
    %143 = vmatprep.subr.mxu0 %v64
    %144 = vmatpush1.msra.mxu0 %v63
    %145 = vmatprep.subr.mxu0 %v68
    %146 = vmatpush1.msra.mxu0 %v67
    %147 = vmatprep.subr.mxu0 %v72
    %148 = vmatpush1.msra.mxu0 %v71
    %149 = vmatprep.subr.mxu0 %v76
    %150 = vmatpush1.msra.mxu0 %v75
    %151 = vmatprep.subr.mxu0 %v80
    %152 = vmatpush1.msra.mxu0 %v79
    %153 = vmatprep.subr.mxu0 %v84
    %154 = vmatpush1.msra.mxu0 %v83
    %155 = vmatprep.subr.mxu0 %v88
    %156 = vmatpush1.msra.mxu0 %v87
    %157 = vmatprep.subr.mxu0 %v92
    %158 = vmatpush1.msra.mxu0 %v91
    %159 = vmatprep.subr.mxu0 %v96
    %160 = vmatpush1.msra.mxu0 %v95
    %161 = vmatprep.subr.mxu0 %v100
    %162 = vmatpush1.msra.mxu0 %v99
    %163 = vmatprep.subr.mxu0 %v104
    %164 = vmatpush1.msra.mxu0 %v103
    %165 = vmatprep.subr.mxu0 %v108
    %166 = vmatpush1.msra.mxu0 %v107
    %167 = vmatprep.subr.mxu0 %v112
    %168 = vmatpush1.msra.mxu0 %v111
    %169 = vmatprep.subr.mxu0 0.0
    %170 = vmatpush1.msra.mxu0 0.0
    %171 = vmatprep.subr.mxu0 0.0
    %172 = vmatpush1.msra.mxu0 0.0
    %173 = vmatprep.subr.mxu0 0.0
    %174 = vmatpush1.msra.mxu0 0.0
    %175 = vmatprep.subr.mxu0 0.0
    %176 = vmatpush1.msra.mxu0 0.0
    %177 = vmatprep.subr.mxu0 0.0
    %178 = vmatpush1.msra.mxu0 0.0
    %179 = vmatprep.subr.mxu0 0.0
    %180 = vmatpush1.msra.mxu0 0.0
    %181 = vmatprep.subr.mxu0 0.0
    %182 = vmatpush1.msra.mxu0 0.0
    %183 = vmatprep.subr.mxu0 0.0
    %184 = vmatpush1.msra.mxu0 0.0
    %185 = vmatprep.subr.mxu0 0.0
    %186 = vmatpush1.msra.mxu0 0.0
    %187 = vmatprep.subr.mxu0 0.0
    %188 = vmatpush1.msra.mxu0 0.0
    %189 = vmatprep.subr.mxu0 0.0
    %190 = vmatpush1.msra.mxu0 0.0
    %191 = vmatprep.subr.mxu0 0.0
    %192 = vmatpush1.msra.mxu0 0.0
    %193 = vmatprep.subr.mxu0 0.0
    %194 = vmatpush1.msra.mxu0 0.0
    %195 = vmatprep.subr.mxu0 0.0
    %196 = vmatpush1.msra.mxu0 0.0
    %197 = vmatprep.subr.mxu0 0.0
    %198 = vmatpush1.msra.mxu0 0.0
    %199 = vmatprep.subr.mxu0 0.0
    %200 = vmatpush1.msra.mxu0 0.0
    %201 = vmatprep.mubr.f32.mxu0 0.0
    %202 = vmatmul.mubr.f32.gmra.mrb[0].mxu0 %v43
    %v203 = vpop.f32.mrb[0].mxu0
    %v204 = vadd.f32 %v120, %v203
    %v205 = vpop.f32.mrb[0].mxu0
    %v206 = vadd.f32 %v124, %v205
    %207 = vmatprep.mubr.f32.mxu0 0.0
    %208 = vmatmul.mubr.f32.gmra.mrb[0].mxu0 %v44
    %v209 = vpop.f32.mrb[0].mxu0
    %v210 = vadd.f32 %v120, %v209
    %v211 = vpop.f32.mrb[0].mxu0
    %v212 = vadd.f32 %v124, %v211
    %213 = vmatprep.mubr.f32.mxu0 0.0
    %214 = vmatmul.mubr.f32.gmra.mrb[0].mxu0 %v45
    %v215 = vpop.f32.mrb[0].mxu0
    %v216 = vadd.f32 %v120, %v215
    %v217 = vpop.f32.mrb[0].mxu0
    %v218 = vadd.f32 %v124, %v217
    %219 = vmatprep.mubr.f32.mxu0 0.0
    %220 = vmatmul.mubr.f32.gmra.mrb[0].mxu0 %v46
    %v221 = vpop.f32.mrb[0].mxu0
    %v222 = vadd.f32 %v120, %v221
    %v223 = vpop.f32.mrb[0].mxu0
    %v224 = vadd.f32 %v124, %v223
    %225 = vmatprep.mubr.f32.mxu0 0.0
    %226 = vmatmul.mubr.f32.gmra.mrb[0].mxu0 %v47
    %v227 = vpop.f32.mrb[0].mxu0
    %v228 = vadd.f32 %v120, %v227
    %v229 = vpop.f32.mrb[0].mxu0
    %v230 = vadd.f32 %v124, %v229
    %231 = vmatprep.mubr.f32.mxu0 0.0
    %232 = vmatmul.mubr.f32.gmra.mrb[0].mxu0 %v48
    %v233 = vpop.f32.mrb[0].mxu0
    %v234 = vadd.f32 %v120, %v233
    %v235 = vpop.f32.mrb[0].mxu0
    %v236 = vadd.f32 %v124, %v235
    %237 = vmatprep.mubr.f32.mxu0 0.0
    %238 = vmatmul.mubr.f32.gmra.mrb[0].mxu0 %v49
    %v239 = vpop.f32.mrb[0].mxu0
    %v240 = vadd.f32 %v120, %v239
    %v241 = vpop.f32.mrb[0].mxu0
    %v242 = vadd.f32 %v124, %v241
    %243 = vmatprep.mubr.f32.mxu0 0.0
    %244 = vmatmul.mubr.f32.gmra.mrb[0].mxu0 %v50
    %v245 = vpop.f32.mrb[0].mxu0
    %v246 = vadd.f32 %v120, %v245
    %v247 = vpop.f32.mrb[0].mxu0
    %v248 = vadd.f32 %v124, %v247
    %249 = vdwg.mxu0
    %250 = vmatprep.subr.mxu0 %v54
    %251 = vmatpush1.msra.mxu0 %v53
    %252 = vmatprep.subr.mxu0 %v58
    %253 = vmatpush1.msra.mxu0 %v57
    %254 = vmatprep.subr.mxu0 %v62
    %255 = vmatpush1.msra.mxu0 %v61
    %256 = vmatprep.subr.mxu0 %v66
    %257 = vmatpush1.msra.mxu0 %v65
    %258 = vmatprep.subr.mxu0 %v70
    %259 = vmatpush1.msra.mxu0 %v69
    %260 = vmatprep.subr.mxu0 %v74
    %261 = vmatpush1.msra.mxu0 %v73
    %262 = vmatprep.subr.mxu0 %v78
    %263 = vmatpush1.msra.mxu0 %v77
    %264 = vmatprep.subr.mxu0 %v82
    %265 = vmatpush1.msra.mxu0 %v81
    %266 = vmatprep.subr.mxu0 %v86
    %267 = vmatpush1.msra.mxu0 %v85
    %268 = vmatprep.subr.mxu0 %v90
    %269 = vmatpush1.msra.mxu0 %v89
    %270 = vmatprep.subr.mxu0 %v94
    %271 = vmatpush1.msra.mxu0 %v93
    %272 = vmatprep.subr.mxu0 %v98
    %273 = vmatpush1.msra.mxu0 %v97
    %274 = vmatprep.subr.mxu0 %v102
    %275 = vmatpush1.msra.mxu0 %v101
    %276 = vmatprep.subr.mxu0 %v106
    %277 = vmatpush1.msra.mxu0 %v105
    %278 = vmatprep.subr.mxu0 %v110
    %279 = vmatpush1.msra.mxu0 %v109
    %280 = vmatprep.subr.mxu0 %v114
    %281 = vmatpush1.msra.mxu0 %v113
    %282 = vmatprep.subr.mxu0 0.0
    %283 = vmatpush1.msra.mxu0 0.0
    %284 = vmatprep.subr.mxu0 0.0
    %285 = vmatpush1.msra.mxu0 0.0
    %286 = vmatprep.subr.mxu0 0.0
    %287 = vmatpush1.msra.mxu0 0.0
    %288 = vmatprep.subr.mxu0 0.0
    %289 = vmatpush1.msra.mxu0 0.0
    %290 = vmatprep.subr.mxu0 0.0
    %291 = vmatpush1.msra.mxu0 0.0
    %292 = vmatprep.subr.mxu0 0.0
    %293 = vmatpush1.msra.mxu0 0.0
    %294 = vmatprep.subr.mxu0 0.0
    %295 = vmatpush1.msra.mxu0 0.0
    %296 = vmatprep.subr.mxu0 0.0
    %297 = vmatpush1.msra.mxu0 0.0
    %298 = vmatprep.subr.mxu0 0.0
    %299 = vmatpush1.msra.mxu0 0.0
    %300 = vmatprep.subr.mxu0 0.0
    %301 = vmatpush1.msra.mxu0 0.0
    %302 = vmatprep.subr.mxu0 0.0
    %303 = vmatpush1.msra.mxu0 0.0
    %304 = vmatprep.subr.mxu0 0.0
    %305 = vmatpush1.msra.mxu0 0.0
    %306 = vmatprep.subr.mxu0 0.0
    %307 = vmatpush1.msra.mxu0 0.0
    %308 = vmatprep.subr.mxu0 0.0
    %309 = vmatpush1.msra.mxu0 0.0
    %310 = vmatprep.subr.mxu0 0.0
    %311 = vmatpush1.msra.mxu0 0.0
    %312 = vmatprep.subr.mxu0 0.0
    %313 = vmatpush1.msra.mxu0 0.0
    %314 = vmatprep.mubr.f32.mxu0 0.0
    %315 = vmatmul.mubr.f32.gmra.mrb[0].mxu0 %v43
    %v316 = vpop.f32.mrb[0].mxu0
    %v317 = vadd.f32 %v128, %v316
    %v318 = vpop.f32.mrb[0].mxu0
    %v319 = vadd.f32 %v132, %v318
    %320 = vmatprep.mubr.f32.mxu0 0.0
    %321 = vmatmul.mubr.f32.gmra.mrb[0].mxu0 %v44
    %v322 = vpop.f32.mrb[0].mxu0
    %v323 = vadd.f32 %v128, %v322
    %v324 = vpop.f32.mrb[0].mxu0
    %v325 = vadd.f32 %v132, %v324
    %326 = vmatprep.mubr.f32.mxu0 0.0
    %327 = vmatmul.mubr.f32.gmra.mrb[0].mxu0 %v45
    %v328 = vpop.f32.mrb[0].mxu0
    %v329 = vadd.f32 %v128, %v328
    %v330 = vpop.f32.mrb[0].mxu0
    %v331 = vadd.f32 %v132, %v330
    %332 = vmatprep.mubr.f32.mxu0 0.0
    %333 = vmatmul.mubr.f32.gmra.mrb[0].mxu0 %v46
    %v334 = vpop.f32.mrb[0].mxu0
    %v335 = vadd.f32 %v128, %v334
    %v336 = vpop.f32.mrb[0].mxu0
    %v337 = vadd.f32 %v132, %v336
    %338 = vmatprep.mubr.f32.mxu0 0.0
    %339 = vmatmul.mubr.f32.gmra.mrb[0].mxu0 %v47
    %v340 = vpop.f32.mrb[0].mxu0
    %v341 = vadd.f32 %v128, %v340
    %v342 = vpop.f32.mrb[0].mxu0
    %v343 = vadd.f32 %v132, %v342
    %344 = vmatprep.mubr.f32.mxu0 0.0
    %345 = vmatmul.mubr.f32.gmra.mrb[0].mxu0 %v48
    %v346 = vpop.f32.mrb[0].mxu0
    %v347 = vadd.f32 %v128, %v346
    %v348 = vpop.f32.mrb[0].mxu0
    %v349 = vadd.f32 %v132, %v348
    %350 = vmatprep.mubr.f32.mxu0 0.0
    %351 = vmatmul.mubr.f32.gmra.mrb[0].mxu0 %v49
    %v352 = vpop.f32.mrb[0].mxu0
    %v353 = vadd.f32 %v128, %v352
    %v354 = vpop.f32.mrb[0].mxu0
    %v355 = vadd.f32 %v132, %v354
    %356 = vmatprep.mubr.f32.mxu0 0.0
    %357 = vmatmul.mubr.f32.gmra.mrb[0].mxu0 %v50
    %v358 = vpop.f32.mrb[0].mxu0
    %v359 = vadd.f32 %v128, %v358
    %v360 = vpop.f32.mrb[0].mxu0
    %v361 = vadd.f32 %v132, %v360
    %362 = vdwg.mxu0
    %363 = vst [vmem:[#allocation2] sm:$0xff] %v204
    %364 = vst [vmem:[#allocation2 + $0x8] sm:$0xff] %v206
    %365 = vst [vmem:[#allocation2 + $0x10] sm:$0xff] %v317
    %366 = vst [vmem:[#allocation2 + $0x18] sm:$0xff] %v319
    %367 = vst [vmem:[#allocation2 + $0x20] sm:$0xff] %v210
    %368 = vst [vmem:[#allocation2 + $0x28] sm:$0xff] %v212
    %369 = vst [vmem:[#allocation2 + $0x30] sm:$0xff] %v323
    %370 = vst [vmem:[#allocation2 + $0x38] sm:$0xff] %v325
    %371 = vst [vmem:[#allocation2 + $0x40] sm:$0xff] %v216
    %372 = vst [vmem:[#allocation2 + $0x48] sm:$0xff] %v218
    %373 = vst [vmem:[#allocation2 + $0x50] sm:$0xff] %v329
    %374 = vst [vmem:[#allocation2 + $0x58] sm:$0xff] %v331
    %375 = vst [vmem:[#allocation2 + $0x60] sm:$0xff] %v222
    %376 = vst [vmem:[#allocation2 + $0x68] sm:$0xff] %v224
    %377 = vst [vmem:[#allocation2 + $0x70] sm:$0xff] %v335
    %378 = vst [vmem:[#allocation2 + $0x78] sm:$0xff] %v337
    %379 = vst [vmem:[#allocation2 + $0x80] sm:$0xff] %v228
    %380 = vst [vmem:[#allocation2 + $0x88] sm:$0xff] %v230
    %381 = vst [vmem:[#allocation2 + $0x90] sm:$0xff] %v341
    %382 = vst [vmem:[#allocation2 + $0x98] sm:$0xff] %v343
    %383 = vst [vmem:[#allocation2 + $0xa0] sm:$0xff] %v234
    %384 = vst [vmem:[#allocation2 + $0xa8] sm:$0xff] %v236
    %385 = vst [vmem:[#allocation2 + $0xb0] sm:$0xff] %v347
    %386 = vst [vmem:[#allocation2 + $0xb8] sm:$0xff] %v349
    %387 = vst [vmem:[#allocation2 + $0xc0] sm:$0xff] %v240
    %388 = vst [vmem:[#allocation2 + $0xc8] sm:$0xff] %v242
    %389 = vst [vmem:[#allocation2 + $0xd0] sm:$0xff] %v353
    %390 = vst [vmem:[#allocation2 + $0xd8] sm:$0xff] %v355
    %391 = vst [vmem:[#allocation2 + $0xe0] sm:$0xff] %v246
    %392 = vst [vmem:[#allocation2 + $0xe8] sm:$0xff] %v248
    %393 = vst [vmem:[#allocation2 + $0xf0] sm:$0xff] %v359
    %394 = vst [vmem:[#allocation2 + $0xf8] sm:$0xff] %v361
    %s395 = smul.u32 0, 4
    %s396 = smul.addr %s395, 8
    %s397 = scalar_lea.vmem [#allocation2], %s396
    %v398 = vld [vmem:[%s397] sm:$0xff]
    %v399 = vld [vmem:[%s397 + $0x8] sm:$0xff]
    %v400 = vld [vmem:[%s397 + $0x10] sm:$0xff]
    %v401 = vld [vmem:[%s397 + $0x18] sm:$0xff]
    %v402 = vld [vmem:[#allocation3] sm:$0xff]
    %v403 = vld [vmem:[#allocation4] sm:$0xff]
    %v404 = vld [vmem:[%s2] sm:$0xff]
    %v405 = vld [vmem:[%s2 + $0x8] sm:$0xff]
    %v406 = vld [vmem:[%s2 + $0x10] sm:$0xff]
    %v407 = vld [vmem:[%s2 + $0x18] sm:$0xff]
    %v408 = vld [vmem:[%s2 + $0x20] sm:$0xff]
    %v409 = vld [vmem:[%s2 + $0x28] sm:$0xff]
    %v410 = vld [vmem:[%s2 + $0x30] sm:$0xff]
    %v411 = vld [vmem:[%s2 + $0x38] sm:$0xff]
    %v412 = vld [vmem:[%s2 + $0x40] sm:$0xff]
    %v413 = vld [vmem:[%s2 + $0x48] sm:$0xff]
    %v414 = vld [vmem:[%s2 + $0x50] sm:$0xff]
    %v415 = vld [vmem:[%s2 + $0x58] sm:$0xff]
    %v416 = vld [vmem:[%s2 + $0x60] sm:$0xff]
    %v417 = vld [vmem:[%s2 + $0x68] sm:$0xff]
    %v418 = vld [vmem:[%s2 + $0x70] sm:$0xff]
    %v419 = vld [vmem:[%s2 + $0x78] sm:$0xff]
    %v420 = vld [vmem:[%s2 + $0x80] sm:$0xff]
    %v421 = vld [vmem:[%s2 + $0x88] sm:$0xff]
    %v422 = vld [vmem:[%s2 + $0x90] sm:$0xff]
    %v423 = vld [vmem:[%s2 + $0x98] sm:$0xff]
    %v424 = vld [vmem:[%s2 + $0xa0] sm:$0xff]
    %v425 = vld [vmem:[%s2 + $0xa8] sm:$0xff]
    %v426 = vld [vmem:[%s2 + $0xb0] sm:$0xff]
    %v427 = vld [vmem:[%s2 + $0xb8] sm:$0xff]
    %v428 = vld [vmem:[%s2 + $0xc0] sm:$0xff]
    %v429 = vld [vmem:[%s2 + $0xc8] sm:$0xff]
    %v430 = vld [vmem:[%s2 + $0xd0] sm:$0xff]
    %v431 = vld [vmem:[%s2 + $0xd8] sm:$0xff]
    %v432 = vld [vmem:[%s2 + $0xe0] sm:$0xff]
    %v433 = vld [vmem:[%s2 + $0xe8] sm:$0xff]
    %v434 = vld [vmem:[%s2 + $0xf0] sm:$0xff]
    %v435 = vld [vmem:[%s2 + $0xf8] sm:$0xff]
    %v436 = vld [vmem:[%s2 + $0x100] sm:$0xff]
    %v437 = vld [vmem:[%s2 + $0x108] sm:$0xff]
    %v438 = vld [vmem:[%s2 + $0x110] sm:$0xff]
    %v439 = vld [vmem:[%s2 + $0x118] sm:$0xff]
    %v440 = vld [vmem:[%s2 + $0x120] sm:$0xff]
    %v441 = vld [vmem:[%s2 + $0x128] sm:$0xff]
    %v442 = vld [vmem:[%s2 + $0x130] sm:$0xff]
    %v443 = vld [vmem:[%s2 + $0x138] sm:$0xff]
    %v444 = vld [vmem:[%s2 + $0x140] sm:$0xff]
    %v445 = vld [vmem:[%s2 + $0x148] sm:$0xff]
    %v446 = vld [vmem:[%s2 + $0x150] sm:$0xff]
    %v447 = vld [vmem:[%s2 + $0x158] sm:$0xff]
    %v448 = vld [vmem:[%s2 + $0x160] sm:$0xff]
    %v449 = vld [vmem:[%s2 + $0x168] sm:$0xff]
    %v450 = vld [vmem:[%s2 + $0x170] sm:$0xff]
    %v451 = vld [vmem:[%s2 + $0x178] sm:$0xff]
    %v452 = vld [vmem:[%s2 + $0x180] sm:$0xff]
    %v453 = vld [vmem:[%s2 + $0x188] sm:$0xff]
    %v454 = vld [vmem:[%s2 + $0x190] sm:$0xff]
    %v455 = vld [vmem:[%s2 + $0x198] sm:$0xff]
    %v456 = vld [vmem:[%s2 + $0x1a0] sm:$0xff]
    %v457 = vld [vmem:[%s2 + $0x1a8] sm:$0xff]
    %v458 = vld [vmem:[%s2 + $0x1b0] sm:$0xff]
    %v459 = vld [vmem:[%s2 + $0x1b8] sm:$0xff]
    %v460 = vld [vmem:[%s2 + $0x1c0] sm:$0xff]
    %v461 = vld [vmem:[%s2 + $0x1c8] sm:$0xff]
    %v462 = vld [vmem:[%s2 + $0x1d0] sm:$0xff]
    %v463 = vld [vmem:[%s2 + $0x1d8] sm:$0xff]
    %v464 = vld [vmem:[%s2 + $0x1e0] sm:$0xff]
    %v465 = vld [vmem:[%s2 + $0x1e8] sm:$0xff]
    %v466 = vld [vmem:[%s2 + $0x1f0] sm:$0xff]
    %v467 = vld [vmem:[%s2 + $0x1f8] sm:$0xff]
    %468 = vmatprep.subr.mxu0 %v405
    %469 = vmatpush1.msra.mxu0 %v404
    %470 = vmatprep.subr.mxu0 %v409
    %471 = vmatpush1.msra.mxu0 %v408
    %472 = vmatprep.subr.mxu0 %v413
    %473 = vmatpush1.msra.mxu0 %v412
    %474 = vmatprep.subr.mxu0 %v417
    %475 = vmatpush1.msra.mxu0 %v416
    %476 = vmatprep.subr.mxu0 %v421
    %477 = vmatpush1.msra.mxu0 %v420
    %478 = vmatprep.subr.mxu0 %v425
    %479 = vmatpush1.msra.mxu0 %v424
    %480 = vmatprep.subr.mxu0 %v429
    %481 = vmatpush1.msra.mxu0 %v428
    %482 = vmatprep.subr.mxu0 %v433
    %483 = vmatpush1.msra.mxu0 %v432
    %484 = vmatprep.subr.mxu0 %v437
    %485 = vmatpush1.msra.mxu0 %v436
    %486 = vmatprep.subr.mxu0 %v441
    %487 = vmatpush1.msra.mxu0 %v440
    %488 = vmatprep.subr.mxu0 %v445
    %489 = vmatpush1.msra.mxu0 %v444
    %490 = vmatprep.subr.mxu0 %v449
    %491 = vmatpush1.msra.mxu0 %v448
    %492 = vmatprep.subr.mxu0 %v453
    %493 = vmatpush1.msra.mxu0 %v452
    %494 = vmatprep.subr.mxu0 %v457
    %495 = vmatpush1.msra.mxu0 %v456
    %496 = vmatprep.subr.mxu0 %v461
    %497 = vmatpush1.msra.mxu0 %v460
    %498 = vmatprep.subr.mxu0 %v465
    %499 = vmatpush1.msra.mxu0 %v464
    %500 = vmatprep.subr.mxu0 0.0
    %501 = vmatpush1.msra.mxu0 0.0
    %502 = vmatprep.subr.mxu0 0.0
    %503 = vmatpush1.msra.mxu0 0.0
    %504 = vmatprep.subr.mxu0 0.0
    %505 = vmatpush1.msra.mxu0 0.0
    %506 = vmatprep.subr.mxu0 0.0
    %507 = vmatpush1.msra.mxu0 0.0
    %508 = vmatprep.subr.mxu0 0.0
    %509 = vmatpush1.msra.mxu0 0.0
    %510 = vmatprep.subr.mxu0 0.0
    %511 = vmatpush1.msra.mxu0 0.0
    %512 = vmatprep.subr.mxu0 0.0
    %513 = vmatpush1.msra.mxu0 0.0
    %514 = vmatprep.subr.mxu0 0.0
    %515 = vmatpush1.msra.mxu0 0.0
    %516 = vmatprep.subr.mxu0 0.0
    %517 = vmatpush1.msra.mxu0 0.0
    %518 = vmatprep.subr.mxu0 0.0
    %519 = vmatpush1.msra.mxu0 0.0
    %520 = vmatprep.subr.mxu0 0.0
    %521 = vmatpush1.msra.mxu0 0.0
    %522 = vmatprep.subr.mxu0 0.0
    %523 = vmatpush1.msra.mxu0 0.0
    %524 = vmatprep.subr.mxu0 0.0
    %525 = vmatpush1.msra.mxu0 0.0
    %526 = vmatprep.subr.mxu0 0.0
    %527 = vmatpush1.msra.mxu0 0.0
    %528 = vmatprep.subr.mxu0 0.0
    %529 = vmatpush1.msra.mxu0 0.0
    %530 = vmatprep.subr.mxu0 0.0
    %531 = vmatpush1.msra.mxu0 0.0
    %532 = vmatprep.mubr.f32.mxu0 0.0
    %533 = vmatmul.mubr.f32.gmra.mrb[0].mxu0 %v402
    %v534 = vpop.f32.mrb[0].mxu0
    %v535 = vadd.f32 0.0, %v534
    %v536 = vpop.f32.mrb[0].mxu0
    %v537 = vadd.f32 0.0, %v536
    %538 = vdwg.mxu0
    %539 = vmatprep.subr.mxu0 %v407
    %540 = vmatpush1.msra.mxu0 %v406
    %541 = vmatprep.subr.mxu0 %v411
    %542 = vmatpush1.msra.mxu0 %v410
    %543 = vmatprep.subr.mxu0 %v415
    %544 = vmatpush1.msra.mxu0 %v414
    %545 = vmatprep.subr.mxu0 %v419
    %546 = vmatpush1.msra.mxu0 %v418
    %547 = vmatprep.subr.mxu0 %v423
    %548 = vmatpush1.msra.mxu0 %v422
    %549 = vmatprep.subr.mxu0 %v427
    %550 = vmatpush1.msra.mxu0 %v426
    %551 = vmatprep.subr.mxu0 %v431
    %552 = vmatpush1.msra.mxu0 %v430
    %553 = vmatprep.subr.mxu0 %v435
    %554 = vmatpush1.msra.mxu0 %v434
    %555 = vmatprep.subr.mxu0 %v439
    %556 = vmatpush1.msra.mxu0 %v438
    %557 = vmatprep.subr.mxu0 %v443
    %558 = vmatpush1.msra.mxu0 %v442
    %559 = vmatprep.subr.mxu0 %v447
    %560 = vmatpush1.msra.mxu0 %v446
    %561 = vmatprep.subr.mxu0 %v451
    %562 = vmatpush1.msra.mxu0 %v450
    %563 = vmatprep.subr.mxu0 %v455
    %564 = vmatpush1.msra.mxu0 %v454
    %565 = vmatprep.subr.mxu0 %v459
    %566 = vmatpush1.msra.mxu0 %v458
    %567 = vmatprep.subr.mxu0 %v463
    %568 = vmatpush1.msra.mxu0 %v462
    %569 = vmatprep.subr.mxu0 %v467
    %570 = vmatpush1.msra.mxu0 %v466
    %571 = vmatprep.subr.mxu0 0.0
    %572 = vmatpush1.msra.mxu0 0.0
    %573 = vmatprep.subr.mxu0 0.0
    %574 = vmatpush1.msra.mxu0 0.0
    %575 = vmatprep.subr.mxu0 0.0
    %576 = vmatpush1.msra.mxu0 0.0
    %577 = vmatprep.subr.mxu0 0.0
    %578 = vmatpush1.msra.mxu0 0.0
    %579 = vmatprep.subr.mxu0 0.0
    %580 = vmatpush1.msra.mxu0 0.0
    %581 = vmatprep.subr.mxu0 0.0
    %582 = vmatpush1.msra.mxu0 0.0
    %583 = vmatprep.subr.mxu0 0.0
    %584 = vmatpush1.msra.mxu0 0.0
    %585 = vmatprep.subr.mxu0 0.0
    %586 = vmatpush1.msra.mxu0 0.0
    %587 = vmatprep.subr.mxu0 0.0
    %588 = vmatpush1.msra.mxu0 0.0
    %589 = vmatprep.subr.mxu0 0.0
    %590 = vmatpush1.msra.mxu0 0.0
    %591 = vmatprep.subr.mxu0 0.0
    %592 = vmatpush1.msra.mxu0 0.0
    %593 = vmatprep.subr.mxu0 0.0
    %594 = vmatpush1.msra.mxu0 0.0
    %595 = vmatprep.subr.mxu0 0.0
    %596 = vmatpush1.msra.mxu0 0.0
    %597 = vmatprep.subr.mxu0 0.0
    %598 = vmatpush1.msra.mxu0 0.0
    %599 = vmatprep.subr.mxu0 0.0
    %600 = vmatpush1.msra.mxu0 0.0
    %601 = vmatprep.subr.mxu0 0.0
    %602 = vmatpush1.msra.mxu0 0.0
    %603 = vmatprep.mubr.f32.mxu0 0.0
    %604 = vmatmul.mubr.f32.gmra.mrb[0].mxu0 %v402
    %v605 = vpop.f32.mrb[0].mxu0
    %v606 = vadd.f32 0.0, %v605
    %v607 = vpop.f32.mrb[0].mxu0
    %v608 = vadd.f32 0.0, %v607
    %609 = vdwg.mxu0
    %v610 = vadd.f32 %v398, %v535
    %v611 = vadd.f32 %v399, %v537
    %v612 = vadd.f32 %v400, %v606
    %v613 = vadd.f32 %v401, %v608
    %v614 = vxor.u32 %v610, 2147483648
    %v615 = vmul.f32 %v614, 1.442695
    %v616 = vpow.pop %v615
    %v617 = vadd.f32 %v616, 1.0
    %v618 = vrcp.pop %v617
    %v619 = vmul.f32 1.0, %v618
    %v620 = vxor.u32 %v611, 2147483648
    %v621 = vmul.f32 %v620, 1.442695
    %v622 = vpow.pop %v621
    %v623 = vadd.f32 %v622, 1.0
    %v624 = vrcp.pop %v623
    %v625 = vmul.f32 1.0, %v624
    %v626 = vtanh.pop %v612
    %v627 = vxor.u32 %v613, 2147483648
    %v628 = vmul.f32 %v627, 1.442695
    %v629 = vpow.pop %v628
    %v630 = vadd.f32 %v629, 1.0
    %v631 = vrcp.pop %v630
    %v632 = vmul.f32 1.0, %v631
    %v633 = vmul.f32 %v625, %v403
    %v634 = vmul.f32 %v619, %v626
    %v635 = vadd.f32 %v633, %v634
    %v636 = vtanh.pop %v635
    %v637 = vmul.f32 %v632, %v636
    %638 = vst [vmem:[#allocation3] sm:$0xff] %v637
    %639 = vst [vmem:[#allocation4] sm:$0xff] %v635
    %s640 = smul.u32 1, 4
    %s641 = smul.addr %s640, 8
    %s642 = scalar_lea.vmem [#allocation2], %s641
    %v643 = vld [vmem:[%s642] sm:$0xff]
    %v644 = vld [vmem:[%s642 + $0x8] sm:$0xff]
    %v645 = vld [vmem:[%s642 + $0x10] sm:$0xff]
    %v646 = vld [vmem:[%s642 + $0x18] sm:$0xff]
    %v647 = vld [vmem:[#allocation3] sm:$0xff]
    %v648 = vld [vmem:[#allocation4] sm:$0xff]
    %v649 = vld [vmem:[%s2] sm:$0xff]
    %v650 = vld [vmem:[%s2 + $0x8] sm:$0xff]
    %v651 = vld [vmem:[%s2 + $0x10] sm:$0xff]
    %v652 = vld [vmem:[%s2 + $0x18] sm:$0xff]
    %v653 = vld [vmem:[%s2 + $0x20] sm:$0xff]
    %v654 = vld [vmem:[%s2 + $0x28] sm:$0xff]
    %v655 = vld [vmem:[%s2 + $0x30] sm:$0xff]
    %v656 = vld [vmem:[%s2 + $0x38] sm:$0xff]
    %v657 = vld [vmem:[%s2 + $0x40] sm:$0xff]
    %v658 = vld [vmem:[%s2 + $0x48] sm:$0xff]
    %v659 = vld [vmem:[%s2 + $0x50] sm:$0xff]
    %v660 = vld [vmem:[%s2 + $0x58] sm:$0xff]
    %v661 = vld [vmem:[%s2 + $0x60] sm:$0xff]
    %v662 = vld [vmem:[%s2 + $0x68] sm:$0xff]
    %v663 = vld [vmem:[%s2 + $0x70] sm:$0xff]
    %v664 = vld [vmem:[%s2 + $0x78] sm:$0xff]
    %v665 = vld [vmem:[%s2 + $0x80] sm:$0xff]
    %v666 = vld [vmem:[%s2 + $0x88] sm:$0xff]
    %v667 = vld [vmem:[%s2 + $0x90] sm:$0xff]
    %v668 = vld [vmem:[%s2 + $0x98] sm:$0xff]
    %v669 = vld [vmem:[%s2 + $0xa0] sm:$0xff]
    %v670 = vld [vmem:[%s2 + $0xa8] sm:$0xff]
    %v671 = vld [vmem:[%s2 + $0xb0] sm:$0xff]
    %v672 = vld [vmem:[%s2 + $0xb8] sm:$0xff]
    %v673 = vld [vmem:[%s2 + $0xc0] sm:$0xff]
    %v674 = vld [vmem:[%s2 + $0xc8] sm:$0xff]
    %v675 = vld [vmem:[%s2 + $0xd0] sm:$0xff]
    %v676 = vld [vmem:[%s2 + $0xd8] sm:$0xff]
    %v677 = vld [vmem:[%s2 + $0xe0] sm:$0xff]
    %v678 = vld [vmem:[%s2 + $0xe8] sm:$0xff]
    %v679 = vld [vmem:[%s2 + $0xf0] sm:$0xff]
    %v680 = vld [vmem:[%s2 + $0xf8] sm:$0xff]
    %v681 = vld [vmem:[%s2 + $0x100] sm:$0xff]
    %v682 = vld [vmem:[%s2 + $0x108] sm:$0xff]
    %v683 = vld [vmem:[%s2 + $0x110] sm:$0xff]
    %v684 = vld [vmem:[%s2 + $0x118] sm:$0xff]
    %v685 = vld [vmem:[%s2 + $0x120] sm:$0xff]
    %v686 = vld [vmem:[%s2 + $0x128] sm:$0xff]
    %v687 = vld [vmem:[%s2 + $0x130] sm:$0xff]
    %v688 = vld [vmem:[%s2 + $0x138] sm:$0xff]
    %v689 = vld [vmem:[%s2 + $0x140] sm:$0xff]
    %v690 = vld [vmem:[%s2 + $0x148] sm:$0xff]
    %v691 = vld [vmem:[%s2 + $0x150] sm:$0xff]
    %v692 = vld [vmem:[%s2 + $0x158] sm:$0xff]
    %v693 = vld [vmem:[%s2 + $0x160] sm:$0xff]
    %v694 = vld [vmem:[%s2 + $0x168] sm:$0xff]
    %v695 = vld [vmem:[%s2 + $0x170] sm:$0xff]
    %v696 = vld [vmem:[%s2 + $0x178] sm:$0xff]
    %v697 = vld [vmem:[%s2 + $0x180] sm:$0xff]
    %v698 = vld [vmem:[%s2 + $0x188] sm:$0xff]
    %v699 = vld [vmem:[%s2 + $0x190] sm:$0xff]
    %v700 = vld [vmem:[%s2 + $0x198] sm:$0xff]
    %v701 = vld [vmem:[%s2 + $0x1a0] sm:$0xff]
    %v702 = vld [vmem:[%s2 + $0x1a8] sm:$0xff]
    %v703 = vld [vmem:[%s2 + $0x1b0] sm:$0xff]
    %v704 = vld [vmem:[%s2 + $0x1b8] sm:$0xff]
    %v705 = vld [vmem:[%s2 + $0x1c0] sm:$0xff]
    %v706 = vld [vmem:[%s2 + $0x1c8] sm:$0xff]
    %v707 = vld [vmem:[%s2 + $0x1d0] sm:$0xff]
    %v708 = vld [vmem:[%s2 + $0x1d8] sm:$0xff]
    %v709 = vld [vmem:[%s2 + $0x1e0] sm:$0xff]
    %v710 = vld [vmem:[%s2 + $0x1e8] sm:$0xff]
    %v711 = vld [vmem:[%s2 + $0x1f0] sm:$0xff]
    %v712 = vld [vmem:[%s2 + $0x1f8] sm:$0xff]
    %713 = vmatprep.subr.mxu0 %v650
    %714 = vmatpush1.msra.mxu0 %v649
    %715 = vmatprep.subr.mxu0 %v654
    %716 = vmatpush1.msra.mxu0 %v653
    %717 = vmatprep.subr.mxu0 %v658
    %718 = vmatpush1.msra.mxu0 %v657
    %719 = vmatprep.subr.mxu0 %v662
    %720 = vmatpush1.msra.mxu0 %v661
    %721 = vmatprep.subr.mxu0 %v666
    %722 = vmatpush1.msra.mxu0 %v665
    %723 = vmatprep.subr.mxu0 %v670
    %724 = vmatpush1.msra.mxu0 %v669
    %725 = vmatprep.subr.mxu0 %v674
    %726 = vmatpush1.msra.mxu0 %v673
    %727 = vmatprep.subr.mxu0 %v678
    %728 = vmatpush1.msra.mxu0 %v677
    %729 = vmatprep.subr.mxu0 %v682
    %730 = vmatpush1.msra.mxu0 %v681
    %731 = vmatprep.subr.mxu0 %v686
    %732 = vmatpush1.msra.mxu0 %v685
    %733 = vmatprep.subr.mxu0 %v690
    %734 = vmatpush1.msra.mxu0 %v689
    %735 = vmatprep.subr.mxu0 %v694
    %736 = vmatpush1.msra.mxu0 %v693
    %737 = vmatprep.subr.mxu0 %v698
    %738 = vmatpush1.msra.mxu0 %v697
    %739 = vmatprep.subr.mxu0 %v702
    %740 = vmatpush1.msra.mxu0 %v701
    %741 = vmatprep.subr.mxu0 %v706
    %742 = vmatpush1.msra.mxu0 %v705
    %743 = vmatprep.subr.mxu0 %v710
    %744 = vmatpush1.msra.mxu0 %v709
    %745 = vmatprep.subr.mxu0 0.0
    %746 = vmatpush1.msra.mxu0 0.0
    %747 = vmatprep.subr.mxu0 0.0
    %748 = vmatpush1.msra.mxu0 0.0
    %749 = vmatprep.subr.mxu0 0.0
    %750 = vmatpush1.msra.mxu0 0.0
    %751 = vmatprep.subr.mxu0 0.0
    %752 = vmatpush1.msra.mxu0 0.0
    %753 = vmatprep.subr.mxu0 0.0
    %754 = vmatpush1.msra.mxu0 0.0
    %755 = vmatprep.subr.mxu0 0.0
    %756 = vmatpush1.msra.mxu0 0.0
    %757 = vmatprep.subr.mxu0 0.0
    %758 = vmatpush1.msra.mxu0 0.0
    %759 = vmatprep.subr.mxu0 0.0
    %760 = vmatpush1.msra.mxu0 0.0
    %761 = vmatprep.subr.mxu0 0.0
    %762 = vmatpush1.msra.mxu0 0.0
    %763 = vmatprep.subr.mxu0 0.0
    %764 = vmatpush1.msra.mxu0 0.0
    %765 = vmatprep.subr.mxu0 0.0
    %766 = vmatpush1.msra.mxu0 0.0
    %767 = vmatprep.subr.mxu0 0.0
    %768 = vmatpush1.msra.mxu0 0.0
    %769 = vmatprep.subr.mxu0 0.0
    %770 = vmatpush1.msra.mxu0 0.0
    %771 = vmatprep.subr.mxu0 0.0
    %772 = vmatpush1.msra.mxu0 0.0
    %773 = vmatprep.subr.mxu0 0.0
    %774 = vmatpush1.msra.mxu0 0.0
    %775 = vmatprep.subr.mxu0 0.0
    %776 = vmatpush1.msra.mxu0 0.0
    %777 = vmatprep.mubr.f32.mxu0 0.0
    %778 = vmatmul.mubr.f32.gmra.mrb[0].mxu0 %v647
    %v779 = vpop.f32.mrb[0].mxu0
    %v780 = vadd.f32 0.0, %v779
    %v781 = vpop.f32.mrb[0].mxu0
    %v782 = vadd.f32 0.0, %v781
    %783 = vdwg.mxu0
    %784 = vmatprep.subr.mxu0 %v652
    %785 = vmatpush1.msra.mxu0 %v651
    %786 = vmatprep.subr.mxu0 %v656
    %787 = vmatpush1.msra.mxu0 %v655
    %788 = vmatprep.subr.mxu0 %v660
    %789 = vmatpush1.msra.mxu0 %v659
    %790 = vmatprep.subr.mxu0 %v664
    %791 = vmatpush1.msra.mxu0 %v663
    %792 = vmatprep.subr.mxu0 %v668
    %793 = vmatpush1.msra.mxu0 %v667
    %794 = vmatprep.subr.mxu0 %v672
    %795 = vmatpush1.msra.mxu0 %v671
    %796 = vmatprep.subr.mxu0 %v676
    %797 = vmatpush1.msra.mxu0 %v675
    %798 = vmatprep.subr.mxu0 %v680
    %799 = vmatpush1.msra.mxu0 %v679
    %800 = vmatprep.subr.mxu0 %v684
    %801 = vmatpush1.msra.mxu0 %v683
    %802 = vmatprep.subr.mxu0 %v688
    %803 = vmatpush1.msra.mxu0 %v687
    %804 = vmatprep.subr.mxu0 %v692
    %805 = vmatpush1.msra.mxu0 %v691
    %806 = vmatprep.subr.mxu0 %v696
    %807 = vmatpush1.msra.mxu0 %v695
    %808 = vmatprep.subr.mxu0 %v700
    %809 = vmatpush1.msra.mxu0 %v699
    %810 = vmatprep.subr.mxu0 %v704
    %811 = vmatpush1.msra.mxu0 %v703
    %812 = vmatprep.subr.mxu0 %v708
    %813 = vmatpush1.msra.mxu0 %v707
    %814 = vmatprep.subr.mxu0 %v712
    %815 = vmatpush1.msra.mxu0 %v711
    %816 = vmatprep.subr.mxu0 0.0
    %817 = vmatpush1.msra.mxu0 0.0
    %818 = vmatprep.subr.mxu0 0.0
    %819 = vmatpush1.msra.mxu0 0.0
    %820 = vmatprep.subr.mxu0 0.0
    %821 = vmatpush1.msra.mxu0 0.0
    %822 = vmatprep.subr.mxu0 0.0
    %823 = vmatpush1.msra.mxu0 0.0
    %824 = vmatprep.subr.mxu0 0.0
    %825 = vmatpush1.msra.mxu0 0.0
    %826 = vmatprep.subr.mxu0 0.0
    %827 = vmatpush1.msra.mxu0 0.0
    %828 = vmatprep.subr.mxu0 0.0
    %829 = vmatpush1.msra.mxu0 0.0
    %830 = vmatprep.subr.mxu0 0.0
    %831 = vmatpush1.msra.mxu0 0.0
    %832 = vmatprep.subr.mxu0 0.0
    %833 = vmatpush1.msra.mxu0 0.0
    %834 = vmatprep.subr.mxu0 0.0
    %835 = vmatpush1.msra.mxu0 0.0
    %836 = vmatprep.subr.mxu0 0.0
    %837 = vmatpush1.msra.mxu0 0.0
    %838 = vmatprep.subr.mxu0 0.0
    %839 = vmatpush1.msra.mxu0 0.0
    %840 = vmatprep.subr.mxu0 0.0
    %841 = vmatpush1.msra.mxu0 0.0
    %842 = vmatprep.subr.mxu0 0.0
    %843 = vmatpush1.msra.mxu0 0.0
    %844 = vmatprep.subr.mxu0 0.0
    %845 = vmatpush1.msra.mxu0 0.0
    %846 = vmatprep.subr.mxu0 0.0
    %847 = vmatpush1.msra.mxu0 0.0
    %848 = vmatprep.mubr.f32.mxu0 0.0
    %849 = vmatmul.mubr.f32.gmra.mrb[0].mxu0 %v647
    %v850 = vpop.f32.mrb[0].mxu0
    %v851 = vadd.f32 0.0, %v850
    %v852 = vpop.f32.mrb[0].mxu0
    %v853 = vadd.f32 0.0, %v852
    %854 = vdwg.mxu0
    %v855 = vadd.f32 %v643, %v780
    %v856 = vadd.f32 %v644, %v782
    %v857 = vadd.f32 %v645, %v851
    %v858 = vadd.f32 %v646, %v853
    %v859 = vxor.u32 %v855, 2147483648
    %v860 = vmul.f32 %v859, 1.442695
    %v861 = vpow.pop %v860
    %v862 = vadd.f32 %v861, 1.0
    %v863 = vrcp.pop %v862
    %v864 = vmul.f32 1.0, %v863
    %v865 = vxor.u32 %v856, 2147483648
    %v866 = vmul.f32 %v865, 1.442695
    %v867 = vpow.pop %v866
    %v868 = vadd.f32 %v867, 1.0
    %v869 = vrcp.pop %v868
    %v870 = vmul.f32 1.0, %v869
    %v871 = vtanh.pop %v857
    %v872 = vxor.u32 %v858, 2147483648
    %v873 = vmul.f32 %v872, 1.442695
    %v874 = vpow.pop %v873
    %v875 = vadd.f32 %v874, 1.0
    %v876 = vrcp.pop %v875
    %v877 = vmul.f32 1.0, %v876
    %v878 = vmul.f32 %v870, %v648
    %v879 = vmul.f32 %v864, %v871
    %v880 = vadd.f32 %v878, %v879
    %v881 = vtanh.pop %v880
    %v882 = vmul.f32 %v877, %v881
    %883 = vst [vmem:[#allocation3] sm:$0xff] %v882
    %884 = vst [vmem:[#allocation4] sm:$0xff] %v880
    %s885 = smul.u32 2, 4
    %s886 = smul.addr %s885, 8
    %s887 = scalar_lea.vmem [#allocation2], %s886
    %v888 = vld [vmem:[%s887] sm:$0xff]
    %v889 = vld [vmem:[%s887 + $0x8] sm:$0xff]
    %v890 = vld [vmem:[%s887 + $0x10] sm:$0xff]
    %v891 = vld [vmem:[%s887 + $0x18] sm:$0xff]
    %v892 = vld [vmem:[#allocation3] sm:$0xff]
    %v893 = vld [vmem:[#allocation4] sm:$0xff]
    %v894 = vld [vmem:[%s2] sm:$0xff]
    %v895 = vld [vmem:[%s2 + $0x8] sm:$0xff]
    %v896 = vld [vmem:[%s2 + $0x10] sm:$0xff]
    %v897 = vld [vmem:[%s2 + $0x18] sm:$0xff]
    %v898 = vld [vmem:[%s2 + $0x20] sm:$0xff]
    %v899 = vld [vmem:[%s2 + $0x28] sm:$0xff]
    %v900 = vld [vmem:[%s2 + $0x30] sm:$0xff]
    %v901 = vld [vmem:[%s2 + $0x38] sm:$0xff]
    %v902 = vld [vmem:[%s2 + $0x40] sm:$0xff]
    %v903 = vld [vmem:[%s2 + $0x48] sm:$0xff]
    %v904 = vld [vmem:[%s2 + $0x50] sm:$0xff]
    %v905 = vld [vmem:[%s2 + $0x58] sm:$0xff]
    %v906 = vld [vmem:[%s2 + $0x60] sm:$0xff]
    %v907 = vld [vmem:[%s2 + $0x68] sm:$0xff]
    %v908 = vld [vmem:[%s2 + $0x70] sm:$0xff]
    %v909 = vld [vmem:[%s2 + $0x78] sm:$0xff]
    %v910 = vld [vmem:[%s2 + $0x80] sm:$0xff]
    %v911 = vld [vmem:[%s2 + $0x88] sm:$0xff]
    %v912 = vld [vmem:[%s2 + $0x90] sm:$0xff]
    %v913 = vld [vmem:[%s2 + $0x98] sm:$0xff]
    %v914 = vld [vmem:[%s2 + $0xa0] sm:$0xff]
    %v915 = vld [vmem:[%s2 + $0xa8] sm:$0xff]
    %v916 = vld [vmem:[%s2 + $0xb0] sm:$0xff]
    %v917 = vld [vmem:[%s2 + $0xb8] sm:$0xff]
    %v918 = vld [vmem:[%s2 + $0xc0] sm:$0xff]
    %v919 = vld [vmem:[%s2 + $0xc8] sm:$0xff]
    %v920 = vld [vmem:[%s2 + $0xd0] sm:$0xff]
    %v921 = vld [vmem:[%s2 + $0xd8] sm:$0xff]
    %v922 = vld [vmem:[%s2 + $0xe0] sm:$0xff]
    %v923 = vld [vmem:[%s2 + $0xe8] sm:$0xff]
    %v924 = vld [vmem:[%s2 + $0xf0] sm:$0xff]
    %v925 = vld [vmem:[%s2 + $0xf8] sm:$0xff]
    %v926 = vld [vmem:[%s2 + $0x100] sm:$0xff]
    %v927 = vld [vmem:[%s2 + $0x108] sm:$0xff]
    %v928 = vld [vmem:[%s2 + $0x110] sm:$0xff]
    %v929 = vld [vmem:[%s2 + $0x118] sm:$0xff]
    %v930 = vld [vmem:[%s2 + $0x120] sm:$0xff]
    %v931 = vld [vmem:[%s2 + $0x128] sm:$0xff]
    %v932 = vld [vmem:[%s2 + $0x130] sm:$0xff]
    %v933 = vld [vmem:[%s2 + $0x138] sm:$0xff]
    %v934 = vld [vmem:[%s2 + $0x140] sm:$0xff]
    %v935 = vld [vmem:[%s2 + $0x148] sm:$0xff]
    %v936 = vld [vmem:[%s2 + $0x150] sm:$0xff]
    %v937 = vld [vmem:[%s2 + $0x158] sm:$0xff]
    %v938 = vld [vmem:[%s2 + $0x160] sm:$0xff]
    %v939 = vld [vmem:[%s2 + $0x168] sm:$0xff]
    %v940 = vld [vmem:[%s2 + $0x170] sm:$0xff]
    %v941 = vld [vmem:[%s2 + $0x178] sm:$0xff]
    %v942 = vld [vmem:[%s2 + $0x180] sm:$0xff]
    %v943 = vld [vmem:[%s2 + $0x188] sm:$0xff]
    %v944 = vld [vmem:[%s2 + $0x190] sm:$0xff]
    %v945 = vld [vmem:[%s2 + $0x198] sm:$0xff]
    %v946 = vld [vmem:[%s2 + $0x1a0] sm:$0xff]
    %v947 = vld [vmem:[%s2 + $0x1a8] sm:$0xff]
    %v948 = vld [vmem:[%s2 + $0x1b0] sm:$0xff]
    %v949 = vld [vmem:[%s2 + $0x1b8] sm:$0xff]
    %v950 = vld [vmem:[%s2 + $0x1c0] sm:$0xff]
    %v951 = vld [vmem:[%s2 + $0x1c8] sm:$0xff]
    %v952 = vld [vmem:[%s2 + $0x1d0] sm:$0xff]
    %v953 = vld [vmem:[%s2 + $0x1d8] sm:$0xff]
    %v954 = vld [vmem:[%s2 + $0x1e0] sm:$0xff]
    %v955 = vld [vmem:[%s2 + $0x1e8] sm:$0xff]
    %v956 = vld [vmem:[%s2 + $0x1f0] sm:$0xff]
    %v957 = vld [vmem:[%s2 + $0x1f8] sm:$0xff]
    %958 = vmatprep.subr.mxu0 %v895
    %959 = vmatpush1.msra.mxu0 %v894
    %960 = vmatprep.subr.mxu0 %v899
    %961 = vmatpush1.msra.mxu0 %v898
    %962 = vmatprep.subr.mxu0 %v903
    %963 = vmatpush1.msra.mxu0 %v902
    %964 = vmatprep.subr.mxu0 %v907
    %965 = vmatpush1.msra.mxu0 %v906
    %966 = vmatprep.subr.mxu0 %v911
    %967 = vmatpush1.msra.mxu0 %v910
    %968 = vmatprep.subr.mxu0 %v915
    %969 = vmatpush1.msra.mxu0 %v914
    %970 = vmatprep.subr.mxu0 %v919
    %971 = vmatpush1.msra.mxu0 %v918
    %972 = vmatprep.subr.mxu0 %v923
    %973 = vmatpush1.msra.mxu0 %v922
    %974 = vmatprep.subr.mxu0 %v927
    %975 = vmatpush1.msra.mxu0 %v926
    %976 = vmatprep.subr.mxu0 %v931
    %977 = vmatpush1.msra.mxu0 %v930
    %978 = vmatprep.subr.mxu0 %v935
    %979 = vmatpush1.msra.mxu0 %v934
    %980 = vmatprep.subr.mxu0 %v939
    %981 = vmatpush1.msra.mxu0 %v938
    %982 = vmatprep.subr.mxu0 %v943
    %983 = vmatpush1.msra.mxu0 %v942
    %984 = vmatprep.subr.mxu0 %v947
    %985 = vmatpush1.msra.mxu0 %v946
    %986 = vmatprep.subr.mxu0 %v951
    %987 = vmatpush1.msra.mxu0 %v950
    %988 = vmatprep.subr.mxu0 %v955
    %989 = vmatpush1.msra.mxu0 %v954
    %990 = vmatprep.subr.mxu0 0.0
    %991 = vmatpush1.msra.mxu0 0.0
    %992 = vmatprep.subr.mxu0 0.0
    %993 = vmatpush1.msra.mxu0 0.0
    %994 = vmatprep.subr.mxu0 0.0
    %995 = vmatpush1.msra.mxu0 0.0
    %996 = vmatprep.subr.mxu0 0.0
    %997 = vmatpush1.msra.mxu0 0.0
    %998 = vmatprep.subr.mxu0 0.0
    %999 = vmatpush1.msra.mxu0 0.0
    %1000 = vmatprep.subr.mxu0 0.0
    %1001 = vmatpush1.msra.mxu0 0.0
    %1002 = vmatprep.subr.mxu0 0.0
    %1003 = vmatpush1.msra.mxu0 0.0
    %1004 = vmatprep.subr.mxu0 0.0
    %1005 = vmatpush1.msra.mxu0 0.0
    %1006 = vmatprep.subr.mxu0 0.0
    %1007 = vmatpush1.msra.mxu0 0.0
    %1008 = vmatprep.subr.mxu0 0.0
    %1009 = vmatpush1.msra.mxu0 0.0
    %1010 = vmatprep.subr.mxu0 0.0
    %1011 = vmatpush1.msra.mxu0 0.0
    %1012 = vmatprep.subr.mxu0 0.0
    %1013 = vmatpush1.msra.mxu0 0.0
    %1014 = vmatprep.subr.mxu0 0.0
    %1015 = vmatpush1.msra.mxu0 0.0
    %1016 = vmatprep.subr.mxu0 0.0
    %1017 = vmatpush1.msra.mxu0 0.0
    %1018 = vmatprep.subr.mxu0 0.0
    %1019 = vmatpush1.msra.mxu0 0.0
    %1020 = vmatprep.subr.mxu0 0.0
    %1021 = vmatpush1.msra.mxu0 0.0
    %1022 = vmatprep.mubr.f32.mxu0 0.0
    %1023 = vmatmul.mubr.f32.gmra.mrb[0].mxu0 %v892
    %v1024 = vpop.f32.mrb[0].mxu0
    %v1025 = vadd.f32 0.0, %v1024
    %v1026 = vpop.f32.mrb[0].mxu0
    %v1027 = vadd.f32 0.0, %v1026
    %1028 = vdwg.mxu0
    %1029 = vmatprep.subr.mxu0 %v897
    %1030 = vmatpush1.msra.mxu0 %v896
    %1031 = vmatprep.subr.mxu0 %v901
    %1032 = vmatpush1.msra.mxu0 %v900
    %1033 = vmatprep.subr.mxu0 %v905
    %1034 = vmatpush1.msra.mxu0 %v904
    %1035 = vmatprep.subr.mxu0 %v909
    %1036 = vmatpush1.msra.mxu0 %v908
    %1037 = vmatprep.subr.mxu0 %v913
    %1038 = vmatpush1.msra.mxu0 %v912
    %1039 = vmatprep.subr.mxu0 %v917
    %1040 = vmatpush1.msra.mxu0 %v916
    %1041 = vmatprep.subr.mxu0 %v921
    %1042 = vmatpush1.msra.mxu0 %v920
    %1043 = vmatprep.subr.mxu0 %v925
    %1044 = vmatpush1.msra.mxu0 %v924
    %1045 = vmatprep.subr.mxu0 %v929
    %1046 = vmatpush1.msra.mxu0 %v928
    %1047 = vmatprep.subr.mxu0 %v933
    %1048 = vmatpush1.msra.mxu0 %v932
    %1049 = vmatprep.subr.mxu0 %v937
    %1050 = vmatpush1.msra.mxu0 %v936
    %1051 = vmatprep.subr.mxu0 %v941
    %1052 = vmatpush1.msra.mxu0 %v940
    %1053 = vmatprep.subr.mxu0 %v945
    %1054 = vmatpush1.msra.mxu0 %v944
    %1055 = vmatprep.subr.mxu0 %v949
    %1056 = vmatpush1.msra.mxu0 %v948
    %1057 = vmatprep.subr.mxu0 %v953
    %1058 = vmatpush1.msra.mxu0 %v952
    %1059 = vmatprep.subr.mxu0 %v957
    %1060 = vmatpush1.msra.mxu0 %v956
    %1061 = vmatprep.subr.mxu0 0.0
    %1062 = vmatpush1.msra.mxu0 0.0
    %1063 = vmatprep.subr.mxu0 0.0
    %1064 = vmatpush1.msra.mxu0 0.0
    %1065 = vmatprep.subr.mxu0 0.0
    %1066 = vmatpush1.msra.mxu0 0.0
    %1067 = vmatprep.subr.mxu0 0.0
    %1068 = vmatpush1.msra.mxu0 0.0
    %1069 = vmatprep.subr.mxu0 0.0
    %1070 = vmatpush1.msra.mxu0 0.0
    %1071 = vmatprep.subr.mxu0 0.0
    %1072 = vmatpush1.msra.mxu0 0.0
    %1073 = vmatprep.subr.mxu0 0.0
    %1074 = vmatpush1.msra.mxu0 0.0
    %1075 = vmatprep.subr.mxu0 0.0
    %1076 = vmatpush1.msra.mxu0 0.0
    %1077 = vmatprep.subr.mxu0 0.0
    %1078 = vmatpush1.msra.mxu0 0.0
    %1079 = vmatprep.subr.mxu0 0.0
    %1080 = vmatpush1.msra.mxu0 0.0
    %1081 = vmatprep.subr.mxu0 0.0
    %1082 = vmatpush1.msra.mxu0 0.0
    %1083 = vmatprep.subr.mxu0 0.0
    %1084 = vmatpush1.msra.mxu0 0.0
    %1085 = vmatprep.subr.mxu0 0.0
    %1086 = vmatpush1.msra.mxu0 0.0
    %1087 = vmatprep.subr.mxu0 0.0
    %1088 = vmatpush1.msra.mxu0 0.0
    %1089 = vmatprep.subr.mxu0 0.0
    %1090 = vmatpush1.msra.mxu0 0.0
    %1091 = vmatprep.subr.mxu0 0.0
    %1092 = vmatpush1.msra.mxu0 0.0
    %1093 = vmatprep.mubr.f32.mxu0 0.0
    %1094 = vmatmul.mubr.f32.gmra.mrb[0].mxu0 %v892
    %v1095 = vpop.f32.mrb[0].mxu0
    %v1096 = vadd.f32 0.0, %v1095
    %v1097 = vpop.f32.mrb[0].mxu0
    %v1098 = vadd.f32 0.0, %v1097
    %1099 = vdwg.mxu0
    %v1100 = vadd.f32 %v888, %v1025
    %v1101 = vadd.f32 %v889, %v1027
    %v1102 = vadd.f32 %v890, %v1096
    %v1103 = vadd.f32 %v891, %v1098
    %v1104 = vxor.u32 %v1100, 2147483648
    %v1105 = vmul.f32 %v1104, 1.442695
    %v1106 = vpow.pop %v1105
    %v1107 = vadd.f32 %v1106, 1.0
    %v1108 = vrcp.pop %v1107
    %v1109 = vmul.f32 1.0, %v1108
    %v1110 = vxor.u32 %v1101, 2147483648
    %v1111 = vmul.f32 %v1110, 1.442695
    %v1112 = vpow.pop %v1111
    %v1113 = vadd.f32 %v1112, 1.0
    %v1114 = vrcp.pop %v1113
    %v1115 = vmul.f32 1.0, %v1114
    %v1116 = vtanh.pop %v1102
    %v1117 = vxor.u32 %v1103, 2147483648
    %v1118 = vmul.f32 %v1117, 1.442695
    %v1119 = vpow.pop %v1118
    %v1120 = vadd.f32 %v1119, 1.0
    %v1121 = vrcp.pop %v1120
    %v1122 = vmul.f32 1.0, %v1121
    %v1123 = vmul.f32 %v1115, %v893
    %v1124 = vmul.f32 %v1109, %v1116
    %v1125 = vadd.f32 %v1123, %v1124
    %v1126 = vtanh.pop %v1125
    %v1127 = vmul.f32 %v1122, %v1126
    %1128 = vst [vmem:[#allocation3] sm:$0xff] %v1127
    %1129 = vst [vmem:[#allocation4] sm:$0xff] %v1125
    %s1130 = smul.u32 3, 4
    %s1131 = smul.addr %s1130, 8
    %s1132 = scalar_lea.vmem [#allocation2], %s1131
    %v1133 = vld [vmem:[%s1132] sm:$0xff]
    %v1134 = vld [vmem:[%s1132 + $0x8] sm:$0xff]
    %v1135 = vld [vmem:[%s1132 + $0x10] sm:$0xff]
    %v1136 = vld [vmem:[%s1132 + $0x18] sm:$0xff]
    %v1137 = vld [vmem:[#allocation3] sm:$0xff]
    %v1138 = vld [vmem:[#allocation4] sm:$0xff]
    %v1139 = vld [vmem:[%s2] sm:$0xff]
    %v1140 = vld [vmem:[%s2 + $0x8] sm:$0xff]
    %v1141 = vld [vmem:[%s2 + $0x10] sm:$0xff]
    %v1142 = vld [vmem:[%s2 + $0x18] sm:$0xff]
    %v1143 = vld [vmem:[%s2 + $0x20] sm:$0xff]
    %v1144 = vld [vmem:[%s2 + $0x28] sm:$0xff]
    %v1145 = vld [vmem:[%s2 + $0x30] sm:$0xff]
    %v1146 = vld [vmem:[%s2 + $0x38] sm:$0xff]
    %v1147 = vld [vmem:[%s2 + $0x40] sm:$0xff]
    %v1148 = vld [vmem:[%s2 + $0x48] sm:$0xff]
    %v1149 = vld [vmem:[%s2 + $0x50] sm:$0xff]
    %v1150 = vld [vmem:[%s2 + $0x58] sm:$0xff]
    %v1151 = vld [vmem:[%s2 + $0x60] sm:$0xff]
    %v1152 = vld [vmem:[%s2 + $0x68] sm:$0xff]
    %v1153 = vld [vmem:[%s2 + $0x70] sm:$0xff]
    %v1154 = vld [vmem:[%s2 + $0x78] sm:$0xff]
    %v1155 = vld [vmem:[%s2 + $0x80] sm:$0xff]
    %v1156 = vld [vmem:[%s2 + $0x88] sm:$0xff]
    %v1157 = vld [vmem:[%s2 + $0x90] sm:$0xff]
    %v1158 = vld [vmem:[%s2 + $0x98] sm:$0xff]
    %v1159 = vld [vmem:[%s2 + $0xa0] sm:$0xff]
    %v1160 = vld [vmem:[%s2 + $0xa8] sm:$0xff]
    %v1161 = vld [vmem:[%s2 + $0xb0] sm:$0xff]
    %v1162 = vld [vmem:[%s2 + $0xb8] sm:$0xff]
    %v1163 = vld [vmem:[%s2 + $0xc0] sm:$0xff]
    %v1164 = vld [vmem:[%s2 + $0xc8] sm:$0xff]
    %v1165 = vld [vmem:[%s2 + $0xd0] sm:$0xff]
    %v1166 = vld [vmem:[%s2 + $0xd8] sm:$0xff]
    %v1167 = vld [vmem:[%s2 + $0xe0] sm:$0xff]
    %v1168 = vld [vmem:[%s2 + $0xe8] sm:$0xff]
    %v1169 = vld [vmem:[%s2 + $0xf0] sm:$0xff]
    %v1170 = vld [vmem:[%s2 + $0xf8] sm:$0xff]
    %v1171 = vld [vmem:[%s2 + $0x100] sm:$0xff]
    %v1172 = vld [vmem:[%s2 + $0x108] sm:$0xff]
    %v1173 = vld [vmem:[%s2 + $0x110] sm:$0xff]
    %v1174 = vld [vmem:[%s2 + $0x118] sm:$0xff]
    %v1175 = vld [vmem:[%s2 + $0x120] sm:$0xff]
    %v1176 = vld [vmem:[%s2 + $0x128] sm:$0xff]
    %v1177 = vld [vmem:[%s2 + $0x130] sm:$0xff]
    %v1178 = vld [vmem:[%s2 + $0x138] sm:$0xff]
    %v1179 = vld [vmem:[%s2 + $0x140] sm:$0xff]
    %v1180 = vld [vmem:[%s2 + $0x148] sm:$0xff]
    %v1181 = vld [vmem:[%s2 + $0x150] sm:$0xff]
    %v1182 = vld [vmem:[%s2 + $0x158] sm:$0xff]
    %v1183 = vld [vmem:[%s2 + $0x160] sm:$0xff]
    %v1184 = vld [vmem:[%s2 + $0x168] sm:$0xff]
    %v1185 = vld [vmem:[%s2 + $0x170] sm:$0xff]
    %v1186 = vld [vmem:[%s2 + $0x178] sm:$0xff]
    %v1187 = vld [vmem:[%s2 + $0x180] sm:$0xff]
    %v1188 = vld [vmem:[%s2 + $0x188] sm:$0xff]
    %v1189 = vld [vmem:[%s2 + $0x190] sm:$0xff]
    %v1190 = vld [vmem:[%s2 + $0x198] sm:$0xff]
    %v1191 = vld [vmem:[%s2 + $0x1a0] sm:$0xff]
    %v1192 = vld [vmem:[%s2 + $0x1a8] sm:$0xff]
    %v1193 = vld [vmem:[%s2 + $0x1b0] sm:$0xff]
    %v1194 = vld [vmem:[%s2 + $0x1b8] sm:$0xff]
    %v1195 = vld [vmem:[%s2 + $0x1c0] sm:$0xff]
    %v1196 = vld [vmem:[%s2 + $0x1c8] sm:$0xff]
    %v1197 = vld [vmem:[%s2 + $0x1d0] sm:$0xff]
    %v1198 = vld [vmem:[%s2 + $0x1d8] sm:$0xff]
    %v1199 = vld [vmem:[%s2 + $0x1e0] sm:$0xff]
    %v1200 = vld [vmem:[%s2 + $0x1e8] sm:$0xff]
    %v1201 = vld [vmem:[%s2 + $0x1f0] sm:$0xff]
    %v1202 = vld [vmem:[%s2 + $0x1f8] sm:$0xff]
    %1203 = vmatprep.subr.mxu0 %v1140
    %1204 = vmatpush1.msra.mxu0 %v1139
    %1205 = vmatprep.subr.mxu0 %v1144
    %1206 = vmatpush1.msra.mxu0 %v1143
    %1207 = vmatprep.subr.mxu0 %v1148
    %1208 = vmatpush1.msra.mxu0 %v1147
    %1209 = vmatprep.subr.mxu0 %v1152
    %1210 = vmatpush1.msra.mxu0 %v1151
    %1211 = vmatprep.subr.mxu0 %v1156
    %1212 = vmatpush1.msra.mxu0 %v1155
    %1213 = vmatprep.subr.mxu0 %v1160
    %1214 = vmatpush1.msra.mxu0 %v1159
    %1215 = vmatprep.subr.mxu0 %v1164
    %1216 = vmatpush1.msra.mxu0 %v1163
    %1217 = vmatprep.subr.mxu0 %v1168
    %1218 = vmatpush1.msra.mxu0 %v1167
    %1219 = vmatprep.subr.mxu0 %v1172
    %1220 = vmatpush1.msra.mxu0 %v1171
    %1221 = vmatprep.subr.mxu0 %v1176
    %1222 = vmatpush1.msra.mxu0 %v1175
    %1223 = vmatprep.subr.mxu0 %v1180
    %1224 = vmatpush1.msra.mxu0 %v1179
    %1225 = vmatprep.subr.mxu0 %v1184
    %1226 = vmatpush1.msra.mxu0 %v1183
    %1227 = vmatprep.subr.mxu0 %v1188
    %1228 = vmatpush1.msra.mxu0 %v1187
    %1229 = vmatprep.subr.mxu0 %v1192
    %1230 = vmatpush1.msra.mxu0 %v1191
    %1231 = vmatprep.subr.mxu0 %v1196
    %1232 = vmatpush1.msra.mxu0 %v1195
    %1233 = vmatprep.subr.mxu0 %v1200
    %1234 = vmatpush1.msra.mxu0 %v1199
    %1235 = vmatprep.subr.mxu0 0.0
    %1236 = vmatpush1.msra.mxu0 0.0
    %1237 = vmatprep.subr.mxu0 0.0
    %1238 = vmatpush1.msra.mxu0 0.0
    %1239 = vmatprep.subr.mxu0 0.0
    %1240 = vmatpush1.msra.mxu0 0.0
    %1241 = vmatprep.subr.mxu0 0.0
    %1242 = vmatpush1.msra.mxu0 0.0
    %1243 = vmatprep.subr.mxu0 0.0
    %1244 = vmatpush1.msra.mxu0 0.0
    %1245 = vmatprep.subr.mxu0 0.0
    %1246 = vmatpush1.msra.mxu0 0.0
    %1247 = vmatprep.subr.mxu0 0.0
    %1248 = vmatpush1.msra.mxu0 0.0
    %1249 = vmatprep.subr.mxu0 0.0
    %1250 = vmatpush1.msra.mxu0 0.0
    %1251 = vmatprep.subr.mxu0 0.0
    %1252 = vmatpush1.msra.mxu0 0.0
    %1253 = vmatprep.subr.mxu0 0.0
    %1254 = vmatpush1.msra.mxu0 0.0
    %1255 = vmatprep.subr.mxu0 0.0
    %1256 = vmatpush1.msra.mxu0 0.0
    %1257 = vmatprep.subr.mxu0 0.0
    %1258 = vmatpush1.msra.mxu0 0.0
    %1259 = vmatprep.subr.mxu0 0.0
    %1260 = vmatpush1.msra.mxu0 0.0
    %1261 = vmatprep.subr.mxu0 0.0
    %1262 = vmatpush1.msra.mxu0 0.0
    %1263 = vmatprep.subr.mxu0 0.0
    %1264 = vmatpush1.msra.mxu0 0.0
    %1265 = vmatprep.subr.mxu0 0.0
    %1266 = vmatpush1.msra.mxu0 0.0
    %1267 = vmatprep.mubr.f32.mxu0 0.0
    %1268 = vmatmul.mubr.f32.gmra.mrb[0].mxu0 %v1137
    %v1269 = vpop.f32.mrb[0].mxu0
    %v1270 = vadd.f32 0.0, %v1269
    %v1271 = vpop.f32.mrb[0].mxu0
    %v1272 = vadd.f32 0.0, %v1271
    %1273 = vdwg.mxu0
    %1274 = vmatprep.subr.mxu0 %v1142
    %1275 = vmatpush1.msra.mxu0 %v1141
    %1276 = vmatprep.subr.mxu0 %v1146
    %1277 = vmatpush1.msra.mxu0 %v1145
    %1278 = vmatprep.subr.mxu0 %v1150
    %1279 = vmatpush1.msra.mxu0 %v1149
    %1280 = vmatprep.subr.mxu0 %v1154
    %1281 = vmatpush1.msra.mxu0 %v1153
    %1282 = vmatprep.subr.mxu0 %v1158
    %1283 = vmatpush1.msra.mxu0 %v1157
    %1284 = vmatprep.subr.mxu0 %v1162
    %1285 = vmatpush1.msra.mxu0 %v1161
    %1286 = vmatprep.subr.mxu0 %v1166
    %1287 = vmatpush1.msra.mxu0 %v1165
    %1288 = vmatprep.subr.mxu0 %v1170
    %1289 = vmatpush1.msra.mxu0 %v1169
    %1290 = vmatprep.subr.mxu0 %v1174
    %1291 = vmatpush1.msra.mxu0 %v1173
    %1292 = vmatprep.subr.mxu0 %v1178
    %1293 = vmatpush1.msra.mxu0 %v1177
    %1294 = vmatprep.subr.mxu0 %v1182
    %1295 = vmatpush1.msra.mxu0 %v1181
    %1296 = vmatprep.subr.mxu0 %v1186
    %1297 = vmatpush1.msra.mxu0 %v1185
    %1298 = vmatprep.subr.mxu0 %v1190
    %1299 = vmatpush1.msra.mxu0 %v1189
    %1300 = vmatprep.subr.mxu0 %v1194
    %1301 = vmatpush1.msra.mxu0 %v1193
    %1302 = vmatprep.subr.mxu0 %v1198
    %1303 = vmatpush1.msra.mxu0 %v1197
    %1304 = vmatprep.subr.mxu0 %v1202
    %1305 = vmatpush1.msra.mxu0 %v1201
    %1306 = vmatprep.subr.mxu0 0.0
    %1307 = vmatpush1.msra.mxu0 0.0
    %1308 = vmatprep.subr.mxu0 0.0
    %1309 = vmatpush1.msra.mxu0 0.0
    %1310 = vmatprep.subr.mxu0 0.0
    %1311 = vmatpush1.msra.mxu0 0.0
    %1312 = vmatprep.subr.mxu0 0.0
    %1313 = vmatpush1.msra.mxu0 0.0
    %1314 = vmatprep.subr.mxu0 0.0
    %1315 = vmatpush1.msra.mxu0 0.0
    %1316 = vmatprep.subr.mxu0 0.0
    %1317 = vmatpush1.msra.mxu0 0.0
    %1318 = vmatprep.subr.mxu0 0.0
    %1319 = vmatpush1.msra.mxu0 0.0
    %1320 = vmatprep.subr.mxu0 0.0
    %1321 = vmatpush1.msra.mxu0 0.0
    %1322 = vmatprep.subr.mxu0 0.0
    %1323 = vmatpush1.msra.mxu0 0.0
    %1324 = vmatprep.subr.mxu0 0.0
    %1325 = vmatpush1.msra.mxu0 0.0
    %1326 = vmatprep.subr.mxu0 0.0
    %1327 = vmatpush1.msra.mxu0 0.0
    %1328 = vmatprep.subr.mxu0 0.0
    %1329 = vmatpush1.msra.mxu0 0.0
    %1330 = vmatprep.subr.mxu0 0.0
    %1331 = vmatpush1.msra.mxu0 0.0
    %1332 = vmatprep.subr.mxu0 0.0
    %1333 = vmatpush1.msra.mxu0 0.0
    %1334 = vmatprep.subr.mxu0 0.0
    %1335 = vmatpush1.msra.mxu0 0.0
    %1336 = vmatprep.subr.mxu0 0.0
    %1337 = vmatpush1.msra.mxu0 0.0
    %1338 = vmatprep.mubr.f32.mxu0 0.0
    %1339 = vmatmul.mubr.f32.gmra.mrb[0].mxu0 %v1137
    %v1340 = vpop.f32.mrb[0].mxu0
    %v1341 = vadd.f32 0.0, %v1340
    %v1342 = vpop.f32.mrb[0].mxu0
    %v1343 = vadd.f32 0.0, %v1342
    %1344 = vdwg.mxu0
    %v1345 = vadd.f32 %v1133, %v1270
    %v1346 = vadd.f32 %v1134, %v1272
    %v1347 = vadd.f32 %v1135, %v1341
    %v1348 = vadd.f32 %v1136, %v1343
    %v1349 = vxor.u32 %v1345, 2147483648
    %v1350 = vmul.f32 %v1349, 1.442695
    %v1351 = vpow.pop %v1350
    %v1352 = vadd.f32 %v1351, 1.0
    %v1353 = vrcp.pop %v1352
    %v1354 = vmul.f32 1.0, %v1353
    %v1355 = vxor.u32 %v1346, 2147483648
    %v1356 = vmul.f32 %v1355, 1.442695
    %v1357 = vpow.pop %v1356
    %v1358 = vadd.f32 %v1357, 1.0
    %v1359 = vrcp.pop %v1358
    %v1360 = vmul.f32 1.0, %v1359
    %v1361 = vtanh.pop %v1347
    %v1362 = vxor.u32 %v1348, 2147483648
    %v1363 = vmul.f32 %v1362, 1.442695
    %v1364 = vpow.pop %v1363
    %v1365 = vadd.f32 %v1364, 1.0
    %v1366 = vrcp.pop %v1365
    %v1367 = vmul.f32 1.0, %v1366
    %v1368 = vmul.f32 %v1360, %v1138
    %v1369 = vmul.f32 %v1354, %v1361
    %v1370 = vadd.f32 %v1368, %v1369
    %v1371 = vtanh.pop %v1370
    %v1372 = vmul.f32 %v1367, %v1371
    %1373 = vst [vmem:[#allocation3] sm:$0xff] %v1372
    %1374 = vst [vmem:[#allocation4] sm:$0xff] %v1370
    %s1375 = smul.u32 4, 4
    %s1376 = smul.addr %s1375, 8
    %s1377 = scalar_lea.vmem [#allocation2], %s1376
    %v1378 = vld [vmem:[%s1377] sm:$0xff]
    %v1379 = vld [vmem:[%s1377 + $0x8] sm:$0xff]
    %v1380 = vld [vmem:[%s1377 + $0x10] sm:$0xff]
    %v1381 = vld [vmem:[%s1377 + $0x18] sm:$0xff]
    %v1382 = vld [vmem:[#allocation3] sm:$0xff]
    %v1383 = vld [vmem:[#allocation4] sm:$0xff]
    %v1384 = vld [vmem:[%s2] sm:$0xff]
    %v1385 = vld [vmem:[%s2 + $0x8] sm:$0xff]
    %v1386 = vld [vmem:[%s2 + $0x10] sm:$0xff]
    %v1387 = vld [vmem:[%s2 + $0x18] sm:$0xff]
    %v1388 = vld [vmem:[%s2 + $0x20] sm:$0xff]
    %v1389 = vld [vmem:[%s2 + $0x28] sm:$0xff]
    %v1390 = vld [vmem:[%s2 + $0x30] sm:$0xff]
    %v1391 = vld [vmem:[%s2 + $0x38] sm:$0xff]
    %v1392 = vld [vmem:[%s2 + $0x40] sm:$0xff]
    %v1393 = vld [vmem:[%s2 + $0x48] sm:$0xff]
    %v1394 = vld [vmem:[%s2 + $0x50] sm:$0xff]
    %v1395 = vld [vmem:[%s2 + $0x58] sm:$0xff]
    %v1396 = vld [vmem:[%s2 + $0x60] sm:$0xff]
    %v1397 = vld [vmem:[%s2 + $0x68] sm:$0xff]
    %v1398 = vld [vmem:[%s2 + $0x70] sm:$0xff]
    %v1399 = vld [vmem:[%s2 + $0x78] sm:$0xff]
    %v1400 = vld [vmem:[%s2 + $0x80] sm:$0xff]
    %v1401 = vld [vmem:[%s2 + $0x88] sm:$0xff]
    %v1402 = vld [vmem:[%s2 + $0x90] sm:$0xff]
    %v1403 = vld [vmem:[%s2 + $0x98] sm:$0xff]
    %v1404 = vld [vmem:[%s2 + $0xa0] sm:$0xff]
    %v1405 = vld [vmem:[%s2 + $0xa8] sm:$0xff]
    %v1406 = vld [vmem:[%s2 + $0xb0] sm:$0xff]
    %v1407 = vld [vmem:[%s2 + $0xb8] sm:$0xff]
    %v1408 = vld [vmem:[%s2 + $0xc0] sm:$0xff]
    %v1409 = vld [vmem:[%s2 + $0xc8] sm:$0xff]
    %v1410 = vld [vmem:[%s2 + $0xd0] sm:$0xff]
    %v1411 = vld [vmem:[%s2 + $0xd8] sm:$0xff]
    %v1412 = vld [vmem:[%s2 + $0xe0] sm:$0xff]
    %v1413 = vld [vmem:[%s2 + $0xe8] sm:$0xff]
    %v1414 = vld [vmem:[%s2 + $0xf0] sm:$0xff]
    %v1415 = vld [vmem:[%s2 + $0xf8] sm:$0xff]
    %v1416 = vld [vmem:[%s2 + $0x100] sm:$0xff]
    %v1417 = vld [vmem:[%s2 + $0x108] sm:$0xff]
    %v1418 = vld [vmem:[%s2 + $0x110] sm:$0xff]
    %v1419 = vld [vmem:[%s2 + $0x118] sm:$0xff]
    %v1420 = vld [vmem:[%s2 + $0x120] sm:$0xff]
    %v1421 = vld [vmem:[%s2 + $0x128] sm:$0xff]
    %v1422 = vld [vmem:[%s2 + $0x130] sm:$0xff]
    %v1423 = vld [vmem:[%s2 + $0x138] sm:$0xff]
    %v1424 = vld [vmem:[%s2 + $0x140] sm:$0xff]
    %v1425 = vld [vmem:[%s2 + $0x148] sm:$0xff]
    %v1426 = vld [vmem:[%s2 + $0x150] sm:$0xff]
    %v1427 = vld [vmem:[%s2 + $0x158] sm:$0xff]
    %v1428 = vld [vmem:[%s2 + $0x160] sm:$0xff]
    %v1429 = vld [vmem:[%s2 + $0x168] sm:$0xff]
    %v1430 = vld [vmem:[%s2 + $0x170] sm:$0xff]
    %v1431 = vld [vmem:[%s2 + $0x178] sm:$0xff]
    %v1432 = vld [vmem:[%s2 + $0x180] sm:$0xff]
    %v1433 = vld [vmem:[%s2 + $0x188] sm:$0xff]
    %v1434 = vld [vmem:[%s2 + $0x190] sm:$0xff]
    %v1435 = vld [vmem:[%s2 + $0x198] sm:$0xff]
    %v1436 = vld [vmem:[%s2 + $0x1a0] sm:$0xff]
    %v1437 = vld [vmem:[%s2 + $0x1a8] sm:$0xff]
    %v1438 = vld [vmem:[%s2 + $0x1b0] sm:$0xff]
    %v1439 = vld [vmem:[%s2 + $0x1b8] sm:$0xff]
    %v1440 = vld [vmem:[%s2 + $0x1c0] sm:$0xff]
    %v1441 = vld [vmem:[%s2 + $0x1c8] sm:$0xff]
    %v1442 = vld [vmem:[%s2 + $0x1d0] sm:$0xff]
    %v1443 = vld [vmem:[%s2 + $0x1d8] sm:$0xff]
    %v1444 = vld [vmem:[%s2 + $0x1e0] sm:$0xff]
    %v1445 = vld [vmem:[%s2 + $0x1e8] sm:$0xff]
    %v1446 = vld [vmem:[%s2 + $0x1f0] sm:$0xff]
    %v1447 = vld [vmem:[%s2 + $0x1f8] sm:$0xff]
    %1448 = vmatprep.subr.mxu0 %v1385
    %1449 = vmatpush1.msra.mxu0 %v1384
    %1450 = vmatprep.subr.mxu0 %v1389
    %1451 = vmatpush1.msra.mxu0 %v1388
    %1452 = vmatprep.subr.mxu0 %v1393
    %1453 = vmatpush1.msra.mxu0 %v1392
    %1454 = vmatprep.subr.mxu0 %v1397
    %1455 = vmatpush1.msra.mxu0 %v1396
    %1456 = vmatprep.subr.mxu0 %v1401
    %1457 = vmatpush1.msra.mxu0 %v1400
    %1458 = vmatprep.subr.mxu0 %v1405
    %1459 = vmatpush1.msra.mxu0 %v1404
    %1460 = vmatprep.subr.mxu0 %v1409
    %1461 = vmatpush1.msra.mxu0 %v1408
    %1462 = vmatprep.subr.mxu0 %v1413
    %1463 = vmatpush1.msra.mxu0 %v1412
    %1464 = vmatprep.subr.mxu0 %v1417
    %1465 = vmatpush1.msra.mxu0 %v1416
    %1466 = vmatprep.subr.mxu0 %v1421
    %1467 = vmatpush1.msra.mxu0 %v1420
    %1468 = vmatprep.subr.mxu0 %v1425
    %1469 = vmatpush1.msra.mxu0 %v1424
    %1470 = vmatprep.subr.mxu0 %v1429
    %1471 = vmatpush1.msra.mxu0 %v1428
    %1472 = vmatprep.subr.mxu0 %v1433
    %1473 = vmatpush1.msra.mxu0 %v1432
    %1474 = vmatprep.subr.mxu0 %v1437
    %1475 = vmatpush1.msra.mxu0 %v1436
    %1476 = vmatprep.subr.mxu0 %v1441
    %1477 = vmatpush1.msra.mxu0 %v1440
    %1478 = vmatprep.subr.mxu0 %v1445
    %1479 = vmatpush1.msra.mxu0 %v1444
    %1480 = vmatprep.subr.mxu0 0.0
    %1481 = vmatpush1.msra.mxu0 0.0
    %1482 = vmatprep.subr.mxu0 0.0
    %1483 = vmatpush1.msra.mxu0 0.0
    %1484 = vmatprep.subr.mxu0 0.0
    %1485 = vmatpush1.msra.mxu0 0.0
    %1486 = vmatprep.subr.mxu0 0.0
    %1487 = vmatpush1.msra.mxu0 0.0
    %1488 = vmatprep.subr.mxu0 0.0
    %1489 = vmatpush1.msra.mxu0 0.0
    %1490 = vmatprep.subr.mxu0 0.0
    %1491 = vmatpush1.msra.mxu0 0.0
    %1492 = vmatprep.subr.mxu0 0.0
    %1493 = vmatpush1.msra.mxu0 0.0
    %1494 = vmatprep.subr.mxu0 0.0
    %1495 = vmatpush1.msra.mxu0 0.0
    %1496 = vmatprep.subr.mxu0 0.0
    %1497 = vmatpush1.msra.mxu0 0.0
    %1498 = vmatprep.subr.mxu0 0.0
    %1499 = vmatpush1.msra.mxu0 0.0
    %1500 = vmatprep.subr.mxu0 0.0
    %1501 = vmatpush1.msra.mxu0 0.0
    %1502 = vmatprep.subr.mxu0 0.0
    %1503 = vmatpush1.msra.mxu0 0.0
    %1504 = vmatprep.subr.mxu0 0.0
    %1505 = vmatpush1.msra.mxu0 0.0
    %1506 = vmatprep.subr.mxu0 0.0
    %1507 = vmatpush1.msra.mxu0 0.0
    %1508 = vmatprep.subr.mxu0 0.0
    %1509 = vmatpush1.msra.mxu0 0.0
    %1510 = vmatprep.subr.mxu0 0.0
    %1511 = vmatpush1.msra.mxu0 0.0
    %1512 = vmatprep.mubr.f32.mxu0 0.0
    %1513 = vmatmul.mubr.f32.gmra.mrb[0].mxu0 %v1382
    %v1514 = vpop.f32.mrb[0].mxu0
    %v1515 = vadd.f32 0.0, %v1514
    %v1516 = vpop.f32.mrb[0].mxu0
    %v1517 = vadd.f32 0.0, %v1516
    %1518 = vdwg.mxu0
    %1519 = vmatprep.subr.mxu0 %v1387
    %1520 = vmatpush1.msra.mxu0 %v1386
    %1521 = vmatprep.subr.mxu0 %v1391
    %1522 = vmatpush1.msra.mxu0 %v1390
    %1523 = vmatprep.subr.mxu0 %v1395
    %1524 = vmatpush1.msra.mxu0 %v1394
    %1525 = vmatprep.subr.mxu0 %v1399
    %1526 = vmatpush1.msra.mxu0 %v1398
    %1527 = vmatprep.subr.mxu0 %v1403
    %1528 = vmatpush1.msra.mxu0 %v1402
    %1529 = vmatprep.subr.mxu0 %v1407
    %1530 = vmatpush1.msra.mxu0 %v1406
    %1531 = vmatprep.subr.mxu0 %v1411
    %1532 = vmatpush1.msra.mxu0 %v1410
    %1533 = vmatprep.subr.mxu0 %v1415
    %1534 = vmatpush1.msra.mxu0 %v1414
    %1535 = vmatprep.subr.mxu0 %v1419
    %1536 = vmatpush1.msra.mxu0 %v1418
    %1537 = vmatprep.subr.mxu0 %v1423
    %1538 = vmatpush1.msra.mxu0 %v1422
    %1539 = vmatprep.subr.mxu0 %v1427
    %1540 = vmatpush1.msra.mxu0 %v1426
    %1541 = vmatprep.subr.mxu0 %v1431
    %1542 = vmatpush1.msra.mxu0 %v1430
    %1543 = vmatprep.subr.mxu0 %v1435
    %1544 = vmatpush1.msra.mxu0 %v1434
    %1545 = vmatprep.subr.mxu0 %v1439
    %1546 = vmatpush1.msra.mxu0 %v1438
    %1547 = vmatprep.subr.mxu0 %v1443
    %1548 = vmatpush1.msra.mxu0 %v1442
    %1549 = vmatprep.subr.mxu0 %v1447
    %1550 = vmatpush1.msra.mxu0 %v1446
    %1551 = vmatprep.subr.mxu0 0.0
    %1552 = vmatpush1.msra.mxu0 0.0
    %1553 = vmatprep.subr.mxu0 0.0
    %1554 = vmatpush1.msra.mxu0 0.0
    %1555 = vmatprep.subr.mxu0 0.0
    %1556 = vmatpush1.msra.mxu0 0.0
    %1557 = vmatprep.subr.mxu0 0.0
    %1558 = vmatpush1.msra.mxu0 0.0
    %1559 = vmatprep.subr.mxu0 0.0
    %1560 = vmatpush1.msra.mxu0 0.0
    %1561 = vmatprep.subr.mxu0 0.0
    %1562 = vmatpush1.msra.mxu0 0.0
    %1563 = vmatprep.subr.mxu0 0.0
    %1564 = vmatpush1.msra.mxu0 0.0
    %1565 = vmatprep.subr.mxu0 0.0
    %1566 = vmatpush1.msra.mxu0 0.0
    %1567 = vmatprep.subr.mxu0 0.0
    %1568 = vmatpush1.msra.mxu0 0.0
    %1569 = vmatprep.subr.mxu0 0.0
    %1570 = vmatpush1.msra.mxu0 0.0
    %1571 = vmatprep.subr.mxu0 0.0
    %1572 = vmatpush1.msra.mxu0 0.0
    %1573 = vmatprep.subr.mxu0 0.0
    %1574 = vmatpush1.msra.mxu0 0.0
    %1575 = vmatprep.subr.mxu0 0.0
    %1576 = vmatpush1.msra.mxu0 0.0
    %1577 = vmatprep.subr.mxu0 0.0
    %1578 = vmatpush1.msra.mxu0 0.0
    %1579 = vmatprep.subr.mxu0 0.0
    %1580 = vmatpush1.msra.mxu0 0.0
    %1581 = vmatprep.subr.mxu0 0.0
    %1582 = vmatpush1.msra.mxu0 0.0
    %1583 = vmatprep.mubr.f32.mxu0 0.0
    %1584 = vmatmul.mubr.f32.gmra.mrb[0].mxu0 %v1382
    %v1585 = vpop.f32.mrb[0].mxu0
    %v1586 = vadd.f32 0.0, %v1585
    %v1587 = vpop.f32.mrb[0].mxu0
    %v1588 = vadd.f32 0.0, %v1587
    %1589 = vdwg.mxu0
    %v1590 = vadd.f32 %v1378, %v1515
    %v1591 = vadd.f32 %v1379, %v1517
    %v1592 = vadd.f32 %v1380, %v1586
    %v1593 = vadd.f32 %v1381, %v1588
    %v1594 = vxor.u32 %v1590, 2147483648
    %v1595 = vmul.f32 %v1594, 1.442695
    %v1596 = vpow.pop %v1595
    %v1597 = vadd.f32 %v1596, 1.0
    %v1598 = vrcp.pop %v1597
    %v1599 = vmul.f32 1.0, %v1598
    %v1600 = vxor.u32 %v1591, 2147483648
    %v1601 = vmul.f32 %v1600, 1.442695
    %v1602 = vpow.pop %v1601
    %v1603 = vadd.f32 %v1602, 1.0
    %v1604 = vrcp.pop %v1603
    %v1605 = vmul.f32 1.0, %v1604
    %v1606 = vtanh.pop %v1592
    %v1607 = vxor.u32 %v1593, 2147483648
    %v1608 = vmul.f32 %v1607, 1.442695
    %v1609 = vpow.pop %v1608
    %v1610 = vadd.f32 %v1609, 1.0
    %v1611 = vrcp.pop %v1610
    %v1612 = vmul.f32 1.0, %v1611
    %v1613 = vmul.f32 %v1605, %v1383
    %v1614 = vmul.f32 %v1599, %v1606
    %v1615 = vadd.f32 %v1613, %v1614
    %v1616 = vtanh.pop %v1615
    %v1617 = vmul.f32 %v1612, %v1616
    %1618 = vst [vmem:[#allocation3] sm:$0xff] %v1617
    %1619 = vst [vmem:[#allocation4] sm:$0xff] %v1615
    %s1620 = smul.u32 5, 4
    %s1621 = smul.addr %s1620, 8
    %s1622 = scalar_lea.vmem [#allocation2], %s1621
    %v1623 = vld [vmem:[%s1622] sm:$0xff]
    %v1624 = vld [vmem:[%s1622 + $0x8] sm:$0xff]
    %v1625 = vld [vmem:[%s1622 + $0x10] sm:$0xff]
    %v1626 = vld [vmem:[%s1622 + $0x18] sm:$0xff]
    %v1627 = vld [vmem:[#allocation3] sm:$0xff]
    %v1628 = vld [vmem:[#allocation4] sm:$0xff]
    %v1629 = vld [vmem:[%s2] sm:$0xff]
    %v1630 = vld [vmem:[%s2 + $0x8] sm:$0xff]
    %v1631 = vld [vmem:[%s2 + $0x10] sm:$0xff]
    %v1632 = vld [vmem:[%s2 + $0x18] sm:$0xff]
    %v1633 = vld [vmem:[%s2 + $0x20] sm:$0xff]
    %v1634 = vld [vmem:[%s2 + $0x28] sm:$0xff]
    %v1635 = vld [vmem:[%s2 + $0x30] sm:$0xff]
    %v1636 = vld [vmem:[%s2 + $0x38] sm:$0xff]
    %v1637 = vld [vmem:[%s2 + $0x40] sm:$0xff]
    %v1638 = vld [vmem:[%s2 + $0x48] sm:$0xff]
    %v1639 = vld [vmem:[%s2 + $0x50] sm:$0xff]
    %v1640 = vld [vmem:[%s2 + $0x58] sm:$0xff]
    %v1641 = vld [vmem:[%s2 + $0x60] sm:$0xff]
    %v1642 = vld [vmem:[%s2 + $0x68] sm:$0xff]
    %v1643 = vld [vmem:[%s2 + $0x70] sm:$0xff]
    %v1644 = vld [vmem:[%s2 + $0x78] sm:$0xff]
    %v1645 = vld [vmem:[%s2 + $0x80] sm:$0xff]
    %v1646 = vld [vmem:[%s2 + $0x88] sm:$0xff]
    %v1647 = vld [vmem:[%s2 + $0x90] sm:$0xff]
    %v1648 = vld [vmem:[%s2 + $0x98] sm:$0xff]
    %v1649 = vld [vmem:[%s2 + $0xa0] sm:$0xff]
    %v1650 = vld [vmem:[%s2 + $0xa8] sm:$0xff]
    %v1651 = vld [vmem:[%s2 + $0xb0] sm:$0xff]
    %v1652 = vld [vmem:[%s2 + $0xb8] sm:$0xff]
    %v1653 = vld [vmem:[%s2 + $0xc0] sm:$0xff]
    %v1654 = vld [vmem:[%s2 + $0xc8] sm:$0xff]
    %v1655 = vld [vmem:[%s2 + $0xd0] sm:$0xff]
    %v1656 = vld [vmem:[%s2 + $0xd8] sm:$0xff]
    %v1657 = vld [vmem:[%s2 + $0xe0] sm:$0xff]
    %v1658 = vld [vmem:[%s2 + $0xe8] sm:$0xff]
    %v1659 = vld [vmem:[%s2 + $0xf0] sm:$0xff]
    %v1660 = vld [vmem:[%s2 + $0xf8] sm:$0xff]
    %v1661 = vld [vmem:[%s2 + $0x100] sm:$0xff]
    %v1662 = vld [vmem:[%s2 + $0x108] sm:$0xff]
    %v1663 = vld [vmem:[%s2 + $0x110] sm:$0xff]
    %v1664 = vld [vmem:[%s2 + $0x118] sm:$0xff]
    %v1665 = vld [vmem:[%s2 + $0x120] sm:$0xff]
    %v1666 = vld [vmem:[%s2 + $0x128] sm:$0xff]
    %v1667 = vld [vmem:[%s2 + $0x130] sm:$0xff]
    %v1668 = vld [vmem:[%s2 + $0x138] sm:$0xff]
    %v1669 = vld [vmem:[%s2 + $0x140] sm:$0xff]
    %v1670 = vld [vmem:[%s2 + $0x148] sm:$0xff]
    %v1671 = vld [vmem:[%s2 + $0x150] sm:$0xff]
    %v1672 = vld [vmem:[%s2 + $0x158] sm:$0xff]
    %v1673 = vld [vmem:[%s2 + $0x160] sm:$0xff]
    %v1674 = vld [vmem:[%s2 + $0x168] sm:$0xff]
    %v1675 = vld [vmem:[%s2 + $0x170] sm:$0xff]
    %v1676 = vld [vmem:[%s2 + $0x178] sm:$0xff]
    %v1677 = vld [vmem:[%s2 + $0x180] sm:$0xff]
    %v1678 = vld [vmem:[%s2 + $0x188] sm:$0xff]
    %v1679 = vld [vmem:[%s2 + $0x190] sm:$0xff]
    %v1680 = vld [vmem:[%s2 + $0x198] sm:$0xff]
    %v1681 = vld [vmem:[%s2 + $0x1a0] sm:$0xff]
    %v1682 = vld [vmem:[%s2 + $0x1a8] sm:$0xff]
    %v1683 = vld [vmem:[%s2 + $0x1b0] sm:$0xff]
    %v1684 = vld [vmem:[%s2 + $0x1b8] sm:$0xff]
    %v1685 = vld [vmem:[%s2 + $0x1c0] sm:$0xff]
    %v1686 = vld [vmem:[%s2 + $0x1c8] sm:$0xff]
    %v1687 = vld [vmem:[%s2 + $0x1d0] sm:$0xff]
    %v1688 = vld [vmem:[%s2 + $0x1d8] sm:$0xff]
    %v1689 = vld [vmem:[%s2 + $0x1e0] sm:$0xff]
    %v1690 = vld [vmem:[%s2 + $0x1e8] sm:$0xff]
    %v1691 = vld [vmem:[%s2 + $0x1f0] sm:$0xff]
    %v1692 = vld [vmem:[%s2 + $0x1f8] sm:$0xff]
    %1693 = vmatprep.subr.mxu0 %v1630
    %1694 = vmatpush1.msra.mxu0 %v1629
    %1695 = vmatprep.subr.mxu0 %v1634
    %1696 = vmatpush1.msra.mxu0 %v1633
    %1697 = vmatprep.subr.mxu0 %v1638
    %1698 = vmatpush1.msra.mxu0 %v1637
    %1699 = vmatprep.subr.mxu0 %v1642
    %1700 = vmatpush1.msra.mxu0 %v1641
    %1701 = vmatprep.subr.mxu0 %v1646
    %1702 = vmatpush1.msra.mxu0 %v1645
    %1703 = vmatprep.subr.mxu0 %v1650
    %1704 = vmatpush1.msra.mxu0 %v1649
    %1705 = vmatprep.subr.mxu0 %v1654
    %1706 = vmatpush1.msra.mxu0 %v1653
    %1707 = vmatprep.subr.mxu0 %v1658
    %1708 = vmatpush1.msra.mxu0 %v1657
    %1709 = vmatprep.subr.mxu0 %v1662
    %1710 = vmatpush1.msra.mxu0 %v1661
    %1711 = vmatprep.subr.mxu0 %v1666
    %1712 = vmatpush1.msra.mxu0 %v1665
    %1713 = vmatprep.subr.mxu0 %v1670
    %1714 = vmatpush1.msra.mxu0 %v1669
    %1715 = vmatprep.subr.mxu0 %v1674
    %1716 = vmatpush1.msra.mxu0 %v1673
    %1717 = vmatprep.subr.mxu0 %v1678
    %1718 = vmatpush1.msra.mxu0 %v1677
    %1719 = vmatprep.subr.mxu0 %v1682
    %1720 = vmatpush1.msra.mxu0 %v1681
    %1721 = vmatprep.subr.mxu0 %v1686
    %1722 = vmatpush1.msra.mxu0 %v1685
    %1723 = vmatprep.subr.mxu0 %v1690
    %1724 = vmatpush1.msra.mxu0 %v1689
    %1725 = vmatprep.subr.mxu0 0.0
    %1726 = vmatpush1.msra.mxu0 0.0
    %1727 = vmatprep.subr.mxu0 0.0
    %1728 = vmatpush1.msra.mxu0 0.0
    %1729 = vmatprep.subr.mxu0 0.0
    %1730 = vmatpush1.msra.mxu0 0.0
    %1731 = vmatprep.subr.mxu0 0.0
    %1732 = vmatpush1.msra.mxu0 0.0
    %1733 = vmatprep.subr.mxu0 0.0
    %1734 = vmatpush1.msra.mxu0 0.0
    %1735 = vmatprep.subr.mxu0 0.0
    %1736 = vmatpush1.msra.mxu0 0.0
    %1737 = vmatprep.subr.mxu0 0.0
    %1738 = vmatpush1.msra.mxu0 0.0
    %1739 = vmatprep.subr.mxu0 0.0
    %1740 = vmatpush1.msra.mxu0 0.0
    %1741 = vmatprep.subr.mxu0 0.0
    %1742 = vmatpush1.msra.mxu0 0.0
    %1743 = vmatprep.subr.mxu0 0.0
    %1744 = vmatpush1.msra.mxu0 0.0
    %1745 = vmatprep.subr.mxu0 0.0
    %1746 = vmatpush1.msra.mxu0 0.0
    %1747 = vmatprep.subr.mxu0 0.0
    %1748 = vmatpush1.msra.mxu0 0.0
    %1749 = vmatprep.subr.mxu0 0.0
    %1750 = vmatpush1.msra.mxu0 0.0
    %1751 = vmatprep.subr.mxu0 0.0
    %1752 = vmatpush1.msra.mxu0 0.0
    %1753 = vmatprep.subr.mxu0 0.0
    %1754 = vmatpush1.msra.mxu0 0.0
    %1755 = vmatprep.subr.mxu0 0.0
    %1756 = vmatpush1.msra.mxu0 0.0
    %1757 = vmatprep.mubr.f32.mxu0 0.0
    %1758 = vmatmul.mubr.f32.gmra.mrb[0].mxu0 %v1627
    %v1759 = vpop.f32.mrb[0].mxu0
    %v1760 = vadd.f32 0.0, %v1759
    %v1761 = vpop.f32.mrb[0].mxu0
    %v1762 = vadd.f32 0.0, %v1761
    %1763 = vdwg.mxu0
    %1764 = vmatprep.subr.mxu0 %v1632
    %1765 = vmatpush1.msra.mxu0 %v1631
    %1766 = vmatprep.subr.mxu0 %v1636
    %1767 = vmatpush1.msra.mxu0 %v1635
    %1768 = vmatprep.subr.mxu0 %v1640
    %1769 = vmatpush1.msra.mxu0 %v1639
    %1770 = vmatprep.subr.mxu0 %v1644
    %1771 = vmatpush1.msra.mxu0 %v1643
    %1772 = vmatprep.subr.mxu0 %v1648
    %1773 = vmatpush1.msra.mxu0 %v1647
    %1774 = vmatprep.subr.mxu0 %v1652
    %1775 = vmatpush1.msra.mxu0 %v1651
    %1776 = vmatprep.subr.mxu0 %v1656
    %1777 = vmatpush1.msra.mxu0 %v1655
    %1778 = vmatprep.subr.mxu0 %v1660
    %1779 = vmatpush1.msra.mxu0 %v1659
    %1780 = vmatprep.subr.mxu0 %v1664
    %1781 = vmatpush1.msra.mxu0 %v1663
    %1782 = vmatprep.subr.mxu0 %v1668
    %1783 = vmatpush1.msra.mxu0 %v1667
    %1784 = vmatprep.subr.mxu0 %v1672
    %1785 = vmatpush1.msra.mxu0 %v1671
    %1786 = vmatprep.subr.mxu0 %v1676
    %1787 = vmatpush1.msra.mxu0 %v1675
    %1788 = vmatprep.subr.mxu0 %v1680
    %1789 = vmatpush1.msra.mxu0 %v1679
    %1790 = vmatprep.subr.mxu0 %v1684
    %1791 = vmatpush1.msra.mxu0 %v1683
    %1792 = vmatprep.subr.mxu0 %v1688
    %1793 = vmatpush1.msra.mxu0 %v1687
    %1794 = vmatprep.subr.mxu0 %v1692
    %1795 = vmatpush1.msra.mxu0 %v1691
    %1796 = vmatprep.subr.mxu0 0.0
    %1797 = vmatpush1.msra.mxu0 0.0
    %1798 = vmatprep.subr.mxu0 0.0
    %1799 = vmatpush1.msra.mxu0 0.0
    %1800 = vmatprep.subr.mxu0 0.0
    %1801 = vmatpush1.msra.mxu0 0.0
    %1802 = vmatprep.subr.mxu0 0.0
    %1803 = vmatpush1.msra.mxu0 0.0
    %1804 = vmatprep.subr.mxu0 0.0
    %1805 = vmatpush1.msra.mxu0 0.0
    %1806 = vmatprep.subr.mxu0 0.0
    %1807 = vmatpush1.msra.mxu0 0.0
    %1808 = vmatprep.subr.mxu0 0.0
    %1809 = vmatpush1.msra.mxu0 0.0
    %1810 = vmatprep.subr.mxu0 0.0
    %1811 = vmatpush1.msra.mxu0 0.0
    %1812 = vmatprep.subr.mxu0 0.0
    %1813 = vmatpush1.msra.mxu0 0.0
    %1814 = vmatprep.subr.mxu0 0.0
    %1815 = vmatpush1.msra.mxu0 0.0
    %1816 = vmatprep.subr.mxu0 0.0
    %1817 = vmatpush1.msra.mxu0 0.0
    %1818 = vmatprep.subr.mxu0 0.0
    %1819 = vmatpush1.msra.mxu0 0.0
    %1820 = vmatprep.subr.mxu0 0.0
    %1821 = vmatpush1.msra.mxu0 0.0
    %1822 = vmatprep.subr.mxu0 0.0
    %1823 = vmatpush1.msra.mxu0 0.0
    %1824 = vmatprep.subr.mxu0 0.0
    %1825 = vmatpush1.msra.mxu0 0.0
    %1826 = vmatprep.subr.mxu0 0.0
    %1827 = vmatpush1.msra.mxu0 0.0
    %1828 = vmatprep.mubr.f32.mxu0 0.0
    %1829 = vmatmul.mubr.f32.gmra.mrb[0].mxu0 %v1627
    %v1830 = vpop.f32.mrb[0].mxu0
    %v1831 = vadd.f32 0.0, %v1830
    %v1832 = vpop.f32.mrb[0].mxu0
    %v1833 = vadd.f32 0.0, %v1832
    %1834 = vdwg.mxu0
    %v1835 = vadd.f32 %v1623, %v1760
    %v1836 = vadd.f32 %v1624, %v1762
    %v1837 = vadd.f32 %v1625, %v1831
    %v1838 = vadd.f32 %v1626, %v1833
    %v1839 = vxor.u32 %v1835, 2147483648
    %v1840 = vmul.f32 %v1839, 1.442695
    %v1841 = vpow.pop %v1840
    %v1842 = vadd.f32 %v1841, 1.0
    %v1843 = vrcp.pop %v1842
    %v1844 = vmul.f32 1.0, %v1843
    %v1845 = vxor.u32 %v1836, 2147483648
    %v1846 = vmul.f32 %v1845, 1.442695
    %v1847 = vpow.pop %v1846
    %v1848 = vadd.f32 %v1847, 1.0
    %v1849 = vrcp.pop %v1848
    %v1850 = vmul.f32 1.0, %v1849
    %v1851 = vtanh.pop %v1837
    %v1852 = vxor.u32 %v1838, 2147483648
    %v1853 = vmul.f32 %v1852, 1.442695
    %v1854 = vpow.pop %v1853
    %v1855 = vadd.f32 %v1854, 1.0
    %v1856 = vrcp.pop %v1855
    %v1857 = vmul.f32 1.0, %v1856
    %v1858 = vmul.f32 %v1850, %v1628
    %v1859 = vmul.f32 %v1844, %v1851
    %v1860 = vadd.f32 %v1858, %v1859
    %v1861 = vtanh.pop %v1860
    %v1862 = vmul.f32 %v1857, %v1861
    %1863 = vst [vmem:[#allocation3] sm:$0xff] %v1862
    %1864 = vst [vmem:[#allocation4] sm:$0xff] %v1860
    %s1865 = smul.u32 6, 4
    %s1866 = smul.addr %s1865, 8
    %s1867 = scalar_lea.vmem [#allocation2], %s1866
    %v1868 = vld [vmem:[%s1867] sm:$0xff]
    %v1869 = vld [vmem:[%s1867 + $0x8] sm:$0xff]
    %v1870 = vld [vmem:[%s1867 + $0x10] sm:$0xff]
    %v1871 = vld [vmem:[%s1867 + $0x18] sm:$0xff]
    %v1872 = vld [vmem:[#allocation3] sm:$0xff]
    %v1873 = vld [vmem:[#allocation4] sm:$0xff]
    %v1874 = vld [vmem:[%s2] sm:$0xff]
    %v1875 = vld [vmem:[%s2 + $0x8] sm:$0xff]
    %v1876 = vld [vmem:[%s2 + $0x10] sm:$0xff]
    %v1877 = vld [vmem:[%s2 + $0x18] sm:$0xff]
    %v1878 = vld [vmem:[%s2 + $0x20] sm:$0xff]
    %v1879 = vld [vmem:[%s2 + $0x28] sm:$0xff]
    %v1880 = vld [vmem:[%s2 + $0x30] sm:$0xff]
    %v1881 = vld [vmem:[%s2 + $0x38] sm:$0xff]
    %v1882 = vld [vmem:[%s2 + $0x40] sm:$0xff]
    %v1883 = vld [vmem:[%s2 + $0x48] sm:$0xff]
    %v1884 = vld [vmem:[%s2 + $0x50] sm:$0xff]
    %v1885 = vld [vmem:[%s2 + $0x58] sm:$0xff]
    %v1886 = vld [vmem:[%s2 + $0x60] sm:$0xff]
    %v1887 = vld [vmem:[%s2 + $0x68] sm:$0xff]
    %v1888 = vld [vmem:[%s2 + $0x70] sm:$0xff]
    %v1889 = vld [vmem:[%s2 + $0x78] sm:$0xff]
    %v1890 = vld [vmem:[%s2 + $0x80] sm:$0xff]
    %v1891 = vld [vmem:[%s2 + $0x88] sm:$0xff]
    %v1892 = vld [vmem:[%s2 + $0x90] sm:$0xff]
    %v1893 = vld [vmem:[%s2 + $0x98] sm:$0xff]
    %v1894 = vld [vmem:[%s2 + $0xa0] sm:$0xff]
    %v1895 = vld [vmem:[%s2 + $0xa8] sm:$0xff]
    %v1896 = vld [vmem:[%s2 + $0xb0] sm:$0xff]
    %v1897 = vld [vmem:[%s2 + $0xb8] sm:$0xff]
    %v1898 = vld [vmem:[%s2 + $0xc0] sm:$0xff]
    %v1899 = vld [vmem:[%s2 + $0xc8] sm:$0xff]
    %v1900 = vld [vmem:[%s2 + $0xd0] sm:$0xff]
    %v1901 = vld [vmem:[%s2 + $0xd8] sm:$0xff]
    %v1902 = vld [vmem:[%s2 + $0xe0] sm:$0xff]
    %v1903 = vld [vmem:[%s2 + $0xe8] sm:$0xff]
    %v1904 = vld [vmem:[%s2 + $0xf0] sm:$0xff]
    %v1905 = vld [vmem:[%s2 + $0xf8] sm:$0xff]
    %v1906 = vld [vmem:[%s2 + $0x100] sm:$0xff]
    %v1907 = vld [vmem:[%s2 + $0x108] sm:$0xff]
    %v1908 = vld [vmem:[%s2 + $0x110] sm:$0xff]
    %v1909 = vld [vmem:[%s2 + $0x118] sm:$0xff]
    %v1910 = vld [vmem:[%s2 + $0x120] sm:$0xff]
    %v1911 = vld [vmem:[%s2 + $0x128] sm:$0xff]
    %v1912 = vld [vmem:[%s2 + $0x130] sm:$0xff]
    %v1913 = vld [vmem:[%s2 + $0x138] sm:$0xff]
    %v1914 = vld [vmem:[%s2 + $0x140] sm:$0xff]
    %v1915 = vld [vmem:[%s2 + $0x148] sm:$0xff]
    %v1916 = vld [vmem:[%s2 + $0x150] sm:$0xff]
    %v1917 = vld [vmem:[%s2 + $0x158] sm:$0xff]
    %v1918 = vld [vmem:[%s2 + $0x160] sm:$0xff]
    %v1919 = vld [vmem:[%s2 + $0x168] sm:$0xff]
    %v1920 = vld [vmem:[%s2 + $0x170] sm:$0xff]
    %v1921 = vld [vmem:[%s2 + $0x178] sm:$0xff]
    %v1922 = vld [vmem:[%s2 + $0x180] sm:$0xff]
    %v1923 = vld [vmem:[%s2 + $0x188] sm:$0xff]
    %v1924 = vld [vmem:[%s2 + $0x190] sm:$0xff]
    %v1925 = vld [vmem:[%s2 + $0x198] sm:$0xff]
    %v1926 = vld [vmem:[%s2 + $0x1a0] sm:$0xff]
    %v1927 = vld [vmem:[%s2 + $0x1a8] sm:$0xff]
    %v1928 = vld [vmem:[%s2 + $0x1b0] sm:$0xff]
    %v1929 = vld [vmem:[%s2 + $0x1b8] sm:$0xff]
    %v1930 = vld [vmem:[%s2 + $0x1c0] sm:$0xff]
    %v1931 = vld [vmem:[%s2 + $0x1c8] sm:$0xff]
    %v1932 = vld [vmem:[%s2 + $0x1d0] sm:$0xff]
    %v1933 = vld [vmem:[%s2 + $0x1d8] sm:$0xff]
    %v1934 = vld [vmem:[%s2 + $0x1e0] sm:$0xff]
    %v1935 = vld [vmem:[%s2 + $0x1e8] sm:$0xff]
    %v1936 = vld [vmem:[%s2 + $0x1f0] sm:$0xff]
    %v1937 = vld [vmem:[%s2 + $0x1f8] sm:$0xff]
    %1938 = vmatprep.subr.mxu0 %v1875
    %1939 = vmatpush1.msra.mxu0 %v1874
    %1940 = vmatprep.subr.mxu0 %v1879
    %1941 = vmatpush1.msra.mxu0 %v1878
    %1942 = vmatprep.subr.mxu0 %v1883
    %1943 = vmatpush1.msra.mxu0 %v1882
    %1944 = vmatprep.subr.mxu0 %v1887
    %1945 = vmatpush1.msra.mxu0 %v1886
    %1946 = vmatprep.subr.mxu0 %v1891
    %1947 = vmatpush1.msra.mxu0 %v1890
    %1948 = vmatprep.subr.mxu0 %v1895
    %1949 = vmatpush1.msra.mxu0 %v1894
    %1950 = vmatprep.subr.mxu0 %v1899
    %1951 = vmatpush1.msra.mxu0 %v1898
    %1952 = vmatprep.subr.mxu0 %v1903
    %1953 = vmatpush1.msra.mxu0 %v1902
    %1954 = vmatprep.subr.mxu0 %v1907
    %1955 = vmatpush1.msra.mxu0 %v1906
    %1956 = vmatprep.subr.mxu0 %v1911
    %1957 = vmatpush1.msra.mxu0 %v1910
    %1958 = vmatprep.subr.mxu0 %v1915
    %1959 = vmatpush1.msra.mxu0 %v1914
    %1960 = vmatprep.subr.mxu0 %v1919
    %1961 = vmatpush1.msra.mxu0 %v1918
    %1962 = vmatprep.subr.mxu0 %v1923
    %1963 = vmatpush1.msra.mxu0 %v1922
    %1964 = vmatprep.subr.mxu0 %v1927
    %1965 = vmatpush1.msra.mxu0 %v1926
    %1966 = vmatprep.subr.mxu0 %v1931
    %1967 = vmatpush1.msra.mxu0 %v1930
    %1968 = vmatprep.subr.mxu0 %v1935
    %1969 = vmatpush1.msra.mxu0 %v1934
    %1970 = vmatprep.subr.mxu0 0.0
    %1971 = vmatpush1.msra.mxu0 0.0
    %1972 = vmatprep.subr.mxu0 0.0
    %1973 = vmatpush1.msra.mxu0 0.0
    %1974 = vmatprep.subr.mxu0 0.0
    %1975 = vmatpush1.msra.mxu0 0.0
    %1976 = vmatprep.subr.mxu0 0.0
    %1977 = vmatpush1.msra.mxu0 0.0
    %1978 = vmatprep.subr.mxu0 0.0
    %1979 = vmatpush1.msra.mxu0 0.0
    %1980 = vmatprep.subr.mxu0 0.0
    %1981 = vmatpush1.msra.mxu0 0.0
    %1982 = vmatprep.subr.mxu0 0.0
    %1983 = vmatpush1.msra.mxu0 0.0
    %1984 = vmatprep.subr.mxu0 0.0
    %1985 = vmatpush1.msra.mxu0 0.0
    %1986 = vmatprep.subr.mxu0 0.0
    %1987 = vmatpush1.msra.mxu0 0.0
    %1988 = vmatprep.subr.mxu0 0.0
    %1989 = vmatpush1.msra.mxu0 0.0
    %1990 = vmatprep.subr.mxu0 0.0
    %1991 = vmatpush1.msra.mxu0 0.0
    %1992 = vmatprep.subr.mxu0 0.0
    %1993 = vmatpush1.msra.mxu0 0.0
    %1994 = vmatprep.subr.mxu0 0.0
    %1995 = vmatpush1.msra.mxu0 0.0
    %1996 = vmatprep.subr.mxu0 0.0
    %1997 = vmatpush1.msra.mxu0 0.0
    %1998 = vmatprep.subr.mxu0 0.0
    %1999 = vmatpush1.msra.mxu0 0.0
    %2000 = vmatprep.subr.mxu0 0.0
    %2001 = vmatpush1.msra.mxu0 0.0
    %2002 = vmatprep.mubr.f32.mxu0 0.0
    %2003 = vmatmul.mubr.f32.gmra.mrb[0].mxu0 %v1872
    %v2004 = vpop.f32.mrb[0].mxu0
    %v2005 = vadd.f32 0.0, %v2004
    %v2006 = vpop.f32.mrb[0].mxu0
    %v2007 = vadd.f32 0.0, %v2006
    %2008 = vdwg.mxu0
    %2009 = vmatprep.subr.mxu0 %v1877
    %2010 = vmatpush1.msra.mxu0 %v1876
    %2011 = vmatprep.subr.mxu0 %v1881
    %2012 = vmatpush1.msra.mxu0 %v1880
    %2013 = vmatprep.subr.mxu0 %v1885
    %2014 = vmatpush1.msra.mxu0 %v1884
    %2015 = vmatprep.subr.mxu0 %v1889
    %2016 = vmatpush1.msra.mxu0 %v1888
    %2017 = vmatprep.subr.mxu0 %v1893
    %2018 = vmatpush1.msra.mxu0 %v1892
    %2019 = vmatprep.subr.mxu0 %v1897
    %2020 = vmatpush1.msra.mxu0 %v1896
    %2021 = vmatprep.subr.mxu0 %v1901
    %2022 = vmatpush1.msra.mxu0 %v1900
    %2023 = vmatprep.subr.mxu0 %v1905
    %2024 = vmatpush1.msra.mxu0 %v1904
    %2025 = vmatprep.subr.mxu0 %v1909
    %2026 = vmatpush1.msra.mxu0 %v1908
    %2027 = vmatprep.subr.mxu0 %v1913
    %2028 = vmatpush1.msra.mxu0 %v1912
    %2029 = vmatprep.subr.mxu0 %v1917
    %2030 = vmatpush1.msra.mxu0 %v1916
    %2031 = vmatprep.subr.mxu0 %v1921
    %2032 = vmatpush1.msra.mxu0 %v1920
    %2033 = vmatprep.subr.mxu0 %v1925
    %2034 = vmatpush1.msra.mxu0 %v1924
    %2035 = vmatprep.subr.mxu0 %v1929
    %2036 = vmatpush1.msra.mxu0 %v1928
    %2037 = vmatprep.subr.mxu0 %v1933
    %2038 = vmatpush1.msra.mxu0 %v1932
    %2039 = vmatprep.subr.mxu0 %v1937
    %2040 = vmatpush1.msra.mxu0 %v1936
    %2041 = vmatprep.subr.mxu0 0.0
    %2042 = vmatpush1.msra.mxu0 0.0
    %2043 = vmatprep.subr.mxu0 0.0
    %2044 = vmatpush1.msra.mxu0 0.0
    %2045 = vmatprep.subr.mxu0 0.0
    %2046 = vmatpush1.msra.mxu0 0.0
    %2047 = vmatprep.subr.mxu0 0.0
    %2048 = vmatpush1.msra.mxu0 0.0
    %2049 = vmatprep.subr.mxu0 0.0
    %2050 = vmatpush1.msra.mxu0 0.0
    %2051 = vmatprep.subr.mxu0 0.0
    %2052 = vmatpush1.msra.mxu0 0.0
    %2053 = vmatprep.subr.mxu0 0.0
    %2054 = vmatpush1.msra.mxu0 0.0
    %2055 = vmatprep.subr.mxu0 0.0
    %2056 = vmatpush1.msra.mxu0 0.0
    %2057 = vmatprep.subr.mxu0 0.0
    %2058 = vmatpush1.msra.mxu0 0.0
    %2059 = vmatprep.subr.mxu0 0.0
    %2060 = vmatpush1.msra.mxu0 0.0
    %2061 = vmatprep.subr.mxu0 0.0
    %2062 = vmatpush1.msra.mxu0 0.0
    %2063 = vmatprep.subr.mxu0 0.0
    %2064 = vmatpush1.msra.mxu0 0.0
    %2065 = vmatprep.subr.mxu0 0.0
    %2066 = vmatpush1.msra.mxu0 0.0
    %2067 = vmatprep.subr.mxu0 0.0
    %2068 = vmatpush1.msra.mxu0 0.0
    %2069 = vmatprep.subr.mxu0 0.0
    %2070 = vmatpush1.msra.mxu0 0.0
    %2071 = vmatprep.subr.mxu0 0.0
    %2072 = vmatpush1.msra.mxu0 0.0
    %2073 = vmatprep.mubr.f32.mxu0 0.0
    %2074 = vmatmul.mubr.f32.gmra.mrb[0].mxu0 %v1872
    %v2075 = vpop.f32.mrb[0].mxu0
    %v2076 = vadd.f32 0.0, %v2075
    %v2077 = vpop.f32.mrb[0].mxu0
    %v2078 = vadd.f32 0.0, %v2077
    %2079 = vdwg.mxu0
    %v2080 = vadd.f32 %v1868, %v2005
    %v2081 = vadd.f32 %v1869, %v2007
    %v2082 = vadd.f32 %v1870, %v2076
    %v2083 = vadd.f32 %v1871, %v2078
    %v2084 = vxor.u32 %v2080, 2147483648
    %v2085 = vmul.f32 %v2084, 1.442695
    %v2086 = vpow.pop %v2085
    %v2087 = vadd.f32 %v2086, 1.0
    %v2088 = vrcp.pop %v2087
    %v2089 = vmul.f32 1.0, %v2088
    %v2090 = vxor.u32 %v2081, 2147483648
    %v2091 = vmul.f32 %v2090, 1.442695
    %v2092 = vpow.pop %v2091
    %v2093 = vadd.f32 %v2092, 1.0
    %v2094 = vrcp.pop %v2093
    %v2095 = vmul.f32 1.0, %v2094
    %v2096 = vtanh.pop %v2082
    %v2097 = vxor.u32 %v2083, 2147483648
    %v2098 = vmul.f32 %v2097, 1.442695
    %v2099 = vpow.pop %v2098
    %v2100 = vadd.f32 %v2099, 1.0
    %v2101 = vrcp.pop %v2100
    %v2102 = vmul.f32 1.0, %v2101
    %v2103 = vmul.f32 %v2095, %v1873
    %v2104 = vmul.f32 %v2089, %v2096
    %v2105 = vadd.f32 %v2103, %v2104
    %v2106 = vtanh.pop %v2105
    %v2107 = vmul.f32 %v2102, %v2106
    %2108 = vst [vmem:[#allocation3] sm:$0xff] %v2107
    %2109 = vst [vmem:[#allocation4] sm:$0xff] %v2105
    %s2110 = smul.u32 7, 4
    %s2111 = smul.addr %s2110, 8
    %s2112 = scalar_lea.vmem [#allocation2], %s2111
    %v2113 = vld [vmem:[%s2112] sm:$0xff]
    %v2114 = vld [vmem:[%s2112 + $0x8] sm:$0xff]
    %v2115 = vld [vmem:[%s2112 + $0x10] sm:$0xff]
    %v2116 = vld [vmem:[%s2112 + $0x18] sm:$0xff]
    %v2117 = vld [vmem:[#allocation3] sm:$0xff]
    %v2118 = vld [vmem:[#allocation4] sm:$0xff]
    %v2119 = vld [vmem:[%s2] sm:$0xff]
    %v2120 = vld [vmem:[%s2 + $0x8] sm:$0xff]
    %v2121 = vld [vmem:[%s2 + $0x10] sm:$0xff]
    %v2122 = vld [vmem:[%s2 + $0x18] sm:$0xff]
    %v2123 = vld [vmem:[%s2 + $0x20] sm:$0xff]
    %v2124 = vld [vmem:[%s2 + $0x28] sm:$0xff]
    %v2125 = vld [vmem:[%s2 + $0x30] sm:$0xff]
    %v2126 = vld [vmem:[%s2 + $0x38] sm:$0xff]
    %v2127 = vld [vmem:[%s2 + $0x40] sm:$0xff]
    %v2128 = vld [vmem:[%s2 + $0x48] sm:$0xff]
    %v2129 = vld [vmem:[%s2 + $0x50] sm:$0xff]
    %v2130 = vld [vmem:[%s2 + $0x58] sm:$0xff]
    %v2131 = vld [vmem:[%s2 + $0x60] sm:$0xff]
    %v2132 = vld [vmem:[%s2 + $0x68] sm:$0xff]
    %v2133 = vld [vmem:[%s2 + $0x70] sm:$0xff]
    %v2134 = vld [vmem:[%s2 + $0x78] sm:$0xff]
    %v2135 = vld [vmem:[%s2 + $0x80] sm:$0xff]
    %v2136 = vld [vmem:[%s2 + $0x88] sm:$0xff]
    %v2137 = vld [vmem:[%s2 + $0x90] sm:$0xff]
    %v2138 = vld [vmem:[%s2 + $0x98] sm:$0xff]
    %v2139 = vld [vmem:[%s2 + $0xa0] sm:$0xff]
    %v2140 = vld [vmem:[%s2 + $0xa8] sm:$0xff]
    %v2141 = vld [vmem:[%s2 + $0xb0] sm:$0xff]
    %v2142 = vld [vmem:[%s2 + $0xb8] sm:$0xff]
    %v2143 = vld [vmem:[%s2 + $0xc0] sm:$0xff]
    %v2144 = vld [vmem:[%s2 + $0xc8] sm:$0xff]
    %v2145 = vld [vmem:[%s2 + $0xd0] sm:$0xff]
    %v2146 = vld [vmem:[%s2 + $0xd8] sm:$0xff]
    %v2147 = vld [vmem:[%s2 + $0xe0] sm:$0xff]
    %v2148 = vld [vmem:[%s2 + $0xe8] sm:$0xff]
    %v2149 = vld [vmem:[%s2 + $0xf0] sm:$0xff]
    %v2150 = vld [vmem:[%s2 + $0xf8] sm:$0xff]
    %v2151 = vld [vmem:[%s2 + $0x100] sm:$0xff]
    %v2152 = vld [vmem:[%s2 + $0x108] sm:$0xff]
    %v2153 = vld [vmem:[%s2 + $0x110] sm:$0xff]
    %v2154 = vld [vmem:[%s2 + $0x118] sm:$0xff]
    %v2155 = vld [vmem:[%s2 + $0x120] sm:$0xff]
    %v2156 = vld [vmem:[%s2 + $0x128] sm:$0xff]
    %v2157 = vld [vmem:[%s2 + $0x130] sm:$0xff]
    %v2158 = vld [vmem:[%s2 + $0x138] sm:$0xff]
    %v2159 = vld [vmem:[%s2 + $0x140] sm:$0xff]
    %v2160 = vld [vmem:[%s2 + $0x148] sm:$0xff]
    %v2161 = vld [vmem:[%s2 + $0x150] sm:$0xff]
    %v2162 = vld [vmem:[%s2 + $0x158] sm:$0xff]
    %v2163 = vld [vmem:[%s2 + $0x160] sm:$0xff]
    %v2164 = vld [vmem:[%s2 + $0x168] sm:$0xff]
    %v2165 = vld [vmem:[%s2 + $0x170] sm:$0xff]
    %v2166 = vld [vmem:[%s2 + $0x178] sm:$0xff]
    %v2167 = vld [vmem:[%s2 + $0x180] sm:$0xff]
    %v2168 = vld [vmem:[%s2 + $0x188] sm:$0xff]
    %v2169 = vld [vmem:[%s2 + $0x190] sm:$0xff]
    %v2170 = vld [vmem:[%s2 + $0x198] sm:$0xff]
    %v2171 = vld [vmem:[%s2 + $0x1a0] sm:$0xff]
    %v2172 = vld [vmem:[%s2 + $0x1a8] sm:$0xff]
    %v2173 = vld [vmem:[%s2 + $0x1b0] sm:$0xff]
    %v2174 = vld [vmem:[%s2 + $0x1b8] sm:$0xff]
    %v2175 = vld [vmem:[%s2 + $0x1c0] sm:$0xff]
    %v2176 = vld [vmem:[%s2 + $0x1c8] sm:$0xff]
    %v2177 = vld [vmem:[%s2 + $0x1d0] sm:$0xff]
    %v2178 = vld [vmem:[%s2 + $0x1d8] sm:$0xff]
    %v2179 = vld [vmem:[%s2 + $0x1e0] sm:$0xff]
    %v2180 = vld [vmem:[%s2 + $0x1e8] sm:$0xff]
    %v2181 = vld [vmem:[%s2 + $0x1f0] sm:$0xff]
    %v2182 = vld [vmem:[%s2 + $0x1f8] sm:$0xff]
    %2183 = vmatprep.subr.mxu0 %v2120
    %2184 = vmatpush1.msra.mxu0 %v2119
    %2185 = vmatprep.subr.mxu0 %v2124
    %2186 = vmatpush1.msra.mxu0 %v2123
    %2187 = vmatprep.subr.mxu0 %v2128
    %2188 = vmatpush1.msra.mxu0 %v2127
    %2189 = vmatprep.subr.mxu0 %v2132
    %2190 = vmatpush1.msra.mxu0 %v2131
    %2191 = vmatprep.subr.mxu0 %v2136
    %2192 = vmatpush1.msra.mxu0 %v2135
    %2193 = vmatprep.subr.mxu0 %v2140
    %2194 = vmatpush1.msra.mxu0 %v2139
    %2195 = vmatprep.subr.mxu0 %v2144
    %2196 = vmatpush1.msra.mxu0 %v2143
    %2197 = vmatprep.subr.mxu0 %v2148
    %2198 = vmatpush1.msra.mxu0 %v2147
    %2199 = vmatprep.subr.mxu0 %v2152
    %2200 = vmatpush1.msra.mxu0 %v2151
    %2201 = vmatprep.subr.mxu0 %v2156
    %2202 = vmatpush1.msra.mxu0 %v2155
    %2203 = vmatprep.subr.mxu0 %v2160
    %2204 = vmatpush1.msra.mxu0 %v2159
    %2205 = vmatprep.subr.mxu0 %v2164
    %2206 = vmatpush1.msra.mxu0 %v2163
    %2207 = vmatprep.subr.mxu0 %v2168
    %2208 = vmatpush1.msra.mxu0 %v2167
    %2209 = vmatprep.subr.mxu0 %v2172
    %2210 = vmatpush1.msra.mxu0 %v2171
    %2211 = vmatprep.subr.mxu0 %v2176
    %2212 = vmatpush1.msra.mxu0 %v2175
    %2213 = vmatprep.subr.mxu0 %v2180
    %2214 = vmatpush1.msra.mxu0 %v2179
    %2215 = vmatprep.subr.mxu0 0.0
    %2216 = vmatpush1.msra.mxu0 0.0
    %2217 = vmatprep.subr.mxu0 0.0
    %2218 = vmatpush1.msra.mxu0 0.0
    %2219 = vmatprep.subr.mxu0 0.0
    %2220 = vmatpush1.msra.mxu0 0.0
    %2221 = vmatprep.subr.mxu0 0.0
    %2222 = vmatpush1.msra.mxu0 0.0
    %2223 = vmatprep.subr.mxu0 0.0
    %2224 = vmatpush1.msra.mxu0 0.0
    %2225 = vmatprep.subr.mxu0 0.0
    %2226 = vmatpush1.msra.mxu0 0.0
    %2227 = vmatprep.subr.mxu0 0.0
    %2228 = vmatpush1.msra.mxu0 0.0
    %2229 = vmatprep.subr.mxu0 0.0
    %2230 = vmatpush1.msra.mxu0 0.0
    %2231 = vmatprep.subr.mxu0 0.0
    %2232 = vmatpush1.msra.mxu0 0.0
    %2233 = vmatprep.subr.mxu0 0.0
    %2234 = vmatpush1.msra.mxu0 0.0
    %2235 = vmatprep.subr.mxu0 0.0
    %2236 = vmatpush1.msra.mxu0 0.0
    %2237 = vmatprep.subr.mxu0 0.0
    %2238 = vmatpush1.msra.mxu0 0.0
    %2239 = vmatprep.subr.mxu0 0.0
    %2240 = vmatpush1.msra.mxu0 0.0
    %2241 = vmatprep.subr.mxu0 0.0
    %2242 = vmatpush1.msra.mxu0 0.0
    %2243 = vmatprep.subr.mxu0 0.0
    %2244 = vmatpush1.msra.mxu0 0.0
    %2245 = vmatprep.subr.mxu0 0.0
    %2246 = vmatpush1.msra.mxu0 0.0
    %2247 = vmatprep.mubr.f32.mxu0 0.0
    %2248 = vmatmul.mubr.f32.gmra.mrb[0].mxu0 %v2117
    %v2249 = vpop.f32.mrb[0].mxu0
    %v2250 = vadd.f32 0.0, %v2249
    %v2251 = vpop.f32.mrb[0].mxu0
    %v2252 = vadd.f32 0.0, %v2251
    %2253 = vdwg.mxu0
    %2254 = vmatprep.subr.mxu0 %v2122
    %2255 = vmatpush1.msra.mxu0 %v2121
    %2256 = vmatprep.subr.mxu0 %v2126
    %2257 = vmatpush1.msra.mxu0 %v2125
    %2258 = vmatprep.subr.mxu0 %v2130
    %2259 = vmatpush1.msra.mxu0 %v2129
    %2260 = vmatprep.subr.mxu0 %v2134
    %2261 = vmatpush1.msra.mxu0 %v2133
    %2262 = vmatprep.subr.mxu0 %v2138
    %2263 = vmatpush1.msra.mxu0 %v2137
    %2264 = vmatprep.subr.mxu0 %v2142
    %2265 = vmatpush1.msra.mxu0 %v2141
    %2266 = vmatprep.subr.mxu0 %v2146
    %2267 = vmatpush1.msra.mxu0 %v2145
    %2268 = vmatprep.subr.mxu0 %v2150
    %2269 = vmatpush1.msra.mxu0 %v2149
    %2270 = vmatprep.subr.mxu0 %v2154
    %2271 = vmatpush1.msra.mxu0 %v2153
    %2272 = vmatprep.subr.mxu0 %v2158
    %2273 = vmatpush1.msra.mxu0 %v2157
    %2274 = vmatprep.subr.mxu0 %v2162
    %2275 = vmatpush1.msra.mxu0 %v2161
    %2276 = vmatprep.subr.mxu0 %v2166
    %2277 = vmatpush1.msra.mxu0 %v2165
    %2278 = vmatprep.subr.mxu0 %v2170
    %2279 = vmatpush1.msra.mxu0 %v2169
    %2280 = vmatprep.subr.mxu0 %v2174
    %2281 = vmatpush1.msra.mxu0 %v2173
    %2282 = vmatprep.subr.mxu0 %v2178
    %2283 = vmatpush1.msra.mxu0 %v2177
    %2284 = vmatprep.subr.mxu0 %v2182
    %2285 = vmatpush1.msra.mxu0 %v2181
    %2286 = vmatprep.subr.mxu0 0.0
    %2287 = vmatpush1.msra.mxu0 0.0
    %2288 = vmatprep.subr.mxu0 0.0
    %2289 = vmatpush1.msra.mxu0 0.0
    %2290 = vmatprep.subr.mxu0 0.0
    %2291 = vmatpush1.msra.mxu0 0.0
    %2292 = vmatprep.subr.mxu0 0.0
    %2293 = vmatpush1.msra.mxu0 0.0
    %2294 = vmatprep.subr.mxu0 0.0
    %2295 = vmatpush1.msra.mxu0 0.0
    %2296 = vmatprep.subr.mxu0 0.0
    %2297 = vmatpush1.msra.mxu0 0.0
    %2298 = vmatprep.subr.mxu0 0.0
    %2299 = vmatpush1.msra.mxu0 0.0
    %2300 = vmatprep.subr.mxu0 0.0
    %2301 = vmatpush1.msra.mxu0 0.0
    %2302 = vmatprep.subr.mxu0 0.0
    %2303 = vmatpush1.msra.mxu0 0.0
    %2304 = vmatprep.subr.mxu0 0.0
    %2305 = vmatpush1.msra.mxu0 0.0
    %2306 = vmatprep.subr.mxu0 0.0
    %2307 = vmatpush1.msra.mxu0 0.0
    %2308 = vmatprep.subr.mxu0 0.0
    %2309 = vmatpush1.msra.mxu0 0.0
    %2310 = vmatprep.subr.mxu0 0.0
    %2311 = vmatpush1.msra.mxu0 0.0
    %2312 = vmatprep.subr.mxu0 0.0
    %2313 = vmatpush1.msra.mxu0 0.0
    %2314 = vmatprep.subr.mxu0 0.0
    %2315 = vmatpush1.msra.mxu0 0.0
    %2316 = vmatprep.subr.mxu0 0.0
    %2317 = vmatpush1.msra.mxu0 0.0
    %2318 = vmatprep.mubr.f32.mxu0 0.0
    %2319 = vmatmul.mubr.f32.gmra.mrb[0].mxu0 %v2117
    %v2320 = vpop.f32.mrb[0].mxu0
    %v2321 = vadd.f32 0.0, %v2320
    %v2322 = vpop.f32.mrb[0].mxu0
    %v2323 = vadd.f32 0.0, %v2322
    %2324 = vdwg.mxu0
    %v2325 = vadd.f32 %v2113, %v2250
    %v2326 = vadd.f32 %v2114, %v2252
    %v2327 = vadd.f32 %v2115, %v2321
    %v2328 = vadd.f32 %v2116, %v2323
    %v2329 = vxor.u32 %v2325, 2147483648
    %v2330 = vmul.f32 %v2329, 1.442695
    %v2331 = vpow.pop %v2330
    %v2332 = vadd.f32 %v2331, 1.0
    %v2333 = vrcp.pop %v2332
    %v2334 = vmul.f32 1.0, %v2333
    %v2335 = vxor.u32 %v2326, 2147483648
    %v2336 = vmul.f32 %v2335, 1.442695
    %v2337 = vpow.pop %v2336
    %v2338 = vadd.f32 %v2337, 1.0
    %v2339 = vrcp.pop %v2338
    %v2340 = vmul.f32 1.0, %v2339
    %v2341 = vtanh.pop %v2327
    %v2342 = vxor.u32 %v2328, 2147483648
    %v2343 = vmul.f32 %v2342, 1.442695
    %v2344 = vpow.pop %v2343
    %v2345 = vadd.f32 %v2344, 1.0
    %v2346 = vrcp.pop %v2345
    %v2347 = vmul.f32 1.0, %v2346
    %v2348 = vmul.f32 %v2340, %v2118
    %v2349 = vmul.f32 %v2334, %v2341
    %v2350 = vadd.f32 %v2348, %v2349
    %v2351 = vtanh.pop %v2350
    %v2352 = vmul.f32 %v2347, %v2351
    %2353 = vst [vmem:[#allocation3] sm:$0xff] %v2352
    %2354 = vst [vmem:[#allocation4] sm:$0xff] %v2350
    // Predicated region
    $region34: #{static_lstm_forward.3} parent=1 // pred_check
      %p2355 = pneg %p37
    $region35: #{static_lstm_forward.3} parent=1 // pred_check_branch
      %2357 = sbr.rel (%p2355) target = $region37
    $region36: #{static_lstm_forward.3} parent=1 // pred_region
      %v2358 = vld [vmem:[#allocation3] sm:$0xff]
      %v2359 = vld [vmem:[%s4] sm:$0xff]
      %v2360 = vld [vmem:[%s4 + $0x8] sm:$0xff]
      %v2361 = vld [vmem:[%s4 + $0x10] sm:$0xff]
      %v2362 = vld [vmem:[%s4 + $0x18] sm:$0xff]
      %v2363 = vld [vmem:[%s4 + $0x20] sm:$0xff]
      %v2364 = vld [vmem:[%s4 + $0x28] sm:$0xff]
      %v2365 = vld [vmem:[%s4 + $0x30] sm:$0xff]
      %v2366 = vld [vmem:[%s4 + $0x38] sm:$0xff]
      %v2367 = vld [vmem:[%s4 + $0x40] sm:$0xff]
      %v2368 = vld [vmem:[%s4 + $0x48] sm:$0xff]
      %v2369 = vld [vmem:[%s4 + $0x50] sm:$0xff]
      %v2370 = vld [vmem:[%s4 + $0x58] sm:$0xff]
      %v2371 = vld [vmem:[%s4 + $0x60] sm:$0xff]
      %v2372 = vld [vmem:[%s4 + $0x68] sm:$0xff]
      %v2373 = vld [vmem:[%s4 + $0x70] sm:$0xff]
      %v2374 = vld [vmem:[%s4 + $0x78] sm:$0xff]
      %v2375 = vld [vmem:[%s5] sm:$0x1]
      %v2377 = vlaneseq
      %v2378 = vshrl.u32 %v2377, 7
      %v2379 = vsub.s32 0, %v2378
      %v2380 = vrot.slane %v2375, %v2379
      %2382 = vmatprep.subr.mxu0 0.0
      %2383 = vmatpush1.msra.mxu0 %v2359
      %2384 = vmatprep.subr.mxu0 0.0
      %2385 = vmatpush1.msra.mxu0 %v2360
      %2386 = vmatprep.subr.mxu0 0.0
      %2387 = vmatpush1.msra.mxu0 %v2361
      %2388 = vmatprep.subr.mxu0 0.0
      %2389 = vmatpush1.msra.mxu0 %v2362
      %2390 = vmatprep.subr.mxu0 0.0
      %2391 = vmatpush1.msra.mxu0 %v2363
      %2392 = vmatprep.subr.mxu0 0.0
      %2393 = vmatpush1.msra.mxu0 %v2364
      %2394 = vmatprep.subr.mxu0 0.0
      %2395 = vmatpush1.msra.mxu0 %v2365
      %2396 = vmatprep.subr.mxu0 0.0
      %2397 = vmatpush1.msra.mxu0 %v2366
      %2398 = vmatprep.subr.mxu0 0.0
      %2399 = vmatpush1.msra.mxu0 %v2367
      %2400 = vmatprep.subr.mxu0 0.0
      %2401 = vmatpush1.msra.mxu0 %v2368
      %2402 = vmatprep.subr.mxu0 0.0
      %2403 = vmatpush1.msra.mxu0 %v2369
      %2404 = vmatprep.subr.mxu0 0.0
      %2405 = vmatpush1.msra.mxu0 %v2370
      %2406 = vmatprep.subr.mxu0 0.0
      %2407 = vmatpush1.msra.mxu0 %v2371
      %2408 = vmatprep.subr.mxu0 0.0
      %2409 = vmatpush1.msra.mxu0 %v2372
      %2410 = vmatprep.subr.mxu0 0.0
      %2411 = vmatpush1.msra.mxu0 %v2373
      %2412 = vmatprep.subr.mxu0 0.0
      %2413 = vmatpush1.msra.mxu0 %v2374
      %2414 = vmatprep.subr.mxu0 0.0
      %2415 = vmatpush1.msra.mxu0 0.0
      %2416 = vmatprep.subr.mxu0 0.0
      %2417 = vmatpush1.msra.mxu0 0.0
      %2418 = vmatprep.subr.mxu0 0.0
      %2419 = vmatpush1.msra.mxu0 0.0
      %2420 = vmatprep.subr.mxu0 0.0
      %2421 = vmatpush1.msra.mxu0 0.0
      %2422 = vmatprep.subr.mxu0 0.0
      %2423 = vmatpush1.msra.mxu0 0.0
      %2424 = vmatprep.subr.mxu0 0.0
      %2425 = vmatpush1.msra.mxu0 0.0
      %2426 = vmatprep.subr.mxu0 0.0
      %2427 = vmatpush1.msra.mxu0 0.0
      %2428 = vmatprep.subr.mxu0 0.0
      %2429 = vmatpush1.msra.mxu0 0.0
      %2430 = vmatprep.subr.mxu0 0.0
      %2431 = vmatpush1.msra.mxu0 0.0
      %2432 = vmatprep.subr.mxu0 0.0
      %2433 = vmatpush1.msra.mxu0 0.0
      %2434 = vmatprep.subr.mxu0 0.0
      %2435 = vmatpush1.msra.mxu0 0.0
      %2436 = vmatprep.subr.mxu0 0.0
      %2437 = vmatpush1.msra.mxu0 0.0
      %2438 = vmatprep.subr.mxu0 0.0
      %2439 = vmatpush1.msra.mxu0 0.0
      %2440 = vmatprep.subr.mxu0 0.0
      %2441 = vmatpush1.msra.mxu0 0.0
      %2442 = vmatprep.subr.mxu0 0.0
      %2443 = vmatpush1.msra.mxu0 0.0
      %2444 = vmatprep.subr.mxu0 0.0
      %2445 = vmatpush1.msra.mxu0 0.0
      %2446 = vmatprep.mubr.f32.mxu0 0.0
      %2447 = vmatmul.mubr.f32.gmra.mrb[0].mxu0 %v2358
      %v2448 = vpop.f32.mrb[0].mxu0
      %v2449 = vadd.f32 %v2380, %v2448
      %v2450 = vpop.f32.mrb[0].mxu0
      %2451 = vdwg.mxu0
      %2452 = vst [vmem:[%s6] sm:$0xff] %v2449
    $region37: #{static_lstm_forward.3} parent=1 // pred_fallthru
      _
    // Predicated region
    $region38: #{static_lstm_forward.3} parent=1 // pred_check
      _
    $region39: #{static_lstm_forward.3} parent=1 // pred_check_branch
      %2454 = sbr.rel (0) target = $region41
    $region40: #{static_lstm_forward.3} parent=1 // pred_region
      _
    $region41: #{static_lstm_forward.3} parent=1 // pred_fallthru
      _
    // Predicated region
    $region42: #{static_lstm_forward.3} parent=1 // pred_check
      _
    $region43: #{static_lstm_forward.3} parent=1 // pred_check_branch
      %2456 = sbr.rel (0) target = $region45
    $region44: #{static_lstm_forward.3} parent=1 // pred_region
      _
    $region45: #{static_lstm_forward.3} parent=1 // pred_fallthru
      _
    %2457 = vsyncpa [#allocation6], 1

</llo_original>
